<compile_context>
chip_gen: v6e
topology: v6e:2x2x1
jax: 0.10.0
libtpu: 0.0.40
codegen_flags: <defaults>
</compile_context>

<pallas_src>
import functools
import numpy as np

import jax
import jax.numpy as jnp
from jax.experimental import pallas as pl
from jax.experimental.pallas import tpu as pltpu

EPS = 1e-5


# ----------------------------------------------------------------------------
# Pallas kernels
# ----------------------------------------------------------------------------
def _conv_fused_kernel(x_ref, w_ref, b_ref, o_ref, *, norm, relu, tanh):
    """Per-batch fused conv-as-matmul + bias (+ InstanceNorm)(+ ReLU)(+ tanh).

    x_ref: (1, HW, K) bf16 im2col patches for one batch element
    w_ref: (K, N)     bf16 matmul-layout weight
    b_ref: (1, N)     f32  bias
    o_ref: (1, HW, N) f32  output
    """
    acc = jnp.dot(x_ref[0], w_ref[...], preferred_element_type=jnp.float32)
    acc = acc + b_ref[...]
    if norm:
        mean = jnp.mean(acc, axis=0, keepdims=True)
        xc = acc - mean
        var = jnp.mean(xc * xc, axis=0, keepdims=True)
        acc = xc * jax.lax.rsqrt(var + EPS)
    if relu:
        acc = jnp.maximum(acc, 0.0)
    if tanh:
        acc = jnp.tanh(acc)
    o_ref[0] = acc


def _resblock_kernel(x_ref, s_ref, w1_ref, b1_ref, w2_ref, b2_ref, o_ref):
    """Fully fused ResnetBlock for one batch element:
        out = x + IN(conv2(reflpad(relu(IN(conv1(reflpad(x)))))))

    x_ref : (1, HW, C)   f32   input activation
    s_ref : (9*HW, HW)   bf16  one-hot reflect-pad gather matrix (all 9 taps)
    w*_ref: (9, C, C)    bf16  per-tap conv weights (InC, OutC)
    b*_ref: (1, C)       f32   biases
    o_ref : (1, HW, C)   f32   output
    """
    _, HW, C = x_ref.shape
    xf = x_ref[0]                     # (HW, C) f32
    s = s_ref[...]                    # (9*HW, HW) bf16

    def conv3x3(h_f32, w_ref, b_ref):
        h_bf = h_f32.astype(jnp.bfloat16)
        # Gather all 9 shifted (reflect-padded) copies with one MXU matmul.
        gathered = jnp.dot(s, h_bf, preferred_element_type=jnp.float32)
        gathered = gathered.astype(jnp.bfloat16)          # (9*HW, C), exact
        acc = None
        for t in range(9):
            g_t = gathered[t * HW:(t + 1) * HW]           # (HW, C)
            d = jnp.dot(g_t, w_ref[t], preferred_element_type=jnp.float32)
            acc = d if acc is None else acc + d
        return acc + b_ref[...]

    def inorm(y):
        mean = jnp.mean(y, axis=0, keepdims=True)
        yc = y - mean
        var = jnp.mean(yc * yc, axis=0, keepdims=True)
        return yc * jax.lax.rsqrt(var + EPS)

    h = jnp.maximum(inorm(conv3x3(xf, w1_ref, b1_ref)), 0.0)
    z = inorm(conv3x3(h, w2_ref, b2_ref))
    o_ref[0] = xf + z


# ----------------------------------------------------------------------------
# Pallas wrappers
# ----------------------------------------------------------------------------
def _compiler_params():
    return pltpu.CompilerParams(dimension_semantics=("parallel",))


def conv_fused(x, w_mat, b_row, k, stride, pad, pad_mode,
               norm=True, relu=True, tanh=False):
    """x: (B, H, W, C) f32 -> (B, OH, OW, N) f32 via im2col + fused Pallas kernel."""
    patches, (B, OH, OW) = im2col(x, k, k, stride, pad, pad_mode)  # (B, OHW, K) bf16
    OHW = OH * OW
    K, N = w_mat.shape
    kern = functools.partial(_conv_fused_kernel, norm=norm, relu=relu, tanh=tanh)
    out = pl.pallas_call(
        kern,
        out_shape=jax.ShapeDtypeStruct((B, OHW, N), jnp.float32),
        grid=(B,),
        in_specs=[
            pl.BlockSpec((1, OHW, K), lambda b: (b, 0, 0)),
            pl.BlockSpec((K, N), lambda b: (0, 0)),
            pl.BlockSpec((1, N), lambda b: (0, 0)),
        ],
        out_specs=pl.BlockSpec((1, OHW, N), lambda b: (b, 0, 0)),
        compiler_params=_compiler_params(),
    )(patches, w_mat, b_row)
    return out.reshape(B, OH, OW, N)


def resnet_block_fused(x, gather_mat, w1, b1, w2, b2):
    """One pallas_call for a whole ResnetBlock. x: (B, H, W, C) f32."""
    B, H, W, C = x.shape
    HW = H * W
    xf = x.reshape(B, HW, C)
    out = pl.pallas_call(
        _resblock_kernel,
        out_shape=jax.ShapeDtypeStruct((B, HW, C), jnp.float32),
        grid=(B,),
        in_specs=[
            pl.BlockSpec((1, HW, C), lambda b: (b, 0, 0)),
            pl.BlockSpec((9 * HW, HW), lambda b: (0, 0)),
            pl.BlockSpec((9, C, C), lambda b: (0, 0, 0)),
            pl.BlockSpec((1, C), lambda b: (0, 0)),
            pl.BlockSpec((9, C, C), lambda b: (0, 0, 0)),
            pl.BlockSpec((1, C), lambda b: (0, 0)),
        ],
        out_specs=pl.BlockSpec((1, HW, C), lambda b: (b, 0, 0)),
        compiler_params=_compiler_params(),
    )(xf, gather_mat, w1, b1, w2, b2)
    return out.reshape(B, H, W, C)


# ----------------------------------------------------------------------------
# Plain-JAX glue: im2col, weight prep, reflect-gather matrix, layer composition
# ----------------------------------------------------------------------------
def im2col(x, kh, kw, stride, pad, pad_mode):
    """x: (B, H, W, C) -> patches (B, OH*OW, kh*kw*C) in bf16, plus (B, OH, OW)."""
    B, H, W, C = x.shape
    x = x.astype(jnp.bfloat16)
    if pad > 0:
        x = jnp.pad(x, ((0, 0), (pad, pad), (pad, pad), (0, 0)), mode=pad_mode)
    OH = (H + 2 * pad - kh) // stride + 1
    OW = (W + 2 * pad - kw) // stride + 1
    cols = []
    for i in range(kh):
        for j in range(kw):
            cols.append(x[:, i:i + stride * OH:stride, j:j + stride * OW:stride, :])
    patches = jnp.stack(cols, axis=3)  # (B, OH, OW, kh*kw, C)
    return patches.reshape(B, OH * OW, kh * kw * C), (B, OH, OW)


def conv_w_to_mat(w):
    """PyTorch conv weight (OutC, InC, KH, KW) -> bf16 (KH*KW*InC, OutC)."""
    OutC, InC, KH, KW = w.shape
    return jnp.transpose(w, (2, 3, 1, 0)).reshape(KH * KW * InC, OutC).astype(jnp.bfloat16)


def conv_w_to_taps(w):
    """PyTorch conv weight (OutC, InC, 3, 3) -> bf16 (9, InC, OutC), tap = ky*3+kx."""
    OutC, InC, KH, KW = w.shape
    return jnp.transpose(w, (2, 3, 1, 0)).reshape(KH * KW, InC, OutC).astype(jnp.bfloat16)


def build_reflect_gather(H, W):
    """One-hot gather matrix for a 3x3 reflect-padded conv on an HxW grid.

    Returns (9*H*W, H*W) f32; tap order ky-major (matching conv_w_to_taps)."""
    def refl(i, n):
        if i < 0:
            return -i
        if i >= n:
            return 2 * n - 2 - i
        return i

    S = np.zeros((9, H * W, H * W), np.float32)
    t = 0
    for dy in (-1, 0, 1):
        for dx in (-1, 0, 1):
            for h in range(H):
                for w in range(W):
                    rh, rw = refl(h + dy, H), refl(w + dx, W)
                    S[t, h * W + w, rh * W + rw] = 1.0
            t += 1
    return S.reshape(9 * H * W, H * W)


def conv_transpose_fused(x, w_mat, b_row):
    """ConvTranspose2d(k=3, s=2, p=1, output_padding=1) + IN + ReLU.

    Implemented as zero-dilation + stride-1 conv with the flipped/transposed
    weight (pre-converted in prepare_params)."""
    # TODO(synk): subpixel (stride-phase) decomposition would avoid the 75%
    # wasted MACs on the zero-dilated input; negligible at these sizes.
    B, H, W, C = x.shape
    xd = jnp.zeros((B, 2 * H, 2 * W, C), x.dtype)
    xd = xd.at[:, 0:2 * H:2, 0:2 * W:2, :].set(x)
    return conv_fused(xd, w_mat, b_row, k=3, stride=1, pad=1, pad_mode='constant',
                      norm=True, relu=True)


def prepare_params(p, n_blocks):
    """One-time conversion of PyTorch-layout params to matmul layouts (bf16 weights)."""
    q = {}
    q['c0_w'] = conv_w_to_mat(p['c0_w'])
    q['c0_b'] = p['c0_b'].reshape(1, -1).astype(jnp.float32)
    for i in range(2):
        q[f'd{i}_w'] = conv_w_to_mat(p[f'd{i}_w'])
        q[f'd{i}_b'] = p[f'd{i}_b'].reshape(1, -1).astype(jnp.float32)
    for i in range(n_blocks):
        q[f'r{i}_w1'] = conv_w_to_taps(p[f'r{i}_w1'])
        q[f'r{i}_b1'] = p[f'r{i}_b1'].reshape(1, -1).astype(jnp.float32)
        q[f'r{i}_w2'] = conv_w_to_taps(p[f'r{i}_w2'])
        q[f'r{i}_b2'] = p[f'r{i}_b2'].reshape(1, -1).astype(jnp.float32)
    for i in range(2):
        # ConvTranspose weight (InC, OutC, KH, KW) -> equivalent conv weight
        w_conv = jnp.transpose(p[f'u{i}_w'], (1, 0, 2, 3))[:, :, ::-1, ::-1]
        q[f'u{i}_w'] = conv_w_to_mat(w_conv)
        q[f'u{i}_b'] = p[f'u{i}_b'].reshape(1, -1).astype(jnp.float32)
    q['cf_w'] = conv_w_to_mat(p['cf_w'])
    q['cf_b'] = p['cf_b'].reshape(1, -1).astype(jnp.float32)
    return q


def resnet_forward(prepared, data_nchw, style, gather_mat, n_blocks):
    # NCHW -> NHWC
    x = jnp.transpose(data_nchw, (0, 2, 3, 1)).astype(jnp.float32)
    B = x.shape[0]
    style_c = style.reshape(B, -1).astype(jnp.float32)  # (B, extra)

    def cat_style(h):
        b, H, W, _ = h.shape
        s = jnp.broadcast_to(style_c[:, None, None, :], (b, H, W, style_c.shape[-1]))
        return jnp.concatenate([h, s], axis=-1)

    # initial 7x7 (tagged -> style concat) + IN + ReLU
    x = cat_style(x)
    x = conv_fused(x, prepared['c0_w'], prepared['c0_b'], k=7, stride=1, pad=3,
                   pad_mode='reflect', norm=True, relu=True)
    # two downsampling convs (tagged)
    for i in range(2):
        x = cat_style(x)
        x = conv_fused(x, prepared[f'd{i}_w'], prepared[f'd{i}_b'], k=3, stride=2,
                       pad=1, pad_mode='constant', norm=True, relu=True)
    # resnet blocks (not tagged) — one fused pallas_call per block
    for i in range(n_blocks):
        x = resnet_block_fused(x, gather_mat,
                               prepared[f'r{i}_w1'], prepared[f'r{i}_b1'],
                               prepared[f'r{i}_w2'], prepared[f'r{i}_b2'])
    # two upsampling transposed convs (tagged)
    for i in range(2):
        x = cat_style(x)
        x = conv_transpose_fused(x, prepared[f'u{i}_w'], prepared[f'u{i}_b'])
    # final 7x7 + tanh (not tagged, no norm)
    x = conv_fused(x, prepared['cf_w'], prepared['cf_b'], k=7, stride=1, pad=3,
                   pad_mode='reflect', norm=False, relu=False, tanh=True)
    return jnp.transpose(x, (0, 3, 1, 2))  # back to NCHW


# ----------------------------------------------------------------------------
# Deterministic parameter initialization (shapes from Resnet.__init__)
# ----------------------------------------------------------------------------
def init_params(key, in_ch, out_ch, extra, ngf, n_blocks):
    keys = iter(jax.random.split(key, 64))
    p = {}

    def conv_w(oc, ic, k):
        return jax.random.normal(next(keys), (oc, ic, k, k), jnp.float32) * 0.1

    def bias(oc):
        return jax.random.normal(next(keys), (oc,), jnp.float32) * 0.01

    # model_0: ReflectionPad(3) + Conv(in+extra -> ngf, 7) + IN + ReLU
    p['c0_w'] = conv_w(ngf, in_ch + extra, 7)
    p['c0_b'] = bias(ngf)
    # downsampling
    for i in range(2):
        mult = 2 ** i
        p[f'd{i}_w'] = conv_w(ngf * mult * 2, ngf * mult + extra, 3)
        p[f'd{i}_b'] = bias(ngf * mult * 2)
    # resnet blocks at ngf*4
    dim = ngf * 4
    for i in range(n_blocks):
        p[f'r{i}_w1'] = conv_w(dim, dim, 3)
        p[f'r{i}_b1'] = bias(dim)
        p[f'r{i}_w2'] = conv_w(dim, dim, 3)
        p[f'r{i}_b2'] = bias(dim)
    # upsampling: ConvTranspose weight is (InC, OutC, KH, KW)
    for i in range(2):
        mult = 2 ** (2 - i)
        p[f'u{i}_w'] = jax.random.normal(
            next(keys), (ngf * mult + extra, ngf * mult // 2, 3, 3), jnp.float32) * 0.1
        p[f'u{i}_b'] = bias(ngf * mult // 2)
    # final conv (always has bias)
    p['cf_w'] = conv_w(out_ch, ngf, 7)
    p['cf_b'] = bias(out_ch)
    return p


# ----------------------------------------------------------------------------
if __name__ == "__main__":
    in_channels, out_channels, extra_channels = 4, 3, 4
    ngf, n_blocks = 32, 6
    B, H, W = 2, 16, 16

    root = jax.random.PRNGKey(0)
    k_params, k_data, k_style = jax.random.split(root, 3)

    params = init_params(k_params, in_channels, out_channels, extra_channels, ngf, n_blocks)
    prepared = prepare_params(params, n_blocks)          # one-time layout conversion
    # gather matrix for the resnet-block spatial size (after two /2 downsamples)
    gather_mat = jnp.asarray(build_reflect_gather(H // 4, W // 4), dtype=jnp.bfloat16)

    data = jax.random.normal(k_data, (B, in_channels, H, W), jnp.float32)
    style = jax.random.normal(k_style, (B, 1, extra_channels), jnp.float32)

    fwd = jax.jit(functools.partial(resnet_forward, n_blocks=n_blocks))
    out = fwd(prepared, data, style, gather_mat)
    out = jax.block_until_ready(out)

    assert out.shape == (B, out_channels, H, W), out.shape
    assert bool(jnp.all(jnp.isfinite(out)))
    # tanh output range sanity
    assert bool(jnp.all(jnp.abs(out) <= 1.0 + 1e-6))
    print("KERNEL_OK")
</pallas_src>

<mosaic_0001>
module attributes {stable_mosaic.version = 11 : i64} {
  func.func @_conv_fused_kernel(%arg0: i32, %arg1: memref<1x256x392xbf16, #tpu.memory_space<vmem>>, %arg2: memref<392x32xbf16, #tpu.memory_space<vmem>>, %arg3: memref<1x32xf32, #tpu.memory_space<vmem>>, %arg4: memref<1x256x32xf32, #tpu.memory_space<vmem>>) attributes {dimension_semantics = [#tpu.dimension_semantics<parallel>], iteration_bounds = array<i64: 2>, scalar_prefetch = 0 : i64, scratch_operands = 0 : i64, tpu.core_type = #tpu.core_type<tc>, window_params = [{transform_indices = @transform_0, window_bounds = array<i64: 1, 256, 392>}, {pipeline_mode = #tpu.pipeline_mode<synchronous>, transform_indices = @transform_1, window_bounds = array<i64: 392, 32>}, {pipeline_mode = #tpu.pipeline_mode<synchronous>, transform_indices = @transform_2, window_bounds = array<i64: 1, 32>}, {transform_indices = @transform_3, window_bounds = array<i64: 1, 256, 32>}]} {
    %c0 = arith.constant 0 : index
    %c0_0 = arith.constant 0 : index
    %c0_1 = arith.constant 0 : index
    %0 = vector.load %arg1[%c0, %c0_0, %c0_1] : memref<1x256x392xbf16, #tpu.memory_space<vmem>>, vector<1x256x392xbf16>
    %1 = vector.shape_cast %0 : vector<1x256x392xbf16> to vector<256x392xbf16>
    %c0_2 = arith.constant 0 : index
    %c0_3 = arith.constant 0 : index
    %2 = vector.load %arg2[%c0_2, %c0_3] : memref<392x32xbf16, #tpu.memory_space<vmem>>, vector<392x32xbf16>
    %cst = arith.constant dense<0.000000e+00> : vector<256x32xf32>
    %3 = tpu.matmul %1, %2, %cst {dimension_numbers = #tpu.dot_dimension_numbers<[1], [0], [0], [1], [0, 0, 1, 1], [], []>} : vector<256x392xbf16>, vector<392x32xbf16>, vector<256x32xf32> -> vector<256x32xf32>
    %c0_4 = arith.constant 0 : index
    %c0_5 = arith.constant 0 : index
    %4 = vector.load %arg3[%c0_4, %c0_5] : memref<1x32xf32, #tpu.memory_space<vmem>>, vector<1x32xf32>
    %5 = vector.broadcast %4 : vector<1x32xf32> to vector<256x32xf32>
    %6 = arith.addf %3, %5 : vector<256x32xf32>
    %cst_6 = arith.constant dense<0.000000e+00> : vector<32xf32>
    %7 = vector.multi_reduction <add>, %6, %cst_6 [0] : vector<256x32xf32> to vector<32xf32>
    %8 = vector.shape_cast %7 : vector<32xf32> to vector<1x32xf32>
    %cst_7 = arith.constant 2.560000e+02 : f32
    %9 = vector.broadcast %cst_7 : f32 to vector<1x32xf32>
    %10 = arith.divf %8, %9 : vector<1x32xf32>
    %11 = vector.broadcast %10 : vector<1x32xf32> to vector<256x32xf32>
    %12 = arith.subf %6, %11 : vector<256x32xf32>
    %13 = arith.mulf %12, %12 : vector<256x32xf32>
    %cst_8 = arith.constant dense<0.000000e+00> : vector<32xf32>
    %14 = vector.multi_reduction <add>, %13, %cst_8 [0] : vector<256x32xf32> to vector<32xf32>
    %15 = vector.shape_cast %14 : vector<32xf32> to vector<1x32xf32>
    %cst_9 = arith.constant 2.560000e+02 : f32
    %16 = vector.broadcast %cst_9 : f32 to vector<1x32xf32>
    %17 = arith.divf %15, %16 : vector<1x32xf32>
    %cst_10 = arith.constant 9.99999974E-6 : f32
    %18 = vector.broadcast %cst_10 : f32 to vector<1x32xf32>
    %19 = arith.addf %17, %18 : vector<1x32xf32>
    %20 = math.rsqrt %19 : vector<1x32xf32>
    %21 = vector.broadcast %20 : vector<1x32xf32> to vector<256x32xf32>
    %22 = arith.mulf %12, %21 : vector<256x32xf32>
    %cst_11 = arith.constant 0.000000e+00 : f32
    %23 = vector.broadcast %cst_11 : f32 to vector<256x32xf32>
    %24 = arith.maximumf %22, %23 : vector<256x32xf32>
    %c0_12 = arith.constant 0 : index
    %c0_13 = arith.constant 0 : index
    %c0_14 = arith.constant 0 : index
    %25 = vector.load %arg4[%c0_12, %c0_13, %c0_14] : memref<1x256x32xf32, #tpu.memory_space<vmem>>, vector<1x256x32xf32>
    %26 = vector.shape_cast %25 : vector<1x256x32xf32> to vector<256x32xf32>
    %27 = vector.shape_cast %24 : vector<256x32xf32> to vector<1x256x32xf32>
    tpu.vector_store %arg4[%c0_12, %c0_13, %c0_14], %27 {strides = array<i32>} : memref<1x256x32xf32, #tpu.memory_space<vmem>>, vector<1x256x32xf32>,
    return
  }
  func.func @transform_0(%arg0: i32) -> (i32, i32, i32) {
    %c0_i32 = arith.constant 0 : i32
    %c0_i32_0 = arith.constant 0 : i32
    %c0_i32_1 = arith.constant 0 : i32
    return %arg0, %c0_i32, %c0_i32_0 : i32, i32, i32
  }
  func.func @transform_1(%arg0: i32) -> (i32, i32) {
    %c0_i32 = arith.constant 0 : i32
    %c0_i32_0 = arith.constant 0 : i32
    %c0_i32_1 = arith.constant 0 : i32
    return %c0_i32, %c0_i32_0 : i32, i32
  }
  func.func @transform_2(%arg0: i32) -> (i32, i32) {
    %c0_i32 = arith.constant 0 : i32
    %c0_i32_0 = arith.constant 0 : i32
    %c0_i32_1 = arith.constant 0 : i32
    return %c0_i32, %c0_i32_0 : i32, i32
  }
  func.func @transform_3(%arg0: i32) -> (i32, i32, i32) {
    %c0_i32 = arith.constant 0 : i32
    %c0_i32_0 = arith.constant 0 : i32
    %c0_i32_1 = arith.constant 0 : i32
    return %arg0, %c0_i32, %c0_i32_0 : i32, i32, i32
  }
}

module attributes {stable_mosaic.version = 11 : i64} {
  func.func @_conv_fused_kernel(%arg0: i32, %arg1: memref<1x64x324xbf16, #tpu.memory_space<vmem>>, %arg2: memref<324x64xbf16, #tpu.memory_space<vmem>>, %arg3: memref<1x64xf32, #tpu.memory_space<vmem>>, %arg4: memref<1x64x64xf32, #tpu.memory_space<vmem>>) attributes {dimension_semantics = [#tpu.dimension_semantics<parallel>], iteration_bounds = array<i64: 2>, scalar_prefetch = 0 : i64, scratch_operands = 0 : i64, tpu.core_type = #tpu.core_type<tc>, window_params = [{transform_indices = @transform_0, window_bounds = array<i64: 1, 64, 324>}, {pipeline_mode = #tpu.pipeline_mode<synchronous>, transform_indices = @transform_1, window_bounds = array<i64: 324, 64>}, {pipeline_mode = #tpu.pipeline_mode<synchronous>, transform_indices = @transform_2, window_bounds = array<i64: 1, 64>}, {transform_indices = @transform_3, window_bounds = array<i64: 1, 64, 64>}]} {
    %c0 = arith.constant 0 : index
    %c0_0 = arith.constant 0 : index
    %c0_1 = arith.constant 0 : index
    %0 = vector.load %arg1[%c0, %c0_0, %c0_1] : memref<1x64x324xbf16, #tpu.memory_space<vmem>>, vector<1x64x324xbf16>
    %1 = vector.shape_cast %0 : vector<1x64x324xbf16> to vector<64x324xbf16>
    %c0_2 = arith.constant 0 : index
    %c0_3 = arith.constant 0 : index
    %2 = vector.load %arg2[%c0_2, %c0_3] : memref<324x64xbf16, #tpu.memory_space<vmem>>, vector<324x64xbf16>
    %cst = arith.constant dense<0.000000e+00> : vector<64x64xf32>
    %3 = tpu.matmul %1, %2, %cst {dimension_numbers = #tpu.dot_dimension_numbers<[1], [0], [0], [1], [0, 0, 1, 1], [], []>} : vector<64x324xbf16>, vector<324x64xbf16>, vector<64x64xf32> -> vector<64x64xf32>
    %c0_4 = arith.constant 0 : index
    %c0_5 = arith.constant 0 : index
    %4 = vector.load %arg3[%c0_4, %c0_5] : memref<1x64xf32, #tpu.memory_space<vmem>>, vector<1x64xf32>
    %5 = vector.broadcast %4 : vector<1x64xf32> to vector<64x64xf32>
    %6 = arith.addf %3, %5 : vector<64x64xf32>
    %cst_6 = arith.constant dense<0.000000e+00> : vector<64xf32>
    %7 = vector.multi_reduction <add>, %6, %cst_6 [0] : vector<64x64xf32> to vector<64xf32>
    %8 = vector.shape_cast %7 : vector<64xf32> to vector<1x64xf32>
    %cst_7 = arith.constant 6.400000e+01 : f32
    %9 = vector.broadcast %cst_7 : f32 to vector<1x64xf32>
    %10 = arith.divf %8, %9 : vector<1x64xf32>
    %11 = vector.broadcast %10 : vector<1x64xf32> to vector<64x64xf32>
    %12 = arith.subf %6, %11 : vector<64x64xf32>
    %13 = arith.mulf %12, %12 : vector<64x64xf32>
    %cst_8 = arith.constant dense<0.000000e+00> : vector<64xf32>
    %14 = vector.multi_reduction <add>, %13, %cst_8 [0] : vector<64x64xf32> to vector<64xf32>
    %15 = vector.shape_cast %14 : vector<64xf32> to vector<1x64xf32>
    %cst_9 = arith.constant 6.400000e+01 : f32
    %16 = vector.broadcast %cst_9 : f32 to vector<1x64xf32>
    %17 = arith.divf %15, %16 : vector<1x64xf32>
    %cst_10 = arith.constant 9.99999974E-6 : f32
    %18 = vector.broadcast %cst_10 : f32 to vector<1x64xf32>
    %19 = arith.addf %17, %18 : vector<1x64xf32>
    %20 = math.rsqrt %19 : vector<1x64xf32>
    %21 = vector.broadcast %20 : vector<1x64xf32> to vector<64x64xf32>
    %22 = arith.mulf %12, %21 : vector<64x64xf32>
    %cst_11 = arith.constant 0.000000e+00 : f32
    %23 = vector.broadcast %cst_11 : f32 to vector<64x64xf32>
    %24 = arith.maximumf %22, %23 : vector<64x64xf32>
    %c0_12 = arith.constant 0 : index
    %c0_13 = arith.constant 0 : index
    %c0_14 = arith.constant 0 : index
    %25 = vector.load %arg4[%c0_12, %c0_13, %c0_14] : memref<1x64x64xf32, #tpu.memory_space<vmem>>, vector<1x64x64xf32>
    %26 = vector.shape_cast %25 : vector<1x64x64xf32> to vector<64x64xf32>
    %27 = vector.shape_cast %24 : vector<64x64xf32> to vector<1x64x64xf32>
    tpu.vector_store %arg4[%c0_12, %c0_13, %c0_14], %27 {strides = array<i32>} : memref<1x64x64xf32, #tpu.memory_space<vmem>>, vector<1x64x64xf32>,
    return
  }
  func.func @transform_0(%arg0: i32) -> (i32, i32, i32) {
    %c0_i32 = arith.constant 0 : i32
    %c0_i32_0 = arith.constant 0 : i32
    %c0_i32_1 = arith.constant 0 : i32
    return %arg0, %c0_i32, %c0_i32_0 : i32, i32, i32
  }
  func.func @transform_1(%arg0: i32) -> (i32, i32) {
    %c0_i32 = arith.constant 0 : i32
    %c0_i32_0 = arith.constant 0 : i32
    %c0_i32_1 = arith.constant 0 : i32
    return %c0_i32, %c0_i32_0 : i32, i32
  }
  func.func @transform_2(%arg0: i32) -> (i32, i32) {
    %c0_i32 = arith.constant 0 : i32
    %c0_i32_0 = arith.constant 0 : i32
    %c0_i32_1 = arith.constant 0 : i32
    return %c0_i32, %c0_i32_0 : i32, i32
  }
  func.func @transform_3(%arg0: i32) -> (i32, i32, i32) {
    %c0_i32 = arith.constant 0 : i32
    %c0_i32_0 = arith.constant 0 : i32
    %c0_i32_1 = arith.constant 0 : i32
    return %arg0, %c0_i32, %c0_i32_0 : i32, i32, i32
  }
}

module attributes {stable_mosaic.version = 11 : i64} {
  func.func @_resblock_kernel(%arg0: i32, %arg1: memref<1x16x128xf32, #tpu.memory_space<vmem>>, %arg2: memref<144x16xbf16, #tpu.memory_space<vmem>>, %arg3: memref<9x128x128xbf16, #tpu.memory_space<vmem>>, %arg4: memref<1x128xf32, #tpu.memory_space<vmem>>, %arg5: memref<9x128x128xbf16, #tpu.memory_space<vmem>>, %arg6: memref<1x128xf32, #tpu.memory_space<vmem>>, %arg7: memref<1x16x128xf32, #tpu.memory_space<vmem>>) attributes {dimension_semantics = [#tpu.dimension_semantics<parallel>], iteration_bounds = array<i64: 2>, scalar_prefetch = 0 : i64, scratch_operands = 0 : i64, tpu.core_type = #tpu.core_type<tc>, window_params = [{transform_indices = @transform_0, window_bounds = array<i64: 1, 16, 128>}, {pipeline_mode = #tpu.pipeline_mode<synchronous>, transform_indices = @transform_1, window_bounds = array<i64: 144, 16>}, {pipeline_mode = #tpu.pipeline_mode<synchronous>, transform_indices = @transform_2, window_bounds = array<i64: 9, 128, 128>}, {pipeline_mode = #tpu.pipeline_mode<synchronous>, transform_indices = @transform_3, window_bounds = array<i64: 1, 128>}, {pipeline_mode = #tpu.pipeline_mode<synchronous>, transform_indices = @transform_4, window_bounds = array<i64: 9, 128, 128>}, {pipeline_mode = #tpu.pipeline_mode<synchronous>, transform_indices = @transform_5, window_bounds = array<i64: 1, 128>}, {transform_indices = @transform_6, window_bounds = array<i64: 1, 16, 128>}]} {
    %c0 = arith.constant 0 : index
    %c0_0 = arith.constant 0 : index
    %c0_1 = arith.constant 0 : index
    %0 = vector.load %arg1[%c0, %c0_0, %c0_1] : memref<1x16x128xf32, #tpu.memory_space<vmem>>, vector<1x16x128xf32>
    %1 = vector.shape_cast %0 : vector<1x16x128xf32> to vector<16x128xf32>
    %c0_2 = arith.constant 0 : index
    %c0_3 = arith.constant 0 : index
    %2 = vector.load %arg2[%c0_2, %c0_3] : memref<144x16xbf16, #tpu.memory_space<vmem>>, vector<144x16xbf16>
    %3 = arith.truncf %1 : vector<16x128xf32> to vector<16x128xbf16>
    %cst = arith.constant dense<0.000000e+00> : vector<144x128xf32>
    %4 = tpu.matmul %2, %3, %cst {dimension_numbers = #tpu.dot_dimension_numbers<[1], [0], [0], [1], [0, 0, 1, 1], [], []>} : vector<144x16xbf16>, vector<16x128xbf16>, vector<144x128xf32> -> vector<144x128xf32>
    %5 = arith.truncf %4 : vector<144x128xf32> to vector<144x128xbf16>
    %6 = vector.extract_strided_slice %5 {offsets = [0, 0], sizes = [16, 128], strides = [1, 1]} : vector<144x128xbf16> to vector<16x128xbf16>
    %c0_4 = arith.constant 0 : index
    %c0_5 = arith.constant 0 : index
    %c0_6 = arith.constant 0 : index
    %7 = vector.load %arg3[%c0_4, %c0_5, %c0_6] : memref<9x128x128xbf16, #tpu.memory_space<vmem>>, vector<1x128x128xbf16>
    %8 = vector.shape_cast %7 : vector<1x128x128xbf16> to vector<128x128xbf16>
    %cst_7 = arith.constant dense<0.000000e+00> : vector<16x128xf32>
    %9 = tpu.matmul %6, %8, %cst_7 {dimension_numbers = #tpu.dot_dimension_numbers<[1], [0], [0], [1], [0, 0, 1, 1], [], []>} : vector<16x128xbf16>, vector<128x128xbf16>, vector<16x128xf32> -> vector<16x128xf32>
    %10 = vector.extract_strided_slice %5 {offsets = [16, 0], sizes = [16, 128], strides = [1, 1]} : vector<144x128xbf16> to vector<16x128xbf16>
    %c1 = arith.constant 1 : index
    %c0_8 = arith.constant 0 : index
    %c0_9 = arith.constant 0 : index
    %11 = vector.load %arg3[%c1, %c0_8, %c0_9] : memref<9x128x128xbf16, #tpu.memory_space<vmem>>, vector<1x128x128xbf16>
    %12 = vector.shape_cast %11 : vector<1x128x128xbf16> to vector<128x128xbf16>
    %cst_10 = arith.constant dense<0.000000e+00> : vector<16x128xf32>
    %13 = tpu.matmul %10, %12, %cst_10 {dimension_numbers = #tpu.dot_dimension_numbers<[1], [0], [0], [1], [0, 0, 1, 1], [], []>} : vector<16x128xbf16>, vector<128x128xbf16>, vector<16x128xf32> -> vector<16x128xf32>
    %14 = arith.addf %9, %13 : vector<16x128xf32>
    %15 = vector.extract_strided_slice %5 {offsets = [32, 0], sizes = [16, 128], strides = [1, 1]} : vector<144x128xbf16> to vector<16x128xbf16>
    %c2 = arith.constant 2 : index
    %c0_11 = arith.constant 0 : index
    %c0_12 = arith.constant 0 : index
    %16 = vector.load %arg3[%c2, %c0_11, %c0_12] : memref<9x128x128xbf16, #tpu.memory_space<vmem>>, vector<1x128x128xbf16>
    %17 = vector.shape_cast %16 : vector<1x128x128xbf16> to vector<128x128xbf16>
    %cst_13 = arith.constant dense<0.000000e+00> : vector<16x128xf32>
    %18 = tpu.matmul %15, %17, %cst_13 {dimension_numbers = #tpu.dot_dimension_numbers<[1], [0], [0], [1], [0, 0, 1, 1], [], []>} : vector<16x128xbf16>, vector<128x128xbf16>, vector<16x128xf32> -> vector<16x128xf32>
    %19 = arith.addf %14, %18 : vector<16x128xf32>
    %20 = vector.extract_strided_slice %5 {offsets = [48, 0], sizes = [16, 128], strides = [1, 1]} : vector<144x128xbf16> to vector<16x128xbf16>
    %c3 = arith.constant 3 : index
    %c0_14 = arith.constant 0 : index
    %c0_15 = arith.constant 0 : index
    %21 = vector.load %arg3[%c3, %c0_14, %c0_15] : memref<9x128x128xbf16, #tpu.memory_space<vmem>>, vector<1x128x128xbf16>
    %22 = vector.shape_cast %21 : vector<1x128x128xbf16> to vector<128x128xbf16>
    %cst_16 = arith.constant dense<0.000000e+00> : vector<16x128xf32>
    %23 = tpu.matmul %20, %22, %cst_16 {dimension_numbers = #tpu.dot_dimension_numbers<[1], [0], [0], [1], [0, 0, 1, 1], [], []>} : vector<16x128xbf16>, vector<128x128xbf16>, vector<16x128xf32> -> vector<16x128xf32>
    %24 = arith.addf %19, %23 : vector<16x128xf32>
    %25 = vector.extract_strided_slice %5 {offsets = [64, 0], sizes = [16, 128], strides = [1, 1]} : vector<144x128xbf16> to vector<16x128xbf16>
    %c4 = arith.constant 4 : index
    %c0_17 = arith.constant 0 : index
    %c0_18 = arith.constant 0 : index
    %26 = vector.load %arg3[%c4, %c0_17, %c0_18] : memref<9x128x128xbf16, #tpu.memory_space<vmem>>, vector<1x128x128xbf16>
    %27 = vector.shape_cast %26 : vector<1x128x128xbf16> to vector<128x128xbf16>
    %cst_19 = arith.constant dense<0.000000e+00> : vector<16x128xf32>
    %28 = tpu.matmul %25, %27, %cst_19 {dimension_numbers = #tpu.dot_dimension_numbers<[1], [0], [0], [1], [0, 0, 1, 1], [], []>} : vector<16x128xbf16>, vector<128x128xbf16>, vector<16x128xf32> -> vector<16x128xf32>
    %29 = arith.addf %24, %28 : vector<16x128xf32>
    %30 = vector.extract_strided_slice %5 {offsets = [80, 0], sizes = [16, 128], strides = [1, 1]} : vector<144x128xbf16> to vector<16x128xbf16>
    %c5 = arith.constant 5 : index
    %c0_20 = arith.constant 0 : index
    %c0_21 = arith.constant 0 : index
    %31 = vector.load %arg3[%c5, %c0_20, %c0_21] : memref<9x128x128xbf16, #tpu.memory_space<vmem>>, vector<1x128x128xbf16>
    %32 = vector.shape_cast %31 : vector<1x128x128xbf16> to vector<128x128xbf16>
    %cst_22 = arith.constant dense<0.000000e+00> : vector<16x128xf32>
    %33 = tpu.matmul %30, %32, %cst_22 {dimension_numbers = #tpu.dot_dimension_numbers<[1], [0], [0], [1], [0, 0, 1, 1], [], []>} : vector<16x128xbf16>, vector<128x128xbf16>, vector<16x128xf32> -> vector<16x128xf32>
    %34 = arith.addf %29, %33 : vector<16x128xf32>
    %35 = vector.extract_strided_slice %5 {offsets = [96, 0], sizes = [16, 128], strides = [1, 1]} : vector<144x128xbf16> to vector<16x128xbf16>
    %c6 = arith.constant 6 : index
    %c0_23 = arith.constant 0 : index
    %c0_24 = arith.constant 0 : index
    %36 = vector.load %arg3[%c6, %c0_23, %c0_24] : memref<9x128x128xbf16, #tpu.memory_space<vmem>>, vector<1x128x128xbf16>
    %37 = vector.shape_cast %36 : vector<1x128x128xbf16> to vector<128x128xbf16>
    %cst_25 = arith.constant dense<0.000000e+00> : vector<16x128xf32>
    %38 = tpu.matmul %35, %37, %cst_25 {dimension_numbers = #tpu.dot_dimension_numbers<[1], [0], [0], [1], [0, 0, 1, 1], [], []>} : vector<16x128xbf16>, vector<128x128xbf16>, vector<16x128xf32> -> vector<16x128xf32>
    %39 = arith.addf %34, %38 : vector<16x128xf32>
    %40 = vector.extract_strided_slice %5 {offsets = [112, 0], sizes = [16, 128], strides = [1, 1]} : vector<144x128xbf16> to vector<16x128xbf16>
    %c7 = arith.constant 7 : index
    %c0_26 = arith.constant 0 : index
    %c0_27 = arith.constant 0 : index
    %41 = vector.load %arg3[%c7, %c0_26, %c0_27] : memref<9x128x128xbf16, #tpu.memory_space<vmem>>, vector<1x128x128xbf16>
    %42 = vector.shape_cast %41 : vector<1x128x128xbf16> to vector<128x128xbf16>
    %cst_28 = arith.constant dense<0.000000e+00> : vector<16x128xf32>
    %43 = tpu.matmul %40, %42, %cst_28 {dimension_numbers = #tpu.dot_dimension_numbers<[1], [0], [0], [1], [0, 0, 1, 1], [], []>} : vector<16x128xbf16>, vector<128x128xbf16>, vector<16x128xf32> -> vector<16x128xf32>
    %44 = arith.addf %39, %43 : vector<16x128xf32>
    %45 = vector.extract_strided_slice %5 {offsets = [128, 0], sizes = [16, 128], strides = [1, 1]} : vector<144x128xbf16> to vector<16x128xbf16>
    %c8 = arith.constant 8 : index
    %c0_29 = arith.constant 0 : index
    %c0_30 = arith.constant 0 : index
    %46 = vector.load %arg3[%c8, %c0_29, %c0_30] : memref<9x128x128xbf16, #tpu.memory_space<vmem>>, vector<1x128x128xbf16>
    %47 = vector.shape_cast %46 : vector<1x128x128xbf16> to vector<128x128xbf16>
    %cst_31 = arith.constant dense<0.000000e+00> : vector<16x128xf32>
    %48 = tpu.matmul %45, %47, %cst_31 {dimension_numbers = #tpu.dot_dimension_numbers<[1], [0], [0], [1], [0, 0, 1, 1], [], []>} : vector<16x128xbf16>, vector<128x128xbf16>, vector<16x128xf32> -> vector<16x128xf32>
    %49 = arith.addf %44, %48 : vector<16x128xf32>
    %c0_32 = arith.constant 0 : index
    %c0_33 = arith.constant 0 : index
    %50 = vector.load %arg4[%c0_32, %c0_33] : memref<1x128xf32, #tpu.memory_space<vmem>>, vector<1x128xf32>
    %51 = vector.broadcast %50 : vector<1x128xf32> to vector<16x128xf32>
    %52 = arith.addf %49, %51 : vector<16x128xf32>
    %cst_34 = arith.constant dense<0.000000e+00> : vector<128xf32>
    %53 = vector.multi_reduction <add>, %52, %cst_34 [0] : vector<16x128xf32> to vector<128xf32>
    %54 = vector.shape_cast %53 : vector<128xf32> to vector<1x128xf32>
    %cst_35 = arith.constant 1.600000e+01 : f32
    %55 = vector.broadcast %cst_35 : f32 to vector<1x128xf32>
    %56 = arith.divf %54, %55 : vector<1x128xf32>
    %57 = vector.broadcast %56 : vector<1x128xf32> to vector<16x128xf32>
    %58 = arith.subf %52, %57 : vector<16x128xf32>
    %59 = arith.mulf %58, %58 : vector<16x128xf32>
    %cst_36 = arith.constant dense<0.000000e+00> : vector<128xf32>
    %60 = vector.multi_reduction <add>, %59, %cst_36 [0] : vector<16x128xf32> to vector<128xf32>
    %61 = vector.shape_cast %60 : vector<128xf32> to vector<1x128xf32>
    %cst_37 = arith.constant 1.600000e+01 : f32
    %62 = vector.broadcast %cst_37 : f32 to vector<1x128xf32>
    %63 = arith.divf %61, %62 : vector<1x128xf32>
    %cst_38 = arith.constant 9.99999974E-6 : f32
    %64 = vector.broadcast %cst_38 : f32 to vector<1x128xf32>
    %65 = arith.addf %63, %64 : vector<1x128xf32>
    %66 = math.rsqrt %65 : vector<1x128xf32>
    %67 = vector.broadcast %66 : vector<1x128xf32> to vector<16x128xf32>
    %68 = arith.mulf %58, %67 : vector<16x128xf32>
    %cst_39 = arith.constant 0.000000e+00 : f32
    %69 = vector.broadcast %cst_39 : f32 to vector<16x128xf32>
    %70 = arith.maximumf %68, %69 : vector<16x128xf32>
    %71 = arith.truncf %70 : vector<16x128xf32> to vector<16x128xbf16>
    %cst_40 = arith.constant dense<0.000000e+00> : vector<144x128xf32>
    %72 = tpu.matmul %2, %71, %cst_40 {dimension_numbers = #tpu.dot_dimension_numbers<[1], [0], [0], [1], [0, 0, 1, 1], [], []>} : vector<144x16xbf16>, vector<16x128xbf16>, vector<144x128xf32> -> vector<144x128xf32>
    %73 = arith.truncf %72 : vector<144x128xf32> to vector<144x128xbf16>
    %74 = vector.extract_strided_slice %73 {offsets = [0, 0], sizes = [16, 128], strides = [1, 1]} : vector<144x128xbf16> to vector<16x128xbf16>
    %c0_41 = arith.constant 0 : index
    %c0_42 = arith.constant 0 : index
    %c0_43 = arith.constant 0 : index
    %75 = vector.load %arg5[%c0_41, %c0_42, %c0_43] : memref<9x128x128xbf16, #tpu.memory_space<vmem>>, vector<1x128x128xbf16>
    %76 = vector.shape_cast %75 : vector<1x128x128xbf16> to vector<128x128xbf16>
    %cst_44 = arith.constant dense<0.000000e+00> : vector<16x128xf32>
    %77 = tpu.matmul %74, %76, %cst_44 {dimension_numbers = #tpu.dot_dimension_numbers<[1], [0], [0], [1], [0, 0, 1, 1], [], []>} : vector<16x128xbf16>, vector<128x128xbf16>, vector<16x128xf32> -> vector<16x128xf32>
    %78 = vector.extract_strided_slice %73 {offsets = [16, 0], sizes = [16, 128], strides = [1, 1]} : vector<144x128xbf16> to vector<16x128xbf16>
    %c1_45 = arith.constant 1 : index
    %c0_46 = arith.constant 0 : index
    %c0_47 = arith.constant 0 : index
    %79 = vector.load %arg5[%c1_45, %c0_46, %c0_47] : memref<9x128x128xbf16, #tpu.memory_space<vmem>>, vector<1x128x128xbf16>
    %80 = vector.shape_cast %79 : vector<1x128x128xbf16> to vector<128x128xbf16>
    %cst_48 = arith.constant dense<0.000000e+00> : vector<16x128xf32>
    %81 = tpu.matmul %78, %80, %cst_48 {dimension_numbers = #tpu.dot_dimension_numbers<[1], [0], [0], [1], [0, 0, 1, 1], [], []>} : vector<16x128xbf16>, vector<128x128xbf16>, vector<16x128xf32> -> vector<16x128xf32>
    %82 = arith.addf %77, %81 : vector<16x128xf32>
    %83 = vector.extract_strided_slice %73 {offsets = [32, 0], sizes = [16, 128], strides = [1, 1]} : vector<144x128xbf16> to vector<16x128xbf16>
    %c2_49 = arith.constant 2 : index
    %c0_50 = arith.constant 0 : index
    %c0_51 = arith.constant 0 : index
    %84 = vector.load %arg5[%c2_49, %c0_50, %c0_51] : memref<9x128x128xbf16, #tpu.memory_space<vmem>>, vector<1x128x128xbf16>
    %85 = vector.shape_cast %84 : vector<1x128x128xbf16> to vector<128x128xbf16>
    %cst_52 = arith.constant dense<0.000000e+00> : vector<16x128xf32>
    %86 = tpu.matmul %83, %85, %cst_52 {dimension_numbers = #tpu.dot_dimension_numbers<[1], [0], [0], [1], [0, 0, 1, 1], [], []>} : vector<16x128xbf16>, vector<128x128xbf16>, vector<16x128xf32> -> vector<16x128xf32>
    %87 = arith.addf %82, %86 : vector<16x128xf32>
    %88 = vector.extract_strided_slice %73 {offsets = [48, 0], sizes = [16, 128], strides = [1, 1]} : vector<144x128xbf16> to vector<16x128xbf16>
    %c3_53 = arith.constant 3 : index
    %c0_54 = arith.constant 0 : index
    %c0_55 = arith.constant 0 : index
    %89 = vector.load %arg5[%c3_53, %c0_54, %c0_55] : memref<9x128x128xbf16, #tpu.memory_space<vmem>>, vector<1x128x128xbf16>
    %90 = vector.shape_cast %89 : vector<1x128x128xbf16> to vector<128x128xbf16>
    %cst_56 = arith.constant dense<0.000000e+00> : vector<16x128xf32>
    %91 = tpu.matmul %88, %90, %cst_56 {dimension_numbers = #tpu.dot_dimension_numbers<[1], [0], [0], [1], [0, 0, 1, 1], [], []>} : vector<16x128xbf16>, vector<128x128xbf16>, vector<16x128xf32> -> vector<16x128xf32>
    %92 = arith.addf %87, %91 : vector<16x128xf32>
    %93 = vector.extract_strided_slice %73 {offsets = [64, 0], sizes = [16, 128], strides = [1, 1]} : vector<144x128xbf16> to vector<16x128xbf16>
    %c4_57 = arith.constant 4 : index
    %c0_58 = arith.constant 0 : index
    %c0_59 = arith.constant 0 : index
    %94 = vector.load %arg5[%c4_57, %c0_58, %c0_59] : memref<9x128x128xbf16, #tpu.memory_space<vmem>>, vector<1x128x128xbf16>
    %95 = vector.shape_cast %94 : vector<1x128x128xbf16> to vector<128x128xbf16>
    %cst_60 = arith.constant dense<0.000000e+00> : vector<16x128xf32>
    %96 = tpu.matmul %93, %95, %cst_60 {dimension_numbers = #tpu.dot_dimension_numbers<[1], [0], [0], [1], [0, 0, 1, 1], [], []>} : vector<16x128xbf16>, vector<128x128xbf16>, vector<16x128xf32> -> vector<16x128xf32>
    %97 = arith.addf %92, %96 : vector<16x128xf32>
    %98 = vector.extract_strided_slice %73 {offsets = [80, 0], sizes = [16, 128], strides = [1, 1]} : vector<144x128xbf16> to vector<16x128xbf16>
    %c5_61 = arith.constant 5 : index
    %c0_62 = arith.constant 0 : index
    %c0_63 = arith.constant 0 : index
    %99 = vector.load %arg5[%c5_61, %c0_62, %c0_63] : memref<9x128x128xbf16, #tpu.memory_space<vmem>>, vector<1x128x128xbf16>
    %100 = vector.shape_cast %99 : vector<1x128x128xbf16> to vector<128x128xbf16>
    %cst_64 = arith.constant dense<0.000000e+00> : vector<16x128xf32>
    %101 = tpu.matmul %98, %100, %cst_64 {dimension_numbers = #tpu.dot_dimension_numbers<[1], [0], [0], [1], [0, 0, 1, 1], [], []>} : vector<16x128xbf16>, vector<128x128xbf16>, vector<16x128xf32> -> vector<16x128xf32>
    %102 = arith.addf %97, %101 : vector<16x128xf32>
    %103 = vector.extract_strided_slice %73 {offsets = [96, 0], sizes = [16, 128], strides = [1, 1]} : vector<144x128xbf16> to vector<16x128xbf16>
    %c6_65 = arith.constant 6 : index
    %c0_66 = arith.constant 0 : index
    %c0_67 = arith.constant 0 : index
    %104 = vector.load %arg5[%c6_65, %c0_66, %c0_67] : memref<9x128x128xbf16, #tpu.memory_space<vmem>>, vector<1x128x128xbf16>
    %105 = vector.shape_cast %104 : vector<1x128x128xbf16> to vector<128x128xbf16>
    %cst_68 = arith.constant dense<0.000000e+00> : vector<16x128xf32>
    %106 = tpu.matmul %103, %105, %cst_68 {dimension_numbers = #tpu.dot_dimension_numbers<[1], [0], [0], [1], [0, 0, 1, 1], [], []>} : vector<16x128xbf16>, vector<128x128xbf16>, vector<16x128xf32> -> vector<16x128xf32>
    %107 = arith.addf %102, %106 : vector<16x128xf32>
    %108 = vector.extract_strided_slice %73 {offsets = [112, 0], sizes = [16, 128], strides = [1, 1]} : vector<144x128xbf16> to vector<16x128xbf16>
    %c7_69 = arith.constant 7 : index
    %c0_70 = arith.constant 0 : index
    %c0_71 = arith.constant 0 : index
    %109 = vector.load %arg5[%c7_69, %c0_70, %c0_71] : memref<9x128x128xbf16, #tpu.memory_space<vmem>>, vector<1x128x128xbf16>
    %110 = vector.shape_cast %109 : vector<1x128x128xbf16> to vector<128x128xbf16>
    %cst_72 = arith.constant dense<0.000000e+00> : vector<16x128xf32>
    %111 = tpu.matmul %108, %110, %cst_72 {dimension_numbers = #tpu.dot_dimension_numbers<[1], [0], [0], [1], [0, 0, 1, 1], [], []>} : vector<16x128xbf16>, vector<128x128xbf16>, vector<16x128xf32> -> vector<16x128xf32>
    %112 = arith.addf %107, %111 : vector<16x128xf32>
    %113 = vector.extract_strided_slice %73 {offsets = [128, 0], sizes = [16, 128], strides = [1, 1]} : vector<144x128xbf16> to vector<16x128xbf16>
    %c8_73 = arith.constant 8 : index
    %c0_74 = arith.constant 0 : index
    %c0_75 = arith.constant 0 : index
    %114 = vector.load %arg5[%c8_73, %c0_74, %c0_75] : memref<9x128x128xbf16, #tpu.memory_space<vmem>>, vector<1x128x128xbf16>
    %115 = vector.shape_cast %114 : vector<1x128x128xbf16> to vector<128x128xbf16>
    %cst_76 = arith.constant dense<0.000000e+00> : vector<16x128xf32>
    %116 = tpu.matmul %113, %115, %cst_76 {dimension_numbers = #tpu.dot_dimension_numbers<[1], [0], [0], [1], [0, 0, 1, 1], [], []>} : vector<16x128xbf16>, vector<128x128xbf16>, vector<16x128xf32> -> vector<16x128xf32>
    %117 = arith.addf %112, %116 : vector<16x128xf32>
    %c0_77 = arith.constant 0 : index
    %c0_78 = arith.constant 0 : index
    %118 = vector.load %arg6[%c0_77, %c0_78] : memref<1x128xf32, #tpu.memory_space<vmem>>, vector<1x128xf32>
    %119 = vector.broadcast %118 : vector<1x128xf32> to vector<16x128xf32>
    %120 = arith.addf %117, %119 : vector<16x128xf32>
    %cst_79 = arith.constant dense<0.000000e+00> : vector<128xf32>
    %121 = vector.multi_reduction <add>, %120, %cst_79 [0] : vector<16x128xf32> to vector<128xf32>
    %122 = vector.shape_cast %121 : vector<128xf32> to vector<1x128xf32>
    %cst_80 = arith.constant 1.600000e+01 : f32
    %123 = vector.broadcast %cst_80 : f32 to vector<1x128xf32>
    %124 = arith.divf %122, %123 : vector<1x128xf32>
    %125 = vector.broadcast %124 : vector<1x128xf32> to vector<16x128xf32>
    %126 = arith.subf %120, %125 : vector<16x128xf32>
    %127 = arith.mulf %126, %126 : vector<16x128xf32>
    %cst_81 = arith.constant dense<0.000000e+00> : vector<128xf32>
    %128 = vector.multi_reduction <add>, %127, %cst_81 [0] : vector<16x128xf32> to vector<128xf32>
    %129 = vector.shape_cast %128 : vector<128xf32> to vector<1x128xf32>
    %cst_82 = arith.constant 1.600000e+01 : f32
    %130 = vector.broadcast %cst_82 : f32 to vector<1x128xf32>
    %131 = arith.divf %129, %130 : vector<1x128xf32>
    %cst_83 = arith.constant 9.99999974E-6 : f32
    %132 = vector.broadcast %cst_83 : f32 to vector<1x128xf32>
    %133 = arith.addf %131, %132 : vector<1x128xf32>
    %134 = math.rsqrt %133 : vector<1x128xf32>
    %135 = vector.broadcast %134 : vector<1x128xf32> to vector<16x128xf32>
    %136 = arith.mulf %126, %135 : vector<16x128xf32>
    %137 = arith.addf %1, %136 : vector<16x128xf32>
    %c0_84 = arith.constant 0 : index
    %c0_85 = arith.constant 0 : index
    %c0_86 = arith.constant 0 : index
    %138 = vector.load %arg7[%c0_84, %c0_85, %c0_86] : memref<1x16x128xf32, #tpu.memory_space<vmem>>, vector<1x16x128xf32>
    %139 = vector.shape_cast %138 : vector<1x16x128xf32> to vector<16x128xf32>
    %140 = vector.shape_cast %137 : vector<16x128xf32> to vector<1x16x128xf32>
    tpu.vector_store %arg7[%c0_84, %c0_85, %c0_86], %140 {strides = array<i32>} : memref<1x16x128xf32, #tpu.memory_space<vmem>>, vector<1x16x128xf32>,
    return
  }
  func.func @transform_0(%arg0: i32) -> (i32, i32, i32) {
    %c0_i32 = arith.constant 0 : i32
    %c0_i32_0 = arith.constant 0 : i32
    %c0_i32_1 = arith.constant 0 : i32
    return %arg0, %c0_i32, %c0_i32_0 : i32, i32, i32
  }
  func.func @transform_1(%arg0: i32) -> (i32, i32) {
    %c0_i32 = arith.constant 0 : i32
    %c0_i32_0 = arith.constant 0 : i32
    %c0_i32_1 = arith.constant 0 : i32
    return %c0_i32, %c0_i32_0 : i32, i32
  }
  func.func @transform_2(%arg0: i32) -> (i32, i32, i32) {
    %c0_i32 = arith.constant 0 : i32
    %c0_i32_0 = arith.constant 0 : i32
    %c0_i32_1 = arith.constant 0 : i32
    %c0_i32_2 = arith.constant 0 : i32
    return %c0_i32, %c0_i32_0, %c0_i32_1 : i32, i32, i32
  }
  func.func @transform_3(%arg0: i32) -> (i32, i32) {
    %c0_i32 = arith.constant 0 : i32
    %c0_i32_0 = arith.constant 0 : i32
    %c0_i32_1 = arith.constant 0 : i32
    return %c0_i32, %c0_i32_0 : i32, i32
  }
  func.func @transform_4(%arg0: i32) -> (i32, i32, i32) {
    %c0_i32 = arith.constant 0 : i32
    %c0_i32_0 = arith.constant 0 : i32
    %c0_i32_1 = arith.constant 0 : i32
    %c0_i32_2 = arith.constant 0 : i32
    return %c0_i32, %c0_i32_0, %c0_i32_1 : i32, i32, i32
  }
  func.func @transform_5(%arg0: i32) -> (i32, i32) {
    %c0_i32 = arith.constant 0 : i32
    %c0_i32_0 = arith.constant 0 : i32
    %c0_i32_1 = arith.constant 0 : i32
    return %c0_i32, %c0_i32_0 : i32, i32
  }
  func.func @transform_6(%arg0: i32) -> (i32, i32, i32) {
    %c0_i32 = arith.constant 0 : i32
    %c0_i32_0 = arith.constant 0 : i32
    %c0_i32_1 = arith.constant 0 : i32
    return %arg0, %c0_i32, %c0_i32_0 : i32, i32, i32
  }
}

module attributes {stable_mosaic.version = 11 : i64} {
  func.func @_conv_fused_kernel(%arg0: i32, %arg1: memref<1x16x612xbf16, #tpu.memory_space<vmem>>, %arg2: memref<612x128xbf16, #tpu.memory_space<vmem>>, %arg3: memref<1x128xf32, #tpu.memory_space<vmem>>, %arg4: memref<1x16x128xf32, #tpu.memory_space<vmem>>) attributes {dimension_semantics = [#tpu.dimension_semantics<parallel>], iteration_bounds = array<i64: 2>, scalar_prefetch = 0 : i64, scratch_operands = 0 : i64, tpu.core_type = #tpu.core_type<tc>, window_params = [{transform_indices = @transform_0, window_bounds = array<i64: 1, 16, 612>}, {pipeline_mode = #tpu.pipeline_mode<synchronous>, transform_indices = @transform_1, window_bounds = array<i64: 612, 128>}, {pipeline_mode = #tpu.pipeline_mode<synchronous>, transform_indices = @transform_2, window_bounds = array<i64: 1, 128>}, {transform_indices = @transform_3, window_bounds = array<i64: 1, 16, 128>}]} {
    %c0 = arith.constant 0 : index
    %c0_0 = arith.constant 0 : index
    %c0_1 = arith.constant 0 : index
    %0 = vector.load %arg1[%c0, %c0_0, %c0_1] : memref<1x16x612xbf16, #tpu.memory_space<vmem>>, vector<1x16x612xbf16>
    %1 = vector.shape_cast %0 : vector<1x16x612xbf16> to vector<16x612xbf16>
    %c0_2 = arith.constant 0 : index
    %c0_3 = arith.constant 0 : index
    %2 = vector.load %arg2[%c0_2, %c0_3] : memref<612x128xbf16, #tpu.memory_space<vmem>>, vector<612x128xbf16>
    %cst = arith.constant dense<0.000000e+00> : vector<16x128xf32>
    %3 = tpu.matmul %1, %2, %cst {dimension_numbers = #tpu.dot_dimension_numbers<[1], [0], [0], [1], [0, 0, 1, 1], [], []>} : vector<16x612xbf16>, vector<612x128xbf16>, vector<16x128xf32> -> vector<16x128xf32>
    %c0_4 = arith.constant 0 : index
    %c0_5 = arith.constant 0 : index
    %4 = vector.load %arg3[%c0_4, %c0_5] : memref<1x128xf32, #tpu.memory_space<vmem>>, vector<1x128xf32>
    %5 = vector.broadcast %4 : vector<1x128xf32> to vector<16x128xf32>
    %6 = arith.addf %3, %5 : vector<16x128xf32>
    %cst_6 = arith.constant dense<0.000000e+00> : vector<128xf32>
    %7 = vector.multi_reduction <add>, %6, %cst_6 [0] : vector<16x128xf32> to vector<128xf32>
    %8 = vector.shape_cast %7 : vector<128xf32> to vector<1x128xf32>
    %cst_7 = arith.constant 1.600000e+01 : f32
    %9 = vector.broadcast %cst_7 : f32 to vector<1x128xf32>
    %10 = arith.divf %8, %9 : vector<1x128xf32>
    %11 = vector.broadcast %10 : vector<1x128xf32> to vector<16x128xf32>
    %12 = arith.subf %6, %11 : vector<16x128xf32>
    %13 = arith.mulf %12, %12 : vector<16x128xf32>
    %cst_8 = arith.constant dense<0.000000e+00> : vector<128xf32>
    %14 = vector.multi_reduction <add>, %13, %cst_8 [0] : vector<16x128xf32> to vector<128xf32>
    %15 = vector.shape_cast %14 : vector<128xf32> to vector<1x128xf32>
    %cst_9 = arith.constant 1.600000e+01 : f32
    %16 = vector.broadcast %cst_9 : f32 to vector<1x128xf32>
    %17 = arith.divf %15, %16 : vector<1x128xf32>
    %cst_10 = arith.constant 9.99999974E-6 : f32
    %18 = vector.broadcast %cst_10 : f32 to vector<1x128xf32>
    %19 = arith.addf %17, %18 : vector<1x128xf32>
    %20 = math.rsqrt %19 : vector<1x128xf32>
    %21 = vector.broadcast %20 : vector<1x128xf32> to vector<16x128xf32>
    %22 = arith.mulf %12, %21 : vector<16x128xf32>
    %cst_11 = arith.constant 0.000000e+00 : f32
    %23 = vector.broadcast %cst_11 : f32 to vector<16x128xf32>
    %24 = arith.maximumf %22, %23 : vector<16x128xf32>
    %c0_12 = arith.constant 0 : index
    %c0_13 = arith.constant 0 : index
    %c0_14 = arith.constant 0 : index
    %25 = vector.load %arg4[%c0_12, %c0_13, %c0_14] : memref<1x16x128xf32, #tpu.memory_space<vmem>>, vector<1x16x128xf32>
    %26 = vector.shape_cast %25 : vector<1x16x128xf32> to vector<16x128xf32>
    %27 = vector.shape_cast %24 : vector<16x128xf32> to vector<1x16x128xf32>
    tpu.vector_store %arg4[%c0_12, %c0_13, %c0_14], %27 {strides = array<i32>} : memref<1x16x128xf32, #tpu.memory_space<vmem>>, vector<1x16x128xf32>,
    return
  }
  func.func @transform_0(%arg0: i32) -> (i32, i32, i32) {
    %c0_i32 = arith.constant 0 : i32
    %c0_i32_0 = arith.constant 0 : i32
    %c0_i32_1 = arith.constant 0 : i32
    return %arg0, %c0_i32, %c0_i32_0 : i32, i32, i32
  }
  func.func @transform_1(%arg0: i32) -> (i32, i32) {
    %c0_i32 = arith.constant 0 : i32
    %c0_i32_0 = arith.constant 0 : i32
    %c0_i32_1 = arith.constant 0 : i32
    return %c0_i32, %c0_i32_0 : i32, i32
  }
  func.func @transform_2(%arg0: i32) -> (i32, i32) {
    %c0_i32 = arith.constant 0 : i32
    %c0_i32_0 = arith.constant 0 : i32
    %c0_i32_1 = arith.constant 0 : i32
    return %c0_i32, %c0_i32_0 : i32, i32
  }
  func.func @transform_3(%arg0: i32) -> (i32, i32, i32) {
    %c0_i32 = arith.constant 0 : i32
    %c0_i32_0 = arith.constant 0 : i32
    %c0_i32_1 = arith.constant 0 : i32
    return %arg0, %c0_i32, %c0_i32_0 : i32, i32, i32
  }
}

module attributes {stable_mosaic.version = 11 : i64} {
  func.func @_conv_fused_kernel(%arg0: i32, %arg1: memref<1x64x1188xbf16, #tpu.memory_space<vmem>>, %arg2: memref<1188x64xbf16, #tpu.memory_space<vmem>>, %arg3: memref<1x64xf32, #tpu.memory_space<vmem>>, %arg4: memref<1x64x64xf32, #tpu.memory_space<vmem>>) attributes {dimension_semantics = [#tpu.dimension_semantics<parallel>], iteration_bounds = array<i64: 2>, scalar_prefetch = 0 : i64, scratch_operands = 0 : i64, tpu.core_type = #tpu.core_type<tc>, window_params = [{transform_indices = @transform_0, window_bounds = array<i64: 1, 64, 1188>}, {pipeline_mode = #tpu.pipeline_mode<synchronous>, transform_indices = @transform_1, window_bounds = array<i64: 1188, 64>}, {pipeline_mode = #tpu.pipeline_mode<synchronous>, transform_indices = @transform_2, window_bounds = array<i64: 1, 64>}, {transform_indices = @transform_3, window_bounds = array<i64: 1, 64, 64>}]} {
    %c0 = arith.constant 0 : index
    %c0_0 = arith.constant 0 : index
    %c0_1 = arith.constant 0 : index
    %0 = vector.load %arg1[%c0, %c0_0, %c0_1] : memref<1x64x1188xbf16, #tpu.memory_space<vmem>>, vector<1x64x1188xbf16>
    %1 = vector.shape_cast %0 : vector<1x64x1188xbf16> to vector<64x1188xbf16>
    %c0_2 = arith.constant 0 : index
    %c0_3 = arith.constant 0 : index
    %2 = vector.load %arg2[%c0_2, %c0_3] : memref<1188x64xbf16, #tpu.memory_space<vmem>>, vector<1188x64xbf16>
    %cst = arith.constant dense<0.000000e+00> : vector<64x64xf32>
    %3 = tpu.matmul %1, %2, %cst {dimension_numbers = #tpu.dot_dimension_numbers<[1], [0], [0], [1], [0, 0, 1, 1], [], []>} : vector<64x1188xbf16>, vector<1188x64xbf16>, vector<64x64xf32> -> vector<64x64xf32>
    %c0_4 = arith.constant 0 : index
    %c0_5 = arith.constant 0 : index
    %4 = vector.load %arg3[%c0_4, %c0_5] : memref<1x64xf32, #tpu.memory_space<vmem>>, vector<1x64xf32>
    %5 = vector.broadcast %4 : vector<1x64xf32> to vector<64x64xf32>
    %6 = arith.addf %3, %5 : vector<64x64xf32>
    %cst_6 = arith.constant dense<0.000000e+00> : vector<64xf32>
    %7 = vector.multi_reduction <add>, %6, %cst_6 [0] : vector<64x64xf32> to vector<64xf32>
    %8 = vector.shape_cast %7 : vector<64xf32> to vector<1x64xf32>
    %cst_7 = arith.constant 6.400000e+01 : f32
    %9 = vector.broadcast %cst_7 : f32 to vector<1x64xf32>
    %10 = arith.divf %8, %9 : vector<1x64xf32>
    %11 = vector.broadcast %10 : vector<1x64xf32> to vector<64x64xf32>
    %12 = arith.subf %6, %11 : vector<64x64xf32>
    %13 = arith.mulf %12, %12 : vector<64x64xf32>
    %cst_8 = arith.constant dense<0.000000e+00> : vector<64xf32>
    %14 = vector.multi_reduction <add>, %13, %cst_8 [0] : vector<64x64xf32> to vector<64xf32>
    %15 = vector.shape_cast %14 : vector<64xf32> to vector<1x64xf32>
    %cst_9 = arith.constant 6.400000e+01 : f32
    %16 = vector.broadcast %cst_9 : f32 to vector<1x64xf32>
    %17 = arith.divf %15, %16 : vector<1x64xf32>
    %cst_10 = arith.constant 9.99999974E-6 : f32
    %18 = vector.broadcast %cst_10 : f32 to vector<1x64xf32>
    %19 = arith.addf %17, %18 : vector<1x64xf32>
    %20 = math.rsqrt %19 : vector<1x64xf32>
    %21 = vector.broadcast %20 : vector<1x64xf32> to vector<64x64xf32>
    %22 = arith.mulf %12, %21 : vector<64x64xf32>
    %cst_11 = arith.constant 0.000000e+00 : f32
    %23 = vector.broadcast %cst_11 : f32 to vector<64x64xf32>
    %24 = arith.maximumf %22, %23 : vector<64x64xf32>
    %c0_12 = arith.constant 0 : index
    %c0_13 = arith.constant 0 : index
    %c0_14 = arith.constant 0 : index
    %25 = vector.load %arg4[%c0_12, %c0_13, %c0_14] : memref<1x64x64xf32, #tpu.memory_space<vmem>>, vector<1x64x64xf32>
    %26 = vector.shape_cast %25 : vector<1x64x64xf32> to vector<64x64xf32>
    %27 = vector.shape_cast %24 : vector<64x64xf32> to vector<1x64x64xf32>
    tpu.vector_store %arg4[%c0_12, %c0_13, %c0_14], %27 {strides = array<i32>} : memref<1x64x64xf32, #tpu.memory_space<vmem>>, vector<1x64x64xf32>,
    return
  }
  func.func @transform_0(%arg0: i32) -> (i32, i32, i32) {
    %c0_i32 = arith.constant 0 : i32
    %c0_i32_0 = arith.constant 0 : i32
    %c0_i32_1 = arith.constant 0 : i32
    return %arg0, %c0_i32, %c0_i32_0 : i32, i32, i32
  }
  func.func @transform_1(%arg0: i32) -> (i32, i32) {
    %c0_i32 = arith.constant 0 : i32
    %c0_i32_0 = arith.constant 0 : i32
    %c0_i32_1 = arith.constant 0 : i32
    return %c0_i32, %c0_i32_0 : i32, i32
  }
  func.func @transform_2(%arg0: i32) -> (i32, i32) {
    %c0_i32 = arith.constant 0 : i32
    %c0_i32_0 = arith.constant 0 : i32
    %c0_i32_1 = arith.constant 0 : i32
    return %c0_i32, %c0_i32_0 : i32, i32
  }
  func.func @transform_3(%arg0: i32) -> (i32, i32, i32) {
    %c0_i32 = arith.constant 0 : i32
    %c0_i32_0 = arith.constant 0 : i32
    %c0_i32_1 = arith.constant 0 : i32
    return %arg0, %c0_i32, %c0_i32_0 : i32, i32, i32
  }
}

module attributes {stable_mosaic.version = 11 : i64} {
  func.func @_conv_fused_kernel(%arg0: i32, %arg1: memref<1x256x612xbf16, #tpu.memory_space<vmem>>, %arg2: memref<612x32xbf16, #tpu.memory_space<vmem>>, %arg3: memref<1x32xf32, #tpu.memory_space<vmem>>, %arg4: memref<1x256x32xf32, #tpu.memory_space<vmem>>) attributes {dimension_semantics = [#tpu.dimension_semantics<parallel>], iteration_bounds = array<i64: 2>, scalar_prefetch = 0 : i64, scratch_operands = 0 : i64, tpu.core_type = #tpu.core_type<tc>, window_params = [{transform_indices = @transform_0, window_bounds = array<i64: 1, 256, 612>}, {pipeline_mode = #tpu.pipeline_mode<synchronous>, transform_indices = @transform_1, window_bounds = array<i64: 612, 32>}, {pipeline_mode = #tpu.pipeline_mode<synchronous>, transform_indices = @transform_2, window_bounds = array<i64: 1, 32>}, {transform_indices = @transform_3, window_bounds = array<i64: 1, 256, 32>}]} {
    %c0 = arith.constant 0 : index
    %c0_0 = arith.constant 0 : index
    %c0_1 = arith.constant 0 : index
    %0 = vector.load %arg1[%c0, %c0_0, %c0_1] : memref<1x256x612xbf16, #tpu.memory_space<vmem>>, vector<1x256x612xbf16>
    %1 = vector.shape_cast %0 : vector<1x256x612xbf16> to vector<256x612xbf16>
    %c0_2 = arith.constant 0 : index
    %c0_3 = arith.constant 0 : index
    %2 = vector.load %arg2[%c0_2, %c0_3] : memref<612x32xbf16, #tpu.memory_space<vmem>>, vector<612x32xbf16>
    %cst = arith.constant dense<0.000000e+00> : vector<256x32xf32>
    %3 = tpu.matmul %1, %2, %cst {dimension_numbers = #tpu.dot_dimension_numbers<[1], [0], [0], [1], [0, 0, 1, 1], [], []>} : vector<256x612xbf16>, vector<612x32xbf16>, vector<256x32xf32> -> vector<256x32xf32>
    %c0_4 = arith.constant 0 : index
    %c0_5 = arith.constant 0 : index
    %4 = vector.load %arg3[%c0_4, %c0_5] : memref<1x32xf32, #tpu.memory_space<vmem>>, vector<1x32xf32>
    %5 = vector.broadcast %4 : vector<1x32xf32> to vector<256x32xf32>
    %6 = arith.addf %3, %5 : vector<256x32xf32>
    %cst_6 = arith.constant dense<0.000000e+00> : vector<32xf32>
    %7 = vector.multi_reduction <add>, %6, %cst_6 [0] : vector<256x32xf32> to vector<32xf32>
    %8 = vector.shape_cast %7 : vector<32xf32> to vector<1x32xf32>
    %cst_7 = arith.constant 2.560000e+02 : f32
    %9 = vector.broadcast %cst_7 : f32 to vector<1x32xf32>
    %10 = arith.divf %8, %9 : vector<1x32xf32>
    %11 = vector.broadcast %10 : vector<1x32xf32> to vector<256x32xf32>
    %12 = arith.subf %6, %11 : vector<256x32xf32>
    %13 = arith.mulf %12, %12 : vector<256x32xf32>
    %cst_8 = arith.constant dense<0.000000e+00> : vector<32xf32>
    %14 = vector.multi_reduction <add>, %13, %cst_8 [0] : vector<256x32xf32> to vector<32xf32>
    %15 = vector.shape_cast %14 : vector<32xf32> to vector<1x32xf32>
    %cst_9 = arith.constant 2.560000e+02 : f32
    %16 = vector.broadcast %cst_9 : f32 to vector<1x32xf32>
    %17 = arith.divf %15, %16 : vector<1x32xf32>
    %cst_10 = arith.constant 9.99999974E-6 : f32
    %18 = vector.broadcast %cst_10 : f32 to vector<1x32xf32>
    %19 = arith.addf %17, %18 : vector<1x32xf32>
    %20 = math.rsqrt %19 : vector<1x32xf32>
    %21 = vector.broadcast %20 : vector<1x32xf32> to vector<256x32xf32>
    %22 = arith.mulf %12, %21 : vector<256x32xf32>
    %cst_11 = arith.constant 0.000000e+00 : f32
    %23 = vector.broadcast %cst_11 : f32 to vector<256x32xf32>
    %24 = arith.maximumf %22, %23 : vector<256x32xf32>
    %c0_12 = arith.constant 0 : index
    %c0_13 = arith.constant 0 : index
    %c0_14 = arith.constant 0 : index
    %25 = vector.load %arg4[%c0_12, %c0_13, %c0_14] : memref<1x256x32xf32, #tpu.memory_space<vmem>>, vector<1x256x32xf32>
    %26 = vector.shape_cast %25 : vector<1x256x32xf32> to vector<256x32xf32>
    %27 = vector.shape_cast %24 : vector<256x32xf32> to vector<1x256x32xf32>
    tpu.vector_store %arg4[%c0_12, %c0_13, %c0_14], %27 {strides = array<i32>} : memref<1x256x32xf32, #tpu.memory_space<vmem>>, vector<1x256x32xf32>,
    return
  }
  func.func @transform_0(%arg0: i32) -> (i32, i32, i32) {
    %c0_i32 = arith.constant 0 : i32
    %c0_i32_0 = arith.constant 0 : i32
    %c0_i32_1 = arith.constant 0 : i32
    return %arg0, %c0_i32, %c0_i32_0 : i32, i32, i32
  }
  func.func @transform_1(%arg0: i32) -> (i32, i32) {
    %c0_i32 = arith.constant 0 : i32
    %c0_i32_0 = arith.constant 0 : i32
    %c0_i32_1 = arith.constant 0 : i32
    return %c0_i32, %c0_i32_0 : i32, i32
  }
  func.func @transform_2(%arg0: i32) -> (i32, i32) {
    %c0_i32 = arith.constant 0 : i32
    %c0_i32_0 = arith.constant 0 : i32
    %c0_i32_1 = arith.constant 0 : i32
    return %c0_i32, %c0_i32_0 : i32, i32
  }
  func.func @transform_3(%arg0: i32) -> (i32, i32, i32) {
    %c0_i32 = arith.constant 0 : i32
    %c0_i32_0 = arith.constant 0 : i32
    %c0_i32_1 = arith.constant 0 : i32
    return %arg0, %c0_i32, %c0_i32_0 : i32, i32, i32
  }
}

module attributes {stable_mosaic.version = 11 : i64} {
  func.func @_conv_fused_kernel(%arg0: i32, %arg1: memref<1x256x1568xbf16, #tpu.memory_space<vmem>>, %arg2: memref<1568x3xbf16, #tpu.memory_space<vmem>>, %arg3: memref<1x3xf32, #tpu.memory_space<vmem>>, %arg4: memref<1x256x3xf32, #tpu.memory_space<vmem>>) attributes {dimension_semantics = [#tpu.dimension_semantics<parallel>], iteration_bounds = array<i64: 2>, scalar_prefetch = 0 : i64, scratch_operands = 0 : i64, tpu.core_type = #tpu.core_type<tc>, window_params = [{transform_indices = @transform_0, window_bounds = array<i64: 1, 256, 1568>}, {pipeline_mode = #tpu.pipeline_mode<synchronous>, transform_indices = @transform_1, window_bounds = array<i64: 1568, 3>}, {pipeline_mode = #tpu.pipeline_mode<synchronous>, transform_indices = @transform_2, window_bounds = array<i64: 1, 3>}, {transform_indices = @transform_3, window_bounds = array<i64: 1, 256, 3>}]} {
    %c0 = arith.constant 0 : index
    %c0_0 = arith.constant 0 : index
    %c0_1 = arith.constant 0 : index
    %0 = vector.load %arg1[%c0, %c0_0, %c0_1] : memref<1x256x1568xbf16, #tpu.memory_space<vmem>>, vector<1x256x1568xbf16>
    %1 = vector.shape_cast %0 : vector<1x256x1568xbf16> to vector<256x1568xbf16>
    %c0_2 = arith.constant 0 : index
    %c0_3 = arith.constant 0 : index
    %2 = vector.load %arg2[%c0_2, %c0_3] : memref<1568x3xbf16, #tpu.memory_space<vmem>>, vector<1568x3xbf16>
    %cst = arith.constant dense<0.000000e+00> : vector<256x3xf32>
    %3 = tpu.matmul %1, %2, %cst {dimension_numbers = #tpu.dot_dimension_numbers<[1], [0], [0], [1], [0, 0, 1, 1], [], []>} : vector<256x1568xbf16>, vector<1568x3xbf16>, vector<256x3xf32> -> vector<256x3xf32>
    %c0_4 = arith.constant 0 : index
    %c0_5 = arith.constant 0 : index
    %4 = vector.load %arg3[%c0_4, %c0_5] : memref<1x3xf32, #tpu.memory_space<vmem>>, vector<1x3xf32>
    %5 = vector.broadcast %4 : vector<1x3xf32> to vector<256x3xf32>
    %6 = arith.addf %3, %5 : vector<256x3xf32>
    %7 = math.tanh %6 : vector<256x3xf32>
    %c0_6 = arith.constant 0 : index
    %c0_7 = arith.constant 0 : index
    %c0_8 = arith.constant 0 : index
    %8 = vector.load %arg4[%c0_6, %c0_7, %c0_8] : memref<1x256x3xf32, #tpu.memory_space<vmem>>, vector<1x256x3xf32>
    %9 = vector.shape_cast %8 : vector<1x256x3xf32> to vector<256x3xf32>
    %10 = vector.shape_cast %7 : vector<256x3xf32> to vector<1x256x3xf32>
    tpu.vector_store %arg4[%c0_6, %c0_7, %c0_8], %10 {strides = array<i32>} : memref<1x256x3xf32, #tpu.memory_space<vmem>>, vector<1x256x3xf32>,
    return
  }
  func.func @transform_0(%arg0: i32) -> (i32, i32, i32) {
    %c0_i32 = arith.constant 0 : i32
    %c0_i32_0 = arith.constant 0 : i32
    %c0_i32_1 = arith.constant 0 : i32
    return %arg0, %c0_i32, %c0_i32_0 : i32, i32, i32
  }
  func.func @transform_1(%arg0: i32) -> (i32, i32) {
    %c0_i32 = arith.constant 0 : i32
    %c0_i32_0 = arith.constant 0 : i32
    %c0_i32_1 = arith.constant 0 : i32
    return %c0_i32, %c0_i32_0 : i32, i32
  }
  func.func @transform_2(%arg0: i32) -> (i32, i32) {
    %c0_i32 = arith.constant 0 : i32
    %c0_i32_0 = arith.constant 0 : i32
    %c0_i32_1 = arith.constant 0 : i32
    return %c0_i32, %c0_i32_0 : i32, i32
  }
  func.func @transform_3(%arg0: i32) -> (i32, i32, i32) {
    %c0_i32 = arith.constant 0 : i32
    %c0_i32_0 = arith.constant 0 : i32
    %c0_i32_1 = arith.constant 0 : i32
    return %arg0, %c0_i32, %c0_i32_0 : i32, i32, i32
  }
}

</mosaic_0001>

<llo_original>
// kernel: resnet_forward.12
$region0: #{resnet_forward.12}
  #allocation0 [shape = 'u32[]', space=smem, size = 0x4, offset = 0x4, fixed_abs, tag = 'smem constant byte address 0x4 - core index']
  #allocation1 [shape = 'u32[144,128]{1,0:T(1,128)}', space=vmem, size = 0x12000, scoped, tag = 'internal scratch']
  %s0 = inlined_call_operand.vmem [shape: bf16[2,256,392], index: 0, kind: input, shape index: {}]
  %s1 = inlined_call_operand.vmem [shape: bf16[392,32], index: 1, kind: input, shape index: {}]
  %s2 = inlined_call_operand.vmem [shape: f32[1,32], index: 2, kind: input, shape index: {}]
  %s3 = inlined_call_operand.vmem [shape: f32[2,256,32], index: 3, kind: output, shape index: {}]
  %s4 = sld [smem:[#allocation0]]
  $region45: #{resnet_forward.12} parent=0
    _
  %s6 = ssub.s32 1, %s4
  %s7 = scalar_select 0, %s6, %s4
  loop: start=0, step=1, limit=4
  $region2: #{resnet_forward.12} parent=0 // loop_pre_header
    _
  $region3: #{resnet_forward.12} parent=0 // loop_header
    %s9 = sphi 0, %s13
    %p10 = scmp.ge.s32.totalorder %s9, 4
    %s19 = sphi 0, %s21
    %s22 = sphi 0, %s19
    %s23 = sphi 0, %s22
    %s39 = sphi 0, %s23
    %s43 = sphi 0, %s43
    %s45 = sphi 0, %s43
    %s46 = sphi 0, %s45
    %s60 = sphi 0, %s46
    %s64 = sphi 0, %s64
    %s66 = sphi 0, %s64
    %s67 = sphi 0, %s66
    %s81 = sphi 0, %s67
    %s87 = sphi 0, %s89
    %s90 = sphi 0, %s87
    %s91 = sphi 0, %s90
    %s107 = sphi 0, %s91
  $region4: #{resnet_forward.12} parent=0 // loop_header_branch
    %12 = sbr.rel (%p10) target = $region8
  $region5: #{resnet_forward.12} parent=0 // loop_body
    %s14 = ssub.s32 %s9, 1
    %s15 = ssub.s32 %s9, 2
    %s16 = sadd.s32 %s9, 1
    %s17 = ssub.s32 %s9, %s16
    %p18 = scmp.eq.s32.totalorder %s17, 0
    %s20 = sadd.s32 %s19, 1
    %s21 = scalar_select %p18, %s19, %s20
    %p24 = pneg %p18
    %p25 = scmp.eq.s32.totalorder %s9, 1
    %p26 = por %p24, %p25
    %p27 = scmp.ne.s32.totalorder %s19, %s22
    %p28 = scmp.eq.s32.totalorder %s9, 0
    %p29 = por %p27, %p28
    %p30 = scmp.ne.s32.totalorder %s19, %s22
    %p31 = scmp.eq.s32.totalorder %s14, 1
    %p32 = por %p30, %p31
    %p33 = scmp.ne.s32.totalorder %s22, %s23
    %p34 = scmp.eq.s32.totalorder %s14, 0
    %p35 = por %p33, %p34
    %p36 = scmp.ne.s32.totalorder %s22, %s23
    %p37 = scmp.eq.s32.totalorder %s15, 1
    %p38 = por %p36, %p37
    %p40 = scmp.ne.s32.totalorder %s23, %s39
    %p41 = scmp.eq.s32.totalorder %s15, 0
    %p42 = por %p40, %p41
    %s44 = sadd.s32 %s43, 1
    %p47 = scmp.eq.s32.totalorder %s9, 1
    %p48 = scmp.ne.s32.totalorder %s43, %s45
    %p49 = scmp.eq.s32.totalorder %s9, 0
    %p50 = por %p48, %p49
    %p51 = scmp.ne.s32.totalorder %s43, %s45
    %p52 = scmp.eq.s32.totalorder %s14, 1
    %p53 = por %p51, %p52
    %p54 = scmp.ne.s32.totalorder %s45, %s46
    %p55 = scmp.eq.s32.totalorder %s14, 0
    %p56 = por %p54, %p55
    %p57 = scmp.ne.s32.totalorder %s45, %s46
    %p58 = scmp.eq.s32.totalorder %s15, 1
    %p59 = por %p57, %p58
    %p61 = scmp.ne.s32.totalorder %s46, %s60
    %p62 = scmp.eq.s32.totalorder %s15, 0
    %p63 = por %p61, %p62
    %s65 = sadd.s32 %s64, 1
    %p68 = scmp.eq.s32.totalorder %s9, 1
    %p69 = scmp.ne.s32.totalorder %s64, %s66
    %p70 = scmp.eq.s32.totalorder %s9, 0
    %p71 = por %p69, %p70
    %p72 = scmp.ne.s32.totalorder %s64, %s66
    %p73 = scmp.eq.s32.totalorder %s14, 1
    %p74 = por %p72, %p73
    %p75 = scmp.ne.s32.totalorder %s66, %s67
    %p76 = scmp.eq.s32.totalorder %s14, 0
    %p77 = por %p75, %p76
    %p78 = scmp.ne.s32.totalorder %s66, %s67
    %p79 = scmp.eq.s32.totalorder %s15, 1
    %p80 = por %p78, %p79
    %p82 = scmp.ne.s32.totalorder %s67, %s81
    %p83 = scmp.eq.s32.totalorder %s15, 0
    %p84 = por %p82, %p83
    %s85 = ssub.s32 %s9, %s16
    %p86 = scmp.eq.s32.totalorder %s85, 0
    %s88 = sadd.s32 %s87, 1
    %s89 = scalar_select %p86, %s87, %s88
    %p92 = pneg %p86
    %p93 = scmp.eq.s32.totalorder %s9, 1
    %p94 = por %p92, %p93
    %p95 = scmp.ne.s32.totalorder %s87, %s90
    %p96 = scmp.eq.s32.totalorder %s9, 0
    %p97 = por %p95, %p96
    %p98 = scmp.ne.s32.totalorder %s87, %s90
    %p99 = scmp.eq.s32.totalorder %s14, 1
    %p100 = por %p98, %p99
    %p101 = scmp.ne.s32.totalorder %s90, %s91
    %p102 = scmp.eq.s32.totalorder %s14, 0
    %p103 = por %p101, %p102
    %p104 = scmp.ne.s32.totalorder %s90, %s91
    %p105 = scmp.eq.s32.totalorder %s15, 1
    %p106 = por %p104, %p105
    %p108 = scmp.ne.s32.totalorder %s91, %s107
    %p109 = scmp.eq.s32.totalorder %s15, 0
    %p110 = por %p108, %p109
    %p111 = scmp.le.s32.totalorder 1, %s9
    %p112 = scmp.lt.s32.totalorder %s9, 3
    %p113 = pnand %p111, %p112
    %p114 = pneg %p113
    // Predicated region
    $region9: #{resnet_forward.12} parent=5 // pred_check
      _
    $region10: #{resnet_forward.12} parent=5 // pred_check_branch
      %116 = sbr.rel (%p113) target = $region12
    $region11: #{resnet_forward.12} parent=5 // pred_region
      %s117 = ssub.s32 %s9, 1
      // Predicated region
      $region13: #{resnet_forward.12} parent=11 // pred_check
        %p118 = pneg %p56
      $region14: #{resnet_forward.12} parent=11 // pred_check_branch
        %120 = sbr.rel (%p118) target = $region16
      $region15: #{resnet_forward.12} parent=11 // pred_region
        _
      $region16: #{resnet_forward.12} parent=11 // pred_fallthru
        _
      // Predicated region
      $region17: #{resnet_forward.12} parent=11 // pred_check
        %p121 = pneg %p77
      $region18: #{resnet_forward.12} parent=11 // pred_check_branch
        %123 = sbr.rel (%p121) target = $region20
      $region19: #{resnet_forward.12} parent=11 // pred_region
        _
      $region20: #{resnet_forward.12} parent=11 // pred_fallthru
        _
    $region12: #{resnet_forward.12} parent=5 // pred_fallthru
      _
    %p124 = scmp.lt.s32.totalorder %s9, 2
    // Predicated region
    $region21: #{resnet_forward.12} parent=5 // pred_check
      %p125 = pneg %p124
    $region22: #{resnet_forward.12} parent=5 // pred_check_branch
      %127 = sbr.rel (%p125) target = $region24
    $region23: #{resnet_forward.12} parent=5 // pred_region
      // Predicated region
      $region25: #{resnet_forward.12} parent=23 // pred_check
        %p128 = pneg %p29
      $region26: #{resnet_forward.12} parent=23 // pred_check_branch
        %130 = sbr.rel (%p128) target = $region28
      $region27: #{resnet_forward.12} parent=23 // pred_region
        %p131 = scmp.lt.s32.totalorder %s9, 1
        %s132 = scalar_select %p131, %s9, 1
        %s133 = smul.addr %s132, 128
        %s134 = smul.addr %s133, 4
        %s135 = scalar_lea.vmem %s0, %s134
      $region28: #{resnet_forward.12} parent=23 // pred_fallthru
        _
    $region24: #{resnet_forward.12} parent=5 // pred_fallthru
      _
    %p136 = scmp.le.s32.totalorder 1, %s9
    %p137 = scmp.lt.s32.totalorder %s9, 3
    %p138 = pnand %p136, %p137
    %p139 = pneg %p138
    // Predicated region
    $region29: #{resnet_forward.12} parent=5 // pred_check
      _
    $region30: #{resnet_forward.12} parent=5 // pred_check_branch
      %141 = sbr.rel (%p138) target = $region32
    $region31: #{resnet_forward.12} parent=5 // pred_region
      %s142 = ssub.s32 %s9, 1
      %p143 = scmp.lt.s32.totalorder %s14, 1
      %s144 = scalar_select %p143, %s14, 1
      %s145 = smul.addr %s144, 128
      %s146 = smul.addr %s145, 4
      %s147 = scalar_lea.vmem %s0, %s146
      %p148 = pneg %p35
      %p149 = pneg %p32
      %p150 = pneg %p56
      %p151 = pneg %p53
      %p152 = pneg %p77
      %p153 = pneg %p74
      %p154 = pneg %p103
      %p155 = pneg %p100
      %p156 = scmp.lt.s32.totalorder %s14, 1
      %s157 = scalar_select %p156, %s14, 1
      %s158 = smul.addr %s157, 32
      %s159 = smul.addr %s158, 8
      %s160 = scalar_lea.vmem %s3, %s159
      %p161 = scmp.lt.s32.totalorder %s14, 1
      %s162 = scalar_select %p161, %s14, 1
      %s163 = smul.addr %s162, 128
      %s164 = smul.addr %s163, 4
      %s165 = scalar_lea.vmem %s0, %s164
      %p166 = scmp.lt.s32.totalorder %s14, 1
      %s167 = scalar_select %p166, %s14, 1
      %s168 = smul.addr %s167, 32
      %s169 = smul.addr %s168, 8
      %s170 = scalar_lea.vmem %s3, %s169
      %v172 = vld [vmem:[%s165] sm:$0xff]
      %v173 = vld [vmem:[%s165 + $0x8] sm:$0xff]
      %v174 = vld [vmem:[%s165 + $0x10] sm:$0xff]
      %v175 = vld [vmem:[%s165 + $0x18] sm:$0xff]
      %v176 = vld [vmem:[%s165 + $0x20] sm:$0xff]
      %v177 = vld [vmem:[%s165 + $0x28] sm:$0xff]
      %v178 = vld [vmem:[%s165 + $0x30] sm:$0xff]
      %v179 = vld [vmem:[%s165 + $0x38] sm:$0xff]
      %v180 = vld [vmem:[%s165 + $0x40] sm:$0xff]
      %v181 = vld [vmem:[%s165 + $0x48] sm:$0xff]
      %v182 = vld [vmem:[%s165 + $0x50] sm:$0xff]
      %v183 = vld [vmem:[%s165 + $0x58] sm:$0xff]
      %v184 = vld [vmem:[%s165 + $0x60] sm:$0xff]
      %v185 = vld [vmem:[%s165 + $0x68] sm:$0xff]
      %v186 = vld [vmem:[%s165 + $0x70] sm:$0xff]
      %v187 = vld [vmem:[%s165 + $0x78] sm:$0xff]
      %v188 = vld [vmem:[%s165 + $0x80] sm:$0xff]
      %v189 = vld [vmem:[%s165 + $0x88] sm:$0xff]
      %v190 = vld [vmem:[%s165 + $0x90] sm:$0xff]
      %v191 = vld [vmem:[%s165 + $0x98] sm:$0xff]
      %v192 = vld [vmem:[%s165 + $0xa0] sm:$0xff]
      %v193 = vld [vmem:[%s165 + $0xa8] sm:$0xff]
      %v194 = vld [vmem:[%s165 + $0xb0] sm:$0xff]
      %v195 = vld [vmem:[%s165 + $0xb8] sm:$0xff]
      %v196 = vld [vmem:[%s165 + $0xc0] sm:$0xff]
      %v197 = vld [vmem:[%s165 + $0xc8] sm:$0xff]
      %v198 = vld [vmem:[%s165 + $0xd0] sm:$0xff]
      %v199 = vld [vmem:[%s165 + $0xd8] sm:$0xff]
      %v200 = vld [vmem:[%s165 + $0xe0] sm:$0xff]
      %v201 = vld [vmem:[%s165 + $0xe8] sm:$0xff]
      %v202 = vld [vmem:[%s165 + $0xf0] sm:$0xff]
      %v203 = vld [vmem:[%s165 + $0xf8] sm:$0xff]
      %v204 = vld [vmem:[%s165 + $0x100] sm:$0xff]
      %v205 = vld [vmem:[%s165 + $0x108] sm:$0xff]
      %v206 = vld [vmem:[%s165 + $0x110] sm:$0xff]
      %v207 = vld [vmem:[%s165 + $0x118] sm:$0xff]
      %v208 = vld [vmem:[%s165 + $0x120] sm:$0xff]
      %v209 = vld [vmem:[%s165 + $0x128] sm:$0xff]
      %v210 = vld [vmem:[%s165 + $0x130] sm:$0xff]
      %v211 = vld [vmem:[%s165 + $0x138] sm:$0xff]
      %v212 = vld [vmem:[%s165 + $0x140] sm:$0xff]
      %v213 = vld [vmem:[%s165 + $0x148] sm:$0xff]
      %v214 = vld [vmem:[%s165 + $0x150] sm:$0xff]
      %v215 = vld [vmem:[%s165 + $0x158] sm:$0xff]
      %v216 = vld [vmem:[%s165 + $0x160] sm:$0xff]
      %v217 = vld [vmem:[%s165 + $0x168] sm:$0xff]
      %v218 = vld [vmem:[%s165 + $0x170] sm:$0xff]
      %v219 = vld [vmem:[%s165 + $0x178] sm:$0xff]
      %v220 = vld [vmem:[%s165 + $0x180] sm:$0xff]
      %v221 = vld [vmem:[%s165 + $0x188] sm:$0xff]
      %v222 = vld [vmem:[%s165 + $0x190] sm:$0xff]
      %v223 = vld [vmem:[%s165 + $0x198] sm:$0xff]
      %v224 = vld [vmem:[%s165 + $0x1a0] sm:$0xff]
      %v225 = vld [vmem:[%s165 + $0x1a8] sm:$0xff]
      %v226 = vld [vmem:[%s165 + $0x1b0] sm:$0xff]
      %v227 = vld [vmem:[%s165 + $0x1b8] sm:$0xff]
      %v228 = vld [vmem:[%s165 + $0x1c0] sm:$0xff]
      %v229 = vld [vmem:[%s165 + $0x1c8] sm:$0xff]
      %v230 = vld [vmem:[%s165 + $0x1d0] sm:$0xff]
      %v231 = vld [vmem:[%s165 + $0x1d8] sm:$0xff]
      %v232 = vld [vmem:[%s165 + $0x1e0] sm:$0xff]
      %v233 = vld [vmem:[%s165 + $0x1e8] sm:$0xff]
      %v234 = vld [vmem:[%s165 + $0x1f0] sm:$0xff]
      %v235 = vld [vmem:[%s165 + $0x1f8] sm:$0xff]
      %v236 = vld [vmem:[%s1] sm:$0xf]
      %v237 = vld [vmem:[%s1 + $0x4] sm:$0xf]
      %v238 = vld [vmem:[%s1 + $0x8] sm:$0xf]
      %v239 = vld [vmem:[%s1 + $0xc] sm:$0xf]
      %v240 = vld [vmem:[%s1 + $0x10] sm:$0xf]
      %v241 = vld [vmem:[%s1 + $0x14] sm:$0xf]
      %v242 = vld [vmem:[%s1 + $0x18] sm:$0xf]
      %v243 = vld [vmem:[%s1 + $0x1c] sm:$0xf]
      %v244 = vld [vmem:[%s1 + $0x20] sm:$0xf]
      %v245 = vld [vmem:[%s1 + $0x24] sm:$0xf]
      %v246 = vld [vmem:[%s1 + $0x28] sm:$0xf]
      %v247 = vld [vmem:[%s1 + $0x2c] sm:$0xf]
      %v248 = vld [vmem:[%s1 + $0x30] sm:$0xf]
      %v249 = vld [vmem:[%s1 + $0x34] sm:$0xf]
      %v250 = vld [vmem:[%s1 + $0x38] sm:$0xf]
      %v251 = vld [vmem:[%s1 + $0x3c] sm:$0xf]
      %v252 = vld [vmem:[%s1 + $0x40] sm:$0xf]
      %v253 = vld [vmem:[%s1 + $0x44] sm:$0xf]
      %v254 = vld [vmem:[%s1 + $0x48] sm:$0xf]
      %v255 = vld [vmem:[%s1 + $0x4c] sm:$0xf]
      %v256 = vld [vmem:[%s1 + $0x50] sm:$0xf]
      %v257 = vld [vmem:[%s1 + $0x54] sm:$0xf]
      %v258 = vld [vmem:[%s1 + $0x58] sm:$0xf]
      %v259 = vld [vmem:[%s1 + $0x5c] sm:$0xf]
      %v260 = vld [vmem:[%s1 + $0x60] sm:$0xf]
      %v261 = vld [vmem:[%s1 + $0x64] sm:$0xf]
      %v262 = vld [vmem:[%s1 + $0x68] sm:$0xf]
      %v263 = vld [vmem:[%s1 + $0x6c] sm:$0xf]
      %v264 = vld [vmem:[%s1 + $0x70] sm:$0xf]
      %v265 = vld [vmem:[%s1 + $0x74] sm:$0xf]
      %v266 = vld [vmem:[%s1 + $0x78] sm:$0xf]
      %v267 = vld [vmem:[%s1 + $0x7c] sm:$0xf]
      %v268 = vld [vmem:[%s1 + $0x80] sm:$0xf]
      %v269 = vld [vmem:[%s1 + $0x84] sm:$0xf]
      %v270 = vld [vmem:[%s1 + $0x88] sm:$0xf]
      %v271 = vld [vmem:[%s1 + $0x8c] sm:$0xf]
      %v272 = vld [vmem:[%s1 + $0x90] sm:$0xf]
      %v273 = vld [vmem:[%s1 + $0x94] sm:$0xf]
      %v274 = vld [vmem:[%s1 + $0x98] sm:$0xf]
      %v275 = vld [vmem:[%s1 + $0x9c] sm:$0xf]
      %v276 = vld [vmem:[%s1 + $0xa0] sm:$0xf]
      %v277 = vld [vmem:[%s1 + $0xa4] sm:$0xf]
      %v278 = vld [vmem:[%s1 + $0xa8] sm:$0xf]
      %v279 = vld [vmem:[%s1 + $0xac] sm:$0xf]
      %v280 = vld [vmem:[%s1 + $0xb0] sm:$0xf]
      %v281 = vld [vmem:[%s1 + $0xb4] sm:$0xf]
      %v282 = vld [vmem:[%s1 + $0xb8] sm:$0xf]
      %v283 = vld [vmem:[%s1 + $0xbc] sm:$0xf]
      %v284 = vld [vmem:[%s1 + $0xc0] sm:$0xf]
      %v285 = vld [vmem:[%s2] sm:$0x1]
      %v287 = vlaneseq
      %v288 = vshrl.u32 %v287, 7
      %v289 = vsub.s32 0, %v288
      %v290 = vrot.slane %v285, %v289
      %v356 = vunpack.c.l.b16 %v172
      %v357 = vunpack.c.h.b16 %v172
      %v358 = vunpack.c.l.b16 %v173
      %v359 = vunpack.c.h.b16 %v173
      %v360 = vunpack.c.l.b16 %v174
      %v361 = vunpack.c.h.b16 %v174
      %v362 = vunpack.c.l.b16 %v175
      %v363 = vunpack.c.h.b16 %v175
      %v364 = vunpack.c.l.b16 %v176
      %v365 = vunpack.c.h.b16 %v176
      %v366 = vunpack.c.l.b16 %v177
      %v367 = vunpack.c.h.b16 %v177
      %v368 = vunpack.c.l.b16 %v178
      %v369 = vunpack.c.h.b16 %v178
      %v370 = vunpack.c.l.b16 %v179
      %v371 = vunpack.c.h.b16 %v179
      %v372 = vunpack.c.l.b16 %v180
      %v373 = vunpack.c.h.b16 %v180
      %v374 = vunpack.c.l.b16 %v181
      %v375 = vunpack.c.h.b16 %v181
      %v376 = vunpack.c.l.b16 %v182
      %v377 = vunpack.c.h.b16 %v182
      %v378 = vunpack.c.l.b16 %v183
      %v379 = vunpack.c.h.b16 %v183
      %v380 = vunpack.c.l.b16 %v184
      %v381 = vunpack.c.h.b16 %v184
      %v382 = vunpack.c.l.b16 %v185
      %v383 = vunpack.c.h.b16 %v185
      %v384 = vunpack.c.l.b16 %v186
      %v385 = vunpack.c.h.b16 %v186
      %v386 = vunpack.c.l.b16 %v187
      %v387 = vunpack.c.h.b16 %v187
      %v388 = vunpack.c.l.b16 %v188
      %v389 = vunpack.c.h.b16 %v188
      %v390 = vunpack.c.l.b16 %v189
      %v391 = vunpack.c.h.b16 %v189
      %v392 = vunpack.c.l.b16 %v190
      %v393 = vunpack.c.h.b16 %v190
      %v394 = vunpack.c.l.b16 %v191
      %v395 = vunpack.c.h.b16 %v191
      %v396 = vunpack.c.l.b16 %v192
      %v397 = vunpack.c.h.b16 %v192
      %v398 = vunpack.c.l.b16 %v193
      %v399 = vunpack.c.h.b16 %v193
      %v400 = vunpack.c.l.b16 %v194
      %v401 = vunpack.c.h.b16 %v194
      %v402 = vunpack.c.l.b16 %v195
      %v403 = vunpack.c.h.b16 %v195
      %v404 = vunpack.c.l.b16 %v196
      %v405 = vunpack.c.h.b16 %v196
      %v406 = vunpack.c.l.b16 %v197
      %v407 = vunpack.c.h.b16 %v197
      %v408 = vunpack.c.l.b16 %v198
      %v409 = vunpack.c.h.b16 %v198
      %v410 = vunpack.c.l.b16 %v199
      %v411 = vunpack.c.h.b16 %v199
      %v412 = vunpack.c.l.b16 %v200
      %v413 = vunpack.c.h.b16 %v200
      %v414 = vunpack.c.l.b16 %v201
      %v415 = vunpack.c.h.b16 %v201
      %v416 = vunpack.c.l.b16 %v202
      %v417 = vunpack.c.h.b16 %v202
      %v418 = vunpack.c.l.b16 %v203
      %v419 = vunpack.c.h.b16 %v203
      %v420 = vunpack.c.l.b16 %v204
      %v421 = vunpack.c.h.b16 %v204
      %v422 = vunpack.c.l.b16 %v205
      %v423 = vunpack.c.h.b16 %v205
      %v424 = vunpack.c.l.b16 %v206
      %v425 = vunpack.c.h.b16 %v206
      %v426 = vunpack.c.l.b16 %v207
      %v427 = vunpack.c.h.b16 %v207
      %v428 = vunpack.c.l.b16 %v208
      %v429 = vunpack.c.h.b16 %v208
      %v430 = vunpack.c.l.b16 %v209
      %v431 = vunpack.c.h.b16 %v209
      %v432 = vunpack.c.l.b16 %v210
      %v433 = vunpack.c.h.b16 %v210
      %v434 = vunpack.c.l.b16 %v211
      %v435 = vunpack.c.h.b16 %v211
      %v436 = vunpack.c.l.b16 %v212
      %v437 = vunpack.c.h.b16 %v212
      %v438 = vunpack.c.l.b16 %v213
      %v439 = vunpack.c.h.b16 %v213
      %v440 = vunpack.c.l.b16 %v214
      %v441 = vunpack.c.h.b16 %v214
      %v442 = vunpack.c.l.b16 %v215
      %v443 = vunpack.c.h.b16 %v215
      %v444 = vunpack.c.l.b16 %v216
      %v445 = vunpack.c.h.b16 %v216
      %v446 = vunpack.c.l.b16 %v217
      %v447 = vunpack.c.h.b16 %v217
      %v448 = vunpack.c.l.b16 %v218
      %v449 = vunpack.c.h.b16 %v218
      %v450 = vunpack.c.l.b16 %v219
      %v451 = vunpack.c.h.b16 %v219
      %v452 = vunpack.c.l.b16 %v220
      %v453 = vunpack.c.h.b16 %v220
      %v454 = vunpack.c.l.b16 %v221
      %v455 = vunpack.c.h.b16 %v221
      %v456 = vunpack.c.l.b16 %v222
      %v457 = vunpack.c.h.b16 %v222
      %v458 = vunpack.c.l.b16 %v223
      %v459 = vunpack.c.h.b16 %v223
      %v460 = vunpack.c.l.b16 %v224
      %v461 = vunpack.c.h.b16 %v224
      %v462 = vunpack.c.l.b16 %v225
      %v463 = vunpack.c.h.b16 %v225
      %v464 = vunpack.c.l.b16 %v226
      %v465 = vunpack.c.h.b16 %v226
      %v466 = vunpack.c.l.b16 %v227
      %v467 = vunpack.c.h.b16 %v227
      %v468 = vunpack.c.l.b16 %v228
      %v469 = vunpack.c.h.b16 %v228
      %v470 = vunpack.c.l.b16 %v229
      %v471 = vunpack.c.h.b16 %v229
      %v472 = vunpack.c.l.b16 %v230
      %v473 = vunpack.c.h.b16 %v230
      %v474 = vunpack.c.l.b16 %v231
      %v475 = vunpack.c.h.b16 %v231
      %v476 = vunpack.c.l.b16 %v232
      %v477 = vunpack.c.h.b16 %v232
      %v478 = vunpack.c.l.b16 %v233
      %v479 = vunpack.c.h.b16 %v233
      %v480 = vunpack.c.l.b16 %v234
      %v481 = vunpack.c.h.b16 %v234
      %v482 = vunpack.c.l.b16 %v235
      %v483 = vunpack.c.h.b16 %v235
      %v484 = vpack.c.b16 %v360, %v356
      %v485 = vpack.c.b16 %v361, %v357
      %v486 = vpack.c.b16 %v362, %v358
      %v487 = vpack.c.b16 %v363, %v359
      %v488 = vpack.c.b16 %v368, %v364
      %v489 = vpack.c.b16 %v369, %v365
      %v490 = vpack.c.b16 %v370, %v366
      %v491 = vpack.c.b16 %v371, %v367
      %v492 = vpack.c.b16 %v376, %v372
      %v493 = vpack.c.b16 %v377, %v373
      %v494 = vpack.c.b16 %v378, %v374
      %v495 = vpack.c.b16 %v379, %v375
      %v496 = vpack.c.b16 %v384, %v380
      %v497 = vpack.c.b16 %v385, %v381
      %v498 = vpack.c.b16 %v386, %v382
      %v499 = vpack.c.b16 %v387, %v383
      %v500 = vpack.c.b16 %v392, %v388
      %v501 = vpack.c.b16 %v393, %v389
      %v502 = vpack.c.b16 %v394, %v390
      %v503 = vpack.c.b16 %v395, %v391
      %v504 = vpack.c.b16 %v400, %v396
      %v505 = vpack.c.b16 %v401, %v397
      %v506 = vpack.c.b16 %v402, %v398
      %v507 = vpack.c.b16 %v403, %v399
      %v508 = vpack.c.b16 %v408, %v404
      %v509 = vpack.c.b16 %v409, %v405
      %v510 = vpack.c.b16 %v410, %v406
      %v511 = vpack.c.b16 %v411, %v407
      %v512 = vpack.c.b16 %v416, %v412
      %v513 = vpack.c.b16 %v417, %v413
      %v514 = vpack.c.b16 %v418, %v414
      %v515 = vpack.c.b16 %v419, %v415
      %v516 = vpack.c.b16 %v424, %v420
      %v517 = vpack.c.b16 %v425, %v421
      %v518 = vpack.c.b16 %v426, %v422
      %v519 = vpack.c.b16 %v427, %v423
      %v520 = vpack.c.b16 %v432, %v428
      %v521 = vpack.c.b16 %v433, %v429
      %v522 = vpack.c.b16 %v434, %v430
      %v523 = vpack.c.b16 %v435, %v431
      %v524 = vpack.c.b16 %v440, %v436
      %v525 = vpack.c.b16 %v441, %v437
      %v526 = vpack.c.b16 %v442, %v438
      %v527 = vpack.c.b16 %v443, %v439
      %v528 = vpack.c.b16 %v448, %v444
      %v529 = vpack.c.b16 %v449, %v445
      %v530 = vpack.c.b16 %v450, %v446
      %v531 = vpack.c.b16 %v451, %v447
      %v532 = vpack.c.b16 %v456, %v452
      %v533 = vpack.c.b16 %v457, %v453
      %v534 = vpack.c.b16 %v458, %v454
      %v535 = vpack.c.b16 %v459, %v455
      %v536 = vpack.c.b16 %v464, %v460
      %v537 = vpack.c.b16 %v465, %v461
      %v538 = vpack.c.b16 %v466, %v462
      %v539 = vpack.c.b16 %v467, %v463
      %v540 = vpack.c.b16 %v472, %v468
      %v541 = vpack.c.b16 %v473, %v469
      %v542 = vpack.c.b16 %v474, %v470
      %v543 = vpack.c.b16 %v475, %v471
      %v544 = vpack.c.b16 %v480, %v476
      %v545 = vpack.c.b16 %v481, %v477
      %v546 = vpack.c.b16 %v482, %v478
      %v547 = vpack.c.b16 %v483, %v479
      %v645 = vunpack.c.l.b16 %v236
      %v646 = vunpack.c.l.b16 %v237
      %v647 = vunpack.c.l.b16 %v238
      %v648 = vunpack.c.l.b16 %v239
      %v649 = vunpack.c.l.b16 %v240
      %v650 = vunpack.c.l.b16 %v241
      %v651 = vunpack.c.l.b16 %v242
      %v652 = vunpack.c.l.b16 %v243
      %v653 = vunpack.c.l.b16 %v244
      %v654 = vunpack.c.l.b16 %v245
      %v655 = vunpack.c.l.b16 %v246
      %v656 = vunpack.c.l.b16 %v247
      %v657 = vunpack.c.l.b16 %v248
      %v658 = vunpack.c.l.b16 %v249
      %v659 = vunpack.c.l.b16 %v250
      %v660 = vunpack.c.l.b16 %v251
      %v661 = vunpack.c.l.b16 %v252
      %v662 = vunpack.c.l.b16 %v253
      %v663 = vunpack.c.l.b16 %v254
      %v664 = vunpack.c.l.b16 %v255
      %v665 = vunpack.c.l.b16 %v256
      %v666 = vunpack.c.l.b16 %v257
      %v667 = vunpack.c.l.b16 %v258
      %v668 = vunpack.c.l.b16 %v259
      %v669 = vunpack.c.l.b16 %v260
      %v670 = vunpack.c.l.b16 %v261
      %v671 = vunpack.c.l.b16 %v262
      %v672 = vunpack.c.l.b16 %v263
      %v673 = vunpack.c.l.b16 %v264
      %v674 = vunpack.c.l.b16 %v265
      %v675 = vunpack.c.l.b16 %v266
      %v676 = vunpack.c.l.b16 %v267
      %v677 = vunpack.c.l.b16 %v268
      %v678 = vunpack.c.l.b16 %v269
      %v679 = vunpack.c.l.b16 %v270
      %v680 = vunpack.c.l.b16 %v271
      %v681 = vunpack.c.l.b16 %v272
      %v682 = vunpack.c.l.b16 %v273
      %v683 = vunpack.c.l.b16 %v274
      %v684 = vunpack.c.l.b16 %v275
      %v685 = vunpack.c.l.b16 %v276
      %v686 = vunpack.c.l.b16 %v277
      %v687 = vunpack.c.l.b16 %v278
      %v688 = vunpack.c.l.b16 %v279
      %v689 = vunpack.c.l.b16 %v280
      %v690 = vunpack.c.l.b16 %v281
      %v691 = vunpack.c.l.b16 %v282
      %v692 = vunpack.c.l.b16 %v283
      %v693 = vunpack.c.l.b16 %v284
      %v694 = vpack.c.b16 %v646, %v645
      %v695 = vpack.c.b16 %v648, %v647
      %v696 = vpack.c.b16 %v650, %v649
      %v697 = vpack.c.b16 %v652, %v651
      %v698 = vpack.c.b16 %v654, %v653
      %v699 = vpack.c.b16 %v656, %v655
      %v700 = vpack.c.b16 %v658, %v657
      %v701 = vpack.c.b16 %v660, %v659
      %v702 = vpack.c.b16 %v662, %v661
      %v703 = vpack.c.b16 %v664, %v663
      %v704 = vpack.c.b16 %v666, %v665
      %v705 = vpack.c.b16 %v668, %v667
      %v706 = vpack.c.b16 %v670, %v669
      %v707 = vpack.c.b16 %v672, %v671
      %v708 = vpack.c.b16 %v674, %v673
      %v709 = vpack.c.b16 %v676, %v675
      %v710 = vpack.c.b16 %v678, %v677
      %v711 = vpack.c.b16 %v680, %v679
      %v712 = vpack.c.b16 %v682, %v681
      %v713 = vpack.c.b16 %v684, %v683
      %v714 = vpack.c.b16 %v686, %v685
      %v715 = vpack.c.b16 %v688, %v687
      %v716 = vpack.c.b16 %v690, %v689
      %v717 = vpack.c.b16 %v692, %v691
      %v718 = vpack.c.b16 %v693, %v693
      %vm743 = vcmask 64512
      %v745 = vsel %vm743, %v487, 0
      %v748 = vsel %vm743, %v491, 0
      %v751 = vsel %vm743, %v495, 0
      %v754 = vsel %vm743, %v499, 0
      %v757 = vsel %vm743, %v503, 0
      %v760 = vsel %vm743, %v507, 0
      %v763 = vsel %vm743, %v511, 0
      %v766 = vsel %vm743, %v515, 0
      %v769 = vsel %vm743, %v519, 0
      %v772 = vsel %vm743, %v523, 0
      %v775 = vsel %vm743, %v527, 0
      %v778 = vsel %vm743, %v531, 0
      %v781 = vsel %vm743, %v535, 0
      %v784 = vsel %vm743, %v539, 0
      %v787 = vsel %vm743, %v543, 0
      %v790 = vsel %vm743, %v547, 0
      %vm792 = vcmask 1043456
      %v794 = vsel %vm792, %v718, 0
      %796 = vmatprep.subr.bf16.mxu0 0
      %797 = vmatpush1.bf16.msra.mxu0 %v701
      %798 = vmatprep.subr.bf16.mxu0 0
      %799 = vmatpush1.bf16.msra.mxu0 %v700
      %800 = vmatprep.subr.bf16.mxu0 0
      %801 = vmatpush1.bf16.msra.mxu0 %v699
      %802 = vmatprep.subr.bf16.mxu0 0
      %803 = vmatpush1.bf16.msra.mxu0 %v698
      %804 = vmatprep.subr.bf16.mxu0 0
      %805 = vmatpush1.bf16.msra.mxu0 %v697
      %806 = vmatprep.subr.bf16.mxu0 0
      %807 = vmatpush1.bf16.msra.mxu0 %v696
      %808 = vmatprep.subr.bf16.mxu0 0
      %809 = vmatpush1.bf16.msra.mxu0 %v695
      %810 = vmatprep.subr.bf16.mxu0 0
      %811 = vmatpush1.bf16.msra.mxu0 %v694
      %812 = vmatprep.subr.bf16.mxu0 0
      %813 = vmatpush2.bf16.msra.mxu0 %v709
      %814 = vmatprep.subr.bf16.mxu0 0
      %815 = vmatpush2.bf16.msra.mxu0 %v708
      %816 = vmatprep.subr.bf16.mxu0 0
      %817 = vmatpush2.bf16.msra.mxu0 %v707
      %818 = vmatprep.subr.bf16.mxu0 0
      %819 = vmatpush2.bf16.msra.mxu0 %v706
      %820 = vmatprep.subr.bf16.mxu0 0
      %821 = vmatpush2.bf16.msra.mxu0 %v705
      %822 = vmatprep.subr.bf16.mxu0 0
      %823 = vmatpush2.bf16.msra.mxu0 %v704
      %824 = vmatprep.subr.bf16.mxu0 0
      %825 = vmatpush2.bf16.msra.mxu0 %v703
      %826 = vmatprep.subr.bf16.mxu0 0
      %827 = vmatpush2.bf16.msra.mxu0 %v702
      %828 = vmatprep.mubr.bf16.mxu0 %v485
      %829 = vmatmul.mubr.bf16.gmra.mxu0 %v484
      %v830 = vpop.f32.mrf.mxu0
      %v831 = vadd.f32 %v290, %v830
      %v832 = vpop.f32.mrf.mxu0
      %v833 = vpop.f32.mrf.mxu0
      %v834 = vadd.f32 %v290, %v833
      %v835 = vpop.f32.mrf.mxu0
      %836 = vmatprep.mubr.bf16.mxu0 %v489
      %837 = vmatmul.mubr.bf16.gmra.mxu0 %v488
      %v838 = vpop.f32.mrf.mxu0
      %v839 = vadd.f32 %v290, %v838
      %v840 = vpop.f32.mrf.mxu0
      %v841 = vpop.f32.mrf.mxu0
      %v842 = vadd.f32 %v290, %v841
      %v843 = vpop.f32.mrf.mxu0
      %844 = vmatprep.mubr.bf16.mxu0 %v493
      %845 = vmatmul.mubr.bf16.gmra.mxu0 %v492
      %v846 = vpop.f32.mrf.mxu0
      %v847 = vadd.f32 %v290, %v846
      %v848 = vpop.f32.mrf.mxu0
      %v849 = vpop.f32.mrf.mxu0
      %v850 = vadd.f32 %v290, %v849
      %v851 = vpop.f32.mrf.mxu0
      %852 = vmatprep.mubr.bf16.mxu0 %v497
      %853 = vmatmul.mubr.bf16.gmra.mxu0 %v496
      %v854 = vpop.f32.mrf.mxu0
      %v855 = vadd.f32 %v290, %v854
      %v856 = vpop.f32.mrf.mxu0
      %v857 = vpop.f32.mrf.mxu0
      %v858 = vadd.f32 %v290, %v857
      %v859 = vpop.f32.mrf.mxu0
      %860 = vmatprep.mubr.bf16.mxu0 %v501
      %861 = vmatmul.mubr.bf16.gmra.mxu0 %v500
      %v862 = vpop.f32.mrf.mxu0
      %v863 = vadd.f32 %v290, %v862
      %v864 = vpop.f32.mrf.mxu0
      %v865 = vpop.f32.mrf.mxu0
      %v866 = vadd.f32 %v290, %v865
      %v867 = vpop.f32.mrf.mxu0
      %868 = vmatprep.mubr.bf16.mxu0 %v505
      %869 = vmatmul.mubr.bf16.gmra.mxu0 %v504
      %v870 = vpop.f32.mrf.mxu0
      %v871 = vadd.f32 %v290, %v870
      %v872 = vpop.f32.mrf.mxu0
      %v873 = vpop.f32.mrf.mxu0
      %v874 = vadd.f32 %v290, %v873
      %v875 = vpop.f32.mrf.mxu0
      %876 = vmatprep.mubr.bf16.mxu0 %v509
      %877 = vmatmul.mubr.bf16.gmra.mxu0 %v508
      %v878 = vpop.f32.mrf.mxu0
      %v879 = vadd.f32 %v290, %v878
      %v880 = vpop.f32.mrf.mxu0
      %v881 = vpop.f32.mrf.mxu0
      %v882 = vadd.f32 %v290, %v881
      %v883 = vpop.f32.mrf.mxu0
      %884 = vmatprep.mubr.bf16.mxu0 %v513
      %885 = vmatmul.mubr.bf16.gmra.mxu0 %v512
      %v886 = vpop.f32.mrf.mxu0
      %v887 = vadd.f32 %v290, %v886
      %v888 = vpop.f32.mrf.mxu0
      %v889 = vpop.f32.mrf.mxu0
      %v890 = vadd.f32 %v290, %v889
      %v891 = vpop.f32.mrf.mxu0
      %892 = vmatprep.mubr.bf16.mxu0 %v517
      %893 = vmatmul.mubr.bf16.gmra.mxu0 %v516
      %v894 = vpop.f32.mrf.mxu0
      %v895 = vadd.f32 %v290, %v894
      %v896 = vpop.f32.mrf.mxu0
      %v897 = vpop.f32.mrf.mxu0
      %v898 = vadd.f32 %v290, %v897
      %v899 = vpop.f32.mrf.mxu0
      %900 = vmatprep.mubr.bf16.mxu0 %v521
      %901 = vmatmul.mubr.bf16.gmra.mxu0 %v520
      %v902 = vpop.f32.mrf.mxu0
      %v903 = vadd.f32 %v290, %v902
      %v904 = vpop.f32.mrf.mxu0
      %v905 = vpop.f32.mrf.mxu0
      %v906 = vadd.f32 %v290, %v905
      %v907 = vpop.f32.mrf.mxu0
      %908 = vmatprep.mubr.bf16.mxu0 %v525
      %909 = vmatmul.mubr.bf16.gmra.mxu0 %v524
      %v910 = vpop.f32.mrf.mxu0
      %v911 = vadd.f32 %v290, %v910
      %v912 = vpop.f32.mrf.mxu0
      %v913 = vpop.f32.mrf.mxu0
      %v914 = vadd.f32 %v290, %v913
      %v915 = vpop.f32.mrf.mxu0
      %916 = vmatprep.mubr.bf16.mxu0 %v529
      %917 = vmatmul.mubr.bf16.gmra.mxu0 %v528
      %v918 = vpop.f32.mrf.mxu0
      %v919 = vadd.f32 %v290, %v918
      %v920 = vpop.f32.mrf.mxu0
      %v921 = vpop.f32.mrf.mxu0
      %v922 = vadd.f32 %v290, %v921
      %v923 = vpop.f32.mrf.mxu0
      %924 = vmatprep.mubr.bf16.mxu0 %v533
      %925 = vmatmul.mubr.bf16.gmra.mxu0 %v532
      %v926 = vpop.f32.mrf.mxu0
      %v927 = vadd.f32 %v290, %v926
      %v928 = vpop.f32.mrf.mxu0
      %v929 = vpop.f32.mrf.mxu0
      %v930 = vadd.f32 %v290, %v929
      %v931 = vpop.f32.mrf.mxu0
      %932 = vmatprep.mubr.bf16.mxu0 %v537
      %933 = vmatmul.mubr.bf16.gmra.mxu0 %v536
      %v934 = vpop.f32.mrf.mxu0
      %v935 = vadd.f32 %v290, %v934
      %v936 = vpop.f32.mrf.mxu0
      %v937 = vpop.f32.mrf.mxu0
      %v938 = vadd.f32 %v290, %v937
      %v939 = vpop.f32.mrf.mxu0
      %940 = vmatprep.mubr.bf16.mxu0 %v541
      %941 = vmatmul.mubr.bf16.gmra.mxu0 %v540
      %v942 = vpop.f32.mrf.mxu0
      %v943 = vadd.f32 %v290, %v942
      %v944 = vpop.f32.mrf.mxu0
      %v945 = vpop.f32.mrf.mxu0
      %v946 = vadd.f32 %v290, %v945
      %v947 = vpop.f32.mrf.mxu0
      %948 = vmatprep.mubr.bf16.mxu0 %v545
      %949 = vmatmul.mubr.bf16.gmra.mxu0 %v544
      %v950 = vpop.f32.mrf.mxu0
      %v951 = vadd.f32 %v290, %v950
      %v952 = vpop.f32.mrf.mxu0
      %v953 = vpop.f32.mrf.mxu0
      %v954 = vadd.f32 %v290, %v953
      %v955 = vpop.f32.mrf.mxu0
      %956 = vdwg.mxu0
      %957 = vmatprep.subr.bf16.mxu0 0
      %958 = vmatpush1.bf16.msra.mxu0 %v717
      %959 = vmatprep.subr.bf16.mxu0 0
      %960 = vmatpush1.bf16.msra.mxu0 %v716
      %961 = vmatprep.subr.bf16.mxu0 0
      %962 = vmatpush1.bf16.msra.mxu0 %v715
      %963 = vmatprep.subr.bf16.mxu0 0
      %964 = vmatpush1.bf16.msra.mxu0 %v714
      %965 = vmatprep.subr.bf16.mxu0 0
      %966 = vmatpush1.bf16.msra.mxu0 %v713
      %967 = vmatprep.subr.bf16.mxu0 0
      %968 = vmatpush1.bf16.msra.mxu0 %v712
      %969 = vmatprep.subr.bf16.mxu0 0
      %970 = vmatpush1.bf16.msra.mxu0 %v711
      %971 = vmatprep.subr.bf16.mxu0 0
      %972 = vmatpush1.bf16.msra.mxu0 %v710
      %973 = vmatprep.subr.bf16.mxu0 0
      %974 = vmatpush2.bf16.msra.mxu0 0
      %975 = vmatprep.subr.bf16.mxu0 0
      %976 = vmatpush2.bf16.msra.mxu0 0
      %977 = vmatprep.subr.bf16.mxu0 0
      %978 = vmatpush2.bf16.msra.mxu0 0
      %979 = vmatprep.subr.bf16.mxu0 0
      %980 = vmatpush2.bf16.msra.mxu0 0
      %981 = vmatprep.subr.bf16.mxu0 0
      %982 = vmatpush2.bf16.msra.mxu0 0
      %983 = vmatprep.subr.bf16.mxu0 0
      %984 = vmatpush2.bf16.msra.mxu0 0
      %985 = vmatprep.subr.bf16.mxu0 0
      %986 = vmatpush2.bf16.msra.mxu0 0
      %987 = vmatprep.subr.bf16.mxu0 0
      %988 = vmatpush2.bf16.msra.mxu0 %v794
      %989 = vmatprep.mubr.bf16.mxu0 %v745
      %990 = vmatmul.mubr.bf16.gmra.mxu0 %v486
      %v991 = vpop.f32.mrf.mxu0
      %v992 = vadd.f32 %v831, %v991
      %v993 = vpop.f32.mrf.mxu0
      %v994 = vpop.f32.mrf.mxu0
      %v995 = vadd.f32 %v834, %v994
      %v996 = vpop.f32.mrf.mxu0
      %997 = vmatprep.mubr.bf16.mxu0 %v748
      %998 = vmatmul.mubr.bf16.gmra.mxu0 %v490
      %v999 = vpop.f32.mrf.mxu0
      %v1000 = vadd.f32 %v839, %v999
      %v1001 = vpop.f32.mrf.mxu0
      %v1002 = vpop.f32.mrf.mxu0
      %v1003 = vadd.f32 %v842, %v1002
      %v1004 = vpop.f32.mrf.mxu0
      %1005 = vmatprep.mubr.bf16.mxu0 %v751
      %1006 = vmatmul.mubr.bf16.gmra.mxu0 %v494
      %v1007 = vpop.f32.mrf.mxu0
      %v1008 = vadd.f32 %v847, %v1007
      %v1009 = vpop.f32.mrf.mxu0
      %v1010 = vpop.f32.mrf.mxu0
      %v1011 = vadd.f32 %v850, %v1010
      %v1012 = vpop.f32.mrf.mxu0
      %1013 = vmatprep.mubr.bf16.mxu0 %v754
      %1014 = vmatmul.mubr.bf16.gmra.mxu0 %v498
      %v1015 = vpop.f32.mrf.mxu0
      %v1016 = vadd.f32 %v855, %v1015
      %v1017 = vpop.f32.mrf.mxu0
      %v1018 = vpop.f32.mrf.mxu0
      %v1019 = vadd.f32 %v858, %v1018
      %v1020 = vpop.f32.mrf.mxu0
      %1021 = vmatprep.mubr.bf16.mxu0 %v757
      %1022 = vmatmul.mubr.bf16.gmra.mxu0 %v502
      %v1023 = vpop.f32.mrf.mxu0
      %v1024 = vadd.f32 %v863, %v1023
      %v1025 = vpop.f32.mrf.mxu0
      %v1026 = vpop.f32.mrf.mxu0
      %v1027 = vadd.f32 %v866, %v1026
      %v1028 = vpop.f32.mrf.mxu0
      %1029 = vmatprep.mubr.bf16.mxu0 %v760
      %1030 = vmatmul.mubr.bf16.gmra.mxu0 %v506
      %v1031 = vpop.f32.mrf.mxu0
      %v1032 = vadd.f32 %v871, %v1031
      %v1033 = vpop.f32.mrf.mxu0
      %v1034 = vpop.f32.mrf.mxu0
      %v1035 = vadd.f32 %v874, %v1034
      %v1036 = vpop.f32.mrf.mxu0
      %1037 = vmatprep.mubr.bf16.mxu0 %v763
      %1038 = vmatmul.mubr.bf16.gmra.mxu0 %v510
      %v1039 = vpop.f32.mrf.mxu0
      %v1040 = vadd.f32 %v879, %v1039
      %v1041 = vpop.f32.mrf.mxu0
      %v1042 = vpop.f32.mrf.mxu0
      %v1043 = vadd.f32 %v882, %v1042
      %v1044 = vpop.f32.mrf.mxu0
      %1045 = vmatprep.mubr.bf16.mxu0 %v766
      %1046 = vmatmul.mubr.bf16.gmra.mxu0 %v514
      %v1047 = vpop.f32.mrf.mxu0
      %v1048 = vadd.f32 %v887, %v1047
      %v1049 = vpop.f32.mrf.mxu0
      %v1050 = vpop.f32.mrf.mxu0
      %v1051 = vadd.f32 %v890, %v1050
      %v1052 = vpop.f32.mrf.mxu0
      %1053 = vmatprep.mubr.bf16.mxu0 %v769
      %1054 = vmatmul.mubr.bf16.gmra.mxu0 %v518
      %v1055 = vpop.f32.mrf.mxu0
      %v1056 = vadd.f32 %v895, %v1055
      %v1057 = vpop.f32.mrf.mxu0
      %v1058 = vpop.f32.mrf.mxu0
      %v1059 = vadd.f32 %v898, %v1058
      %v1060 = vpop.f32.mrf.mxu0
      %1061 = vmatprep.mubr.bf16.mxu0 %v772
      %1062 = vmatmul.mubr.bf16.gmra.mxu0 %v522
      %v1063 = vpop.f32.mrf.mxu0
      %v1064 = vadd.f32 %v903, %v1063
      %v1065 = vpop.f32.mrf.mxu0
      %v1066 = vpop.f32.mrf.mxu0
      %v1067 = vadd.f32 %v906, %v1066
      %v1068 = vpop.f32.mrf.mxu0
      %1069 = vmatprep.mubr.bf16.mxu0 %v775
      %1070 = vmatmul.mubr.bf16.gmra.mxu0 %v526
      %v1071 = vpop.f32.mrf.mxu0
      %v1072 = vadd.f32 %v911, %v1071
      %v1073 = vpop.f32.mrf.mxu0
      %v1074 = vpop.f32.mrf.mxu0
      %v1075 = vadd.f32 %v914, %v1074
      %v1076 = vpop.f32.mrf.mxu0
      %1077 = vmatprep.mubr.bf16.mxu0 %v778
      %1078 = vmatmul.mubr.bf16.gmra.mxu0 %v530
      %v1079 = vpop.f32.mrf.mxu0
      %v1080 = vadd.f32 %v919, %v1079
      %v1081 = vpop.f32.mrf.mxu0
      %v1082 = vpop.f32.mrf.mxu0
      %v1083 = vadd.f32 %v922, %v1082
      %v1084 = vpop.f32.mrf.mxu0
      %1085 = vmatprep.mubr.bf16.mxu0 %v781
      %1086 = vmatmul.mubr.bf16.gmra.mxu0 %v534
      %v1087 = vpop.f32.mrf.mxu0
      %v1088 = vadd.f32 %v927, %v1087
      %v1089 = vpop.f32.mrf.mxu0
      %v1090 = vpop.f32.mrf.mxu0
      %v1091 = vadd.f32 %v930, %v1090
      %v1092 = vpop.f32.mrf.mxu0
      %1093 = vmatprep.mubr.bf16.mxu0 %v784
      %1094 = vmatmul.mubr.bf16.gmra.mxu0 %v538
      %v1095 = vpop.f32.mrf.mxu0
      %v1096 = vadd.f32 %v935, %v1095
      %v1097 = vpop.f32.mrf.mxu0
      %v1098 = vpop.f32.mrf.mxu0
      %v1099 = vadd.f32 %v938, %v1098
      %v1100 = vpop.f32.mrf.mxu0
      %1101 = vmatprep.mubr.bf16.mxu0 %v787
      %1102 = vmatmul.mubr.bf16.gmra.mxu0 %v542
      %v1103 = vpop.f32.mrf.mxu0
      %v1104 = vadd.f32 %v943, %v1103
      %v1105 = vpop.f32.mrf.mxu0
      %v1106 = vpop.f32.mrf.mxu0
      %v1107 = vadd.f32 %v946, %v1106
      %v1108 = vpop.f32.mrf.mxu0
      %1109 = vmatprep.mubr.bf16.mxu0 %v790
      %1110 = vmatmul.mubr.bf16.gmra.mxu0 %v546
      %v1111 = vpop.f32.mrf.mxu0
      %v1112 = vadd.f32 %v951, %v1111
      %v1113 = vpop.f32.mrf.mxu0
      %v1114 = vpop.f32.mrf.mxu0
      %v1115 = vadd.f32 %v954, %v1114
      %v1116 = vpop.f32.mrf.mxu0
      %1117 = vdwg.mxu0
      %vm1118 = vcmask 261120
      %v1119 = vsel %vm1118, %v992, 0.0
      %v1120 = vsel %vm1118, %v995, 0.0
      %v1121 = vadd.f32 %v1119, %v1120
      %v1122 = vsel %vm1118, %v1000, 0.0
      %v1123 = vadd.f32 %v1121, %v1122
      %v1124 = vsel %vm1118, %v1003, 0.0
      %v1125 = vadd.f32 %v1123, %v1124
      %v1126 = vsel %vm1118, %v1008, 0.0
      %v1127 = vadd.f32 %v1125, %v1126
      %v1128 = vsel %vm1118, %v1011, 0.0
      %v1129 = vadd.f32 %v1127, %v1128
      %v1130 = vsel %vm1118, %v1016, 0.0
      %v1131 = vadd.f32 %v1129, %v1130
      %v1132 = vsel %vm1118, %v1019, 0.0
      %v1133 = vadd.f32 %v1131, %v1132
      %v1134 = vsel %vm1118, %v1024, 0.0
      %v1135 = vadd.f32 %v1133, %v1134
      %v1136 = vsel %vm1118, %v1027, 0.0
      %v1137 = vadd.f32 %v1135, %v1136
      %v1138 = vsel %vm1118, %v1032, 0.0
      %v1139 = vadd.f32 %v1137, %v1138
      %v1140 = vsel %vm1118, %v1035, 0.0
      %v1141 = vadd.f32 %v1139, %v1140
      %v1142 = vsel %vm1118, %v1040, 0.0
      %v1143 = vadd.f32 %v1141, %v1142
      %v1144 = vsel %vm1118, %v1043, 0.0
      %v1145 = vadd.f32 %v1143, %v1144
      %v1146 = vsel %vm1118, %v1048, 0.0
      %v1147 = vadd.f32 %v1145, %v1146
      %v1148 = vsel %vm1118, %v1051, 0.0
      %v1149 = vadd.f32 %v1147, %v1148
      %v1150 = vsel %vm1118, %v1056, 0.0
      %v1151 = vadd.f32 %v1149, %v1150
      %v1152 = vsel %vm1118, %v1059, 0.0
      %v1153 = vadd.f32 %v1151, %v1152
      %v1154 = vsel %vm1118, %v1064, 0.0
      %v1155 = vadd.f32 %v1153, %v1154
      %v1156 = vsel %vm1118, %v1067, 0.0
      %v1157 = vadd.f32 %v1155, %v1156
      %v1158 = vsel %vm1118, %v1072, 0.0
      %v1159 = vadd.f32 %v1157, %v1158
      %v1160 = vsel %vm1118, %v1075, 0.0
      %v1161 = vadd.f32 %v1159, %v1160
      %v1162 = vsel %vm1118, %v1080, 0.0
      %v1163 = vadd.f32 %v1161, %v1162
      %v1164 = vsel %vm1118, %v1083, 0.0
      %v1165 = vadd.f32 %v1163, %v1164
      %v1166 = vsel %vm1118, %v1088, 0.0
      %v1167 = vadd.f32 %v1165, %v1166
      %v1168 = vsel %vm1118, %v1091, 0.0
      %v1169 = vadd.f32 %v1167, %v1168
      %v1170 = vsel %vm1118, %v1096, 0.0
      %v1171 = vadd.f32 %v1169, %v1170
      %v1172 = vsel %vm1118, %v1099, 0.0
      %v1173 = vadd.f32 %v1171, %v1172
      %v1174 = vsel %vm1118, %v1104, 0.0
      %v1175 = vadd.f32 %v1173, %v1174
      %v1176 = vsel %vm1118, %v1107, 0.0
      %v1177 = vadd.f32 %v1175, %v1176
      %v1178 = vsel %vm1118, %v1112, 0.0
      %v1179 = vadd.f32 %v1177, %v1178
      %v1180 = vsel %vm1118, %v1115, 0.0
      %v1181 = vadd.f32 %v1179, %v1180
      %v1182 = vrot.slane %v1181, 4
      %v1183 = vadd.f32 %v1181, %v1182
      %v1184 = vrot.slane %v1183, 2
      %v1185 = vadd.f32 %v1183, %v1184
      %v1186 = vrot.slane %v1185, 1
      %v1187 = vadd.f32 %v1185, %v1186
      %v1188 = vrcp.pop 256.0
      %v1189 = vmul.f32 %v1187, %v1188
      %v1190 = vsub.f32 %v992, %v1189
      %v1191 = vsub.f32 %v995, %v1189
      %v1192 = vsub.f32 %v1000, %v1189
      %v1193 = vsub.f32 %v1003, %v1189
      %v1194 = vsub.f32 %v1008, %v1189
      %v1195 = vsub.f32 %v1011, %v1189
      %v1196 = vsub.f32 %v1016, %v1189
      %v1197 = vsub.f32 %v1019, %v1189
      %v1198 = vsub.f32 %v1024, %v1189
      %v1199 = vsub.f32 %v1027, %v1189
      %v1200 = vsub.f32 %v1032, %v1189
      %v1201 = vsub.f32 %v1035, %v1189
      %v1202 = vsub.f32 %v1040, %v1189
      %v1203 = vsub.f32 %v1043, %v1189
      %v1204 = vsub.f32 %v1048, %v1189
      %v1205 = vsub.f32 %v1051, %v1189
      %v1206 = vsub.f32 %v1056, %v1189
      %v1207 = vsub.f32 %v1059, %v1189
      %v1208 = vsub.f32 %v1064, %v1189
      %v1209 = vsub.f32 %v1067, %v1189
      %v1210 = vsub.f32 %v1072, %v1189
      %v1211 = vsub.f32 %v1075, %v1189
      %v1212 = vsub.f32 %v1080, %v1189
      %v1213 = vsub.f32 %v1083, %v1189
      %v1214 = vsub.f32 %v1088, %v1189
      %v1215 = vsub.f32 %v1091, %v1189
      %v1216 = vsub.f32 %v1096, %v1189
      %v1217 = vsub.f32 %v1099, %v1189
      %v1218 = vsub.f32 %v1104, %v1189
      %v1219 = vsub.f32 %v1107, %v1189
      %v1220 = vsub.f32 %v1112, %v1189
      %v1221 = vsub.f32 %v1115, %v1189
      %v1222 = vmul.f32 %v1190, %v1190
      %v1223 = vmul.f32 %v1191, %v1191
      %v1224 = vmul.f32 %v1192, %v1192
      %v1225 = vmul.f32 %v1193, %v1193
      %v1226 = vmul.f32 %v1194, %v1194
      %v1227 = vmul.f32 %v1195, %v1195
      %v1228 = vmul.f32 %v1196, %v1196
      %v1229 = vmul.f32 %v1197, %v1197
      %v1230 = vmul.f32 %v1198, %v1198
      %v1231 = vmul.f32 %v1199, %v1199
      %v1232 = vmul.f32 %v1200, %v1200
      %v1233 = vmul.f32 %v1201, %v1201
      %v1234 = vmul.f32 %v1202, %v1202
      %v1235 = vmul.f32 %v1203, %v1203
      %v1236 = vmul.f32 %v1204, %v1204
      %v1237 = vmul.f32 %v1205, %v1205
      %v1238 = vmul.f32 %v1206, %v1206
      %v1239 = vmul.f32 %v1207, %v1207
      %v1240 = vmul.f32 %v1208, %v1208
      %v1241 = vmul.f32 %v1209, %v1209
      %v1242 = vmul.f32 %v1210, %v1210
      %v1243 = vmul.f32 %v1211, %v1211
      %v1244 = vmul.f32 %v1212, %v1212
      %v1245 = vmul.f32 %v1213, %v1213
      %v1246 = vmul.f32 %v1214, %v1214
      %v1247 = vmul.f32 %v1215, %v1215
      %v1248 = vmul.f32 %v1216, %v1216
      %v1249 = vmul.f32 %v1217, %v1217
      %v1250 = vmul.f32 %v1218, %v1218
      %v1251 = vmul.f32 %v1219, %v1219
      %v1252 = vmul.f32 %v1220, %v1220
      %v1253 = vmul.f32 %v1221, %v1221
      %v1254 = vsel %vm1118, %v1222, 0.0
      %v1255 = vsel %vm1118, %v1223, 0.0
      %v1256 = vadd.f32 %v1254, %v1255
      %v1257 = vsel %vm1118, %v1224, 0.0
      %v1258 = vadd.f32 %v1256, %v1257
      %v1259 = vsel %vm1118, %v1225, 0.0
      %v1260 = vadd.f32 %v1258, %v1259
      %v1261 = vsel %vm1118, %v1226, 0.0
      %v1262 = vadd.f32 %v1260, %v1261
      %v1263 = vsel %vm1118, %v1227, 0.0
      %v1264 = vadd.f32 %v1262, %v1263
      %v1265 = vsel %vm1118, %v1228, 0.0
      %v1266 = vadd.f32 %v1264, %v1265
      %v1267 = vsel %vm1118, %v1229, 0.0
      %v1268 = vadd.f32 %v1266, %v1267
      %v1269 = vsel %vm1118, %v1230, 0.0
      %v1270 = vadd.f32 %v1268, %v1269
      %v1271 = vsel %vm1118, %v1231, 0.0
      %v1272 = vadd.f32 %v1270, %v1271
      %v1273 = vsel %vm1118, %v1232, 0.0
      %v1274 = vadd.f32 %v1272, %v1273
      %v1275 = vsel %vm1118, %v1233, 0.0
      %v1276 = vadd.f32 %v1274, %v1275
      %v1277 = vsel %vm1118, %v1234, 0.0
      %v1278 = vadd.f32 %v1276, %v1277
      %v1279 = vsel %vm1118, %v1235, 0.0
      %v1280 = vadd.f32 %v1278, %v1279
      %v1281 = vsel %vm1118, %v1236, 0.0
      %v1282 = vadd.f32 %v1280, %v1281
      %v1283 = vsel %vm1118, %v1237, 0.0
      %v1284 = vadd.f32 %v1282, %v1283
      %v1285 = vsel %vm1118, %v1238, 0.0
      %v1286 = vadd.f32 %v1284, %v1285
      %v1287 = vsel %vm1118, %v1239, 0.0
      %v1288 = vadd.f32 %v1286, %v1287
      %v1289 = vsel %vm1118, %v1240, 0.0
      %v1290 = vadd.f32 %v1288, %v1289
      %v1291 = vsel %vm1118, %v1241, 0.0
      %v1292 = vadd.f32 %v1290, %v1291
      %v1293 = vsel %vm1118, %v1242, 0.0
      %v1294 = vadd.f32 %v1292, %v1293
      %v1295 = vsel %vm1118, %v1243, 0.0
      %v1296 = vadd.f32 %v1294, %v1295
      %v1297 = vsel %vm1118, %v1244, 0.0
      %v1298 = vadd.f32 %v1296, %v1297
      %v1299 = vsel %vm1118, %v1245, 0.0
      %v1300 = vadd.f32 %v1298, %v1299
      %v1301 = vsel %vm1118, %v1246, 0.0
      %v1302 = vadd.f32 %v1300, %v1301
      %v1303 = vsel %vm1118, %v1247, 0.0
      %v1304 = vadd.f32 %v1302, %v1303
      %v1305 = vsel %vm1118, %v1248, 0.0
      %v1306 = vadd.f32 %v1304, %v1305
      %v1307 = vsel %vm1118, %v1249, 0.0
      %v1308 = vadd.f32 %v1306, %v1307
      %v1309 = vsel %vm1118, %v1250, 0.0
      %v1310 = vadd.f32 %v1308, %v1309
      %v1311 = vsel %vm1118, %v1251, 0.0
      %v1312 = vadd.f32 %v1310, %v1311
      %v1313 = vsel %vm1118, %v1252, 0.0
      %v1314 = vadd.f32 %v1312, %v1313
      %v1315 = vsel %vm1118, %v1253, 0.0
      %v1316 = vadd.f32 %v1314, %v1315
      %v1317 = vrot.slane %v1316, 4
      %v1318 = vadd.f32 %v1316, %v1317
      %v1319 = vrot.slane %v1318, 2
      %v1320 = vadd.f32 %v1318, %v1319
      %v1321 = vrot.slane %v1320, 1
      %v1322 = vadd.f32 %v1320, %v1321
      %v1323 = vmul.f32 %v1322, %v1188
      %v1324 = vadd.f32 %v1323, 1e-05
      %v1325 = vrsqrt.pop %v1324
      %v1326 = vmul.f32 %v1190, %v1325
      %v1327 = vmul.f32 %v1191, %v1325
      %v1328 = vmul.f32 %v1192, %v1325
      %v1329 = vmul.f32 %v1193, %v1325
      %v1330 = vmul.f32 %v1194, %v1325
      %v1331 = vmul.f32 %v1195, %v1325
      %v1332 = vmul.f32 %v1196, %v1325
      %v1333 = vmul.f32 %v1197, %v1325
      %v1334 = vmul.f32 %v1198, %v1325
      %v1335 = vmul.f32 %v1199, %v1325
      %v1336 = vmul.f32 %v1200, %v1325
      %v1337 = vmul.f32 %v1201, %v1325
      %v1338 = vmul.f32 %v1202, %v1325
      %v1339 = vmul.f32 %v1203, %v1325
      %v1340 = vmul.f32 %v1204, %v1325
      %v1341 = vmul.f32 %v1205, %v1325
      %v1342 = vmul.f32 %v1206, %v1325
      %v1343 = vmul.f32 %v1207, %v1325
      %v1344 = vmul.f32 %v1208, %v1325
      %v1345 = vmul.f32 %v1209, %v1325
      %v1346 = vmul.f32 %v1210, %v1325
      %v1347 = vmul.f32 %v1211, %v1325
      %v1348 = vmul.f32 %v1212, %v1325
      %v1349 = vmul.f32 %v1213, %v1325
      %v1350 = vmul.f32 %v1214, %v1325
      %v1351 = vmul.f32 %v1215, %v1325
      %v1352 = vmul.f32 %v1216, %v1325
      %v1353 = vmul.f32 %v1217, %v1325
      %v1354 = vmul.f32 %v1218, %v1325
      %v1355 = vmul.f32 %v1219, %v1325
      %v1356 = vmul.f32 %v1220, %v1325
      %v1357 = vmul.f32 %v1221, %v1325
      %v1358 = vmax.f32 %v1326, 0.0
      %v1359 = vmax.f32 %v1327, 0.0
      %v1360 = vmax.f32 %v1328, 0.0
      %v1361 = vmax.f32 %v1329, 0.0
      %v1362 = vmax.f32 %v1330, 0.0
      %v1363 = vmax.f32 %v1331, 0.0
      %v1364 = vmax.f32 %v1332, 0.0
      %v1365 = vmax.f32 %v1333, 0.0
      %v1366 = vmax.f32 %v1334, 0.0
      %v1367 = vmax.f32 %v1335, 0.0
      %v1368 = vmax.f32 %v1336, 0.0
      %v1369 = vmax.f32 %v1337, 0.0
      %v1370 = vmax.f32 %v1338, 0.0
      %v1371 = vmax.f32 %v1339, 0.0
      %v1372 = vmax.f32 %v1340, 0.0
      %v1373 = vmax.f32 %v1341, 0.0
      %v1374 = vmax.f32 %v1342, 0.0
      %v1375 = vmax.f32 %v1343, 0.0
      %v1376 = vmax.f32 %v1344, 0.0
      %v1377 = vmax.f32 %v1345, 0.0
      %v1378 = vmax.f32 %v1346, 0.0
      %v1379 = vmax.f32 %v1347, 0.0
      %v1380 = vmax.f32 %v1348, 0.0
      %v1381 = vmax.f32 %v1349, 0.0
      %v1382 = vmax.f32 %v1350, 0.0
      %v1383 = vmax.f32 %v1351, 0.0
      %v1384 = vmax.f32 %v1352, 0.0
      %v1385 = vmax.f32 %v1353, 0.0
      %v1386 = vmax.f32 %v1354, 0.0
      %v1387 = vmax.f32 %v1355, 0.0
      %v1388 = vmax.f32 %v1356, 0.0
      %v1389 = vmax.f32 %v1357, 0.0
      %1390 = vst.msk [vmem:[%s170] sm:$0xff] %vm1118, %v1358
      %1391 = vst.msk [vmem:[%s170 + $0x8] sm:$0xff] %vm1118, %v1359
      %1392 = vst.msk [vmem:[%s170 + $0x10] sm:$0xff] %vm1118, %v1360
      %1393 = vst.msk [vmem:[%s170 + $0x18] sm:$0xff] %vm1118, %v1361
      %1394 = vst.msk [vmem:[%s170 + $0x20] sm:$0xff] %vm1118, %v1362
      %1395 = vst.msk [vmem:[%s170 + $0x28] sm:$0xff] %vm1118, %v1363
      %1396 = vst.msk [vmem:[%s170 + $0x30] sm:$0xff] %vm1118, %v1364
      %1397 = vst.msk [vmem:[%s170 + $0x38] sm:$0xff] %vm1118, %v1365
      %1398 = vst.msk [vmem:[%s170 + $0x40] sm:$0xff] %vm1118, %v1366
      %1399 = vst.msk [vmem:[%s170 + $0x48] sm:$0xff] %vm1118, %v1367
      %1400 = vst.msk [vmem:[%s170 + $0x50] sm:$0xff] %vm1118, %v1368
      %1401 = vst.msk [vmem:[%s170 + $0x58] sm:$0xff] %vm1118, %v1369
      %1402 = vst.msk [vmem:[%s170 + $0x60] sm:$0xff] %vm1118, %v1370
      %1403 = vst.msk [vmem:[%s170 + $0x68] sm:$0xff] %vm1118, %v1371
      %1404 = vst.msk [vmem:[%s170 + $0x70] sm:$0xff] %vm1118, %v1372
      %1405 = vst.msk [vmem:[%s170 + $0x78] sm:$0xff] %vm1118, %v1373
      %1406 = vst.msk [vmem:[%s170 + $0x80] sm:$0xff] %vm1118, %v1374
      %1407 = vst.msk [vmem:[%s170 + $0x88] sm:$0xff] %vm1118, %v1375
      %1408 = vst.msk [vmem:[%s170 + $0x90] sm:$0xff] %vm1118, %v1376
      %1409 = vst.msk [vmem:[%s170 + $0x98] sm:$0xff] %vm1118, %v1377
      %1410 = vst.msk [vmem:[%s170 + $0xa0] sm:$0xff] %vm1118, %v1378
      %1411 = vst.msk [vmem:[%s170 + $0xa8] sm:$0xff] %vm1118, %v1379
      %1412 = vst.msk [vmem:[%s170 + $0xb0] sm:$0xff] %vm1118, %v1380
      %1413 = vst.msk [vmem:[%s170 + $0xb8] sm:$0xff] %vm1118, %v1381
      %1414 = vst.msk [vmem:[%s170 + $0xc0] sm:$0xff] %vm1118, %v1382
      %1415 = vst.msk [vmem:[%s170 + $0xc8] sm:$0xff] %vm1118, %v1383
      %1416 = vst.msk [vmem:[%s170 + $0xd0] sm:$0xff] %vm1118, %v1384
      %1417 = vst.msk [vmem:[%s170 + $0xd8] sm:$0xff] %vm1118, %v1385
      %1418 = vst.msk [vmem:[%s170 + $0xe0] sm:$0xff] %vm1118, %v1386
      %1419 = vst.msk [vmem:[%s170 + $0xe8] sm:$0xff] %vm1118, %v1387
      %1420 = vst.msk [vmem:[%s170 + $0xf0] sm:$0xff] %vm1118, %v1388
      %1421 = vst.msk [vmem:[%s170 + $0xf8] sm:$0xff] %vm1118, %v1389
      %p1422 = scmp.lt.s32.totalorder %s14, 1
      %s1423 = scalar_select %p1422, %s14, 1
      %s1424 = smul.addr %s1423, 32
      %s1425 = smul.addr %s1424, 8
      %s1426 = scalar_lea.vmem %s3, %s1425
      // Predicated region
      $region33: #{resnet_forward.12} parent=31 // pred_check
        %p1427 = pneg %p100
      $region34: #{resnet_forward.12} parent=31 // pred_check_branch
        %1429 = sbr.rel (%p1427) target = $region36
      $region35: #{resnet_forward.12} parent=31 // pred_region
        _
      $region36: #{resnet_forward.12} parent=31 // pred_fallthru
        _
    $region32: #{resnet_forward.12} parent=5 // pred_fallthru
      _
    %p1430 = scmp.le.s32.totalorder 2, %s9
    // Predicated region
    $region37: #{resnet_forward.12} parent=5 // pred_check
      %p1431 = pneg %p1430
    $region38: #{resnet_forward.12} parent=5 // pred_check_branch
      %1433 = sbr.rel (%p1431) target = $region40
    $region39: #{resnet_forward.12} parent=5 // pred_region
      %s1434 = ssub.s32 %s9, 2
      // Predicated region
      $region41: #{resnet_forward.12} parent=39 // pred_check
        %p1435 = pneg %p106
      $region42: #{resnet_forward.12} parent=39 // pred_check_branch
        %1437 = sbr.rel (%p1435) target = $region44
      $region43: #{resnet_forward.12} parent=39 // pred_region
        %p1438 = scmp.lt.s32.totalorder %s15, 1
        %s1439 = scalar_select %p1438, %s15, 1
        %s1440 = smul.addr %s1439, 32
        %s1441 = smul.addr %s1440, 8
        %s1442 = scalar_lea.vmem %s3, %s1441
      $region44: #{resnet_forward.12} parent=39 // pred_fallthru
        _
    $region40: #{resnet_forward.12} parent=5 // pred_fallthru
      _
  $region6: #{resnet_forward.12} parent=0 // loop_footer
    %s13 = sadd.s32 1, %s9
  $region7: #{resnet_forward.12} parent=0 // loop_footer_branch
    %8 = sbr.rel target = $region3
  $region8: #{resnet_forward.12} parent=0 // loop_exit
    _

// kernel: resnet_forward.13
$region0: #{resnet_forward.13}
  #allocation0 [shape = 'u32[]', space=smem, size = 0x4, offset = 0x4, fixed_abs, tag = 'smem constant byte address 0x4 - core index']
  #allocation1 [shape = 'u32[144,128]{1,0:T(1,128)}', space=vmem, size = 0x12000, scoped, tag = 'internal scratch']
  %s0 = inlined_call_operand.vmem [shape: bf16[2,64,324], index: 0, kind: input, shape index: {}]
  %s1 = inlined_call_operand.vmem [shape: bf16[324,64], index: 1, kind: input, shape index: {}]
  %s2 = inlined_call_operand.vmem [shape: f32[1,64], index: 2, kind: input, shape index: {}]
  %s3 = inlined_call_operand.vmem [shape: f32[2,64,64], index: 3, kind: output, shape index: {}]
  %s4 = sld [smem:[#allocation0]]
  $region45: #{resnet_forward.13} parent=0
    _
  %s6 = ssub.s32 1, %s4
  %s7 = scalar_select 0, %s6, %s4
  loop: start=0, step=1, limit=4
  $region2: #{resnet_forward.13} parent=0 // loop_pre_header
    _
  $region3: #{resnet_forward.13} parent=0 // loop_header
    %s9 = sphi 0, %s13
    %p10 = scmp.ge.s32.totalorder %s9, 4
    %s19 = sphi 0, %s21
    %s22 = sphi 0, %s19
    %s23 = sphi 0, %s22
    %s39 = sphi 0, %s23
    %s43 = sphi 0, %s43
    %s45 = sphi 0, %s43
    %s46 = sphi 0, %s45
    %s60 = sphi 0, %s46
    %s64 = sphi 0, %s64
    %s66 = sphi 0, %s64
    %s67 = sphi 0, %s66
    %s81 = sphi 0, %s67
    %s87 = sphi 0, %s89
    %s90 = sphi 0, %s87
    %s91 = sphi 0, %s90
    %s107 = sphi 0, %s91
  $region4: #{resnet_forward.13} parent=0 // loop_header_branch
    %12 = sbr.rel (%p10) target = $region8
  $region5: #{resnet_forward.13} parent=0 // loop_body
    %s14 = ssub.s32 %s9, 1
    %s15 = ssub.s32 %s9, 2
    %s16 = sadd.s32 %s9, 1
    %s17 = ssub.s32 %s9, %s16
    %p18 = scmp.eq.s32.totalorder %s17, 0
    %s20 = sadd.s32 %s19, 1
    %s21 = scalar_select %p18, %s19, %s20
    %p24 = pneg %p18
    %p25 = scmp.eq.s32.totalorder %s9, 1
    %p26 = por %p24, %p25
    %p27 = scmp.ne.s32.totalorder %s19, %s22
    %p28 = scmp.eq.s32.totalorder %s9, 0
    %p29 = por %p27, %p28
    %p30 = scmp.ne.s32.totalorder %s19, %s22
    %p31 = scmp.eq.s32.totalorder %s14, 1
    %p32 = por %p30, %p31
    %p33 = scmp.ne.s32.totalorder %s22, %s23
    %p34 = scmp.eq.s32.totalorder %s14, 0
    %p35 = por %p33, %p34
    %p36 = scmp.ne.s32.totalorder %s22, %s23
    %p37 = scmp.eq.s32.totalorder %s15, 1
    %p38 = por %p36, %p37
    %p40 = scmp.ne.s32.totalorder %s23, %s39
    %p41 = scmp.eq.s32.totalorder %s15, 0
    %p42 = por %p40, %p41
    %s44 = sadd.s32 %s43, 1
    %p47 = scmp.eq.s32.totalorder %s9, 1
    %p48 = scmp.ne.s32.totalorder %s43, %s45
    %p49 = scmp.eq.s32.totalorder %s9, 0
    %p50 = por %p48, %p49
    %p51 = scmp.ne.s32.totalorder %s43, %s45
    %p52 = scmp.eq.s32.totalorder %s14, 1
    %p53 = por %p51, %p52
    %p54 = scmp.ne.s32.totalorder %s45, %s46
    %p55 = scmp.eq.s32.totalorder %s14, 0
    %p56 = por %p54, %p55
    %p57 = scmp.ne.s32.totalorder %s45, %s46
    %p58 = scmp.eq.s32.totalorder %s15, 1
    %p59 = por %p57, %p58
    %p61 = scmp.ne.s32.totalorder %s46, %s60
    %p62 = scmp.eq.s32.totalorder %s15, 0
    %p63 = por %p61, %p62
    %s65 = sadd.s32 %s64, 1
    %p68 = scmp.eq.s32.totalorder %s9, 1
    %p69 = scmp.ne.s32.totalorder %s64, %s66
    %p70 = scmp.eq.s32.totalorder %s9, 0
    %p71 = por %p69, %p70
    %p72 = scmp.ne.s32.totalorder %s64, %s66
    %p73 = scmp.eq.s32.totalorder %s14, 1
    %p74 = por %p72, %p73
    %p75 = scmp.ne.s32.totalorder %s66, %s67
    %p76 = scmp.eq.s32.totalorder %s14, 0
    %p77 = por %p75, %p76
    %p78 = scmp.ne.s32.totalorder %s66, %s67
    %p79 = scmp.eq.s32.totalorder %s15, 1
    %p80 = por %p78, %p79
    %p82 = scmp.ne.s32.totalorder %s67, %s81
    %p83 = scmp.eq.s32.totalorder %s15, 0
    %p84 = por %p82, %p83
    %s85 = ssub.s32 %s9, %s16
    %p86 = scmp.eq.s32.totalorder %s85, 0
    %s88 = sadd.s32 %s87, 1
    %s89 = scalar_select %p86, %s87, %s88
    %p92 = pneg %p86
    %p93 = scmp.eq.s32.totalorder %s9, 1
    %p94 = por %p92, %p93
    %p95 = scmp.ne.s32.totalorder %s87, %s90
    %p96 = scmp.eq.s32.totalorder %s9, 0
    %p97 = por %p95, %p96
    %p98 = scmp.ne.s32.totalorder %s87, %s90
    %p99 = scmp.eq.s32.totalorder %s14, 1
    %p100 = por %p98, %p99
    %p101 = scmp.ne.s32.totalorder %s90, %s91
    %p102 = scmp.eq.s32.totalorder %s14, 0
    %p103 = por %p101, %p102
    %p104 = scmp.ne.s32.totalorder %s90, %s91
    %p105 = scmp.eq.s32.totalorder %s15, 1
    %p106 = por %p104, %p105
    %p108 = scmp.ne.s32.totalorder %s91, %s107
    %p109 = scmp.eq.s32.totalorder %s15, 0
    %p110 = por %p108, %p109
    %p111 = scmp.le.s32.totalorder 1, %s9
    %p112 = scmp.lt.s32.totalorder %s9, 3
    %p113 = pnand %p111, %p112
    %p114 = pneg %p113
    // Predicated region
    $region9: #{resnet_forward.13} parent=5 // pred_check
      _
    $region10: #{resnet_forward.13} parent=5 // pred_check_branch
      %116 = sbr.rel (%p113) target = $region12
    $region11: #{resnet_forward.13} parent=5 // pred_region
      %s117 = ssub.s32 %s9, 1
      // Predicated region
      $region13: #{resnet_forward.13} parent=11 // pred_check
        %p118 = pneg %p56
      $region14: #{resnet_forward.13} parent=11 // pred_check_branch
        %120 = sbr.rel (%p118) target = $region16
      $region15: #{resnet_forward.13} parent=11 // pred_region
        _
      $region16: #{resnet_forward.13} parent=11 // pred_fallthru
        _
      // Predicated region
      $region17: #{resnet_forward.13} parent=11 // pred_check
        %p121 = pneg %p77
      $region18: #{resnet_forward.13} parent=11 // pred_check_branch
        %123 = sbr.rel (%p121) target = $region20
      $region19: #{resnet_forward.13} parent=11 // pred_region
        _
      $region20: #{resnet_forward.13} parent=11 // pred_fallthru
        _
    $region12: #{resnet_forward.13} parent=5 // pred_fallthru
      _
    %p124 = scmp.lt.s32.totalorder %s9, 2
    // Predicated region
    $region21: #{resnet_forward.13} parent=5 // pred_check
      %p125 = pneg %p124
    $region22: #{resnet_forward.13} parent=5 // pred_check_branch
      %127 = sbr.rel (%p125) target = $region24
    $region23: #{resnet_forward.13} parent=5 // pred_region
      // Predicated region
      $region25: #{resnet_forward.13} parent=23 // pred_check
        %p128 = pneg %p29
      $region26: #{resnet_forward.13} parent=23 // pred_check_branch
        %130 = sbr.rel (%p128) target = $region28
      $region27: #{resnet_forward.13} parent=23 // pred_region
        %p131 = scmp.lt.s32.totalorder %s9, 1
        %s132 = scalar_select %p131, %s9, 1
        %s133 = smul.addr %s132, 24
        %s134 = smul.addr %s133, 4
        %s135 = scalar_lea.vmem %s0, %s134
      $region28: #{resnet_forward.13} parent=23 // pred_fallthru
        _
    $region24: #{resnet_forward.13} parent=5 // pred_fallthru
      _
    %p136 = scmp.le.s32.totalorder 1, %s9
    %p137 = scmp.lt.s32.totalorder %s9, 3
    %p138 = pnand %p136, %p137
    %p139 = pneg %p138
    // Predicated region
    $region29: #{resnet_forward.13} parent=5 // pred_check
      _
    $region30: #{resnet_forward.13} parent=5 // pred_check_branch
      %141 = sbr.rel (%p138) target = $region32
    $region31: #{resnet_forward.13} parent=5 // pred_region
      %s142 = ssub.s32 %s9, 1
      %p143 = scmp.lt.s32.totalorder %s14, 1
      %s144 = scalar_select %p143, %s14, 1
      %s145 = smul.addr %s144, 24
      %s146 = smul.addr %s145, 4
      %s147 = scalar_lea.vmem %s0, %s146
      %p148 = pneg %p35
      %p149 = pneg %p32
      %p150 = pneg %p56
      %p151 = pneg %p53
      %p152 = pneg %p77
      %p153 = pneg %p74
      %p154 = pneg %p103
      %p155 = pneg %p100
      %p156 = scmp.lt.s32.totalorder %s14, 1
      %s157 = scalar_select %p156, %s14, 1
      %s158 = smul.addr %s157, 8
      %s159 = smul.addr %s158, 8
      %s160 = scalar_lea.vmem %s3, %s159
      %p161 = scmp.lt.s32.totalorder %s14, 1
      %s162 = scalar_select %p161, %s14, 1
      %s163 = smul.addr %s162, 24
      %s164 = smul.addr %s163, 4
      %s165 = scalar_lea.vmem %s0, %s164
      %p166 = scmp.lt.s32.totalorder %s14, 1
      %s167 = scalar_select %p166, %s14, 1
      %s168 = smul.addr %s167, 8
      %s169 = smul.addr %s168, 8
      %s170 = scalar_lea.vmem %s3, %s169
      %v172 = vld [vmem:[%s165] sm:$0xff]
      %v173 = vld [vmem:[%s165 + $0x8] sm:$0xf]
      %v174 = vld [vmem:[%s165 + $0xc] sm:$0xff]
      %v175 = vld [vmem:[%s165 + $0x14] sm:$0xf]
      %v176 = vld [vmem:[%s165 + $0x18] sm:$0xff]
      %v177 = vld [vmem:[%s165 + $0x20] sm:$0xf]
      %v178 = vld [vmem:[%s165 + $0x24] sm:$0xff]
      %v179 = vld [vmem:[%s165 + $0x2c] sm:$0xf]
      %v180 = vld [vmem:[%s165 + $0x30] sm:$0xff]
      %v181 = vld [vmem:[%s165 + $0x38] sm:$0xf]
      %v182 = vld [vmem:[%s165 + $0x3c] sm:$0xff]
      %v183 = vld [vmem:[%s165 + $0x44] sm:$0xf]
      %v184 = vld [vmem:[%s165 + $0x48] sm:$0xff]
      %v185 = vld [vmem:[%s165 + $0x50] sm:$0xf]
      %v186 = vld [vmem:[%s165 + $0x54] sm:$0xff]
      %v187 = vld [vmem:[%s165 + $0x5c] sm:$0xf]
      %v188 = vld [vmem:[%s1] sm:$0xf]
      %v189 = vld [vmem:[%s1 + $0x4] sm:$0xf]
      %v190 = vld [vmem:[%s1 + $0x8] sm:$0xf]
      %v191 = vld [vmem:[%s1 + $0xc] sm:$0xf]
      %v192 = vld [vmem:[%s1 + $0x10] sm:$0xf]
      %v193 = vld [vmem:[%s1 + $0x14] sm:$0xf]
      %v194 = vld [vmem:[%s1 + $0x18] sm:$0xf]
      %v195 = vld [vmem:[%s1 + $0x1c] sm:$0xf]
      %v196 = vld [vmem:[%s1 + $0x20] sm:$0xf]
      %v197 = vld [vmem:[%s1 + $0x24] sm:$0xf]
      %v198 = vld [vmem:[%s1 + $0x28] sm:$0xf]
      %v199 = vld [vmem:[%s1 + $0x2c] sm:$0xf]
      %v200 = vld [vmem:[%s1 + $0x30] sm:$0xf]
      %v201 = vld [vmem:[%s1 + $0x34] sm:$0xf]
      %v202 = vld [vmem:[%s1 + $0x38] sm:$0xf]
      %v203 = vld [vmem:[%s1 + $0x3c] sm:$0xf]
      %v204 = vld [vmem:[%s1 + $0x40] sm:$0xf]
      %v205 = vld [vmem:[%s1 + $0x44] sm:$0xf]
      %v206 = vld [vmem:[%s1 + $0x48] sm:$0xf]
      %v207 = vld [vmem:[%s1 + $0x4c] sm:$0xf]
      %v208 = vld [vmem:[%s1 + $0x50] sm:$0xf]
      %v209 = vld [vmem:[%s1 + $0x54] sm:$0xf]
      %v210 = vld [vmem:[%s1 + $0x58] sm:$0xf]
      %v211 = vld [vmem:[%s1 + $0x5c] sm:$0xf]
      %v212 = vld [vmem:[%s1 + $0x60] sm:$0xf]
      %v213 = vld [vmem:[%s1 + $0x64] sm:$0xf]
      %v214 = vld [vmem:[%s1 + $0x68] sm:$0xf]
      %v215 = vld [vmem:[%s1 + $0x6c] sm:$0xf]
      %v216 = vld [vmem:[%s1 + $0x70] sm:$0xf]
      %v217 = vld [vmem:[%s1 + $0x74] sm:$0xf]
      %v218 = vld [vmem:[%s1 + $0x78] sm:$0xf]
      %v219 = vld [vmem:[%s1 + $0x7c] sm:$0xf]
      %v220 = vld [vmem:[%s1 + $0x80] sm:$0xf]
      %v221 = vld [vmem:[%s1 + $0x84] sm:$0xf]
      %v222 = vld [vmem:[%s1 + $0x88] sm:$0xf]
      %v223 = vld [vmem:[%s1 + $0x8c] sm:$0xf]
      %v224 = vld [vmem:[%s1 + $0x90] sm:$0xf]
      %v225 = vld [vmem:[%s1 + $0x94] sm:$0xf]
      %v226 = vld [vmem:[%s1 + $0x98] sm:$0xf]
      %v227 = vld [vmem:[%s1 + $0x9c] sm:$0xf]
      %v228 = vld [vmem:[%s1 + $0xa0] sm:$0x3]
      %v229 = vld [vmem:[%s2] sm:$0x1]
      %v231 = vlaneseq
      %v232 = vshrl.u32 %v231, 7
      %v233 = vsub.s32 0, %v232
      %v234 = vrot.slane %v229, %v233
      %v252 = vunpack.c.l.b16 %v172
      %v253 = vunpack.c.h.b16 %v172
      %v254 = vunpack.c.l.b16 %v173
      %v255 = vunpack.c.l.b16 %v174
      %v256 = vunpack.c.h.b16 %v174
      %v257 = vunpack.c.l.b16 %v175
      %v258 = vunpack.c.l.b16 %v176
      %v259 = vunpack.c.h.b16 %v176
      %v260 = vunpack.c.l.b16 %v177
      %v261 = vunpack.c.l.b16 %v178
      %v262 = vunpack.c.h.b16 %v178
      %v263 = vunpack.c.l.b16 %v179
      %v264 = vunpack.c.l.b16 %v180
      %v265 = vunpack.c.h.b16 %v180
      %v266 = vunpack.c.l.b16 %v181
      %v267 = vunpack.c.l.b16 %v182
      %v268 = vunpack.c.h.b16 %v182
      %v269 = vunpack.c.l.b16 %v183
      %v270 = vunpack.c.l.b16 %v184
      %v271 = vunpack.c.h.b16 %v184
      %v272 = vunpack.c.l.b16 %v185
      %v273 = vunpack.c.l.b16 %v186
      %v274 = vunpack.c.h.b16 %v186
      %v275 = vunpack.c.l.b16 %v187
      %v276 = vpack.c.b16 %v255, %v252
      %v277 = vpack.c.b16 %v256, %v253
      %v278 = vpack.c.b16 %v257, %v254
      %v279 = vpack.c.b16 %v261, %v258
      %v280 = vpack.c.b16 %v262, %v259
      %v281 = vpack.c.b16 %v263, %v260
      %v282 = vpack.c.b16 %v267, %v264
      %v283 = vpack.c.b16 %v268, %v265
      %v284 = vpack.c.b16 %v269, %v266
      %v285 = vpack.c.b16 %v273, %v270
      %v286 = vpack.c.b16 %v274, %v271
      %v287 = vpack.c.b16 %v275, %v272
      %v337 = vunpack.c.l.b16 %v188
      %v338 = vunpack.c.l.b16 %v189
      %v339 = vunpack.c.l.b16 %v190
      %v340 = vunpack.c.l.b16 %v191
      %v341 = vunpack.c.l.b16 %v192
      %v342 = vunpack.c.l.b16 %v193
      %v343 = vunpack.c.l.b16 %v194
      %v344 = vunpack.c.l.b16 %v195
      %v345 = vunpack.c.l.b16 %v196
      %v346 = vunpack.c.l.b16 %v197
      %v347 = vunpack.c.l.b16 %v198
      %v348 = vunpack.c.l.b16 %v199
      %v349 = vunpack.c.l.b16 %v200
      %v350 = vunpack.c.l.b16 %v201
      %v351 = vunpack.c.l.b16 %v202
      %v352 = vunpack.c.l.b16 %v203
      %v353 = vunpack.c.l.b16 %v204
      %v354 = vunpack.c.l.b16 %v205
      %v355 = vunpack.c.l.b16 %v206
      %v356 = vunpack.c.l.b16 %v207
      %v357 = vunpack.c.l.b16 %v208
      %v358 = vunpack.c.l.b16 %v209
      %v359 = vunpack.c.l.b16 %v210
      %v360 = vunpack.c.l.b16 %v211
      %v361 = vunpack.c.l.b16 %v212
      %v362 = vunpack.c.l.b16 %v213
      %v363 = vunpack.c.l.b16 %v214
      %v364 = vunpack.c.l.b16 %v215
      %v365 = vunpack.c.l.b16 %v216
      %v366 = vunpack.c.l.b16 %v217
      %v367 = vunpack.c.l.b16 %v218
      %v368 = vunpack.c.l.b16 %v219
      %v369 = vunpack.c.l.b16 %v220
      %v370 = vunpack.c.l.b16 %v221
      %v371 = vunpack.c.l.b16 %v222
      %v372 = vunpack.c.l.b16 %v223
      %v373 = vunpack.c.l.b16 %v224
      %v374 = vunpack.c.l.b16 %v225
      %v375 = vunpack.c.l.b16 %v226
      %v376 = vunpack.c.l.b16 %v227
      %v377 = vunpack.c.l.b16 %v228
      %v378 = vpack.c.b16 %v338, %v337
      %v379 = vpack.c.b16 %v340, %v339
      %v380 = vpack.c.b16 %v342, %v341
      %v381 = vpack.c.b16 %v344, %v343
      %v382 = vpack.c.b16 %v346, %v345
      %v383 = vpack.c.b16 %v348, %v347
      %v384 = vpack.c.b16 %v350, %v349
      %v385 = vpack.c.b16 %v352, %v351
      %v386 = vpack.c.b16 %v354, %v353
      %v387 = vpack.c.b16 %v356, %v355
      %v388 = vpack.c.b16 %v358, %v357
      %v389 = vpack.c.b16 %v360, %v359
      %v390 = vpack.c.b16 %v362, %v361
      %v391 = vpack.c.b16 %v364, %v363
      %v392 = vpack.c.b16 %v366, %v365
      %v393 = vpack.c.b16 %v368, %v367
      %v394 = vpack.c.b16 %v370, %v369
      %v395 = vpack.c.b16 %v372, %v371
      %v396 = vpack.c.b16 %v374, %v373
      %v397 = vpack.c.b16 %v376, %v375
      %v398 = vpack.c.b16 %v377, %v377
      %vm419 = vcmask 556032
      %v421 = vsel %vm419, %v278, 0
      %v424 = vsel %vm419, %v281, 0
      %v427 = vsel %vm419, %v284, 0
      %v430 = vsel %vm419, %v287, 0
      %vm432 = vcmask 1041408
      %v434 = vsel %vm432, %v398, 0
      %436 = vmatprep.subr.bf16.mxu0 0
      %437 = vmatpush1.bf16.msra.mxu0 %v385
      %438 = vmatprep.subr.bf16.mxu0 0
      %439 = vmatpush1.bf16.msra.mxu0 %v384
      %440 = vmatprep.subr.bf16.mxu0 0
      %441 = vmatpush1.bf16.msra.mxu0 %v383
      %442 = vmatprep.subr.bf16.mxu0 0
      %443 = vmatpush1.bf16.msra.mxu0 %v382
      %444 = vmatprep.subr.bf16.mxu0 0
      %445 = vmatpush1.bf16.msra.mxu0 %v381
      %446 = vmatprep.subr.bf16.mxu0 0
      %447 = vmatpush1.bf16.msra.mxu0 %v380
      %448 = vmatprep.subr.bf16.mxu0 0
      %449 = vmatpush1.bf16.msra.mxu0 %v379
      %450 = vmatprep.subr.bf16.mxu0 0
      %451 = vmatpush1.bf16.msra.mxu0 %v378
      %452 = vmatprep.subr.bf16.mxu0 0
      %453 = vmatpush2.bf16.msra.mxu0 %v393
      %454 = vmatprep.subr.bf16.mxu0 0
      %455 = vmatpush2.bf16.msra.mxu0 %v392
      %456 = vmatprep.subr.bf16.mxu0 0
      %457 = vmatpush2.bf16.msra.mxu0 %v391
      %458 = vmatprep.subr.bf16.mxu0 0
      %459 = vmatpush2.bf16.msra.mxu0 %v390
      %460 = vmatprep.subr.bf16.mxu0 0
      %461 = vmatpush2.bf16.msra.mxu0 %v389
      %462 = vmatprep.subr.bf16.mxu0 0
      %463 = vmatpush2.bf16.msra.mxu0 %v388
      %464 = vmatprep.subr.bf16.mxu0 0
      %465 = vmatpush2.bf16.msra.mxu0 %v387
      %466 = vmatprep.subr.bf16.mxu0 0
      %467 = vmatpush2.bf16.msra.mxu0 %v386
      %468 = vmatprep.mubr.bf16.mxu0 %v277
      %469 = vmatmul.mubr.bf16.gmra.mxu0 %v276
      %v470 = vpop.f32.mrf.mxu0
      %v471 = vadd.f32 %v234, %v470
      %v472 = vpop.f32.mrf.mxu0
      %v473 = vpop.f32.mrf.mxu0
      %v474 = vadd.f32 %v234, %v473
      %v475 = vpop.f32.mrf.mxu0
      %476 = vmatprep.mubr.bf16.mxu0 %v280
      %477 = vmatmul.mubr.bf16.gmra.mxu0 %v279
      %v478 = vpop.f32.mrf.mxu0
      %v479 = vadd.f32 %v234, %v478
      %v480 = vpop.f32.mrf.mxu0
      %v481 = vpop.f32.mrf.mxu0
      %v482 = vadd.f32 %v234, %v481
      %v483 = vpop.f32.mrf.mxu0
      %484 = vmatprep.mubr.bf16.mxu0 %v283
      %485 = vmatmul.mubr.bf16.gmra.mxu0 %v282
      %v486 = vpop.f32.mrf.mxu0
      %v487 = vadd.f32 %v234, %v486
      %v488 = vpop.f32.mrf.mxu0
      %v489 = vpop.f32.mrf.mxu0
      %v490 = vadd.f32 %v234, %v489
      %v491 = vpop.f32.mrf.mxu0
      %492 = vmatprep.mubr.bf16.mxu0 %v286
      %493 = vmatmul.mubr.bf16.gmra.mxu0 %v285
      %v494 = vpop.f32.mrf.mxu0
      %v495 = vadd.f32 %v234, %v494
      %v496 = vpop.f32.mrf.mxu0
      %v497 = vpop.f32.mrf.mxu0
      %v498 = vadd.f32 %v234, %v497
      %v499 = vpop.f32.mrf.mxu0
      %500 = vdwg.mxu0
      %501 = vmatprep.subr.bf16.mxu0 0
      %502 = vmatpush1.bf16.msra.mxu0 0
      %503 = vmatprep.subr.bf16.mxu0 0
      %504 = vmatpush1.bf16.msra.mxu0 0
      %505 = vmatprep.subr.bf16.mxu0 0
      %506 = vmatpush1.bf16.msra.mxu0 0
      %507 = vmatprep.subr.bf16.mxu0 0
      %508 = vmatpush1.bf16.msra.mxu0 %v434
      %509 = vmatprep.subr.bf16.mxu0 0
      %510 = vmatpush1.bf16.msra.mxu0 %v397
      %511 = vmatprep.subr.bf16.mxu0 0
      %512 = vmatpush1.bf16.msra.mxu0 %v396
      %513 = vmatprep.subr.bf16.mxu0 0
      %514 = vmatpush1.bf16.msra.mxu0 %v395
      %515 = vmatprep.subr.bf16.mxu0 0
      %516 = vmatpush1.bf16.msra.mxu0 %v394
      %517 = vmatprep.subr.bf16.mxu0 0
      %518 = vmatpush2.bf16.msra.mxu0 0
      %519 = vmatprep.subr.bf16.mxu0 0
      %520 = vmatpush2.bf16.msra.mxu0 0
      %521 = vmatprep.subr.bf16.mxu0 0
      %522 = vmatpush2.bf16.msra.mxu0 0
      %523 = vmatprep.subr.bf16.mxu0 0
      %524 = vmatpush2.bf16.msra.mxu0 0
      %525 = vmatprep.subr.bf16.mxu0 0
      %526 = vmatpush2.bf16.msra.mxu0 0
      %527 = vmatprep.subr.bf16.mxu0 0
      %528 = vmatpush2.bf16.msra.mxu0 0
      %529 = vmatprep.subr.bf16.mxu0 0
      %530 = vmatpush2.bf16.msra.mxu0 0
      %531 = vmatprep.subr.bf16.mxu0 0
      %532 = vmatpush2.bf16.msra.mxu0 0
      %533 = vmatprep.mubr.bf16.mxu0 0
      %534 = vmatmul.mubr.bf16.gmra.mxu0 %v421
      %v535 = vpop.f32.mrf.mxu0
      %v536 = vadd.f32 %v471, %v535
      %v537 = vpop.f32.mrf.mxu0
      %v538 = vpop.f32.mrf.mxu0
      %v539 = vadd.f32 %v474, %v538
      %v540 = vpop.f32.mrf.mxu0
      %541 = vmatprep.mubr.bf16.mxu0 0
      %542 = vmatmul.mubr.bf16.gmra.mxu0 %v424
      %v543 = vpop.f32.mrf.mxu0
      %v544 = vadd.f32 %v479, %v543
      %v545 = vpop.f32.mrf.mxu0
      %v546 = vpop.f32.mrf.mxu0
      %v547 = vadd.f32 %v482, %v546
      %v548 = vpop.f32.mrf.mxu0
      %549 = vmatprep.mubr.bf16.mxu0 0
      %550 = vmatmul.mubr.bf16.gmra.mxu0 %v427
      %v551 = vpop.f32.mrf.mxu0
      %v552 = vadd.f32 %v487, %v551
      %v553 = vpop.f32.mrf.mxu0
      %v554 = vpop.f32.mrf.mxu0
      %v555 = vadd.f32 %v490, %v554
      %v556 = vpop.f32.mrf.mxu0
      %557 = vmatprep.mubr.bf16.mxu0 0
      %558 = vmatmul.mubr.bf16.gmra.mxu0 %v430
      %v559 = vpop.f32.mrf.mxu0
      %v560 = vadd.f32 %v495, %v559
      %v561 = vpop.f32.mrf.mxu0
      %v562 = vpop.f32.mrf.mxu0
      %v563 = vadd.f32 %v498, %v562
      %v564 = vpop.f32.mrf.mxu0
      %565 = vdwg.mxu0
      %vm566 = vcmask 523264
      %v567 = vsel %vm566, %v536, 0.0
      %v568 = vsel %vm566, %v539, 0.0
      %v569 = vadd.f32 %v567, %v568
      %v570 = vsel %vm566, %v544, 0.0
      %v571 = vadd.f32 %v569, %v570
      %v572 = vsel %vm566, %v547, 0.0
      %v573 = vadd.f32 %v571, %v572
      %v574 = vsel %vm566, %v552, 0.0
      %v575 = vadd.f32 %v573, %v574
      %v576 = vsel %vm566, %v555, 0.0
      %v577 = vadd.f32 %v575, %v576
      %v578 = vsel %vm566, %v560, 0.0
      %v579 = vadd.f32 %v577, %v578
      %v580 = vsel %vm566, %v563, 0.0
      %v581 = vadd.f32 %v579, %v580
      %v582 = vrot.slane %v581, 4
      %v583 = vadd.f32 %v581, %v582
      %v584 = vrot.slane %v583, 2
      %v585 = vadd.f32 %v583, %v584
      %v586 = vrot.slane %v585, 1
      %v587 = vadd.f32 %v585, %v586
      %v588 = vrcp.pop 64.0
      %v589 = vmul.f32 %v587, %v588
      %v590 = vsub.f32 %v536, %v589
      %v591 = vsub.f32 %v539, %v589
      %v592 = vsub.f32 %v544, %v589
      %v593 = vsub.f32 %v547, %v589
      %v594 = vsub.f32 %v552, %v589
      %v595 = vsub.f32 %v555, %v589
      %v596 = vsub.f32 %v560, %v589
      %v597 = vsub.f32 %v563, %v589
      %v598 = vmul.f32 %v590, %v590
      %v599 = vmul.f32 %v591, %v591
      %v600 = vmul.f32 %v592, %v592
      %v601 = vmul.f32 %v593, %v593
      %v602 = vmul.f32 %v594, %v594
      %v603 = vmul.f32 %v595, %v595
      %v604 = vmul.f32 %v596, %v596
      %v605 = vmul.f32 %v597, %v597
      %v606 = vsel %vm566, %v598, 0.0
      %v607 = vsel %vm566, %v599, 0.0
      %v608 = vadd.f32 %v606, %v607
      %v609 = vsel %vm566, %v600, 0.0
      %v610 = vadd.f32 %v608, %v609
      %v611 = vsel %vm566, %v601, 0.0
      %v612 = vadd.f32 %v610, %v611
      %v613 = vsel %vm566, %v602, 0.0
      %v614 = vadd.f32 %v612, %v613
      %v615 = vsel %vm566, %v603, 0.0
      %v616 = vadd.f32 %v614, %v615
      %v617 = vsel %vm566, %v604, 0.0
      %v618 = vadd.f32 %v616, %v617
      %v619 = vsel %vm566, %v605, 0.0
      %v620 = vadd.f32 %v618, %v619
      %v621 = vrot.slane %v620, 4
      %v622 = vadd.f32 %v620, %v621
      %v623 = vrot.slane %v622, 2
      %v624 = vadd.f32 %v622, %v623
      %v625 = vrot.slane %v624, 1
      %v626 = vadd.f32 %v624, %v625
      %v627 = vmul.f32 %v626, %v588
      %v628 = vadd.f32 %v627, 1e-05
      %v629 = vrsqrt.pop %v628
      %v630 = vmul.f32 %v590, %v629
      %v631 = vmul.f32 %v591, %v629
      %v632 = vmul.f32 %v592, %v629
      %v633 = vmul.f32 %v593, %v629
      %v634 = vmul.f32 %v594, %v629
      %v635 = vmul.f32 %v595, %v629
      %v636 = vmul.f32 %v596, %v629
      %v637 = vmul.f32 %v597, %v629
      %v638 = vmax.f32 %v630, 0.0
      %v639 = vmax.f32 %v631, 0.0
      %v640 = vmax.f32 %v632, 0.0
      %v641 = vmax.f32 %v633, 0.0
      %v642 = vmax.f32 %v634, 0.0
      %v643 = vmax.f32 %v635, 0.0
      %v644 = vmax.f32 %v636, 0.0
      %v645 = vmax.f32 %v637, 0.0
      %646 = vst.msk [vmem:[%s170] sm:$0xff] %vm566, %v638
      %647 = vst.msk [vmem:[%s170 + $0x8] sm:$0xff] %vm566, %v639
      %648 = vst.msk [vmem:[%s170 + $0x10] sm:$0xff] %vm566, %v640
      %649 = vst.msk [vmem:[%s170 + $0x18] sm:$0xff] %vm566, %v641
      %650 = vst.msk [vmem:[%s170 + $0x20] sm:$0xff] %vm566, %v642
      %651 = vst.msk [vmem:[%s170 + $0x28] sm:$0xff] %vm566, %v643
      %652 = vst.msk [vmem:[%s170 + $0x30] sm:$0xff] %vm566, %v644
      %653 = vst.msk [vmem:[%s170 + $0x38] sm:$0xff] %vm566, %v645
      %p654 = scmp.lt.s32.totalorder %s14, 1
      %s655 = scalar_select %p654, %s14, 1
      %s656 = smul.addr %s655, 8
      %s657 = smul.addr %s656, 8
      %s658 = scalar_lea.vmem %s3, %s657
      // Predicated region
      $region33: #{resnet_forward.13} parent=31 // pred_check
        %p659 = pneg %p100
      $region34: #{resnet_forward.13} parent=31 // pred_check_branch
        %661 = sbr.rel (%p659) target = $region36
      $region35: #{resnet_forward.13} parent=31 // pred_region
        _
      $region36: #{resnet_forward.13} parent=31 // pred_fallthru
        _
    $region32: #{resnet_forward.13} parent=5 // pred_fallthru
      _
    %p662 = scmp.le.s32.totalorder 2, %s9
    // Predicated region
    $region37: #{resnet_forward.13} parent=5 // pred_check
      %p663 = pneg %p662
    $region38: #{resnet_forward.13} parent=5 // pred_check_branch
      %665 = sbr.rel (%p663) target = $region40
    $region39: #{resnet_forward.13} parent=5 // pred_region
      %s666 = ssub.s32 %s9, 2
      // Predicated region
      $region41: #{resnet_forward.13} parent=39 // pred_check
        %p667 = pneg %p106
      $region42: #{resnet_forward.13} parent=39 // pred_check_branch
        %669 = sbr.rel (%p667) target = $region44
      $region43: #{resnet_forward.13} parent=39 // pred_region
        %p670 = scmp.lt.s32.totalorder %s15, 1
        %s671 = scalar_select %p670, %s15, 1
        %s672 = smul.addr %s671, 8
        %s673 = smul.addr %s672, 8
        %s674 = scalar_lea.vmem %s3, %s673
      $region44: #{resnet_forward.13} parent=39 // pred_fallthru
        _
    $region40: #{resnet_forward.13} parent=5 // pred_fallthru
      _
  $region6: #{resnet_forward.13} parent=0 // loop_footer
    %s13 = sadd.s32 1, %s9
  $region7: #{resnet_forward.13} parent=0 // loop_footer_branch
    %8 = sbr.rel target = $region3
  $region8: #{resnet_forward.13} parent=0 // loop_exit
    _

// kernel: resnet_forward.14
$region0: #{resnet_forward.14}
  #allocation0 [shape = 'u32[]', space=smem, size = 0x4, offset = 0x4, fixed_abs, tag = 'smem constant byte address 0x4 - core index']
  #allocation1 [shape = 'u32[144,128]{1,0:T(1,128)}', space=vmem, size = 0x12000, scoped, tag = 'internal scratch']
  %s0 = inlined_call_operand.vmem [shape: bf16[2,16,612], index: 0, kind: input, shape index: {}]
  %s1 = inlined_call_operand.vmem [shape: bf16[612,128], index: 1, kind: input, shape index: {}]
  %s2 = inlined_call_operand.vmem [shape: f32[1,128], index: 2, kind: input, shape index: {}]
  %s3 = inlined_call_operand.vmem [shape: f32[2,16,128], index: 3, kind: output, shape index: {}]
  %s4 = sld [smem:[#allocation0]]
  $region45: #{resnet_forward.14} parent=0
    _
  %s6 = ssub.s32 1, %s4
  %s7 = scalar_select 0, %s6, %s4
  loop: start=0, step=1, limit=4
  $region2: #{resnet_forward.14} parent=0 // loop_pre_header
    _
  $region3: #{resnet_forward.14} parent=0 // loop_header
    %s9 = sphi 0, %s13
    %p10 = scmp.ge.s32.totalorder %s9, 4
    %s19 = sphi 0, %s21
    %s22 = sphi 0, %s19
    %s23 = sphi 0, %s22
    %s39 = sphi 0, %s23
    %s43 = sphi 0, %s43
    %s45 = sphi 0, %s43
    %s46 = sphi 0, %s45
    %s60 = sphi 0, %s46
    %s64 = sphi 0, %s64
    %s66 = sphi 0, %s64
    %s67 = sphi 0, %s66
    %s81 = sphi 0, %s67
    %s87 = sphi 0, %s89
    %s90 = sphi 0, %s87
    %s91 = sphi 0, %s90
    %s107 = sphi 0, %s91
  $region4: #{resnet_forward.14} parent=0 // loop_header_branch
    %12 = sbr.rel (%p10) target = $region8
  $region5: #{resnet_forward.14} parent=0 // loop_body
    %s14 = ssub.s32 %s9, 1
    %s15 = ssub.s32 %s9, 2
    %s16 = sadd.s32 %s9, 1
    %s17 = ssub.s32 %s9, %s16
    %p18 = scmp.eq.s32.totalorder %s17, 0
    %s20 = sadd.s32 %s19, 1
    %s21 = scalar_select %p18, %s19, %s20
    %p24 = pneg %p18
    %p25 = scmp.eq.s32.totalorder %s9, 1
    %p26 = por %p24, %p25
    %p27 = scmp.ne.s32.totalorder %s19, %s22
    %p28 = scmp.eq.s32.totalorder %s9, 0
    %p29 = por %p27, %p28
    %p30 = scmp.ne.s32.totalorder %s19, %s22
    %p31 = scmp.eq.s32.totalorder %s14, 1
    %p32 = por %p30, %p31
    %p33 = scmp.ne.s32.totalorder %s22, %s23
    %p34 = scmp.eq.s32.totalorder %s14, 0
    %p35 = por %p33, %p34
    %p36 = scmp.ne.s32.totalorder %s22, %s23
    %p37 = scmp.eq.s32.totalorder %s15, 1
    %p38 = por %p36, %p37
    %p40 = scmp.ne.s32.totalorder %s23, %s39
    %p41 = scmp.eq.s32.totalorder %s15, 0
    %p42 = por %p40, %p41
    %s44 = sadd.s32 %s43, 1
    %p47 = scmp.eq.s32.totalorder %s9, 1
    %p48 = scmp.ne.s32.totalorder %s43, %s45
    %p49 = scmp.eq.s32.totalorder %s9, 0
    %p50 = por %p48, %p49
    %p51 = scmp.ne.s32.totalorder %s43, %s45
    %p52 = scmp.eq.s32.totalorder %s14, 1
    %p53 = por %p51, %p52
    %p54 = scmp.ne.s32.totalorder %s45, %s46
    %p55 = scmp.eq.s32.totalorder %s14, 0
    %p56 = por %p54, %p55
    %p57 = scmp.ne.s32.totalorder %s45, %s46
    %p58 = scmp.eq.s32.totalorder %s15, 1
    %p59 = por %p57, %p58
    %p61 = scmp.ne.s32.totalorder %s46, %s60
    %p62 = scmp.eq.s32.totalorder %s15, 0
    %p63 = por %p61, %p62
    %s65 = sadd.s32 %s64, 1
    %p68 = scmp.eq.s32.totalorder %s9, 1
    %p69 = scmp.ne.s32.totalorder %s64, %s66
    %p70 = scmp.eq.s32.totalorder %s9, 0
    %p71 = por %p69, %p70
    %p72 = scmp.ne.s32.totalorder %s64, %s66
    %p73 = scmp.eq.s32.totalorder %s14, 1
    %p74 = por %p72, %p73
    %p75 = scmp.ne.s32.totalorder %s66, %s67
    %p76 = scmp.eq.s32.totalorder %s14, 0
    %p77 = por %p75, %p76
    %p78 = scmp.ne.s32.totalorder %s66, %s67
    %p79 = scmp.eq.s32.totalorder %s15, 1
    %p80 = por %p78, %p79
    %p82 = scmp.ne.s32.totalorder %s67, %s81
    %p83 = scmp.eq.s32.totalorder %s15, 0
    %p84 = por %p82, %p83
    %s85 = ssub.s32 %s9, %s16
    %p86 = scmp.eq.s32.totalorder %s85, 0
    %s88 = sadd.s32 %s87, 1
    %s89 = scalar_select %p86, %s87, %s88
    %p92 = pneg %p86
    %p93 = scmp.eq.s32.totalorder %s9, 1
    %p94 = por %p92, %p93
    %p95 = scmp.ne.s32.totalorder %s87, %s90
    %p96 = scmp.eq.s32.totalorder %s9, 0
    %p97 = por %p95, %p96
    %p98 = scmp.ne.s32.totalorder %s87, %s90
    %p99 = scmp.eq.s32.totalorder %s14, 1
    %p100 = por %p98, %p99
    %p101 = scmp.ne.s32.totalorder %s90, %s91
    %p102 = scmp.eq.s32.totalorder %s14, 0
    %p103 = por %p101, %p102
    %p104 = scmp.ne.s32.totalorder %s90, %s91
    %p105 = scmp.eq.s32.totalorder %s15, 1
    %p106 = por %p104, %p105
    %p108 = scmp.ne.s32.totalorder %s91, %s107
    %p109 = scmp.eq.s32.totalorder %s15, 0
    %p110 = por %p108, %p109
    %p111 = scmp.le.s32.totalorder 1, %s9
    %p112 = scmp.lt.s32.totalorder %s9, 3
    %p113 = pnand %p111, %p112
    %p114 = pneg %p113
    // Predicated region
    $region9: #{resnet_forward.14} parent=5 // pred_check
      _
    $region10: #{resnet_forward.14} parent=5 // pred_check_branch
      %116 = sbr.rel (%p113) target = $region12
    $region11: #{resnet_forward.14} parent=5 // pred_region
      %s117 = ssub.s32 %s9, 1
      // Predicated region
      $region13: #{resnet_forward.14} parent=11 // pred_check
        %p118 = pneg %p56
      $region14: #{resnet_forward.14} parent=11 // pred_check_branch
        %120 = sbr.rel (%p118) target = $region16
      $region15: #{resnet_forward.14} parent=11 // pred_region
        _
      $region16: #{resnet_forward.14} parent=11 // pred_fallthru
        _
      // Predicated region
      $region17: #{resnet_forward.14} parent=11 // pred_check
        %p121 = pneg %p77
      $region18: #{resnet_forward.14} parent=11 // pred_check_branch
        %123 = sbr.rel (%p121) target = $region20
      $region19: #{resnet_forward.14} parent=11 // pred_region
        _
      $region20: #{resnet_forward.14} parent=11 // pred_fallthru
        _
    $region12: #{resnet_forward.14} parent=5 // pred_fallthru
      _
    %p124 = scmp.lt.s32.totalorder %s9, 2
    // Predicated region
    $region21: #{resnet_forward.14} parent=5 // pred_check
      %p125 = pneg %p124
    $region22: #{resnet_forward.14} parent=5 // pred_check_branch
      %127 = sbr.rel (%p125) target = $region24
    $region23: #{resnet_forward.14} parent=5 // pred_region
      // Predicated region
      $region25: #{resnet_forward.14} parent=23 // pred_check
        %p128 = pneg %p29
      $region26: #{resnet_forward.14} parent=23 // pred_check_branch
        %130 = sbr.rel (%p128) target = $region28
      $region27: #{resnet_forward.14} parent=23 // pred_region
        %p131 = scmp.lt.s32.totalorder %s9, 1
        %s132 = scalar_select %p131, %s9, 1
        %s133 = smul.addr %s132, 10
        %s134 = smul.addr %s133, 4
        %s135 = scalar_lea.vmem %s0, %s134
      $region28: #{resnet_forward.14} parent=23 // pred_fallthru
        _
    $region24: #{resnet_forward.14} parent=5 // pred_fallthru
      _
    %p136 = scmp.le.s32.totalorder 1, %s9
    %p137 = scmp.lt.s32.totalorder %s9, 3
    %p138 = pnand %p136, %p137
    %p139 = pneg %p138
    // Predicated region
    $region29: #{resnet_forward.14} parent=5 // pred_check
      _
    $region30: #{resnet_forward.14} parent=5 // pred_check_branch
      %141 = sbr.rel (%p138) target = $region32
    $region31: #{resnet_forward.14} parent=5 // pred_region
      %s142 = ssub.s32 %s9, 1
      %p143 = scmp.lt.s32.totalorder %s14, 1
      %s144 = scalar_select %p143, %s14, 1
      %s145 = smul.addr %s144, 10
      %s146 = smul.addr %s145, 4
      %s147 = scalar_lea.vmem %s0, %s146
      %p148 = pneg %p35
      %p149 = pneg %p32
      %p150 = pneg %p56
      %p151 = pneg %p53
      %p152 = pneg %p77
      %p153 = pneg %p74
      %p154 = pneg %p103
      %p155 = pneg %p100
      %p156 = scmp.lt.s32.totalorder %s14, 1
      %s157 = scalar_select %p156, %s14, 1
      %s158 = smul.addr %s157, 2
      %s159 = smul.addr %s158, 8
      %s160 = scalar_lea.vmem %s3, %s159
      %p161 = scmp.lt.s32.totalorder %s14, 1
      %s162 = scalar_select %p161, %s14, 1
      %s163 = smul.addr %s162, 10
      %s164 = smul.addr %s163, 4
      %s165 = scalar_lea.vmem %s0, %s164
      %p166 = scmp.lt.s32.totalorder %s14, 1
      %s167 = scalar_select %p166, %s14, 1
      %s168 = smul.addr %s167, 2
      %s169 = smul.addr %s168, 8
      %s170 = scalar_lea.vmem %s3, %s169
      %v172 = vld [vmem:[%s165] sm:$0xff]
      %v173 = vld [vmem:[%s165 + $0x8] sm:$0xff]
      %v174 = vld [vmem:[%s165 + $0x10] sm:$0xf]
      %v175 = vld [vmem:[%s165 + $0x14] sm:$0xff]
      %v176 = vld [vmem:[%s165 + $0x1c] sm:$0xff]
      %v177 = vld [vmem:[%s165 + $0x24] sm:$0xf]
      %v178 = vld [vmem:[%s1] sm:$0xf]
      %v179 = vld [vmem:[%s1 + $0x4] sm:$0xf]
      %v180 = vld [vmem:[%s1 + $0x8] sm:$0xf]
      %v181 = vld [vmem:[%s1 + $0xc] sm:$0xf]
      %v182 = vld [vmem:[%s1 + $0x10] sm:$0xf]
      %v183 = vld [vmem:[%s1 + $0x14] sm:$0xf]
      %v184 = vld [vmem:[%s1 + $0x18] sm:$0xf]
      %v185 = vld [vmem:[%s1 + $0x1c] sm:$0xf]
      %v186 = vld [vmem:[%s1 + $0x20] sm:$0xf]
      %v187 = vld [vmem:[%s1 + $0x24] sm:$0xf]
      %v188 = vld [vmem:[%s1 + $0x28] sm:$0xf]
      %v189 = vld [vmem:[%s1 + $0x2c] sm:$0xf]
      %v190 = vld [vmem:[%s1 + $0x30] sm:$0xf]
      %v191 = vld [vmem:[%s1 + $0x34] sm:$0xf]
      %v192 = vld [vmem:[%s1 + $0x38] sm:$0xf]
      %v193 = vld [vmem:[%s1 + $0x3c] sm:$0xf]
      %v194 = vld [vmem:[%s1 + $0x40] sm:$0xf]
      %v195 = vld [vmem:[%s1 + $0x44] sm:$0xf]
      %v196 = vld [vmem:[%s1 + $0x48] sm:$0xf]
      %v197 = vld [vmem:[%s1 + $0x4c] sm:$0xf]
      %v198 = vld [vmem:[%s1 + $0x50] sm:$0xf]
      %v199 = vld [vmem:[%s1 + $0x54] sm:$0xf]
      %v200 = vld [vmem:[%s1 + $0x58] sm:$0xf]
      %v201 = vld [vmem:[%s1 + $0x5c] sm:$0xf]
      %v202 = vld [vmem:[%s1 + $0x60] sm:$0xf]
      %v203 = vld [vmem:[%s1 + $0x64] sm:$0xf]
      %v204 = vld [vmem:[%s1 + $0x68] sm:$0xf]
      %v205 = vld [vmem:[%s1 + $0x6c] sm:$0xf]
      %v206 = vld [vmem:[%s1 + $0x70] sm:$0xf]
      %v207 = vld [vmem:[%s1 + $0x74] sm:$0xf]
      %v208 = vld [vmem:[%s1 + $0x78] sm:$0xf]
      %v209 = vld [vmem:[%s1 + $0x7c] sm:$0xf]
      %v210 = vld [vmem:[%s1 + $0x80] sm:$0xf]
      %v211 = vld [vmem:[%s1 + $0x84] sm:$0xf]
      %v212 = vld [vmem:[%s1 + $0x88] sm:$0xf]
      %v213 = vld [vmem:[%s1 + $0x8c] sm:$0xf]
      %v214 = vld [vmem:[%s1 + $0x90] sm:$0xf]
      %v215 = vld [vmem:[%s1 + $0x94] sm:$0xf]
      %v216 = vld [vmem:[%s1 + $0x98] sm:$0xf]
      %v217 = vld [vmem:[%s1 + $0x9c] sm:$0xf]
      %v218 = vld [vmem:[%s1 + $0xa0] sm:$0xf]
      %v219 = vld [vmem:[%s1 + $0xa4] sm:$0xf]
      %v220 = vld [vmem:[%s1 + $0xa8] sm:$0xf]
      %v221 = vld [vmem:[%s1 + $0xac] sm:$0xf]
      %v222 = vld [vmem:[%s1 + $0xb0] sm:$0xf]
      %v223 = vld [vmem:[%s1 + $0xb4] sm:$0xf]
      %v224 = vld [vmem:[%s1 + $0xb8] sm:$0xf]
      %v225 = vld [vmem:[%s1 + $0xbc] sm:$0xf]
      %v226 = vld [vmem:[%s1 + $0xc0] sm:$0xf]
      %v227 = vld [vmem:[%s1 + $0xc4] sm:$0xf]
      %v228 = vld [vmem:[%s1 + $0xc8] sm:$0xf]
      %v229 = vld [vmem:[%s1 + $0xcc] sm:$0xf]
      %v230 = vld [vmem:[%s1 + $0xd0] sm:$0xf]
      %v231 = vld [vmem:[%s1 + $0xd4] sm:$0xf]
      %v232 = vld [vmem:[%s1 + $0xd8] sm:$0xf]
      %v233 = vld [vmem:[%s1 + $0xdc] sm:$0xf]
      %v234 = vld [vmem:[%s1 + $0xe0] sm:$0xf]
      %v235 = vld [vmem:[%s1 + $0xe4] sm:$0xf]
      %v236 = vld [vmem:[%s1 + $0xe8] sm:$0xf]
      %v237 = vld [vmem:[%s1 + $0xec] sm:$0xf]
      %v238 = vld [vmem:[%s1 + $0xf0] sm:$0xf]
      %v239 = vld [vmem:[%s1 + $0xf4] sm:$0xf]
      %v240 = vld [vmem:[%s1 + $0xf8] sm:$0xf]
      %v241 = vld [vmem:[%s1 + $0xfc] sm:$0xf]
      %v242 = vld [vmem:[%s1 + $0x100] sm:$0xf]
      %v243 = vld [vmem:[%s1 + $0x104] sm:$0xf]
      %v244 = vld [vmem:[%s1 + $0x108] sm:$0xf]
      %v245 = vld [vmem:[%s1 + $0x10c] sm:$0xf]
      %v246 = vld [vmem:[%s1 + $0x110] sm:$0xf]
      %v247 = vld [vmem:[%s1 + $0x114] sm:$0xf]
      %v248 = vld [vmem:[%s1 + $0x118] sm:$0xf]
      %v249 = vld [vmem:[%s1 + $0x11c] sm:$0xf]
      %v250 = vld [vmem:[%s1 + $0x120] sm:$0xf]
      %v251 = vld [vmem:[%s1 + $0x124] sm:$0xf]
      %v252 = vld [vmem:[%s1 + $0x128] sm:$0xf]
      %v253 = vld [vmem:[%s1 + $0x12c] sm:$0xf]
      %v254 = vld [vmem:[%s1 + $0x130] sm:$0x3]
      %v255 = vld [vmem:[%s2] sm:$0x1]
      %v257 = vlaneseq
      %v258 = vshrl.u32 %v257, 7
      %v259 = vsub.s32 0, %v258
      %v260 = vrot.slane %v255, %v259
      %v268 = vunpack.c.l.b16 %v172
      %v269 = vunpack.c.h.b16 %v172
      %v270 = vunpack.c.l.b16 %v173
      %v271 = vunpack.c.h.b16 %v173
      %v272 = vunpack.c.l.b16 %v174
      %v273 = vunpack.c.l.b16 %v175
      %v274 = vunpack.c.h.b16 %v175
      %v275 = vunpack.c.l.b16 %v176
      %v276 = vunpack.c.h.b16 %v176
      %v277 = vunpack.c.l.b16 %v177
      %v278 = vpack.c.b16 %v273, %v268
      %v279 = vpack.c.b16 %v274, %v269
      %v280 = vpack.c.b16 %v275, %v270
      %v281 = vpack.c.b16 %v276, %v271
      %v282 = vpack.c.b16 %v277, %v272
      %v364 = vunpack.c.l.b16 %v178
      %v365 = vunpack.c.l.b16 %v179
      %v366 = vunpack.c.l.b16 %v180
      %v367 = vunpack.c.l.b16 %v181
      %v368 = vunpack.c.l.b16 %v182
      %v369 = vunpack.c.l.b16 %v183
      %v370 = vunpack.c.l.b16 %v184
      %v371 = vunpack.c.l.b16 %v185
      %v372 = vunpack.c.l.b16 %v186
      %v373 = vunpack.c.l.b16 %v187
      %v374 = vunpack.c.l.b16 %v188
      %v375 = vunpack.c.l.b16 %v189
      %v376 = vunpack.c.l.b16 %v190
      %v377 = vunpack.c.l.b16 %v191
      %v378 = vunpack.c.l.b16 %v192
      %v379 = vunpack.c.l.b16 %v193
      %v380 = vunpack.c.l.b16 %v194
      %v381 = vunpack.c.l.b16 %v195
      %v382 = vunpack.c.l.b16 %v196
      %v383 = vunpack.c.l.b16 %v197
      %v384 = vunpack.c.l.b16 %v198
      %v385 = vunpack.c.l.b16 %v199
      %v386 = vunpack.c.l.b16 %v200
      %v387 = vunpack.c.l.b16 %v201
      %v388 = vunpack.c.l.b16 %v202
      %v389 = vunpack.c.l.b16 %v203
      %v390 = vunpack.c.l.b16 %v204
      %v391 = vunpack.c.l.b16 %v205
      %v392 = vunpack.c.l.b16 %v206
      %v393 = vunpack.c.l.b16 %v207
      %v394 = vunpack.c.l.b16 %v208
      %v395 = vunpack.c.l.b16 %v209
      %v396 = vunpack.c.l.b16 %v210
      %v397 = vunpack.c.l.b16 %v211
      %v398 = vunpack.c.l.b16 %v212
      %v399 = vunpack.c.l.b16 %v213
      %v400 = vunpack.c.l.b16 %v214
      %v401 = vunpack.c.l.b16 %v215
      %v402 = vunpack.c.l.b16 %v216
      %v403 = vunpack.c.l.b16 %v217
      %v404 = vunpack.c.l.b16 %v218
      %v405 = vunpack.c.l.b16 %v219
      %v406 = vunpack.c.l.b16 %v220
      %v407 = vunpack.c.l.b16 %v221
      %v408 = vunpack.c.l.b16 %v222
      %v409 = vunpack.c.l.b16 %v223
      %v410 = vunpack.c.l.b16 %v224
      %v411 = vunpack.c.l.b16 %v225
      %v412 = vunpack.c.l.b16 %v226
      %v413 = vunpack.c.l.b16 %v227
      %v414 = vunpack.c.l.b16 %v228
      %v415 = vunpack.c.l.b16 %v229
      %v416 = vunpack.c.l.b16 %v230
      %v417 = vunpack.c.l.b16 %v231
      %v418 = vunpack.c.l.b16 %v232
      %v419 = vunpack.c.l.b16 %v233
      %v420 = vunpack.c.l.b16 %v234
      %v421 = vunpack.c.l.b16 %v235
      %v422 = vunpack.c.l.b16 %v236
      %v423 = vunpack.c.l.b16 %v237
      %v424 = vunpack.c.l.b16 %v238
      %v425 = vunpack.c.l.b16 %v239
      %v426 = vunpack.c.l.b16 %v240
      %v427 = vunpack.c.l.b16 %v241
      %v428 = vunpack.c.l.b16 %v242
      %v429 = vunpack.c.l.b16 %v243
      %v430 = vunpack.c.l.b16 %v244
      %v431 = vunpack.c.l.b16 %v245
      %v432 = vunpack.c.l.b16 %v246
      %v433 = vunpack.c.l.b16 %v247
      %v434 = vunpack.c.l.b16 %v248
      %v435 = vunpack.c.l.b16 %v249
      %v436 = vunpack.c.l.b16 %v250
      %v437 = vunpack.c.l.b16 %v251
      %v438 = vunpack.c.l.b16 %v252
      %v439 = vunpack.c.l.b16 %v253
      %v440 = vunpack.c.l.b16 %v254
      %v441 = vpack.c.b16 %v365, %v364
      %v442 = vpack.c.b16 %v367, %v366
      %v443 = vpack.c.b16 %v369, %v368
      %v444 = vpack.c.b16 %v371, %v370
      %v445 = vpack.c.b16 %v373, %v372
      %v446 = vpack.c.b16 %v375, %v374
      %v447 = vpack.c.b16 %v377, %v376
      %v448 = vpack.c.b16 %v379, %v378
      %v449 = vpack.c.b16 %v381, %v380
      %v450 = vpack.c.b16 %v383, %v382
      %v451 = vpack.c.b16 %v385, %v384
      %v452 = vpack.c.b16 %v387, %v386
      %v453 = vpack.c.b16 %v389, %v388
      %v454 = vpack.c.b16 %v391, %v390
      %v455 = vpack.c.b16 %v393, %v392
      %v456 = vpack.c.b16 %v395, %v394
      %v457 = vpack.c.b16 %v397, %v396
      %v458 = vpack.c.b16 %v399, %v398
      %v459 = vpack.c.b16 %v401, %v400
      %v460 = vpack.c.b16 %v403, %v402
      %v461 = vpack.c.b16 %v405, %v404
      %v462 = vpack.c.b16 %v407, %v406
      %v463 = vpack.c.b16 %v409, %v408
      %v464 = vpack.c.b16 %v411, %v410
      %v465 = vpack.c.b16 %v413, %v412
      %v466 = vpack.c.b16 %v415, %v414
      %v467 = vpack.c.b16 %v417, %v416
      %v468 = vpack.c.b16 %v419, %v418
      %v469 = vpack.c.b16 %v421, %v420
      %v470 = vpack.c.b16 %v423, %v422
      %v471 = vpack.c.b16 %v425, %v424
      %v472 = vpack.c.b16 %v427, %v426
      %v473 = vpack.c.b16 %v429, %v428
      %v474 = vpack.c.b16 %v431, %v430
      %v475 = vpack.c.b16 %v433, %v432
      %v476 = vpack.c.b16 %v435, %v434
      %v477 = vpack.c.b16 %v437, %v436
      %v478 = vpack.c.b16 %v439, %v438
      %v479 = vpack.c.b16 %v440, %v440
      %vm518 = vcmask 818176
      %v520 = vsel %vm518, %v282, 0
      %vm522 = vcmask 1041408
      %v524 = vsel %vm522, %v479, 0
      %526 = vmatprep.subr.bf16.mxu0 0
      %527 = vmatpush1.bf16.msra.mxu0 %v448
      %528 = vmatprep.subr.bf16.mxu0 0
      %529 = vmatpush1.bf16.msra.mxu0 %v447
      %530 = vmatprep.subr.bf16.mxu0 0
      %531 = vmatpush1.bf16.msra.mxu0 %v446
      %532 = vmatprep.subr.bf16.mxu0 0
      %533 = vmatpush1.bf16.msra.mxu0 %v445
      %534 = vmatprep.subr.bf16.mxu0 0
      %535 = vmatpush1.bf16.msra.mxu0 %v444
      %536 = vmatprep.subr.bf16.mxu0 0
      %537 = vmatpush1.bf16.msra.mxu0 %v443
      %538 = vmatprep.subr.bf16.mxu0 0
      %539 = vmatpush1.bf16.msra.mxu0 %v442
      %540 = vmatprep.subr.bf16.mxu0 0
      %541 = vmatpush1.bf16.msra.mxu0 %v441
      %542 = vmatprep.subr.bf16.mxu0 0
      %543 = vmatpush2.bf16.msra.mxu0 %v456
      %544 = vmatprep.subr.bf16.mxu0 0
      %545 = vmatpush2.bf16.msra.mxu0 %v455
      %546 = vmatprep.subr.bf16.mxu0 0
      %547 = vmatpush2.bf16.msra.mxu0 %v454
      %548 = vmatprep.subr.bf16.mxu0 0
      %549 = vmatpush2.bf16.msra.mxu0 %v453
      %550 = vmatprep.subr.bf16.mxu0 0
      %551 = vmatpush2.bf16.msra.mxu0 %v452
      %552 = vmatprep.subr.bf16.mxu0 0
      %553 = vmatpush2.bf16.msra.mxu0 %v451
      %554 = vmatprep.subr.bf16.mxu0 0
      %555 = vmatpush2.bf16.msra.mxu0 %v450
      %556 = vmatprep.subr.bf16.mxu0 0
      %557 = vmatpush2.bf16.msra.mxu0 %v449
      %558 = vmatprep.mubr.bf16.mxu0 %v279
      %559 = vmatmul.mubr.bf16.gmra.mxu0 %v278
      %v560 = vpop.f32.mrf.mxu0
      %v561 = vadd.f32 %v260, %v560
      %v562 = vpop.f32.mrf.mxu0
      %v563 = vpop.f32.mrf.mxu0
      %v564 = vadd.f32 %v260, %v563
      %v565 = vpop.f32.mrf.mxu0
      %566 = vdwg.mxu0
      %567 = vmatprep.subr.bf16.mxu0 0
      %568 = vmatpush1.bf16.msra.mxu0 %v464
      %569 = vmatprep.subr.bf16.mxu0 0
      %570 = vmatpush1.bf16.msra.mxu0 %v463
      %571 = vmatprep.subr.bf16.mxu0 0
      %572 = vmatpush1.bf16.msra.mxu0 %v462
      %573 = vmatprep.subr.bf16.mxu0 0
      %574 = vmatpush1.bf16.msra.mxu0 %v461
      %575 = vmatprep.subr.bf16.mxu0 0
      %576 = vmatpush1.bf16.msra.mxu0 %v460
      %577 = vmatprep.subr.bf16.mxu0 0
      %578 = vmatpush1.bf16.msra.mxu0 %v459
      %579 = vmatprep.subr.bf16.mxu0 0
      %580 = vmatpush1.bf16.msra.mxu0 %v458
      %581 = vmatprep.subr.bf16.mxu0 0
      %582 = vmatpush1.bf16.msra.mxu0 %v457
      %583 = vmatprep.subr.bf16.mxu0 0
      %584 = vmatpush2.bf16.msra.mxu0 %v472
      %585 = vmatprep.subr.bf16.mxu0 0
      %586 = vmatpush2.bf16.msra.mxu0 %v471
      %587 = vmatprep.subr.bf16.mxu0 0
      %588 = vmatpush2.bf16.msra.mxu0 %v470
      %589 = vmatprep.subr.bf16.mxu0 0
      %590 = vmatpush2.bf16.msra.mxu0 %v469
      %591 = vmatprep.subr.bf16.mxu0 0
      %592 = vmatpush2.bf16.msra.mxu0 %v468
      %593 = vmatprep.subr.bf16.mxu0 0
      %594 = vmatpush2.bf16.msra.mxu0 %v467
      %595 = vmatprep.subr.bf16.mxu0 0
      %596 = vmatpush2.bf16.msra.mxu0 %v466
      %597 = vmatprep.subr.bf16.mxu0 0
      %598 = vmatpush2.bf16.msra.mxu0 %v465
      %599 = vmatprep.mubr.bf16.mxu0 %v281
      %600 = vmatmul.mubr.bf16.gmra.mxu0 %v280
      %v601 = vpop.f32.mrf.mxu0
      %v602 = vadd.f32 %v561, %v601
      %v603 = vpop.f32.mrf.mxu0
      %v604 = vpop.f32.mrf.mxu0
      %v605 = vadd.f32 %v564, %v604
      %v606 = vpop.f32.mrf.mxu0
      %607 = vdwg.mxu0
      %608 = vmatprep.subr.bf16.mxu0 0
      %609 = vmatpush1.bf16.msra.mxu0 0
      %610 = vmatprep.subr.bf16.mxu0 0
      %611 = vmatpush1.bf16.msra.mxu0 %v524
      %612 = vmatprep.subr.bf16.mxu0 0
      %613 = vmatpush1.bf16.msra.mxu0 %v478
      %614 = vmatprep.subr.bf16.mxu0 0
      %615 = vmatpush1.bf16.msra.mxu0 %v477
      %616 = vmatprep.subr.bf16.mxu0 0
      %617 = vmatpush1.bf16.msra.mxu0 %v476
      %618 = vmatprep.subr.bf16.mxu0 0
      %619 = vmatpush1.bf16.msra.mxu0 %v475
      %620 = vmatprep.subr.bf16.mxu0 0
      %621 = vmatpush1.bf16.msra.mxu0 %v474
      %622 = vmatprep.subr.bf16.mxu0 0
      %623 = vmatpush1.bf16.msra.mxu0 %v473
      %624 = vmatprep.subr.bf16.mxu0 0
      %625 = vmatpush2.bf16.msra.mxu0 0
      %626 = vmatprep.subr.bf16.mxu0 0
      %627 = vmatpush2.bf16.msra.mxu0 0
      %628 = vmatprep.subr.bf16.mxu0 0
      %629 = vmatpush2.bf16.msra.mxu0 0
      %630 = vmatprep.subr.bf16.mxu0 0
      %631 = vmatpush2.bf16.msra.mxu0 0
      %632 = vmatprep.subr.bf16.mxu0 0
      %633 = vmatpush2.bf16.msra.mxu0 0
      %634 = vmatprep.subr.bf16.mxu0 0
      %635 = vmatpush2.bf16.msra.mxu0 0
      %636 = vmatprep.subr.bf16.mxu0 0
      %637 = vmatpush2.bf16.msra.mxu0 0
      %638 = vmatprep.subr.bf16.mxu0 0
      %639 = vmatpush2.bf16.msra.mxu0 0
      %640 = vmatprep.mubr.bf16.mxu0 0
      %641 = vmatmul.mubr.bf16.gmra.mxu0 %v520
      %v642 = vpop.f32.mrf.mxu0
      %v643 = vadd.f32 %v602, %v642
      %v644 = vpop.f32.mrf.mxu0
      %v645 = vpop.f32.mrf.mxu0
      %v646 = vadd.f32 %v605, %v645
      %v647 = vpop.f32.mrf.mxu0
      %648 = vdwg.mxu0
      %v649 = vadd.f32 %v643, %v646
      %v650 = vrot.slane %v649, 4
      %v651 = vadd.f32 %v649, %v650
      %v652 = vrot.slane %v651, 2
      %v653 = vadd.f32 %v651, %v652
      %v654 = vrot.slane %v653, 1
      %v655 = vadd.f32 %v653, %v654
      %v656 = vrcp.pop 16.0
      %v657 = vmul.f32 %v655, %v656
      %v658 = vsub.f32 %v643, %v657
      %v659 = vsub.f32 %v646, %v657
      %v660 = vmul.f32 %v658, %v658
      %v661 = vmul.f32 %v659, %v659
      %v662 = vadd.f32 %v660, %v661
      %v663 = vrot.slane %v662, 4
      %v664 = vadd.f32 %v662, %v663
      %v665 = vrot.slane %v664, 2
      %v666 = vadd.f32 %v664, %v665
      %v667 = vrot.slane %v666, 1
      %v668 = vadd.f32 %v666, %v667
      %v669 = vmul.f32 %v668, %v656
      %v670 = vadd.f32 %v669, 1e-05
      %v671 = vrsqrt.pop %v670
      %v672 = vmul.f32 %v658, %v671
      %v673 = vmul.f32 %v659, %v671
      %v674 = vmax.f32 %v672, 0.0
      %v675 = vmax.f32 %v673, 0.0
      %676 = vst [vmem:[%s170] sm:$0xff] %v674
      %677 = vst [vmem:[%s170 + $0x8] sm:$0xff] %v675
      %p678 = scmp.lt.s32.totalorder %s14, 1
      %s679 = scalar_select %p678, %s14, 1
      %s680 = smul.addr %s679, 2
      %s681 = smul.addr %s680, 8
      %s682 = scalar_lea.vmem %s3, %s681
      // Predicated region
      $region33: #{resnet_forward.14} parent=31 // pred_check
        %p683 = pneg %p100
      $region34: #{resnet_forward.14} parent=31 // pred_check_branch
        %685 = sbr.rel (%p683) target = $region36
      $region35: #{resnet_forward.14} parent=31 // pred_region
        _
      $region36: #{resnet_forward.14} parent=31 // pred_fallthru
        _
    $region32: #{resnet_forward.14} parent=5 // pred_fallthru
      _
    %p686 = scmp.le.s32.totalorder 2, %s9
    // Predicated region
    $region37: #{resnet_forward.14} parent=5 // pred_check
      %p687 = pneg %p686
    $region38: #{resnet_forward.14} parent=5 // pred_check_branch
      %689 = sbr.rel (%p687) target = $region40
    $region39: #{resnet_forward.14} parent=5 // pred_region
      %s690 = ssub.s32 %s9, 2
      // Predicated region
      $region41: #{resnet_forward.14} parent=39 // pred_check
        %p691 = pneg %p106
      $region42: #{resnet_forward.14} parent=39 // pred_check_branch
        %693 = sbr.rel (%p691) target = $region44
      $region43: #{resnet_forward.14} parent=39 // pred_region
        %p694 = scmp.lt.s32.totalorder %s15, 1
        %s695 = scalar_select %p694, %s15, 1
        %s696 = smul.addr %s695, 2
        %s697 = smul.addr %s696, 8
        %s698 = scalar_lea.vmem %s3, %s697
      $region44: #{resnet_forward.14} parent=39 // pred_fallthru
        _
    $region40: #{resnet_forward.14} parent=5 // pred_fallthru
      _
  $region6: #{resnet_forward.14} parent=0 // loop_footer
    %s13 = sadd.s32 1, %s9
  $region7: #{resnet_forward.14} parent=0 // loop_footer_branch
    %8 = sbr.rel target = $region3
  $region8: #{resnet_forward.14} parent=0 // loop_exit
    _

// kernel: resnet_forward.15
$region0: #{resnet_forward.15}
  #allocation0 [shape = 'u32[]', space=smem, size = 0x4, offset = 0x4, fixed_abs, tag = 'smem constant byte address 0x4 - core index']
  #allocation1 [shape = 'u32[144,128]{1,0:T(1,128)}', space=vmem, size = 0x12000, scoped, tag = 'internal scratch']
  %s0 = inlined_call_operand.vmem [shape: f32[2,16,128], index: 0, kind: input, shape index: {}]
  %s1 = inlined_call_operand.vmem [shape: bf16[144,16], index: 1, kind: input, shape index: {}]
  %s2 = inlined_call_operand.vmem [shape: bf16[9,128,128], index: 2, kind: input, shape index: {}]
  %s3 = inlined_call_operand.vmem [shape: f32[1,128], index: 3, kind: input, shape index: {}]
  %s4 = inlined_call_operand.vmem [shape: bf16[9,128,128], index: 4, kind: input, shape index: {}]
  %s5 = inlined_call_operand.vmem [shape: f32[1,128], index: 5, kind: input, shape index: {}]
  %s6 = inlined_call_operand.vmem [shape: f32[2,16,128], index: 6, kind: output, shape index: {}]
  %s7 = sld [smem:[#allocation0]]
  $region57: #{resnet_forward.15} parent=0
    _
  %s9 = ssub.s32 1, %s7
  %s10 = scalar_select 0, %s9, %s7
  loop: start=0, step=1, limit=4
  $region2: #{resnet_forward.15} parent=0 // loop_pre_header
    _
  $region3: #{resnet_forward.15} parent=0 // loop_header
    %s12 = sphi 0, %s16
    %p13 = scmp.ge.s32.totalorder %s12, 4
    %s22 = sphi 0, %s24
    %s25 = sphi 0, %s22
    %s26 = sphi 0, %s25
    %s42 = sphi 0, %s26
    %s46 = sphi 0, %s46
    %s48 = sphi 0, %s46
    %s49 = sphi 0, %s48
    %s63 = sphi 0, %s49
    %s67 = sphi 0, %s67
    %s69 = sphi 0, %s67
    %s70 = sphi 0, %s69
    %s84 = sphi 0, %s70
    %s88 = sphi 0, %s88
    %s90 = sphi 0, %s88
    %s91 = sphi 0, %s90
    %s105 = sphi 0, %s91
    %s109 = sphi 0, %s109
    %s111 = sphi 0, %s109
    %s112 = sphi 0, %s111
    %s126 = sphi 0, %s112
    %s130 = sphi 0, %s130
    %s132 = sphi 0, %s130
    %s133 = sphi 0, %s132
    %s147 = sphi 0, %s133
    %s153 = sphi 0, %s155
    %s156 = sphi 0, %s153
    %s157 = sphi 0, %s156
    %s173 = sphi 0, %s157
  $region4: #{resnet_forward.15} parent=0 // loop_header_branch
    %15 = sbr.rel (%p13) target = $region8
  $region5: #{resnet_forward.15} parent=0 // loop_body
    %s17 = ssub.s32 %s12, 1
    %s18 = ssub.s32 %s12, 2
    %s19 = sadd.s32 %s12, 1
    %s20 = ssub.s32 %s12, %s19
    %p21 = scmp.eq.s32.totalorder %s20, 0
    %s23 = sadd.s32 %s22, 1
    %s24 = scalar_select %p21, %s22, %s23
    %p27 = pneg %p21
    %p28 = scmp.eq.s32.totalorder %s12, 1
    %p29 = por %p27, %p28
    %p30 = scmp.ne.s32.totalorder %s22, %s25
    %p31 = scmp.eq.s32.totalorder %s12, 0
    %p32 = por %p30, %p31
    %p33 = scmp.ne.s32.totalorder %s22, %s25
    %p34 = scmp.eq.s32.totalorder %s17, 1
    %p35 = por %p33, %p34
    %p36 = scmp.ne.s32.totalorder %s25, %s26
    %p37 = scmp.eq.s32.totalorder %s17, 0
    %p38 = por %p36, %p37
    %p39 = scmp.ne.s32.totalorder %s25, %s26
    %p40 = scmp.eq.s32.totalorder %s18, 1
    %p41 = por %p39, %p40
    %p43 = scmp.ne.s32.totalorder %s26, %s42
    %p44 = scmp.eq.s32.totalorder %s18, 0
    %p45 = por %p43, %p44
    %s47 = sadd.s32 %s46, 1
    %p50 = scmp.eq.s32.totalorder %s12, 1
    %p51 = scmp.ne.s32.totalorder %s46, %s48
    %p52 = scmp.eq.s32.totalorder %s12, 0
    %p53 = por %p51, %p52
    %p54 = scmp.ne.s32.totalorder %s46, %s48
    %p55 = scmp.eq.s32.totalorder %s17, 1
    %p56 = por %p54, %p55
    %p57 = scmp.ne.s32.totalorder %s48, %s49
    %p58 = scmp.eq.s32.totalorder %s17, 0
    %p59 = por %p57, %p58
    %p60 = scmp.ne.s32.totalorder %s48, %s49
    %p61 = scmp.eq.s32.totalorder %s18, 1
    %p62 = por %p60, %p61
    %p64 = scmp.ne.s32.totalorder %s49, %s63
    %p65 = scmp.eq.s32.totalorder %s18, 0
    %p66 = por %p64, %p65
    %s68 = sadd.s32 %s67, 1
    %p71 = scmp.eq.s32.totalorder %s12, 1
    %p72 = scmp.ne.s32.totalorder %s67, %s69
    %p73 = scmp.eq.s32.totalorder %s12, 0
    %p74 = por %p72, %p73
    %p75 = scmp.ne.s32.totalorder %s67, %s69
    %p76 = scmp.eq.s32.totalorder %s17, 1
    %p77 = por %p75, %p76
    %p78 = scmp.ne.s32.totalorder %s69, %s70
    %p79 = scmp.eq.s32.totalorder %s17, 0
    %p80 = por %p78, %p79
    %p81 = scmp.ne.s32.totalorder %s69, %s70
    %p82 = scmp.eq.s32.totalorder %s18, 1
    %p83 = por %p81, %p82
    %p85 = scmp.ne.s32.totalorder %s70, %s84
    %p86 = scmp.eq.s32.totalorder %s18, 0
    %p87 = por %p85, %p86
    %s89 = sadd.s32 %s88, 1
    %p92 = scmp.eq.s32.totalorder %s12, 1
    %p93 = scmp.ne.s32.totalorder %s88, %s90
    %p94 = scmp.eq.s32.totalorder %s12, 0
    %p95 = por %p93, %p94
    %p96 = scmp.ne.s32.totalorder %s88, %s90
    %p97 = scmp.eq.s32.totalorder %s17, 1
    %p98 = por %p96, %p97
    %p99 = scmp.ne.s32.totalorder %s90, %s91
    %p100 = scmp.eq.s32.totalorder %s17, 0
    %p101 = por %p99, %p100
    %p102 = scmp.ne.s32.totalorder %s90, %s91
    %p103 = scmp.eq.s32.totalorder %s18, 1
    %p104 = por %p102, %p103
    %p106 = scmp.ne.s32.totalorder %s91, %s105
    %p107 = scmp.eq.s32.totalorder %s18, 0
    %p108 = por %p106, %p107
    %s110 = sadd.s32 %s109, 1
    %p113 = scmp.eq.s32.totalorder %s12, 1
    %p114 = scmp.ne.s32.totalorder %s109, %s111
    %p115 = scmp.eq.s32.totalorder %s12, 0
    %p116 = por %p114, %p115
    %p117 = scmp.ne.s32.totalorder %s109, %s111
    %p118 = scmp.eq.s32.totalorder %s17, 1
    %p119 = por %p117, %p118
    %p120 = scmp.ne.s32.totalorder %s111, %s112
    %p121 = scmp.eq.s32.totalorder %s17, 0
    %p122 = por %p120, %p121
    %p123 = scmp.ne.s32.totalorder %s111, %s112
    %p124 = scmp.eq.s32.totalorder %s18, 1
    %p125 = por %p123, %p124
    %p127 = scmp.ne.s32.totalorder %s112, %s126
    %p128 = scmp.eq.s32.totalorder %s18, 0
    %p129 = por %p127, %p128
    %s131 = sadd.s32 %s130, 1
    %p134 = scmp.eq.s32.totalorder %s12, 1
    %p135 = scmp.ne.s32.totalorder %s130, %s132
    %p136 = scmp.eq.s32.totalorder %s12, 0
    %p137 = por %p135, %p136
    %p138 = scmp.ne.s32.totalorder %s130, %s132
    %p139 = scmp.eq.s32.totalorder %s17, 1
    %p140 = por %p138, %p139
    %p141 = scmp.ne.s32.totalorder %s132, %s133
    %p142 = scmp.eq.s32.totalorder %s17, 0
    %p143 = por %p141, %p142
    %p144 = scmp.ne.s32.totalorder %s132, %s133
    %p145 = scmp.eq.s32.totalorder %s18, 1
    %p146 = por %p144, %p145
    %p148 = scmp.ne.s32.totalorder %s133, %s147
    %p149 = scmp.eq.s32.totalorder %s18, 0
    %p150 = por %p148, %p149
    %s151 = ssub.s32 %s12, %s19
    %p152 = scmp.eq.s32.totalorder %s151, 0
    %s154 = sadd.s32 %s153, 1
    %s155 = scalar_select %p152, %s153, %s154
    %p158 = pneg %p152
    %p159 = scmp.eq.s32.totalorder %s12, 1
    %p160 = por %p158, %p159
    %p161 = scmp.ne.s32.totalorder %s153, %s156
    %p162 = scmp.eq.s32.totalorder %s12, 0
    %p163 = por %p161, %p162
    %p164 = scmp.ne.s32.totalorder %s153, %s156
    %p165 = scmp.eq.s32.totalorder %s17, 1
    %p166 = por %p164, %p165
    %p167 = scmp.ne.s32.totalorder %s156, %s157
    %p168 = scmp.eq.s32.totalorder %s17, 0
    %p169 = por %p167, %p168
    %p170 = scmp.ne.s32.totalorder %s156, %s157
    %p171 = scmp.eq.s32.totalorder %s18, 1
    %p172 = por %p170, %p171
    %p174 = scmp.ne.s32.totalorder %s157, %s173
    %p175 = scmp.eq.s32.totalorder %s18, 0
    %p176 = por %p174, %p175
    %p177 = scmp.le.s32.totalorder 1, %s12
    %p178 = scmp.lt.s32.totalorder %s12, 3
    %p179 = pnand %p177, %p178
    %p180 = pneg %p179
    // Predicated region
    $region9: #{resnet_forward.15} parent=5 // pred_check
      _
    $region10: #{resnet_forward.15} parent=5 // pred_check_branch
      %182 = sbr.rel (%p179) target = $region12
    $region11: #{resnet_forward.15} parent=5 // pred_region
      %s183 = ssub.s32 %s12, 1
      // Predicated region
      $region13: #{resnet_forward.15} parent=11 // pred_check
        %p184 = pneg %p59
      $region14: #{resnet_forward.15} parent=11 // pred_check_branch
        %186 = sbr.rel (%p184) target = $region16
      $region15: #{resnet_forward.15} parent=11 // pred_region
        _
      $region16: #{resnet_forward.15} parent=11 // pred_fallthru
        _
      // Predicated region
      $region17: #{resnet_forward.15} parent=11 // pred_check
        %p187 = pneg %p80
      $region18: #{resnet_forward.15} parent=11 // pred_check_branch
        %189 = sbr.rel (%p187) target = $region20
      $region19: #{resnet_forward.15} parent=11 // pred_region
        _
      $region20: #{resnet_forward.15} parent=11 // pred_fallthru
        _
      // Predicated region
      $region21: #{resnet_forward.15} parent=11 // pred_check
        %p190 = pneg %p101
      $region22: #{resnet_forward.15} parent=11 // pred_check_branch
        %192 = sbr.rel (%p190) target = $region24
      $region23: #{resnet_forward.15} parent=11 // pred_region
        _
      $region24: #{resnet_forward.15} parent=11 // pred_fallthru
        _
      // Predicated region
      $region25: #{resnet_forward.15} parent=11 // pred_check
        %p193 = pneg %p122
      $region26: #{resnet_forward.15} parent=11 // pred_check_branch
        %195 = sbr.rel (%p193) target = $region28
      $region27: #{resnet_forward.15} parent=11 // pred_region
        _
      $region28: #{resnet_forward.15} parent=11 // pred_fallthru
        _
      // Predicated region
      $region29: #{resnet_forward.15} parent=11 // pred_check
        %p196 = pneg %p143
      $region30: #{resnet_forward.15} parent=11 // pred_check_branch
        %198 = sbr.rel (%p196) target = $region32
      $region31: #{resnet_forward.15} parent=11 // pred_region
        _
      $region32: #{resnet_forward.15} parent=11 // pred_fallthru
        _
    $region12: #{resnet_forward.15} parent=5 // pred_fallthru
      _
    %p199 = scmp.lt.s32.totalorder %s12, 2
    // Predicated region
    $region33: #{resnet_forward.15} parent=5 // pred_check
      %p200 = pneg %p199
    $region34: #{resnet_forward.15} parent=5 // pred_check_branch
      %202 = sbr.rel (%p200) target = $region36
    $region35: #{resnet_forward.15} parent=5 // pred_region
      // Predicated region
      $region37: #{resnet_forward.15} parent=35 // pred_check
        %p203 = pneg %p32
      $region38: #{resnet_forward.15} parent=35 // pred_check_branch
        %205 = sbr.rel (%p203) target = $region40
      $region39: #{resnet_forward.15} parent=35 // pred_region
        %p206 = scmp.lt.s32.totalorder %s12, 1
        %s207 = scalar_select %p206, %s12, 1
        %s208 = smul.addr %s207, 2
        %s209 = smul.addr %s208, 8
        %s210 = scalar_lea.vmem %s0, %s209
      $region40: #{resnet_forward.15} parent=35 // pred_fallthru
        _
    $region36: #{resnet_forward.15} parent=5 // pred_fallthru
      _
    %p211 = scmp.le.s32.totalorder 1, %s12
    %p212 = scmp.lt.s32.totalorder %s12, 3
    %p213 = pnand %p211, %p212
    %p214 = pneg %p213
    // Predicated region
    $region41: #{resnet_forward.15} parent=5 // pred_check
      _
    $region42: #{resnet_forward.15} parent=5 // pred_check_branch
      %216 = sbr.rel (%p213) target = $region44
    $region43: #{resnet_forward.15} parent=5 // pred_region
      %s217 = ssub.s32 %s12, 1
      %p218 = scmp.lt.s32.totalorder %s17, 1
      %s219 = scalar_select %p218, %s17, 1
      %s220 = smul.addr %s219, 2
      %s221 = smul.addr %s220, 8
      %s222 = scalar_lea.vmem %s0, %s221
      %p223 = pneg %p38
      %p224 = pneg %p35
      %p225 = pneg %p59
      %p226 = pneg %p56
      %p227 = pneg %p80
      %p228 = pneg %p77
      %p229 = pneg %p101
      %p230 = pneg %p98
      %p231 = pneg %p122
      %p232 = pneg %p119
      %p233 = pneg %p143
      %p234 = pneg %p140
      %p235 = pneg %p169
      %p236 = pneg %p166
      %p237 = scmp.lt.s32.totalorder %s17, 1
      %s238 = scalar_select %p237, %s17, 1
      %s239 = smul.addr %s238, 2
      %s240 = smul.addr %s239, 8
      %s241 = scalar_lea.vmem %s6, %s240
      %p242 = scmp.lt.s32.totalorder %s17, 1
      %s243 = scalar_select %p242, %s17, 1
      %s244 = smul.addr %s243, 2
      %s245 = smul.addr %s244, 8
      %s246 = scalar_lea.vmem %s0, %s245
      %p247 = scmp.lt.s32.totalorder %s17, 1
      %s248 = scalar_select %p247, %s17, 1
      %s249 = smul.addr %s248, 2
      %s250 = smul.addr %s249, 8
      %s251 = scalar_lea.vmem %s6, %s250
      %v253 = vld [vmem:[%s246] sm:$0xff]
      %v254 = vld [vmem:[%s246 + $0x8] sm:$0xff]
      %v255 = vld [vmem:[%s1] sm:$0xf]
      %v256 = vld [vmem:[%s1 + $0x4] sm:$0xf]
      %v257 = vld [vmem:[%s1 + $0x8] sm:$0xf]
      %v258 = vld [vmem:[%s1 + $0xc] sm:$0xf]
      %v259 = vld [vmem:[%s1 + $0x10] sm:$0xf]
      %v260 = vld [vmem:[%s1 + $0x14] sm:$0xf]
      %v261 = vld [vmem:[%s1 + $0x18] sm:$0xf]
      %v262 = vld [vmem:[%s1 + $0x1c] sm:$0xf]
      %v263 = vld [vmem:[%s1 + $0x20] sm:$0xf]
      %v264 = vld [vmem:[%s1 + $0x24] sm:$0xf]
      %v265 = vld [vmem:[%s1 + $0x28] sm:$0xf]
      %v266 = vld [vmem:[%s1 + $0x2c] sm:$0xf]
      %v267 = vld [vmem:[%s1 + $0x30] sm:$0xf]
      %v268 = vld [vmem:[%s1 + $0x34] sm:$0xf]
      %v269 = vld [vmem:[%s1 + $0x38] sm:$0xf]
      %v270 = vld [vmem:[%s1 + $0x3c] sm:$0xf]
      %v271 = vld [vmem:[%s1 + $0x40] sm:$0xf]
      %v272 = vld [vmem:[%s1 + $0x44] sm:$0xf]
      %v273 = vpack.c.bf16 %v254, %v253
      %v292 = vunpack.c.l.b16 %v255
      %v293 = vunpack.c.l.b16 %v256
      %v294 = vunpack.c.l.b16 %v257
      %v295 = vunpack.c.l.b16 %v258
      %v296 = vunpack.c.l.b16 %v259
      %v297 = vunpack.c.l.b16 %v260
      %v298 = vunpack.c.l.b16 %v261
      %v299 = vunpack.c.l.b16 %v262
      %v300 = vunpack.c.l.b16 %v263
      %v301 = vunpack.c.l.b16 %v264
      %v302 = vunpack.c.l.b16 %v265
      %v303 = vunpack.c.l.b16 %v266
      %v304 = vunpack.c.l.b16 %v267
      %v305 = vunpack.c.l.b16 %v268
      %v306 = vunpack.c.l.b16 %v269
      %v307 = vunpack.c.l.b16 %v270
      %v308 = vunpack.c.l.b16 %v271
      %v309 = vunpack.c.l.b16 %v272
      %v310 = vpack.c.b16 %v293, %v292
      %v311 = vpack.c.b16 %v295, %v294
      %v312 = vpack.c.b16 %v297, %v296
      %v313 = vpack.c.b16 %v299, %v298
      %v314 = vpack.c.b16 %v301, %v300
      %v315 = vpack.c.b16 %v303, %v302
      %v316 = vpack.c.b16 %v305, %v304
      %v317 = vpack.c.b16 %v307, %v306
      %v318 = vpack.c.b16 %v309, %v308
      %vm319 = vcmask 130048
      %v321 = vsel %vm319, %v310, 0
      %v324 = vsel %vm319, %v311, 0
      %v327 = vsel %vm319, %v312, 0
      %v330 = vsel %vm319, %v313, 0
      %v333 = vsel %vm319, %v314, 0
      %v336 = vsel %vm319, %v315, 0
      %v339 = vsel %vm319, %v316, 0
      %v342 = vsel %vm319, %v317, 0
      %v345 = vsel %vm319, %v318, 0
      %347 = vmatprep.subr.bf16.mxu0 0
      %348 = vmatpush1.bf16.msra.mxu0 0
      %349 = vmatprep.subr.bf16.mxu0 0
      %350 = vmatpush1.bf16.msra.mxu0 0
      %351 = vmatprep.subr.bf16.mxu0 0
      %352 = vmatpush1.bf16.msra.mxu0 0
      %353 = vmatprep.subr.bf16.mxu0 0
      %354 = vmatpush1.bf16.msra.mxu0 0
      %355 = vmatprep.subr.bf16.mxu0 0
      %356 = vmatpush1.bf16.msra.mxu0 0
      %357 = vmatprep.subr.bf16.mxu0 0
      %358 = vmatpush1.bf16.msra.mxu0 0
      %359 = vmatprep.subr.bf16.mxu0 0
      %360 = vmatpush1.bf16.msra.mxu0 0
      %361 = vmatprep.subr.bf16.mxu0 0
      %362 = vmatpush1.bf16.msra.mxu0 %v273
      %363 = vmatprep.subr.bf16.mxu0 0
      %364 = vmatpush2.bf16.msra.mxu0 0
      %365 = vmatprep.subr.bf16.mxu0 0
      %366 = vmatpush2.bf16.msra.mxu0 0
      %367 = vmatprep.subr.bf16.mxu0 0
      %368 = vmatpush2.bf16.msra.mxu0 0
      %369 = vmatprep.subr.bf16.mxu0 0
      %370 = vmatpush2.bf16.msra.mxu0 0
      %371 = vmatprep.subr.bf16.mxu0 0
      %372 = vmatpush2.bf16.msra.mxu0 0
      %373 = vmatprep.subr.bf16.mxu0 0
      %374 = vmatpush2.bf16.msra.mxu0 0
      %375 = vmatprep.subr.bf16.mxu0 0
      %376 = vmatpush2.bf16.msra.mxu0 0
      %377 = vmatprep.subr.bf16.mxu0 0
      %378 = vmatpush2.bf16.msra.mxu0 0
      %379 = vmatprep.mubr.bf16.mxu0 0
      %380 = vmatmul.mubr.bf16.gmra.mxu0 %v321
      %v381 = vpop.f32.mrf.mxu0
      %v382 = vadd.f32 0.0, %v381
      %v383 = vpop.f32.mrf.mxu0
      %v384 = vpop.f32.mrf.mxu0
      %v385 = vadd.f32 0.0, %v384
      %v386 = vpop.f32.mrf.mxu0
      %387 = vmatprep.mubr.bf16.mxu0 0
      %388 = vmatmul.mubr.bf16.gmra.mxu0 %v324
      %v389 = vpop.f32.mrf.mxu0
      %v390 = vadd.f32 0.0, %v389
      %v391 = vpop.f32.mrf.mxu0
      %v392 = vpop.f32.mrf.mxu0
      %v393 = vadd.f32 0.0, %v392
      %v394 = vpop.f32.mrf.mxu0
      %395 = vmatprep.mubr.bf16.mxu0 0
      %396 = vmatmul.mubr.bf16.gmra.mxu0 %v327
      %v397 = vpop.f32.mrf.mxu0
      %v398 = vadd.f32 0.0, %v397
      %v399 = vpop.f32.mrf.mxu0
      %v400 = vpop.f32.mrf.mxu0
      %v401 = vadd.f32 0.0, %v400
      %v402 = vpop.f32.mrf.mxu0
      %403 = vmatprep.mubr.bf16.mxu0 0
      %404 = vmatmul.mubr.bf16.gmra.mxu0 %v330
      %v405 = vpop.f32.mrf.mxu0
      %v406 = vadd.f32 0.0, %v405
      %v407 = vpop.f32.mrf.mxu0
      %v408 = vpop.f32.mrf.mxu0
      %v409 = vadd.f32 0.0, %v408
      %v410 = vpop.f32.mrf.mxu0
      %411 = vmatprep.mubr.bf16.mxu0 0
      %412 = vmatmul.mubr.bf16.gmra.mxu0 %v333
      %v413 = vpop.f32.mrf.mxu0
      %v414 = vadd.f32 0.0, %v413
      %v415 = vpop.f32.mrf.mxu0
      %v416 = vpop.f32.mrf.mxu0
      %v417 = vadd.f32 0.0, %v416
      %v418 = vpop.f32.mrf.mxu0
      %419 = vmatprep.mubr.bf16.mxu0 0
      %420 = vmatmul.mubr.bf16.gmra.mxu0 %v336
      %v421 = vpop.f32.mrf.mxu0
      %v422 = vadd.f32 0.0, %v421
      %v423 = vpop.f32.mrf.mxu0
      %v424 = vpop.f32.mrf.mxu0
      %v425 = vadd.f32 0.0, %v424
      %v426 = vpop.f32.mrf.mxu0
      %427 = vmatprep.mubr.bf16.mxu0 0
      %428 = vmatmul.mubr.bf16.gmra.mxu0 %v339
      %v429 = vpop.f32.mrf.mxu0
      %v430 = vadd.f32 0.0, %v429
      %v431 = vpop.f32.mrf.mxu0
      %v432 = vpop.f32.mrf.mxu0
      %v433 = vadd.f32 0.0, %v432
      %v434 = vpop.f32.mrf.mxu0
      %435 = vmatprep.mubr.bf16.mxu0 0
      %436 = vmatmul.mubr.bf16.gmra.mxu0 %v342
      %v437 = vpop.f32.mrf.mxu0
      %v438 = vadd.f32 0.0, %v437
      %v439 = vpop.f32.mrf.mxu0
      %v440 = vpop.f32.mrf.mxu0
      %v441 = vadd.f32 0.0, %v440
      %v442 = vpop.f32.mrf.mxu0
      %443 = vmatprep.mubr.bf16.mxu0 0
      %444 = vmatmul.mubr.bf16.gmra.mxu0 %v345
      %v445 = vpop.f32.mrf.mxu0
      %v446 = vadd.f32 0.0, %v445
      %v447 = vpop.f32.mrf.mxu0
      %v448 = vpop.f32.mrf.mxu0
      %v449 = vadd.f32 0.0, %v448
      %v450 = vpop.f32.mrf.mxu0
      %451 = vdwg.mxu0
      %v452 = vpack.c.bf16 %v385, %v382
      %v453 = vpack.c.bf16 %v393, %v390
      %v454 = vpack.c.bf16 %v401, %v398
      %v455 = vpack.c.bf16 %v409, %v406
      %v456 = vpack.c.bf16 %v417, %v414
      %v457 = vpack.c.bf16 %v425, %v422
      %v458 = vpack.c.bf16 %v433, %v430
      %v459 = vpack.c.bf16 %v441, %v438
      %v460 = vpack.c.bf16 %v449, %v446
      %v461 = vld [vmem:[%s2] sm:$0xf]
      %v462 = vld [vmem:[%s2 + $0x4] sm:$0xf]
      %v463 = vld [vmem:[%s2 + $0x8] sm:$0xf]
      %v464 = vld [vmem:[%s2 + $0xc] sm:$0xf]
      %v465 = vld [vmem:[%s2 + $0x10] sm:$0xf]
      %v466 = vld [vmem:[%s2 + $0x14] sm:$0xf]
      %v467 = vld [vmem:[%s2 + $0x18] sm:$0xf]
      %v468 = vld [vmem:[%s2 + $0x1c] sm:$0xf]
      %v469 = vld [vmem:[%s2 + $0x20] sm:$0xf]
      %v470 = vld [vmem:[%s2 + $0x24] sm:$0xf]
      %v471 = vld [vmem:[%s2 + $0x28] sm:$0xf]
      %v472 = vld [vmem:[%s2 + $0x2c] sm:$0xf]
      %v473 = vld [vmem:[%s2 + $0x30] sm:$0xf]
      %v474 = vld [vmem:[%s2 + $0x34] sm:$0xf]
      %v475 = vld [vmem:[%s2 + $0x38] sm:$0xf]
      %v476 = vld [vmem:[%s2 + $0x3c] sm:$0xf]
      %s477 = scalar_lea.vmem %s2, 64
      %v478 = vld [vmem:[%s477] sm:$0xf]
      %v479 = vld [vmem:[%s477 + $0x4] sm:$0xf]
      %v480 = vld [vmem:[%s477 + $0x8] sm:$0xf]
      %v481 = vld [vmem:[%s477 + $0xc] sm:$0xf]
      %v482 = vld [vmem:[%s477 + $0x10] sm:$0xf]
      %v483 = vld [vmem:[%s477 + $0x14] sm:$0xf]
      %v484 = vld [vmem:[%s477 + $0x18] sm:$0xf]
      %v485 = vld [vmem:[%s477 + $0x1c] sm:$0xf]
      %v486 = vld [vmem:[%s477 + $0x20] sm:$0xf]
      %v487 = vld [vmem:[%s477 + $0x24] sm:$0xf]
      %v488 = vld [vmem:[%s477 + $0x28] sm:$0xf]
      %v489 = vld [vmem:[%s477 + $0x2c] sm:$0xf]
      %v490 = vld [vmem:[%s477 + $0x30] sm:$0xf]
      %v491 = vld [vmem:[%s477 + $0x34] sm:$0xf]
      %v492 = vld [vmem:[%s477 + $0x38] sm:$0xf]
      %v493 = vld [vmem:[%s477 + $0x3c] sm:$0xf]
      %v510 = vunpack.c.l.b16 %v478
      %v511 = vunpack.c.l.b16 %v479
      %v512 = vunpack.c.l.b16 %v480
      %v513 = vunpack.c.l.b16 %v481
      %v514 = vunpack.c.l.b16 %v482
      %v515 = vunpack.c.l.b16 %v483
      %v516 = vunpack.c.l.b16 %v484
      %v517 = vunpack.c.l.b16 %v485
      %v518 = vunpack.c.l.b16 %v486
      %v519 = vunpack.c.l.b16 %v487
      %v520 = vunpack.c.l.b16 %v488
      %v521 = vunpack.c.l.b16 %v489
      %v522 = vunpack.c.l.b16 %v490
      %v523 = vunpack.c.l.b16 %v491
      %v524 = vunpack.c.l.b16 %v492
      %v525 = vunpack.c.l.b16 %v493
      %v526 = vpack.c.b16 %v511, %v510
      %v527 = vpack.c.b16 %v513, %v512
      %v528 = vpack.c.b16 %v515, %v514
      %v529 = vpack.c.b16 %v517, %v516
      %v530 = vpack.c.b16 %v519, %v518
      %v531 = vpack.c.b16 %v521, %v520
      %v532 = vpack.c.b16 %v523, %v522
      %v533 = vpack.c.b16 %v525, %v524
      %542 = vmatprep.subr.bf16.mxu0 0
      %543 = vmatpush1.bf16.msra.mxu0 %v533
      %544 = vmatprep.subr.bf16.mxu0 0
      %545 = vmatpush1.bf16.msra.mxu0 %v532
      %546 = vmatprep.subr.bf16.mxu0 0
      %547 = vmatpush1.bf16.msra.mxu0 %v531
      %548 = vmatprep.subr.bf16.mxu0 0
      %549 = vmatpush1.bf16.msra.mxu0 %v530
      %550 = vmatprep.subr.bf16.mxu0 0
      %551 = vmatpush1.bf16.msra.mxu0 %v529
      %552 = vmatprep.subr.bf16.mxu0 0
      %553 = vmatpush1.bf16.msra.mxu0 %v528
      %554 = vmatprep.subr.bf16.mxu0 0
      %555 = vmatpush1.bf16.msra.mxu0 %v527
      %556 = vmatprep.subr.bf16.mxu0 0
      %557 = vmatpush1.bf16.msra.mxu0 %v526
      %558 = vmatprep.subr.bf16.mxu0 0
      %559 = vmatpush2.bf16.msra.mxu0 0
      %560 = vmatprep.subr.bf16.mxu0 0
      %561 = vmatpush2.bf16.msra.mxu0 0
      %562 = vmatprep.subr.bf16.mxu0 0
      %563 = vmatpush2.bf16.msra.mxu0 0
      %564 = vmatprep.subr.bf16.mxu0 0
      %565 = vmatpush2.bf16.msra.mxu0 0
      %566 = vmatprep.subr.bf16.mxu0 0
      %567 = vmatpush2.bf16.msra.mxu0 0
      %568 = vmatprep.subr.bf16.mxu0 0
      %569 = vmatpush2.bf16.msra.mxu0 0
      %570 = vmatprep.subr.bf16.mxu0 0
      %571 = vmatpush2.bf16.msra.mxu0 0
      %572 = vmatprep.subr.bf16.mxu0 0
      %573 = vmatpush2.bf16.msra.mxu0 0
      %574 = vmatprep.mubr.bf16.mxu0 0
      %575 = vmatmul.mubr.bf16.gmra.mxu0 %v453
      %v576 = vpop.f32.mrf.mxu0
      %v577 = vadd.f32 0.0, %v576
      %v578 = vpop.f32.mrf.mxu0
      %v579 = vpop.f32.mrf.mxu0
      %v580 = vadd.f32 0.0, %v579
      %v581 = vpop.f32.mrf.mxu0
      %582 = vdwg.mxu0
      %v599 = vunpack.c.l.b16 %v461
      %v600 = vunpack.c.l.b16 %v462
      %v601 = vunpack.c.l.b16 %v463
      %v602 = vunpack.c.l.b16 %v464
      %v603 = vunpack.c.l.b16 %v465
      %v604 = vunpack.c.l.b16 %v466
      %v605 = vunpack.c.l.b16 %v467
      %v606 = vunpack.c.l.b16 %v468
      %v607 = vunpack.c.l.b16 %v469
      %v608 = vunpack.c.l.b16 %v470
      %v609 = vunpack.c.l.b16 %v471
      %v610 = vunpack.c.l.b16 %v472
      %v611 = vunpack.c.l.b16 %v473
      %v612 = vunpack.c.l.b16 %v474
      %v613 = vunpack.c.l.b16 %v475
      %v614 = vunpack.c.l.b16 %v476
      %v615 = vpack.c.b16 %v600, %v599
      %v616 = vpack.c.b16 %v602, %v601
      %v617 = vpack.c.b16 %v604, %v603
      %v618 = vpack.c.b16 %v606, %v605
      %v619 = vpack.c.b16 %v608, %v607
      %v620 = vpack.c.b16 %v610, %v609
      %v621 = vpack.c.b16 %v612, %v611
      %v622 = vpack.c.b16 %v614, %v613
      %631 = vmatprep.subr.bf16.mxu0 0
      %632 = vmatpush1.bf16.msra.mxu0 %v622
      %633 = vmatprep.subr.bf16.mxu0 0
      %634 = vmatpush1.bf16.msra.mxu0 %v621
      %635 = vmatprep.subr.bf16.mxu0 0
      %636 = vmatpush1.bf16.msra.mxu0 %v620
      %637 = vmatprep.subr.bf16.mxu0 0
      %638 = vmatpush1.bf16.msra.mxu0 %v619
      %639 = vmatprep.subr.bf16.mxu0 0
      %640 = vmatpush1.bf16.msra.mxu0 %v618
      %641 = vmatprep.subr.bf16.mxu0 0
      %642 = vmatpush1.bf16.msra.mxu0 %v617
      %643 = vmatprep.subr.bf16.mxu0 0
      %644 = vmatpush1.bf16.msra.mxu0 %v616
      %645 = vmatprep.subr.bf16.mxu0 0
      %646 = vmatpush1.bf16.msra.mxu0 %v615
      %647 = vmatprep.subr.bf16.mxu0 0
      %648 = vmatpush2.bf16.msra.mxu0 0
      %649 = vmatprep.subr.bf16.mxu0 0
      %650 = vmatpush2.bf16.msra.mxu0 0
      %651 = vmatprep.subr.bf16.mxu0 0
      %652 = vmatpush2.bf16.msra.mxu0 0
      %653 = vmatprep.subr.bf16.mxu0 0
      %654 = vmatpush2.bf16.msra.mxu0 0
      %655 = vmatprep.subr.bf16.mxu0 0
      %656 = vmatpush2.bf16.msra.mxu0 0
      %657 = vmatprep.subr.bf16.mxu0 0
      %658 = vmatpush2.bf16.msra.mxu0 0
      %659 = vmatprep.subr.bf16.mxu0 0
      %660 = vmatpush2.bf16.msra.mxu0 0
      %661 = vmatprep.subr.bf16.mxu0 0
      %662 = vmatpush2.bf16.msra.mxu0 0
      %663 = vmatprep.mubr.bf16.mxu0 0
      %664 = vmatmul.mubr.bf16.gmra.mxu0 %v452
      %v665 = vpop.f32.mrf.mxu0
      %v666 = vadd.f32 %v577, %v665
      %v667 = vpop.f32.mrf.mxu0
      %v668 = vpop.f32.mrf.mxu0
      %v669 = vadd.f32 %v580, %v668
      %v670 = vpop.f32.mrf.mxu0
      %671 = vdwg.mxu0
      %s672 = scalar_lea.vmem %s2, 128
      %v673 = vld [vmem:[%s672] sm:$0xf]
      %v674 = vld [vmem:[%s672 + $0x4] sm:$0xf]
      %v675 = vld [vmem:[%s672 + $0x8] sm:$0xf]
      %v676 = vld [vmem:[%s672 + $0xc] sm:$0xf]
      %v677 = vld [vmem:[%s672 + $0x10] sm:$0xf]
      %v678 = vld [vmem:[%s672 + $0x14] sm:$0xf]
      %v679 = vld [vmem:[%s672 + $0x18] sm:$0xf]
      %v680 = vld [vmem:[%s672 + $0x1c] sm:$0xf]
      %v681 = vld [vmem:[%s672 + $0x20] sm:$0xf]
      %v682 = vld [vmem:[%s672 + $0x24] sm:$0xf]
      %v683 = vld [vmem:[%s672 + $0x28] sm:$0xf]
      %v684 = vld [vmem:[%s672 + $0x2c] sm:$0xf]
      %v685 = vld [vmem:[%s672 + $0x30] sm:$0xf]
      %v686 = vld [vmem:[%s672 + $0x34] sm:$0xf]
      %v687 = vld [vmem:[%s672 + $0x38] sm:$0xf]
      %v688 = vld [vmem:[%s672 + $0x3c] sm:$0xf]
      %v705 = vunpack.c.l.b16 %v673
      %v706 = vunpack.c.l.b16 %v674
      %v707 = vunpack.c.l.b16 %v675
      %v708 = vunpack.c.l.b16 %v676
      %v709 = vunpack.c.l.b16 %v677
      %v710 = vunpack.c.l.b16 %v678
      %v711 = vunpack.c.l.b16 %v679
      %v712 = vunpack.c.l.b16 %v680
      %v713 = vunpack.c.l.b16 %v681
      %v714 = vunpack.c.l.b16 %v682
      %v715 = vunpack.c.l.b16 %v683
      %v716 = vunpack.c.l.b16 %v684
      %v717 = vunpack.c.l.b16 %v685
      %v718 = vunpack.c.l.b16 %v686
      %v719 = vunpack.c.l.b16 %v687
      %v720 = vunpack.c.l.b16 %v688
      %v721 = vpack.c.b16 %v706, %v705
      %v722 = vpack.c.b16 %v708, %v707
      %v723 = vpack.c.b16 %v710, %v709
      %v724 = vpack.c.b16 %v712, %v711
      %v725 = vpack.c.b16 %v714, %v713
      %v726 = vpack.c.b16 %v716, %v715
      %v727 = vpack.c.b16 %v718, %v717
      %v728 = vpack.c.b16 %v720, %v719
      %737 = vmatprep.subr.bf16.mxu0 0
      %738 = vmatpush1.bf16.msra.mxu0 %v728
      %739 = vmatprep.subr.bf16.mxu0 0
      %740 = vmatpush1.bf16.msra.mxu0 %v727
      %741 = vmatprep.subr.bf16.mxu0 0
      %742 = vmatpush1.bf16.msra.mxu0 %v726
      %743 = vmatprep.subr.bf16.mxu0 0
      %744 = vmatpush1.bf16.msra.mxu0 %v725
      %745 = vmatprep.subr.bf16.mxu0 0
      %746 = vmatpush1.bf16.msra.mxu0 %v724
      %747 = vmatprep.subr.bf16.mxu0 0
      %748 = vmatpush1.bf16.msra.mxu0 %v723
      %749 = vmatprep.subr.bf16.mxu0 0
      %750 = vmatpush1.bf16.msra.mxu0 %v722
      %751 = vmatprep.subr.bf16.mxu0 0
      %752 = vmatpush1.bf16.msra.mxu0 %v721
      %753 = vmatprep.subr.bf16.mxu0 0
      %754 = vmatpush2.bf16.msra.mxu0 0
      %755 = vmatprep.subr.bf16.mxu0 0
      %756 = vmatpush2.bf16.msra.mxu0 0
      %757 = vmatprep.subr.bf16.mxu0 0
      %758 = vmatpush2.bf16.msra.mxu0 0
      %759 = vmatprep.subr.bf16.mxu0 0
      %760 = vmatpush2.bf16.msra.mxu0 0
      %761 = vmatprep.subr.bf16.mxu0 0
      %762 = vmatpush2.bf16.msra.mxu0 0
      %763 = vmatprep.subr.bf16.mxu0 0
      %764 = vmatpush2.bf16.msra.mxu0 0
      %765 = vmatprep.subr.bf16.mxu0 0
      %766 = vmatpush2.bf16.msra.mxu0 0
      %767 = vmatprep.subr.bf16.mxu0 0
      %768 = vmatpush2.bf16.msra.mxu0 0
      %769 = vmatprep.mubr.bf16.mxu0 0
      %770 = vmatmul.mubr.bf16.gmra.mxu0 %v454
      %v771 = vpop.f32.mrf.mxu0
      %v772 = vadd.f32 0.0, %v771
      %v773 = vpop.f32.mrf.mxu0
      %v774 = vpop.f32.mrf.mxu0
      %v775 = vadd.f32 0.0, %v774
      %v776 = vpop.f32.mrf.mxu0
      %777 = vdwg.mxu0
      %v778 = vadd.f32 %v666, %v772
      %v779 = vadd.f32 %v669, %v775
      %s780 = scalar_lea.vmem %s2, 192
      %v781 = vld [vmem:[%s780] sm:$0xf]
      %v782 = vld [vmem:[%s780 + $0x4] sm:$0xf]
      %v783 = vld [vmem:[%s780 + $0x8] sm:$0xf]
      %v784 = vld [vmem:[%s780 + $0xc] sm:$0xf]
      %v785 = vld [vmem:[%s780 + $0x10] sm:$0xf]
      %v786 = vld [vmem:[%s780 + $0x14] sm:$0xf]
      %v787 = vld [vmem:[%s780 + $0x18] sm:$0xf]
      %v788 = vld [vmem:[%s780 + $0x1c] sm:$0xf]
      %v789 = vld [vmem:[%s780 + $0x20] sm:$0xf]
      %v790 = vld [vmem:[%s780 + $0x24] sm:$0xf]
      %v791 = vld [vmem:[%s780 + $0x28] sm:$0xf]
      %v792 = vld [vmem:[%s780 + $0x2c] sm:$0xf]
      %v793 = vld [vmem:[%s780 + $0x30] sm:$0xf]
      %v794 = vld [vmem:[%s780 + $0x34] sm:$0xf]
      %v795 = vld [vmem:[%s780 + $0x38] sm:$0xf]
      %v796 = vld [vmem:[%s780 + $0x3c] sm:$0xf]
      %v813 = vunpack.c.l.b16 %v781
      %v814 = vunpack.c.l.b16 %v782
      %v815 = vunpack.c.l.b16 %v783
      %v816 = vunpack.c.l.b16 %v784
      %v817 = vunpack.c.l.b16 %v785
      %v818 = vunpack.c.l.b16 %v786
      %v819 = vunpack.c.l.b16 %v787
      %v820 = vunpack.c.l.b16 %v788
      %v821 = vunpack.c.l.b16 %v789
      %v822 = vunpack.c.l.b16 %v790
      %v823 = vunpack.c.l.b16 %v791
      %v824 = vunpack.c.l.b16 %v792
      %v825 = vunpack.c.l.b16 %v793
      %v826 = vunpack.c.l.b16 %v794
      %v827 = vunpack.c.l.b16 %v795
      %v828 = vunpack.c.l.b16 %v796
      %v829 = vpack.c.b16 %v814, %v813
      %v830 = vpack.c.b16 %v816, %v815
      %v831 = vpack.c.b16 %v818, %v817
      %v832 = vpack.c.b16 %v820, %v819
      %v833 = vpack.c.b16 %v822, %v821
      %v834 = vpack.c.b16 %v824, %v823
      %v835 = vpack.c.b16 %v826, %v825
      %v836 = vpack.c.b16 %v828, %v827
      %845 = vmatprep.subr.bf16.mxu0 0
      %846 = vmatpush1.bf16.msra.mxu0 %v836
      %847 = vmatprep.subr.bf16.mxu0 0
      %848 = vmatpush1.bf16.msra.mxu0 %v835
      %849 = vmatprep.subr.bf16.mxu0 0
      %850 = vmatpush1.bf16.msra.mxu0 %v834
      %851 = vmatprep.subr.bf16.mxu0 0
      %852 = vmatpush1.bf16.msra.mxu0 %v833
      %853 = vmatprep.subr.bf16.mxu0 0
      %854 = vmatpush1.bf16.msra.mxu0 %v832
      %855 = vmatprep.subr.bf16.mxu0 0
      %856 = vmatpush1.bf16.msra.mxu0 %v831
      %857 = vmatprep.subr.bf16.mxu0 0
      %858 = vmatpush1.bf16.msra.mxu0 %v830
      %859 = vmatprep.subr.bf16.mxu0 0
      %860 = vmatpush1.bf16.msra.mxu0 %v829
      %861 = vmatprep.subr.bf16.mxu0 0
      %862 = vmatpush2.bf16.msra.mxu0 0
      %863 = vmatprep.subr.bf16.mxu0 0
      %864 = vmatpush2.bf16.msra.mxu0 0
      %865 = vmatprep.subr.bf16.mxu0 0
      %866 = vmatpush2.bf16.msra.mxu0 0
      %867 = vmatprep.subr.bf16.mxu0 0
      %868 = vmatpush2.bf16.msra.mxu0 0
      %869 = vmatprep.subr.bf16.mxu0 0
      %870 = vmatpush2.bf16.msra.mxu0 0
      %871 = vmatprep.subr.bf16.mxu0 0
      %872 = vmatpush2.bf16.msra.mxu0 0
      %873 = vmatprep.subr.bf16.mxu0 0
      %874 = vmatpush2.bf16.msra.mxu0 0
      %875 = vmatprep.subr.bf16.mxu0 0
      %876 = vmatpush2.bf16.msra.mxu0 0
      %877 = vmatprep.mubr.bf16.mxu0 0
      %878 = vmatmul.mubr.bf16.gmra.mxu0 %v455
      %v879 = vpop.f32.mrf.mxu0
      %v880 = vadd.f32 0.0, %v879
      %v881 = vpop.f32.mrf.mxu0
      %v882 = vpop.f32.mrf.mxu0
      %v883 = vadd.f32 0.0, %v882
      %v884 = vpop.f32.mrf.mxu0
      %885 = vdwg.mxu0
      %v886 = vadd.f32 %v778, %v880
      %v887 = vadd.f32 %v779, %v883
      %s888 = scalar_lea.vmem %s2, 256
      %v889 = vld [vmem:[%s888] sm:$0xf]
      %v890 = vld [vmem:[%s888 + $0x4] sm:$0xf]
      %v891 = vld [vmem:[%s888 + $0x8] sm:$0xf]
      %v892 = vld [vmem:[%s888 + $0xc] sm:$0xf]
      %v893 = vld [vmem:[%s888 + $0x10] sm:$0xf]
      %v894 = vld [vmem:[%s888 + $0x14] sm:$0xf]
      %v895 = vld [vmem:[%s888 + $0x18] sm:$0xf]
      %v896 = vld [vmem:[%s888 + $0x1c] sm:$0xf]
      %v897 = vld [vmem:[%s888 + $0x20] sm:$0xf]
      %v898 = vld [vmem:[%s888 + $0x24] sm:$0xf]
      %v899 = vld [vmem:[%s888 + $0x28] sm:$0xf]
      %v900 = vld [vmem:[%s888 + $0x2c] sm:$0xf]
      %v901 = vld [vmem:[%s888 + $0x30] sm:$0xf]
      %v902 = vld [vmem:[%s888 + $0x34] sm:$0xf]
      %v903 = vld [vmem:[%s888 + $0x38] sm:$0xf]
      %v904 = vld [vmem:[%s888 + $0x3c] sm:$0xf]
      %v921 = vunpack.c.l.b16 %v889
      %v922 = vunpack.c.l.b16 %v890
      %v923 = vunpack.c.l.b16 %v891
      %v924 = vunpack.c.l.b16 %v892
      %v925 = vunpack.c.l.b16 %v893
      %v926 = vunpack.c.l.b16 %v894
      %v927 = vunpack.c.l.b16 %v895
      %v928 = vunpack.c.l.b16 %v896
      %v929 = vunpack.c.l.b16 %v897
      %v930 = vunpack.c.l.b16 %v898
      %v931 = vunpack.c.l.b16 %v899
      %v932 = vunpack.c.l.b16 %v900
      %v933 = vunpack.c.l.b16 %v901
      %v934 = vunpack.c.l.b16 %v902
      %v935 = vunpack.c.l.b16 %v903
      %v936 = vunpack.c.l.b16 %v904
      %v937 = vpack.c.b16 %v922, %v921
      %v938 = vpack.c.b16 %v924, %v923
      %v939 = vpack.c.b16 %v926, %v925
      %v940 = vpack.c.b16 %v928, %v927
      %v941 = vpack.c.b16 %v930, %v929
      %v942 = vpack.c.b16 %v932, %v931
      %v943 = vpack.c.b16 %v934, %v933
      %v944 = vpack.c.b16 %v936, %v935
      %953 = vmatprep.subr.bf16.mxu0 0
      %954 = vmatpush1.bf16.msra.mxu0 %v944
      %955 = vmatprep.subr.bf16.mxu0 0
      %956 = vmatpush1.bf16.msra.mxu0 %v943
      %957 = vmatprep.subr.bf16.mxu0 0
      %958 = vmatpush1.bf16.msra.mxu0 %v942
      %959 = vmatprep.subr.bf16.mxu0 0
      %960 = vmatpush1.bf16.msra.mxu0 %v941
      %961 = vmatprep.subr.bf16.mxu0 0
      %962 = vmatpush1.bf16.msra.mxu0 %v940
      %963 = vmatprep.subr.bf16.mxu0 0
      %964 = vmatpush1.bf16.msra.mxu0 %v939
      %965 = vmatprep.subr.bf16.mxu0 0
      %966 = vmatpush1.bf16.msra.mxu0 %v938
      %967 = vmatprep.subr.bf16.mxu0 0
      %968 = vmatpush1.bf16.msra.mxu0 %v937
      %969 = vmatprep.subr.bf16.mxu0 0
      %970 = vmatpush2.bf16.msra.mxu0 0
      %971 = vmatprep.subr.bf16.mxu0 0
      %972 = vmatpush2.bf16.msra.mxu0 0
      %973 = vmatprep.subr.bf16.mxu0 0
      %974 = vmatpush2.bf16.msra.mxu0 0
      %975 = vmatprep.subr.bf16.mxu0 0
      %976 = vmatpush2.bf16.msra.mxu0 0
      %977 = vmatprep.subr.bf16.mxu0 0
      %978 = vmatpush2.bf16.msra.mxu0 0
      %979 = vmatprep.subr.bf16.mxu0 0
      %980 = vmatpush2.bf16.msra.mxu0 0
      %981 = vmatprep.subr.bf16.mxu0 0
      %982 = vmatpush2.bf16.msra.mxu0 0
      %983 = vmatprep.subr.bf16.mxu0 0
      %984 = vmatpush2.bf16.msra.mxu0 0
      %985 = vmatprep.mubr.bf16.mxu0 0
      %986 = vmatmul.mubr.bf16.gmra.mxu0 %v456
      %v987 = vpop.f32.mrf.mxu0
      %v988 = vadd.f32 0.0, %v987
      %v989 = vpop.f32.mrf.mxu0
      %v990 = vpop.f32.mrf.mxu0
      %v991 = vadd.f32 0.0, %v990
      %v992 = vpop.f32.mrf.mxu0
      %993 = vdwg.mxu0
      %v994 = vadd.f32 %v886, %v988
      %v995 = vadd.f32 %v887, %v991
      %s996 = scalar_lea.vmem %s2, 320
      %v997 = vld [vmem:[%s996] sm:$0xf]
      %v998 = vld [vmem:[%s996 + $0x4] sm:$0xf]
      %v999 = vld [vmem:[%s996 + $0x8] sm:$0xf]
      %v1000 = vld [vmem:[%s996 + $0xc] sm:$0xf]
      %v1001 = vld [vmem:[%s996 + $0x10] sm:$0xf]
      %v1002 = vld [vmem:[%s996 + $0x14] sm:$0xf]
      %v1003 = vld [vmem:[%s996 + $0x18] sm:$0xf]
      %v1004 = vld [vmem:[%s996 + $0x1c] sm:$0xf]
      %v1005 = vld [vmem:[%s996 + $0x20] sm:$0xf]
      %v1006 = vld [vmem:[%s996 + $0x24] sm:$0xf]
      %v1007 = vld [vmem:[%s996 + $0x28] sm:$0xf]
      %v1008 = vld [vmem:[%s996 + $0x2c] sm:$0xf]
      %v1009 = vld [vmem:[%s996 + $0x30] sm:$0xf]
      %v1010 = vld [vmem:[%s996 + $0x34] sm:$0xf]
      %v1011 = vld [vmem:[%s996 + $0x38] sm:$0xf]
      %v1012 = vld [vmem:[%s996 + $0x3c] sm:$0xf]
      %v1029 = vunpack.c.l.b16 %v997
      %v1030 = vunpack.c.l.b16 %v998
      %v1031 = vunpack.c.l.b16 %v999
      %v1032 = vunpack.c.l.b16 %v1000
      %v1033 = vunpack.c.l.b16 %v1001
      %v1034 = vunpack.c.l.b16 %v1002
      %v1035 = vunpack.c.l.b16 %v1003
      %v1036 = vunpack.c.l.b16 %v1004
      %v1037 = vunpack.c.l.b16 %v1005
      %v1038 = vunpack.c.l.b16 %v1006
      %v1039 = vunpack.c.l.b16 %v1007
      %v1040 = vunpack.c.l.b16 %v1008
      %v1041 = vunpack.c.l.b16 %v1009
      %v1042 = vunpack.c.l.b16 %v1010
      %v1043 = vunpack.c.l.b16 %v1011
      %v1044 = vunpack.c.l.b16 %v1012
      %v1045 = vpack.c.b16 %v1030, %v1029
      %v1046 = vpack.c.b16 %v1032, %v1031
      %v1047 = vpack.c.b16 %v1034, %v1033
      %v1048 = vpack.c.b16 %v1036, %v1035
      %v1049 = vpack.c.b16 %v1038, %v1037
      %v1050 = vpack.c.b16 %v1040, %v1039
      %v1051 = vpack.c.b16 %v1042, %v1041
      %v1052 = vpack.c.b16 %v1044, %v1043
      %1061 = vmatprep.subr.bf16.mxu0 0
      %1062 = vmatpush1.bf16.msra.mxu0 %v1052
      %1063 = vmatprep.subr.bf16.mxu0 0
      %1064 = vmatpush1.bf16.msra.mxu0 %v1051
      %1065 = vmatprep.subr.bf16.mxu0 0
      %1066 = vmatpush1.bf16.msra.mxu0 %v1050
      %1067 = vmatprep.subr.bf16.mxu0 0
      %1068 = vmatpush1.bf16.msra.mxu0 %v1049
      %1069 = vmatprep.subr.bf16.mxu0 0
      %1070 = vmatpush1.bf16.msra.mxu0 %v1048
      %1071 = vmatprep.subr.bf16.mxu0 0
      %1072 = vmatpush1.bf16.msra.mxu0 %v1047
      %1073 = vmatprep.subr.bf16.mxu0 0
      %1074 = vmatpush1.bf16.msra.mxu0 %v1046
      %1075 = vmatprep.subr.bf16.mxu0 0
      %1076 = vmatpush1.bf16.msra.mxu0 %v1045
      %1077 = vmatprep.subr.bf16.mxu0 0
      %1078 = vmatpush2.bf16.msra.mxu0 0
      %1079 = vmatprep.subr.bf16.mxu0 0
      %1080 = vmatpush2.bf16.msra.mxu0 0
      %1081 = vmatprep.subr.bf16.mxu0 0
      %1082 = vmatpush2.bf16.msra.mxu0 0
      %1083 = vmatprep.subr.bf16.mxu0 0
      %1084 = vmatpush2.bf16.msra.mxu0 0
      %1085 = vmatprep.subr.bf16.mxu0 0
      %1086 = vmatpush2.bf16.msra.mxu0 0
      %1087 = vmatprep.subr.bf16.mxu0 0
      %1088 = vmatpush2.bf16.msra.mxu0 0
      %1089 = vmatprep.subr.bf16.mxu0 0
      %1090 = vmatpush2.bf16.msra.mxu0 0
      %1091 = vmatprep.subr.bf16.mxu0 0
      %1092 = vmatpush2.bf16.msra.mxu0 0
      %1093 = vmatprep.mubr.bf16.mxu0 0
      %1094 = vmatmul.mubr.bf16.gmra.mxu0 %v457
      %v1095 = vpop.f32.mrf.mxu0
      %v1096 = vadd.f32 0.0, %v1095
      %v1097 = vpop.f32.mrf.mxu0
      %v1098 = vpop.f32.mrf.mxu0
      %v1099 = vadd.f32 0.0, %v1098
      %v1100 = vpop.f32.mrf.mxu0
      %1101 = vdwg.mxu0
      %v1102 = vadd.f32 %v994, %v1096
      %v1103 = vadd.f32 %v995, %v1099
      %s1104 = scalar_lea.vmem %s2, 384
      %v1105 = vld [vmem:[%s1104] sm:$0xf]
      %v1106 = vld [vmem:[%s1104 + $0x4] sm:$0xf]
      %v1107 = vld [vmem:[%s1104 + $0x8] sm:$0xf]
      %v1108 = vld [vmem:[%s1104 + $0xc] sm:$0xf]
      %v1109 = vld [vmem:[%s1104 + $0x10] sm:$0xf]
      %v1110 = vld [vmem:[%s1104 + $0x14] sm:$0xf]
      %v1111 = vld [vmem:[%s1104 + $0x18] sm:$0xf]
      %v1112 = vld [vmem:[%s1104 + $0x1c] sm:$0xf]
      %v1113 = vld [vmem:[%s1104 + $0x20] sm:$0xf]
      %v1114 = vld [vmem:[%s1104 + $0x24] sm:$0xf]
      %v1115 = vld [vmem:[%s1104 + $0x28] sm:$0xf]
      %v1116 = vld [vmem:[%s1104 + $0x2c] sm:$0xf]
      %v1117 = vld [vmem:[%s1104 + $0x30] sm:$0xf]
      %v1118 = vld [vmem:[%s1104 + $0x34] sm:$0xf]
      %v1119 = vld [vmem:[%s1104 + $0x38] sm:$0xf]
      %v1120 = vld [vmem:[%s1104 + $0x3c] sm:$0xf]
      %v1137 = vunpack.c.l.b16 %v1105
      %v1138 = vunpack.c.l.b16 %v1106
      %v1139 = vunpack.c.l.b16 %v1107
      %v1140 = vunpack.c.l.b16 %v1108
      %v1141 = vunpack.c.l.b16 %v1109
      %v1142 = vunpack.c.l.b16 %v1110
      %v1143 = vunpack.c.l.b16 %v1111
      %v1144 = vunpack.c.l.b16 %v1112
      %v1145 = vunpack.c.l.b16 %v1113
      %v1146 = vunpack.c.l.b16 %v1114
      %v1147 = vunpack.c.l.b16 %v1115
      %v1148 = vunpack.c.l.b16 %v1116
      %v1149 = vunpack.c.l.b16 %v1117
      %v1150 = vunpack.c.l.b16 %v1118
      %v1151 = vunpack.c.l.b16 %v1119
      %v1152 = vunpack.c.l.b16 %v1120
      %v1153 = vpack.c.b16 %v1138, %v1137
      %v1154 = vpack.c.b16 %v1140, %v1139
      %v1155 = vpack.c.b16 %v1142, %v1141
      %v1156 = vpack.c.b16 %v1144, %v1143
      %v1157 = vpack.c.b16 %v1146, %v1145
      %v1158 = vpack.c.b16 %v1148, %v1147
      %v1159 = vpack.c.b16 %v1150, %v1149
      %v1160 = vpack.c.b16 %v1152, %v1151
      %1169 = vmatprep.subr.bf16.mxu0 0
      %1170 = vmatpush1.bf16.msra.mxu0 %v1160
      %1171 = vmatprep.subr.bf16.mxu0 0
      %1172 = vmatpush1.bf16.msra.mxu0 %v1159
      %1173 = vmatprep.subr.bf16.mxu0 0
      %1174 = vmatpush1.bf16.msra.mxu0 %v1158
      %1175 = vmatprep.subr.bf16.mxu0 0
      %1176 = vmatpush1.bf16.msra.mxu0 %v1157
      %1177 = vmatprep.subr.bf16.mxu0 0
      %1178 = vmatpush1.bf16.msra.mxu0 %v1156
      %1179 = vmatprep.subr.bf16.mxu0 0
      %1180 = vmatpush1.bf16.msra.mxu0 %v1155
      %1181 = vmatprep.subr.bf16.mxu0 0
      %1182 = vmatpush1.bf16.msra.mxu0 %v1154
      %1183 = vmatprep.subr.bf16.mxu0 0
      %1184 = vmatpush1.bf16.msra.mxu0 %v1153
      %1185 = vmatprep.subr.bf16.mxu0 0
      %1186 = vmatpush2.bf16.msra.mxu0 0
      %1187 = vmatprep.subr.bf16.mxu0 0
      %1188 = vmatpush2.bf16.msra.mxu0 0
      %1189 = vmatprep.subr.bf16.mxu0 0
      %1190 = vmatpush2.bf16.msra.mxu0 0
      %1191 = vmatprep.subr.bf16.mxu0 0
      %1192 = vmatpush2.bf16.msra.mxu0 0
      %1193 = vmatprep.subr.bf16.mxu0 0
      %1194 = vmatpush2.bf16.msra.mxu0 0
      %1195 = vmatprep.subr.bf16.mxu0 0
      %1196 = vmatpush2.bf16.msra.mxu0 0
      %1197 = vmatprep.subr.bf16.mxu0 0
      %1198 = vmatpush2.bf16.msra.mxu0 0
      %1199 = vmatprep.subr.bf16.mxu0 0
      %1200 = vmatpush2.bf16.msra.mxu0 0
      %1201 = vmatprep.mubr.bf16.mxu0 0
      %1202 = vmatmul.mubr.bf16.gmra.mxu0 %v458
      %v1203 = vpop.f32.mrf.mxu0
      %v1204 = vadd.f32 0.0, %v1203
      %v1205 = vpop.f32.mrf.mxu0
      %v1206 = vpop.f32.mrf.mxu0
      %v1207 = vadd.f32 0.0, %v1206
      %v1208 = vpop.f32.mrf.mxu0
      %1209 = vdwg.mxu0
      %v1210 = vadd.f32 %v1102, %v1204
      %v1211 = vadd.f32 %v1103, %v1207
      %s1212 = scalar_lea.vmem %s2, 448
      %v1213 = vld [vmem:[%s1212] sm:$0xf]
      %v1214 = vld [vmem:[%s1212 + $0x4] sm:$0xf]
      %v1215 = vld [vmem:[%s1212 + $0x8] sm:$0xf]
      %v1216 = vld [vmem:[%s1212 + $0xc] sm:$0xf]
      %v1217 = vld [vmem:[%s1212 + $0x10] sm:$0xf]
      %v1218 = vld [vmem:[%s1212 + $0x14] sm:$0xf]
      %v1219 = vld [vmem:[%s1212 + $0x18] sm:$0xf]
      %v1220 = vld [vmem:[%s1212 + $0x1c] sm:$0xf]
      %v1221 = vld [vmem:[%s1212 + $0x20] sm:$0xf]
      %v1222 = vld [vmem:[%s1212 + $0x24] sm:$0xf]
      %v1223 = vld [vmem:[%s1212 + $0x28] sm:$0xf]
      %v1224 = vld [vmem:[%s1212 + $0x2c] sm:$0xf]
      %v1225 = vld [vmem:[%s1212 + $0x30] sm:$0xf]
      %v1226 = vld [vmem:[%s1212 + $0x34] sm:$0xf]
      %v1227 = vld [vmem:[%s1212 + $0x38] sm:$0xf]
      %v1228 = vld [vmem:[%s1212 + $0x3c] sm:$0xf]
      %v1245 = vunpack.c.l.b16 %v1213
      %v1246 = vunpack.c.l.b16 %v1214
      %v1247 = vunpack.c.l.b16 %v1215
      %v1248 = vunpack.c.l.b16 %v1216
      %v1249 = vunpack.c.l.b16 %v1217
      %v1250 = vunpack.c.l.b16 %v1218
      %v1251 = vunpack.c.l.b16 %v1219
      %v1252 = vunpack.c.l.b16 %v1220
      %v1253 = vunpack.c.l.b16 %v1221
      %v1254 = vunpack.c.l.b16 %v1222
      %v1255 = vunpack.c.l.b16 %v1223
      %v1256 = vunpack.c.l.b16 %v1224
      %v1257 = vunpack.c.l.b16 %v1225
      %v1258 = vunpack.c.l.b16 %v1226
      %v1259 = vunpack.c.l.b16 %v1227
      %v1260 = vunpack.c.l.b16 %v1228
      %v1261 = vpack.c.b16 %v1246, %v1245
      %v1262 = vpack.c.b16 %v1248, %v1247
      %v1263 = vpack.c.b16 %v1250, %v1249
      %v1264 = vpack.c.b16 %v1252, %v1251
      %v1265 = vpack.c.b16 %v1254, %v1253
      %v1266 = vpack.c.b16 %v1256, %v1255
      %v1267 = vpack.c.b16 %v1258, %v1257
      %v1268 = vpack.c.b16 %v1260, %v1259
      %1277 = vmatprep.subr.bf16.mxu0 0
      %1278 = vmatpush1.bf16.msra.mxu0 %v1268
      %1279 = vmatprep.subr.bf16.mxu0 0
      %1280 = vmatpush1.bf16.msra.mxu0 %v1267
      %1281 = vmatprep.subr.bf16.mxu0 0
      %1282 = vmatpush1.bf16.msra.mxu0 %v1266
      %1283 = vmatprep.subr.bf16.mxu0 0
      %1284 = vmatpush1.bf16.msra.mxu0 %v1265
      %1285 = vmatprep.subr.bf16.mxu0 0
      %1286 = vmatpush1.bf16.msra.mxu0 %v1264
      %1287 = vmatprep.subr.bf16.mxu0 0
      %1288 = vmatpush1.bf16.msra.mxu0 %v1263
      %1289 = vmatprep.subr.bf16.mxu0 0
      %1290 = vmatpush1.bf16.msra.mxu0 %v1262
      %1291 = vmatprep.subr.bf16.mxu0 0
      %1292 = vmatpush1.bf16.msra.mxu0 %v1261
      %1293 = vmatprep.subr.bf16.mxu0 0
      %1294 = vmatpush2.bf16.msra.mxu0 0
      %1295 = vmatprep.subr.bf16.mxu0 0
      %1296 = vmatpush2.bf16.msra.mxu0 0
      %1297 = vmatprep.subr.bf16.mxu0 0
      %1298 = vmatpush2.bf16.msra.mxu0 0
      %1299 = vmatprep.subr.bf16.mxu0 0
      %1300 = vmatpush2.bf16.msra.mxu0 0
      %1301 = vmatprep.subr.bf16.mxu0 0
      %1302 = vmatpush2.bf16.msra.mxu0 0
      %1303 = vmatprep.subr.bf16.mxu0 0
      %1304 = vmatpush2.bf16.msra.mxu0 0
      %1305 = vmatprep.subr.bf16.mxu0 0
      %1306 = vmatpush2.bf16.msra.mxu0 0
      %1307 = vmatprep.subr.bf16.mxu0 0
      %1308 = vmatpush2.bf16.msra.mxu0 0
      %1309 = vmatprep.mubr.bf16.mxu0 0
      %1310 = vmatmul.mubr.bf16.gmra.mxu0 %v459
      %v1311 = vpop.f32.mrf.mxu0
      %v1312 = vadd.f32 0.0, %v1311
      %v1313 = vpop.f32.mrf.mxu0
      %v1314 = vpop.f32.mrf.mxu0
      %v1315 = vadd.f32 0.0, %v1314
      %v1316 = vpop.f32.mrf.mxu0
      %1317 = vdwg.mxu0
      %v1318 = vadd.f32 %v1210, %v1312
      %v1319 = vadd.f32 %v1211, %v1315
      %s1320 = scalar_lea.vmem %s2, 512
      %v1321 = vld [vmem:[%s1320] sm:$0xf]
      %v1322 = vld [vmem:[%s1320 + $0x4] sm:$0xf]
      %v1323 = vld [vmem:[%s1320 + $0x8] sm:$0xf]
      %v1324 = vld [vmem:[%s1320 + $0xc] sm:$0xf]
      %v1325 = vld [vmem:[%s1320 + $0x10] sm:$0xf]
      %v1326 = vld [vmem:[%s1320 + $0x14] sm:$0xf]
      %v1327 = vld [vmem:[%s1320 + $0x18] sm:$0xf]
      %v1328 = vld [vmem:[%s1320 + $0x1c] sm:$0xf]
      %v1329 = vld [vmem:[%s1320 + $0x20] sm:$0xf]
      %v1330 = vld [vmem:[%s1320 + $0x24] sm:$0xf]
      %v1331 = vld [vmem:[%s1320 + $0x28] sm:$0xf]
      %v1332 = vld [vmem:[%s1320 + $0x2c] sm:$0xf]
      %v1333 = vld [vmem:[%s1320 + $0x30] sm:$0xf]
      %v1334 = vld [vmem:[%s1320 + $0x34] sm:$0xf]
      %v1335 = vld [vmem:[%s1320 + $0x38] sm:$0xf]
      %v1336 = vld [vmem:[%s1320 + $0x3c] sm:$0xf]
      %v1353 = vunpack.c.l.b16 %v1321
      %v1354 = vunpack.c.l.b16 %v1322
      %v1355 = vunpack.c.l.b16 %v1323
      %v1356 = vunpack.c.l.b16 %v1324
      %v1357 = vunpack.c.l.b16 %v1325
      %v1358 = vunpack.c.l.b16 %v1326
      %v1359 = vunpack.c.l.b16 %v1327
      %v1360 = vunpack.c.l.b16 %v1328
      %v1361 = vunpack.c.l.b16 %v1329
      %v1362 = vunpack.c.l.b16 %v1330
      %v1363 = vunpack.c.l.b16 %v1331
      %v1364 = vunpack.c.l.b16 %v1332
      %v1365 = vunpack.c.l.b16 %v1333
      %v1366 = vunpack.c.l.b16 %v1334
      %v1367 = vunpack.c.l.b16 %v1335
      %v1368 = vunpack.c.l.b16 %v1336
      %v1369 = vpack.c.b16 %v1354, %v1353
      %v1370 = vpack.c.b16 %v1356, %v1355
      %v1371 = vpack.c.b16 %v1358, %v1357
      %v1372 = vpack.c.b16 %v1360, %v1359
      %v1373 = vpack.c.b16 %v1362, %v1361
      %v1374 = vpack.c.b16 %v1364, %v1363
      %v1375 = vpack.c.b16 %v1366, %v1365
      %v1376 = vpack.c.b16 %v1368, %v1367
      %1385 = vmatprep.subr.bf16.mxu0 0
      %1386 = vmatpush1.bf16.msra.mxu0 %v1376
      %1387 = vmatprep.subr.bf16.mxu0 0
      %1388 = vmatpush1.bf16.msra.mxu0 %v1375
      %1389 = vmatprep.subr.bf16.mxu0 0
      %1390 = vmatpush1.bf16.msra.mxu0 %v1374
      %1391 = vmatprep.subr.bf16.mxu0 0
      %1392 = vmatpush1.bf16.msra.mxu0 %v1373
      %1393 = vmatprep.subr.bf16.mxu0 0
      %1394 = vmatpush1.bf16.msra.mxu0 %v1372
      %1395 = vmatprep.subr.bf16.mxu0 0
      %1396 = vmatpush1.bf16.msra.mxu0 %v1371
      %1397 = vmatprep.subr.bf16.mxu0 0
      %1398 = vmatpush1.bf16.msra.mxu0 %v1370
      %1399 = vmatprep.subr.bf16.mxu0 0
      %1400 = vmatpush1.bf16.msra.mxu0 %v1369
      %1401 = vmatprep.subr.bf16.mxu0 0
      %1402 = vmatpush2.bf16.msra.mxu0 0
      %1403 = vmatprep.subr.bf16.mxu0 0
      %1404 = vmatpush2.bf16.msra.mxu0 0
      %1405 = vmatprep.subr.bf16.mxu0 0
      %1406 = vmatpush2.bf16.msra.mxu0 0
      %1407 = vmatprep.subr.bf16.mxu0 0
      %1408 = vmatpush2.bf16.msra.mxu0 0
      %1409 = vmatprep.subr.bf16.mxu0 0
      %1410 = vmatpush2.bf16.msra.mxu0 0
      %1411 = vmatprep.subr.bf16.mxu0 0
      %1412 = vmatpush2.bf16.msra.mxu0 0
      %1413 = vmatprep.subr.bf16.mxu0 0
      %1414 = vmatpush2.bf16.msra.mxu0 0
      %1415 = vmatprep.subr.bf16.mxu0 0
      %1416 = vmatpush2.bf16.msra.mxu0 0
      %1417 = vmatprep.mubr.bf16.mxu0 0
      %1418 = vmatmul.mubr.bf16.gmra.mxu0 %v460
      %v1419 = vpop.f32.mrf.mxu0
      %v1420 = vadd.f32 0.0, %v1419
      %v1421 = vpop.f32.mrf.mxu0
      %v1422 = vpop.f32.mrf.mxu0
      %v1423 = vadd.f32 0.0, %v1422
      %v1424 = vpop.f32.mrf.mxu0
      %1425 = vdwg.mxu0
      %v1426 = vadd.f32 %v1318, %v1420
      %v1427 = vadd.f32 %v1319, %v1423
      %v1428 = vld [vmem:[%s3] sm:$0x1]
      %v1430 = vlaneseq
      %v1431 = vshrl.u32 %v1430, 7
      %v1432 = vsub.s32 0, %v1431
      %v1433 = vrot.slane %v1428, %v1432
      %v1435 = vadd.f32 %v1426, %v1433
      %v1436 = vadd.f32 %v1427, %v1433
      %v1437 = vadd.f32 %v1435, %v1436
      %v1438 = vrot.slane %v1437, 4
      %v1439 = vadd.f32 %v1437, %v1438
      %v1440 = vrot.slane %v1439, 2
      %v1441 = vadd.f32 %v1439, %v1440
      %v1442 = vrot.slane %v1441, 1
      %v1443 = vadd.f32 %v1441, %v1442
      %v1444 = vrcp.pop 16.0
      %v1445 = vmul.f32 %v1443, %v1444
      %v1446 = vsub.f32 %v1435, %v1445
      %v1447 = vsub.f32 %v1436, %v1445
      %v1448 = vmul.f32 %v1446, %v1446
      %v1449 = vmul.f32 %v1447, %v1447
      %v1450 = vadd.f32 %v1448, %v1449
      %v1451 = vrot.slane %v1450, 4
      %v1452 = vadd.f32 %v1450, %v1451
      %v1453 = vrot.slane %v1452, 2
      %v1454 = vadd.f32 %v1452, %v1453
      %v1455 = vrot.slane %v1454, 1
      %v1456 = vadd.f32 %v1454, %v1455
      %v1457 = vmul.f32 %v1456, %v1444
      %v1458 = vadd.f32 %v1457, 1e-05
      %v1459 = vrsqrt.pop %v1458
      %v1460 = vmul.f32 %v1446, %v1459
      %v1461 = vmul.f32 %v1447, %v1459
      %v1462 = vmax.f32 %v1460, 0.0
      %v1463 = vmax.f32 %v1461, 0.0
      %v1464 = vpack.c.bf16 %v1463, %v1462
      %1465 = vmatprep.subr.bf16.mxu0 0
      %1466 = vmatpush1.bf16.msra.mxu0 0
      %1467 = vmatprep.subr.bf16.mxu0 0
      %1468 = vmatpush1.bf16.msra.mxu0 0
      %1469 = vmatprep.subr.bf16.mxu0 0
      %1470 = vmatpush1.bf16.msra.mxu0 0
      %1471 = vmatprep.subr.bf16.mxu0 0
      %1472 = vmatpush1.bf16.msra.mxu0 0
      %1473 = vmatprep.subr.bf16.mxu0 0
      %1474 = vmatpush1.bf16.msra.mxu0 0
      %1475 = vmatprep.subr.bf16.mxu0 0
      %1476 = vmatpush1.bf16.msra.mxu0 0
      %1477 = vmatprep.subr.bf16.mxu0 0
      %1478 = vmatpush1.bf16.msra.mxu0 0
      %1479 = vmatprep.subr.bf16.mxu0 0
      %1480 = vmatpush1.bf16.msra.mxu0 %v1464
      %1481 = vmatprep.subr.bf16.mxu0 0
      %1482 = vmatpush2.bf16.msra.mxu0 0
      %1483 = vmatprep.subr.bf16.mxu0 0
      %1484 = vmatpush2.bf16.msra.mxu0 0
      %1485 = vmatprep.subr.bf16.mxu0 0
      %1486 = vmatpush2.bf16.msra.mxu0 0
      %1487 = vmatprep.subr.bf16.mxu0 0
      %1488 = vmatpush2.bf16.msra.mxu0 0
      %1489 = vmatprep.subr.bf16.mxu0 0
      %1490 = vmatpush2.bf16.msra.mxu0 0
      %1491 = vmatprep.subr.bf16.mxu0 0
      %1492 = vmatpush2.bf16.msra.mxu0 0
      %1493 = vmatprep.subr.bf16.mxu0 0
      %1494 = vmatpush2.bf16.msra.mxu0 0
      %1495 = vmatprep.subr.bf16.mxu0 0
      %1496 = vmatpush2.bf16.msra.mxu0 0
      %1497 = vmatprep.mubr.bf16.mxu0 0
      %1498 = vmatmul.mubr.bf16.gmra.mxu0 %v321
      %v1499 = vpop.f32.mrf.mxu0
      %v1500 = vadd.f32 0.0, %v1499
      %v1501 = vpop.f32.mrf.mxu0
      %v1502 = vpop.f32.mrf.mxu0
      %v1503 = vadd.f32 0.0, %v1502
      %v1504 = vpop.f32.mrf.mxu0
      %1505 = vmatprep.mubr.bf16.mxu0 0
      %1506 = vmatmul.mubr.bf16.gmra.mxu0 %v324
      %v1507 = vpop.f32.mrf.mxu0
      %v1508 = vadd.f32 0.0, %v1507
      %v1509 = vpop.f32.mrf.mxu0
      %v1510 = vpop.f32.mrf.mxu0
      %v1511 = vadd.f32 0.0, %v1510
      %v1512 = vpop.f32.mrf.mxu0
      %1513 = vmatprep.mubr.bf16.mxu0 0
      %1514 = vmatmul.mubr.bf16.gmra.mxu0 %v327
      %v1515 = vpop.f32.mrf.mxu0
      %v1516 = vadd.f32 0.0, %v1515
      %v1517 = vpop.f32.mrf.mxu0
      %v1518 = vpop.f32.mrf.mxu0
      %v1519 = vadd.f32 0.0, %v1518
      %v1520 = vpop.f32.mrf.mxu0
      %1521 = vmatprep.mubr.bf16.mxu0 0
      %1522 = vmatmul.mubr.bf16.gmra.mxu0 %v330
      %v1523 = vpop.f32.mrf.mxu0
      %v1524 = vadd.f32 0.0, %v1523
      %v1525 = vpop.f32.mrf.mxu0
      %v1526 = vpop.f32.mrf.mxu0
      %v1527 = vadd.f32 0.0, %v1526
      %v1528 = vpop.f32.mrf.mxu0
      %1529 = vmatprep.mubr.bf16.mxu0 0
      %1530 = vmatmul.mubr.bf16.gmra.mxu0 %v333
      %v1531 = vpop.f32.mrf.mxu0
      %v1532 = vadd.f32 0.0, %v1531
      %v1533 = vpop.f32.mrf.mxu0
      %v1534 = vpop.f32.mrf.mxu0
      %v1535 = vadd.f32 0.0, %v1534
      %v1536 = vpop.f32.mrf.mxu0
      %1537 = vmatprep.mubr.bf16.mxu0 0
      %1538 = vmatmul.mubr.bf16.gmra.mxu0 %v336
      %v1539 = vpop.f32.mrf.mxu0
      %v1540 = vadd.f32 0.0, %v1539
      %v1541 = vpop.f32.mrf.mxu0
      %v1542 = vpop.f32.mrf.mxu0
      %v1543 = vadd.f32 0.0, %v1542
      %v1544 = vpop.f32.mrf.mxu0
      %1545 = vmatprep.mubr.bf16.mxu0 0
      %1546 = vmatmul.mubr.bf16.gmra.mxu0 %v339
      %v1547 = vpop.f32.mrf.mxu0
      %v1548 = vadd.f32 0.0, %v1547
      %v1549 = vpop.f32.mrf.mxu0
      %v1550 = vpop.f32.mrf.mxu0
      %v1551 = vadd.f32 0.0, %v1550
      %v1552 = vpop.f32.mrf.mxu0
      %1553 = vmatprep.mubr.bf16.mxu0 0
      %1554 = vmatmul.mubr.bf16.gmra.mxu0 %v342
      %v1555 = vpop.f32.mrf.mxu0
      %v1556 = vadd.f32 0.0, %v1555
      %v1557 = vpop.f32.mrf.mxu0
      %v1558 = vpop.f32.mrf.mxu0
      %v1559 = vadd.f32 0.0, %v1558
      %v1560 = vpop.f32.mrf.mxu0
      %1561 = vmatprep.mubr.bf16.mxu0 0
      %1562 = vmatmul.mubr.bf16.gmra.mxu0 %v345
      %v1563 = vpop.f32.mrf.mxu0
      %v1564 = vadd.f32 0.0, %v1563
      %v1565 = vpop.f32.mrf.mxu0
      %v1566 = vpop.f32.mrf.mxu0
      %v1567 = vadd.f32 0.0, %v1566
      %v1568 = vpop.f32.mrf.mxu0
      %1569 = vdwg.mxu0
      %v1570 = vpack.c.bf16 %v1503, %v1500
      %v1571 = vpack.c.bf16 %v1511, %v1508
      %v1572 = vpack.c.bf16 %v1519, %v1516
      %v1573 = vpack.c.bf16 %v1527, %v1524
      %v1574 = vpack.c.bf16 %v1535, %v1532
      %v1575 = vpack.c.bf16 %v1543, %v1540
      %v1576 = vpack.c.bf16 %v1551, %v1548
      %v1577 = vpack.c.bf16 %v1559, %v1556
      %v1578 = vpack.c.bf16 %v1567, %v1564
      %v1579 = vld [vmem:[%s4] sm:$0xf]
      %v1580 = vld [vmem:[%s4 + $0x4] sm:$0xf]
      %v1581 = vld [vmem:[%s4 + $0x8] sm:$0xf]
      %v1582 = vld [vmem:[%s4 + $0xc] sm:$0xf]
      %v1583 = vld [vmem:[%s4 + $0x10] sm:$0xf]
      %v1584 = vld [vmem:[%s4 + $0x14] sm:$0xf]
      %v1585 = vld [vmem:[%s4 + $0x18] sm:$0xf]
      %v1586 = vld [vmem:[%s4 + $0x1c] sm:$0xf]
      %v1587 = vld [vmem:[%s4 + $0x20] sm:$0xf]
      %v1588 = vld [vmem:[%s4 + $0x24] sm:$0xf]
      %v1589 = vld [vmem:[%s4 + $0x28] sm:$0xf]
      %v1590 = vld [vmem:[%s4 + $0x2c] sm:$0xf]
      %v1591 = vld [vmem:[%s4 + $0x30] sm:$0xf]
      %v1592 = vld [vmem:[%s4 + $0x34] sm:$0xf]
      %v1593 = vld [vmem:[%s4 + $0x38] sm:$0xf]
      %v1594 = vld [vmem:[%s4 + $0x3c] sm:$0xf]
      %s1595 = scalar_lea.vmem %s4, 64
      %v1596 = vld [vmem:[%s1595] sm:$0xf]
      %v1597 = vld [vmem:[%s1595 + $0x4] sm:$0xf]
      %v1598 = vld [vmem:[%s1595 + $0x8] sm:$0xf]
      %v1599 = vld [vmem:[%s1595 + $0xc] sm:$0xf]
      %v1600 = vld [vmem:[%s1595 + $0x10] sm:$0xf]
      %v1601 = vld [vmem:[%s1595 + $0x14] sm:$0xf]
      %v1602 = vld [vmem:[%s1595 + $0x18] sm:$0xf]
      %v1603 = vld [vmem:[%s1595 + $0x1c] sm:$0xf]
      %v1604 = vld [vmem:[%s1595 + $0x20] sm:$0xf]
      %v1605 = vld [vmem:[%s1595 + $0x24] sm:$0xf]
      %v1606 = vld [vmem:[%s1595 + $0x28] sm:$0xf]
      %v1607 = vld [vmem:[%s1595 + $0x2c] sm:$0xf]
      %v1608 = vld [vmem:[%s1595 + $0x30] sm:$0xf]
      %v1609 = vld [vmem:[%s1595 + $0x34] sm:$0xf]
      %v1610 = vld [vmem:[%s1595 + $0x38] sm:$0xf]
      %v1611 = vld [vmem:[%s1595 + $0x3c] sm:$0xf]
      %v1628 = vunpack.c.l.b16 %v1596
      %v1629 = vunpack.c.l.b16 %v1597
      %v1630 = vunpack.c.l.b16 %v1598
      %v1631 = vunpack.c.l.b16 %v1599
      %v1632 = vunpack.c.l.b16 %v1600
      %v1633 = vunpack.c.l.b16 %v1601
      %v1634 = vunpack.c.l.b16 %v1602
      %v1635 = vunpack.c.l.b16 %v1603
      %v1636 = vunpack.c.l.b16 %v1604
      %v1637 = vunpack.c.l.b16 %v1605
      %v1638 = vunpack.c.l.b16 %v1606
      %v1639 = vunpack.c.l.b16 %v1607
      %v1640 = vunpack.c.l.b16 %v1608
      %v1641 = vunpack.c.l.b16 %v1609
      %v1642 = vunpack.c.l.b16 %v1610
      %v1643 = vunpack.c.l.b16 %v1611
      %v1644 = vpack.c.b16 %v1629, %v1628
      %v1645 = vpack.c.b16 %v1631, %v1630
      %v1646 = vpack.c.b16 %v1633, %v1632
      %v1647 = vpack.c.b16 %v1635, %v1634
      %v1648 = vpack.c.b16 %v1637, %v1636
      %v1649 = vpack.c.b16 %v1639, %v1638
      %v1650 = vpack.c.b16 %v1641, %v1640
      %v1651 = vpack.c.b16 %v1643, %v1642
      %1660 = vmatprep.subr.bf16.mxu0 0
      %1661 = vmatpush1.bf16.msra.mxu0 %v1651
      %1662 = vmatprep.subr.bf16.mxu0 0
      %1663 = vmatpush1.bf16.msra.mxu0 %v1650
      %1664 = vmatprep.subr.bf16.mxu0 0
      %1665 = vmatpush1.bf16.msra.mxu0 %v1649
      %1666 = vmatprep.subr.bf16.mxu0 0
      %1667 = vmatpush1.bf16.msra.mxu0 %v1648
      %1668 = vmatprep.subr.bf16.mxu0 0
      %1669 = vmatpush1.bf16.msra.mxu0 %v1647
      %1670 = vmatprep.subr.bf16.mxu0 0
      %1671 = vmatpush1.bf16.msra.mxu0 %v1646
      %1672 = vmatprep.subr.bf16.mxu0 0
      %1673 = vmatpush1.bf16.msra.mxu0 %v1645
      %1674 = vmatprep.subr.bf16.mxu0 0
      %1675 = vmatpush1.bf16.msra.mxu0 %v1644
      %1676 = vmatprep.subr.bf16.mxu0 0
      %1677 = vmatpush2.bf16.msra.mxu0 0
      %1678 = vmatprep.subr.bf16.mxu0 0
      %1679 = vmatpush2.bf16.msra.mxu0 0
      %1680 = vmatprep.subr.bf16.mxu0 0
      %1681 = vmatpush2.bf16.msra.mxu0 0
      %1682 = vmatprep.subr.bf16.mxu0 0
      %1683 = vmatpush2.bf16.msra.mxu0 0
      %1684 = vmatprep.subr.bf16.mxu0 0
      %1685 = vmatpush2.bf16.msra.mxu0 0
      %1686 = vmatprep.subr.bf16.mxu0 0
      %1687 = vmatpush2.bf16.msra.mxu0 0
      %1688 = vmatprep.subr.bf16.mxu0 0
      %1689 = vmatpush2.bf16.msra.mxu0 0
      %1690 = vmatprep.subr.bf16.mxu0 0
      %1691 = vmatpush2.bf16.msra.mxu0 0
      %1692 = vmatprep.mubr.bf16.mxu0 0
      %1693 = vmatmul.mubr.bf16.gmra.mxu0 %v1571
      %v1694 = vpop.f32.mrf.mxu0
      %v1695 = vadd.f32 0.0, %v1694
      %v1696 = vpop.f32.mrf.mxu0
      %v1697 = vpop.f32.mrf.mxu0
      %v1698 = vadd.f32 0.0, %v1697
      %v1699 = vpop.f32.mrf.mxu0
      %1700 = vdwg.mxu0
      %v1717 = vunpack.c.l.b16 %v1579
      %v1718 = vunpack.c.l.b16 %v1580
      %v1719 = vunpack.c.l.b16 %v1581
      %v1720 = vunpack.c.l.b16 %v1582
      %v1721 = vunpack.c.l.b16 %v1583
      %v1722 = vunpack.c.l.b16 %v1584
      %v1723 = vunpack.c.l.b16 %v1585
      %v1724 = vunpack.c.l.b16 %v1586
      %v1725 = vunpack.c.l.b16 %v1587
      %v1726 = vunpack.c.l.b16 %v1588
      %v1727 = vunpack.c.l.b16 %v1589
      %v1728 = vunpack.c.l.b16 %v1590
      %v1729 = vunpack.c.l.b16 %v1591
      %v1730 = vunpack.c.l.b16 %v1592
      %v1731 = vunpack.c.l.b16 %v1593
      %v1732 = vunpack.c.l.b16 %v1594
      %v1733 = vpack.c.b16 %v1718, %v1717
      %v1734 = vpack.c.b16 %v1720, %v1719
      %v1735 = vpack.c.b16 %v1722, %v1721
      %v1736 = vpack.c.b16 %v1724, %v1723
      %v1737 = vpack.c.b16 %v1726, %v1725
      %v1738 = vpack.c.b16 %v1728, %v1727
      %v1739 = vpack.c.b16 %v1730, %v1729
      %v1740 = vpack.c.b16 %v1732, %v1731
      %1749 = vmatprep.subr.bf16.mxu0 0
      %1750 = vmatpush1.bf16.msra.mxu0 %v1740
      %1751 = vmatprep.subr.bf16.mxu0 0
      %1752 = vmatpush1.bf16.msra.mxu0 %v1739
      %1753 = vmatprep.subr.bf16.mxu0 0
      %1754 = vmatpush1.bf16.msra.mxu0 %v1738
      %1755 = vmatprep.subr.bf16.mxu0 0
      %1756 = vmatpush1.bf16.msra.mxu0 %v1737
      %1757 = vmatprep.subr.bf16.mxu0 0
      %1758 = vmatpush1.bf16.msra.mxu0 %v1736
      %1759 = vmatprep.subr.bf16.mxu0 0
      %1760 = vmatpush1.bf16.msra.mxu0 %v1735
      %1761 = vmatprep.subr.bf16.mxu0 0
      %1762 = vmatpush1.bf16.msra.mxu0 %v1734
      %1763 = vmatprep.subr.bf16.mxu0 0
      %1764 = vmatpush1.bf16.msra.mxu0 %v1733
      %1765 = vmatprep.subr.bf16.mxu0 0
      %1766 = vmatpush2.bf16.msra.mxu0 0
      %1767 = vmatprep.subr.bf16.mxu0 0
      %1768 = vmatpush2.bf16.msra.mxu0 0
      %1769 = vmatprep.subr.bf16.mxu0 0
      %1770 = vmatpush2.bf16.msra.mxu0 0
      %1771 = vmatprep.subr.bf16.mxu0 0
      %1772 = vmatpush2.bf16.msra.mxu0 0
      %1773 = vmatprep.subr.bf16.mxu0 0
      %1774 = vmatpush2.bf16.msra.mxu0 0
      %1775 = vmatprep.subr.bf16.mxu0 0
      %1776 = vmatpush2.bf16.msra.mxu0 0
      %1777 = vmatprep.subr.bf16.mxu0 0
      %1778 = vmatpush2.bf16.msra.mxu0 0
      %1779 = vmatprep.subr.bf16.mxu0 0
      %1780 = vmatpush2.bf16.msra.mxu0 0
      %1781 = vmatprep.mubr.bf16.mxu0 0
      %1782 = vmatmul.mubr.bf16.gmra.mxu0 %v1570
      %v1783 = vpop.f32.mrf.mxu0
      %v1784 = vadd.f32 %v1695, %v1783
      %v1785 = vpop.f32.mrf.mxu0
      %v1786 = vpop.f32.mrf.mxu0
      %v1787 = vadd.f32 %v1698, %v1786
      %v1788 = vpop.f32.mrf.mxu0
      %1789 = vdwg.mxu0
      %s1790 = scalar_lea.vmem %s4, 128
      %v1791 = vld [vmem:[%s1790] sm:$0xf]
      %v1792 = vld [vmem:[%s1790 + $0x4] sm:$0xf]
      %v1793 = vld [vmem:[%s1790 + $0x8] sm:$0xf]
      %v1794 = vld [vmem:[%s1790 + $0xc] sm:$0xf]
      %v1795 = vld [vmem:[%s1790 + $0x10] sm:$0xf]
      %v1796 = vld [vmem:[%s1790 + $0x14] sm:$0xf]
      %v1797 = vld [vmem:[%s1790 + $0x18] sm:$0xf]
      %v1798 = vld [vmem:[%s1790 + $0x1c] sm:$0xf]
      %v1799 = vld [vmem:[%s1790 + $0x20] sm:$0xf]
      %v1800 = vld [vmem:[%s1790 + $0x24] sm:$0xf]
      %v1801 = vld [vmem:[%s1790 + $0x28] sm:$0xf]
      %v1802 = vld [vmem:[%s1790 + $0x2c] sm:$0xf]
      %v1803 = vld [vmem:[%s1790 + $0x30] sm:$0xf]
      %v1804 = vld [vmem:[%s1790 + $0x34] sm:$0xf]
      %v1805 = vld [vmem:[%s1790 + $0x38] sm:$0xf]
      %v1806 = vld [vmem:[%s1790 + $0x3c] sm:$0xf]
      %v1823 = vunpack.c.l.b16 %v1791
      %v1824 = vunpack.c.l.b16 %v1792
      %v1825 = vunpack.c.l.b16 %v1793
      %v1826 = vunpack.c.l.b16 %v1794
      %v1827 = vunpack.c.l.b16 %v1795
      %v1828 = vunpack.c.l.b16 %v1796
      %v1829 = vunpack.c.l.b16 %v1797
      %v1830 = vunpack.c.l.b16 %v1798
      %v1831 = vunpack.c.l.b16 %v1799
      %v1832 = vunpack.c.l.b16 %v1800
      %v1833 = vunpack.c.l.b16 %v1801
      %v1834 = vunpack.c.l.b16 %v1802
      %v1835 = vunpack.c.l.b16 %v1803
      %v1836 = vunpack.c.l.b16 %v1804
      %v1837 = vunpack.c.l.b16 %v1805
      %v1838 = vunpack.c.l.b16 %v1806
      %v1839 = vpack.c.b16 %v1824, %v1823
      %v1840 = vpack.c.b16 %v1826, %v1825
      %v1841 = vpack.c.b16 %v1828, %v1827
      %v1842 = vpack.c.b16 %v1830, %v1829
      %v1843 = vpack.c.b16 %v1832, %v1831
      %v1844 = vpack.c.b16 %v1834, %v1833
      %v1845 = vpack.c.b16 %v1836, %v1835
      %v1846 = vpack.c.b16 %v1838, %v1837
      %1855 = vmatprep.subr.bf16.mxu0 0
      %1856 = vmatpush1.bf16.msra.mxu0 %v1846
      %1857 = vmatprep.subr.bf16.mxu0 0
      %1858 = vmatpush1.bf16.msra.mxu0 %v1845
      %1859 = vmatprep.subr.bf16.mxu0 0
      %1860 = vmatpush1.bf16.msra.mxu0 %v1844
      %1861 = vmatprep.subr.bf16.mxu0 0
      %1862 = vmatpush1.bf16.msra.mxu0 %v1843
      %1863 = vmatprep.subr.bf16.mxu0 0
      %1864 = vmatpush1.bf16.msra.mxu0 %v1842
      %1865 = vmatprep.subr.bf16.mxu0 0
      %1866 = vmatpush1.bf16.msra.mxu0 %v1841
      %1867 = vmatprep.subr.bf16.mxu0 0
      %1868 = vmatpush1.bf16.msra.mxu0 %v1840
      %1869 = vmatprep.subr.bf16.mxu0 0
      %1870 = vmatpush1.bf16.msra.mxu0 %v1839
      %1871 = vmatprep.subr.bf16.mxu0 0
      %1872 = vmatpush2.bf16.msra.mxu0 0
      %1873 = vmatprep.subr.bf16.mxu0 0
      %1874 = vmatpush2.bf16.msra.mxu0 0
      %1875 = vmatprep.subr.bf16.mxu0 0
      %1876 = vmatpush2.bf16.msra.mxu0 0
      %1877 = vmatprep.subr.bf16.mxu0 0
      %1878 = vmatpush2.bf16.msra.mxu0 0
      %1879 = vmatprep.subr.bf16.mxu0 0
      %1880 = vmatpush2.bf16.msra.mxu0 0
      %1881 = vmatprep.subr.bf16.mxu0 0
      %1882 = vmatpush2.bf16.msra.mxu0 0
      %1883 = vmatprep.subr.bf16.mxu0 0
      %1884 = vmatpush2.bf16.msra.mxu0 0
      %1885 = vmatprep.subr.bf16.mxu0 0
      %1886 = vmatpush2.bf16.msra.mxu0 0
      %1887 = vmatprep.mubr.bf16.mxu0 0
      %1888 = vmatmul.mubr.bf16.gmra.mxu0 %v1572
      %v1889 = vpop.f32.mrf.mxu0
      %v1890 = vadd.f32 0.0, %v1889
      %v1891 = vpop.f32.mrf.mxu0
      %v1892 = vpop.f32.mrf.mxu0
      %v1893 = vadd.f32 0.0, %v1892
      %v1894 = vpop.f32.mrf.mxu0
      %1895 = vdwg.mxu0
      %v1896 = vadd.f32 %v1784, %v1890
      %v1897 = vadd.f32 %v1787, %v1893
      %s1898 = scalar_lea.vmem %s4, 192
      %v1899 = vld [vmem:[%s1898] sm:$0xf]
      %v1900 = vld [vmem:[%s1898 + $0x4] sm:$0xf]
      %v1901 = vld [vmem:[%s1898 + $0x8] sm:$0xf]
      %v1902 = vld [vmem:[%s1898 + $0xc] sm:$0xf]
      %v1903 = vld [vmem:[%s1898 + $0x10] sm:$0xf]
      %v1904 = vld [vmem:[%s1898 + $0x14] sm:$0xf]
      %v1905 = vld [vmem:[%s1898 + $0x18] sm:$0xf]
      %v1906 = vld [vmem:[%s1898 + $0x1c] sm:$0xf]
      %v1907 = vld [vmem:[%s1898 + $0x20] sm:$0xf]
      %v1908 = vld [vmem:[%s1898 + $0x24] sm:$0xf]
      %v1909 = vld [vmem:[%s1898 + $0x28] sm:$0xf]
      %v1910 = vld [vmem:[%s1898 + $0x2c] sm:$0xf]
      %v1911 = vld [vmem:[%s1898 + $0x30] sm:$0xf]
      %v1912 = vld [vmem:[%s1898 + $0x34] sm:$0xf]
      %v1913 = vld [vmem:[%s1898 + $0x38] sm:$0xf]
      %v1914 = vld [vmem:[%s1898 + $0x3c] sm:$0xf]
      %v1931 = vunpack.c.l.b16 %v1899
      %v1932 = vunpack.c.l.b16 %v1900
      %v1933 = vunpack.c.l.b16 %v1901
      %v1934 = vunpack.c.l.b16 %v1902
      %v1935 = vunpack.c.l.b16 %v1903
      %v1936 = vunpack.c.l.b16 %v1904
      %v1937 = vunpack.c.l.b16 %v1905
      %v1938 = vunpack.c.l.b16 %v1906
      %v1939 = vunpack.c.l.b16 %v1907
      %v1940 = vunpack.c.l.b16 %v1908
      %v1941 = vunpack.c.l.b16 %v1909
      %v1942 = vunpack.c.l.b16 %v1910
      %v1943 = vunpack.c.l.b16 %v1911
      %v1944 = vunpack.c.l.b16 %v1912
      %v1945 = vunpack.c.l.b16 %v1913
      %v1946 = vunpack.c.l.b16 %v1914
      %v1947 = vpack.c.b16 %v1932, %v1931
      %v1948 = vpack.c.b16 %v1934, %v1933
      %v1949 = vpack.c.b16 %v1936, %v1935
      %v1950 = vpack.c.b16 %v1938, %v1937
      %v1951 = vpack.c.b16 %v1940, %v1939
      %v1952 = vpack.c.b16 %v1942, %v1941
      %v1953 = vpack.c.b16 %v1944, %v1943
      %v1954 = vpack.c.b16 %v1946, %v1945
      %1963 = vmatprep.subr.bf16.mxu0 0
      %1964 = vmatpush1.bf16.msra.mxu0 %v1954
      %1965 = vmatprep.subr.bf16.mxu0 0
      %1966 = vmatpush1.bf16.msra.mxu0 %v1953
      %1967 = vmatprep.subr.bf16.mxu0 0
      %1968 = vmatpush1.bf16.msra.mxu0 %v1952
      %1969 = vmatprep.subr.bf16.mxu0 0
      %1970 = vmatpush1.bf16.msra.mxu0 %v1951
      %1971 = vmatprep.subr.bf16.mxu0 0
      %1972 = vmatpush1.bf16.msra.mxu0 %v1950
      %1973 = vmatprep.subr.bf16.mxu0 0
      %1974 = vmatpush1.bf16.msra.mxu0 %v1949
      %1975 = vmatprep.subr.bf16.mxu0 0
      %1976 = vmatpush1.bf16.msra.mxu0 %v1948
      %1977 = vmatprep.subr.bf16.mxu0 0
      %1978 = vmatpush1.bf16.msra.mxu0 %v1947
      %1979 = vmatprep.subr.bf16.mxu0 0
      %1980 = vmatpush2.bf16.msra.mxu0 0
      %1981 = vmatprep.subr.bf16.mxu0 0
      %1982 = vmatpush2.bf16.msra.mxu0 0
      %1983 = vmatprep.subr.bf16.mxu0 0
      %1984 = vmatpush2.bf16.msra.mxu0 0
      %1985 = vmatprep.subr.bf16.mxu0 0
      %1986 = vmatpush2.bf16.msra.mxu0 0
      %1987 = vmatprep.subr.bf16.mxu0 0
      %1988 = vmatpush2.bf16.msra.mxu0 0
      %1989 = vmatprep.subr.bf16.mxu0 0
      %1990 = vmatpush2.bf16.msra.mxu0 0
      %1991 = vmatprep.subr.bf16.mxu0 0
      %1992 = vmatpush2.bf16.msra.mxu0 0
      %1993 = vmatprep.subr.bf16.mxu0 0
      %1994 = vmatpush2.bf16.msra.mxu0 0
      %1995 = vmatprep.mubr.bf16.mxu0 0
      %1996 = vmatmul.mubr.bf16.gmra.mxu0 %v1573
      %v1997 = vpop.f32.mrf.mxu0
      %v1998 = vadd.f32 0.0, %v1997
      %v1999 = vpop.f32.mrf.mxu0
      %v2000 = vpop.f32.mrf.mxu0
      %v2001 = vadd.f32 0.0, %v2000
      %v2002 = vpop.f32.mrf.mxu0
      %2003 = vdwg.mxu0
      %v2004 = vadd.f32 %v1896, %v1998
      %v2005 = vadd.f32 %v1897, %v2001
      %s2006 = scalar_lea.vmem %s4, 256
      %v2007 = vld [vmem:[%s2006] sm:$0xf]
      %v2008 = vld [vmem:[%s2006 + $0x4] sm:$0xf]
      %v2009 = vld [vmem:[%s2006 + $0x8] sm:$0xf]
      %v2010 = vld [vmem:[%s2006 + $0xc] sm:$0xf]
      %v2011 = vld [vmem:[%s2006 + $0x10] sm:$0xf]
      %v2012 = vld [vmem:[%s2006 + $0x14] sm:$0xf]
      %v2013 = vld [vmem:[%s2006 + $0x18] sm:$0xf]
      %v2014 = vld [vmem:[%s2006 + $0x1c] sm:$0xf]
      %v2015 = vld [vmem:[%s2006 + $0x20] sm:$0xf]
      %v2016 = vld [vmem:[%s2006 + $0x24] sm:$0xf]
      %v2017 = vld [vmem:[%s2006 + $0x28] sm:$0xf]
      %v2018 = vld [vmem:[%s2006 + $0x2c] sm:$0xf]
      %v2019 = vld [vmem:[%s2006 + $0x30] sm:$0xf]
      %v2020 = vld [vmem:[%s2006 + $0x34] sm:$0xf]
      %v2021 = vld [vmem:[%s2006 + $0x38] sm:$0xf]
      %v2022 = vld [vmem:[%s2006 + $0x3c] sm:$0xf]
      %v2039 = vunpack.c.l.b16 %v2007
      %v2040 = vunpack.c.l.b16 %v2008
      %v2041 = vunpack.c.l.b16 %v2009
      %v2042 = vunpack.c.l.b16 %v2010
      %v2043 = vunpack.c.l.b16 %v2011
      %v2044 = vunpack.c.l.b16 %v2012
      %v2045 = vunpack.c.l.b16 %v2013
      %v2046 = vunpack.c.l.b16 %v2014
      %v2047 = vunpack.c.l.b16 %v2015
      %v2048 = vunpack.c.l.b16 %v2016
      %v2049 = vunpack.c.l.b16 %v2017
      %v2050 = vunpack.c.l.b16 %v2018
      %v2051 = vunpack.c.l.b16 %v2019
      %v2052 = vunpack.c.l.b16 %v2020
      %v2053 = vunpack.c.l.b16 %v2021
      %v2054 = vunpack.c.l.b16 %v2022
      %v2055 = vpack.c.b16 %v2040, %v2039
      %v2056 = vpack.c.b16 %v2042, %v2041
      %v2057 = vpack.c.b16 %v2044, %v2043
      %v2058 = vpack.c.b16 %v2046, %v2045
      %v2059 = vpack.c.b16 %v2048, %v2047
      %v2060 = vpack.c.b16 %v2050, %v2049
      %v2061 = vpack.c.b16 %v2052, %v2051
      %v2062 = vpack.c.b16 %v2054, %v2053
      %2071 = vmatprep.subr.bf16.mxu0 0
      %2072 = vmatpush1.bf16.msra.mxu0 %v2062
      %2073 = vmatprep.subr.bf16.mxu0 0
      %2074 = vmatpush1.bf16.msra.mxu0 %v2061
      %2075 = vmatprep.subr.bf16.mxu0 0
      %2076 = vmatpush1.bf16.msra.mxu0 %v2060
      %2077 = vmatprep.subr.bf16.mxu0 0
      %2078 = vmatpush1.bf16.msra.mxu0 %v2059
      %2079 = vmatprep.subr.bf16.mxu0 0
      %2080 = vmatpush1.bf16.msra.mxu0 %v2058
      %2081 = vmatprep.subr.bf16.mxu0 0
      %2082 = vmatpush1.bf16.msra.mxu0 %v2057
      %2083 = vmatprep.subr.bf16.mxu0 0
      %2084 = vmatpush1.bf16.msra.mxu0 %v2056
      %2085 = vmatprep.subr.bf16.mxu0 0
      %2086 = vmatpush1.bf16.msra.mxu0 %v2055
      %2087 = vmatprep.subr.bf16.mxu0 0
      %2088 = vmatpush2.bf16.msra.mxu0 0
      %2089 = vmatprep.subr.bf16.mxu0 0
      %2090 = vmatpush2.bf16.msra.mxu0 0
      %2091 = vmatprep.subr.bf16.mxu0 0
      %2092 = vmatpush2.bf16.msra.mxu0 0
      %2093 = vmatprep.subr.bf16.mxu0 0
      %2094 = vmatpush2.bf16.msra.mxu0 0
      %2095 = vmatprep.subr.bf16.mxu0 0
      %2096 = vmatpush2.bf16.msra.mxu0 0
      %2097 = vmatprep.subr.bf16.mxu0 0
      %2098 = vmatpush2.bf16.msra.mxu0 0
      %2099 = vmatprep.subr.bf16.mxu0 0
      %2100 = vmatpush2.bf16.msra.mxu0 0
      %2101 = vmatprep.subr.bf16.mxu0 0
      %2102 = vmatpush2.bf16.msra.mxu0 0
      %2103 = vmatprep.mubr.bf16.mxu0 0
      %2104 = vmatmul.mubr.bf16.gmra.mxu0 %v1574
      %v2105 = vpop.f32.mrf.mxu0
      %v2106 = vadd.f32 0.0, %v2105
      %v2107 = vpop.f32.mrf.mxu0
      %v2108 = vpop.f32.mrf.mxu0
      %v2109 = vadd.f32 0.0, %v2108
      %v2110 = vpop.f32.mrf.mxu0
      %2111 = vdwg.mxu0
      %v2112 = vadd.f32 %v2004, %v2106
      %v2113 = vadd.f32 %v2005, %v2109
      %s2114 = scalar_lea.vmem %s4, 320
      %v2115 = vld [vmem:[%s2114] sm:$0xf]
      %v2116 = vld [vmem:[%s2114 + $0x4] sm:$0xf]
      %v2117 = vld [vmem:[%s2114 + $0x8] sm:$0xf]
      %v2118 = vld [vmem:[%s2114 + $0xc] sm:$0xf]
      %v2119 = vld [vmem:[%s2114 + $0x10] sm:$0xf]
      %v2120 = vld [vmem:[%s2114 + $0x14] sm:$0xf]
      %v2121 = vld [vmem:[%s2114 + $0x18] sm:$0xf]
      %v2122 = vld [vmem:[%s2114 + $0x1c] sm:$0xf]
      %v2123 = vld [vmem:[%s2114 + $0x20] sm:$0xf]
      %v2124 = vld [vmem:[%s2114 + $0x24] sm:$0xf]
      %v2125 = vld [vmem:[%s2114 + $0x28] sm:$0xf]
      %v2126 = vld [vmem:[%s2114 + $0x2c] sm:$0xf]
      %v2127 = vld [vmem:[%s2114 + $0x30] sm:$0xf]
      %v2128 = vld [vmem:[%s2114 + $0x34] sm:$0xf]
      %v2129 = vld [vmem:[%s2114 + $0x38] sm:$0xf]
      %v2130 = vld [vmem:[%s2114 + $0x3c] sm:$0xf]
      %v2147 = vunpack.c.l.b16 %v2115
      %v2148 = vunpack.c.l.b16 %v2116
      %v2149 = vunpack.c.l.b16 %v2117
      %v2150 = vunpack.c.l.b16 %v2118
      %v2151 = vunpack.c.l.b16 %v2119
      %v2152 = vunpack.c.l.b16 %v2120
      %v2153 = vunpack.c.l.b16 %v2121
      %v2154 = vunpack.c.l.b16 %v2122
      %v2155 = vunpack.c.l.b16 %v2123
      %v2156 = vunpack.c.l.b16 %v2124
      %v2157 = vunpack.c.l.b16 %v2125
      %v2158 = vunpack.c.l.b16 %v2126
      %v2159 = vunpack.c.l.b16 %v2127
      %v2160 = vunpack.c.l.b16 %v2128
      %v2161 = vunpack.c.l.b16 %v2129
      %v2162 = vunpack.c.l.b16 %v2130
      %v2163 = vpack.c.b16 %v2148, %v2147
      %v2164 = vpack.c.b16 %v2150, %v2149
      %v2165 = vpack.c.b16 %v2152, %v2151
      %v2166 = vpack.c.b16 %v2154, %v2153
      %v2167 = vpack.c.b16 %v2156, %v2155
      %v2168 = vpack.c.b16 %v2158, %v2157
      %v2169 = vpack.c.b16 %v2160, %v2159
      %v2170 = vpack.c.b16 %v2162, %v2161
      %2179 = vmatprep.subr.bf16.mxu0 0
      %2180 = vmatpush1.bf16.msra.mxu0 %v2170
      %2181 = vmatprep.subr.bf16.mxu0 0
      %2182 = vmatpush1.bf16.msra.mxu0 %v2169
      %2183 = vmatprep.subr.bf16.mxu0 0
      %2184 = vmatpush1.bf16.msra.mxu0 %v2168
      %2185 = vmatprep.subr.bf16.mxu0 0
      %2186 = vmatpush1.bf16.msra.mxu0 %v2167
      %2187 = vmatprep.subr.bf16.mxu0 0
      %2188 = vmatpush1.bf16.msra.mxu0 %v2166
      %2189 = vmatprep.subr.bf16.mxu0 0
      %2190 = vmatpush1.bf16.msra.mxu0 %v2165
      %2191 = vmatprep.subr.bf16.mxu0 0
      %2192 = vmatpush1.bf16.msra.mxu0 %v2164
      %2193 = vmatprep.subr.bf16.mxu0 0
      %2194 = vmatpush1.bf16.msra.mxu0 %v2163
      %2195 = vmatprep.subr.bf16.mxu0 0
      %2196 = vmatpush2.bf16.msra.mxu0 0
      %2197 = vmatprep.subr.bf16.mxu0 0
      %2198 = vmatpush2.bf16.msra.mxu0 0
      %2199 = vmatprep.subr.bf16.mxu0 0
      %2200 = vmatpush2.bf16.msra.mxu0 0
      %2201 = vmatprep.subr.bf16.mxu0 0
      %2202 = vmatpush2.bf16.msra.mxu0 0
      %2203 = vmatprep.subr.bf16.mxu0 0
      %2204 = vmatpush2.bf16.msra.mxu0 0
      %2205 = vmatprep.subr.bf16.mxu0 0
      %2206 = vmatpush2.bf16.msra.mxu0 0
      %2207 = vmatprep.subr.bf16.mxu0 0
      %2208 = vmatpush2.bf16.msra.mxu0 0
      %2209 = vmatprep.subr.bf16.mxu0 0
      %2210 = vmatpush2.bf16.msra.mxu0 0
      %2211 = vmatprep.mubr.bf16.mxu0 0
      %2212 = vmatmul.mubr.bf16.gmra.mxu0 %v1575
      %v2213 = vpop.f32.mrf.mxu0
      %v2214 = vadd.f32 0.0, %v2213
      %v2215 = vpop.f32.mrf.mxu0
      %v2216 = vpop.f32.mrf.mxu0
      %v2217 = vadd.f32 0.0, %v2216
      %v2218 = vpop.f32.mrf.mxu0
      %2219 = vdwg.mxu0
      %v2220 = vadd.f32 %v2112, %v2214
      %v2221 = vadd.f32 %v2113, %v2217
      %s2222 = scalar_lea.vmem %s4, 384
      %v2223 = vld [vmem:[%s2222] sm:$0xf]
      %v2224 = vld [vmem:[%s2222 + $0x4] sm:$0xf]
      %v2225 = vld [vmem:[%s2222 + $0x8] sm:$0xf]
      %v2226 = vld [vmem:[%s2222 + $0xc] sm:$0xf]
      %v2227 = vld [vmem:[%s2222 + $0x10] sm:$0xf]
      %v2228 = vld [vmem:[%s2222 + $0x14] sm:$0xf]
      %v2229 = vld [vmem:[%s2222 + $0x18] sm:$0xf]
      %v2230 = vld [vmem:[%s2222 + $0x1c] sm:$0xf]
      %v2231 = vld [vmem:[%s2222 + $0x20] sm:$0xf]
      %v2232 = vld [vmem:[%s2222 + $0x24] sm:$0xf]
      %v2233 = vld [vmem:[%s2222 + $0x28] sm:$0xf]
      %v2234 = vld [vmem:[%s2222 + $0x2c] sm:$0xf]
      %v2235 = vld [vmem:[%s2222 + $0x30] sm:$0xf]
      %v2236 = vld [vmem:[%s2222 + $0x34] sm:$0xf]
      %v2237 = vld [vmem:[%s2222 + $0x38] sm:$0xf]
      %v2238 = vld [vmem:[%s2222 + $0x3c] sm:$0xf]
      %v2255 = vunpack.c.l.b16 %v2223
      %v2256 = vunpack.c.l.b16 %v2224
      %v2257 = vunpack.c.l.b16 %v2225
      %v2258 = vunpack.c.l.b16 %v2226
      %v2259 = vunpack.c.l.b16 %v2227
      %v2260 = vunpack.c.l.b16 %v2228
      %v2261 = vunpack.c.l.b16 %v2229
      %v2262 = vunpack.c.l.b16 %v2230
      %v2263 = vunpack.c.l.b16 %v2231
      %v2264 = vunpack.c.l.b16 %v2232
      %v2265 = vunpack.c.l.b16 %v2233
      %v2266 = vunpack.c.l.b16 %v2234
      %v2267 = vunpack.c.l.b16 %v2235
      %v2268 = vunpack.c.l.b16 %v2236
      %v2269 = vunpack.c.l.b16 %v2237
      %v2270 = vunpack.c.l.b16 %v2238
      %v2271 = vpack.c.b16 %v2256, %v2255
      %v2272 = vpack.c.b16 %v2258, %v2257
      %v2273 = vpack.c.b16 %v2260, %v2259
      %v2274 = vpack.c.b16 %v2262, %v2261
      %v2275 = vpack.c.b16 %v2264, %v2263
      %v2276 = vpack.c.b16 %v2266, %v2265
      %v2277 = vpack.c.b16 %v2268, %v2267
      %v2278 = vpack.c.b16 %v2270, %v2269
      %2287 = vmatprep.subr.bf16.mxu0 0
      %2288 = vmatpush1.bf16.msra.mxu0 %v2278
      %2289 = vmatprep.subr.bf16.mxu0 0
      %2290 = vmatpush1.bf16.msra.mxu0 %v2277
      %2291 = vmatprep.subr.bf16.mxu0 0
      %2292 = vmatpush1.bf16.msra.mxu0 %v2276
      %2293 = vmatprep.subr.bf16.mxu0 0
      %2294 = vmatpush1.bf16.msra.mxu0 %v2275
      %2295 = vmatprep.subr.bf16.mxu0 0
      %2296 = vmatpush1.bf16.msra.mxu0 %v2274
      %2297 = vmatprep.subr.bf16.mxu0 0
      %2298 = vmatpush1.bf16.msra.mxu0 %v2273
      %2299 = vmatprep.subr.bf16.mxu0 0
      %2300 = vmatpush1.bf16.msra.mxu0 %v2272
      %2301 = vmatprep.subr.bf16.mxu0 0
      %2302 = vmatpush1.bf16.msra.mxu0 %v2271
      %2303 = vmatprep.subr.bf16.mxu0 0
      %2304 = vmatpush2.bf16.msra.mxu0 0
      %2305 = vmatprep.subr.bf16.mxu0 0
      %2306 = vmatpush2.bf16.msra.mxu0 0
      %2307 = vmatprep.subr.bf16.mxu0 0
      %2308 = vmatpush2.bf16.msra.mxu0 0
      %2309 = vmatprep.subr.bf16.mxu0 0
      %2310 = vmatpush2.bf16.msra.mxu0 0
      %2311 = vmatprep.subr.bf16.mxu0 0
      %2312 = vmatpush2.bf16.msra.mxu0 0
      %2313 = vmatprep.subr.bf16.mxu0 0
      %2314 = vmatpush2.bf16.msra.mxu0 0
      %2315 = vmatprep.subr.bf16.mxu0 0
      %2316 = vmatpush2.bf16.msra.mxu0 0
      %2317 = vmatprep.subr.bf16.mxu0 0
      %2318 = vmatpush2.bf16.msra.mxu0 0
      %2319 = vmatprep.mubr.bf16.mxu0 0
      %2320 = vmatmul.mubr.bf16.gmra.mxu0 %v1576
      %v2321 = vpop.f32.mrf.mxu0
      %v2322 = vadd.f32 0.0, %v2321
      %v2323 = vpop.f32.mrf.mxu0
      %v2324 = vpop.f32.mrf.mxu0
      %v2325 = vadd.f32 0.0, %v2324
      %v2326 = vpop.f32.mrf.mxu0
      %2327 = vdwg.mxu0
      %v2328 = vadd.f32 %v2220, %v2322
      %v2329 = vadd.f32 %v2221, %v2325
      %s2330 = scalar_lea.vmem %s4, 448
      %v2331 = vld [vmem:[%s2330] sm:$0xf]
      %v2332 = vld [vmem:[%s2330 + $0x4] sm:$0xf]
      %v2333 = vld [vmem:[%s2330 + $0x8] sm:$0xf]
      %v2334 = vld [vmem:[%s2330 + $0xc] sm:$0xf]
      %v2335 = vld [vmem:[%s2330 + $0x10] sm:$0xf]
      %v2336 = vld [vmem:[%s2330 + $0x14] sm:$0xf]
      %v2337 = vld [vmem:[%s2330 + $0x18] sm:$0xf]
      %v2338 = vld [vmem:[%s2330 + $0x1c] sm:$0xf]
      %v2339 = vld [vmem:[%s2330 + $0x20] sm:$0xf]
      %v2340 = vld [vmem:[%s2330 + $0x24] sm:$0xf]
      %v2341 = vld [vmem:[%s2330 + $0x28] sm:$0xf]
      %v2342 = vld [vmem:[%s2330 + $0x2c] sm:$0xf]
      %v2343 = vld [vmem:[%s2330 + $0x30] sm:$0xf]
      %v2344 = vld [vmem:[%s2330 + $0x34] sm:$0xf]
      %v2345 = vld [vmem:[%s2330 + $0x38] sm:$0xf]
      %v2346 = vld [vmem:[%s2330 + $0x3c] sm:$0xf]
      %v2363 = vunpack.c.l.b16 %v2331
      %v2364 = vunpack.c.l.b16 %v2332
      %v2365 = vunpack.c.l.b16 %v2333
      %v2366 = vunpack.c.l.b16 %v2334
      %v2367 = vunpack.c.l.b16 %v2335
      %v2368 = vunpack.c.l.b16 %v2336
      %v2369 = vunpack.c.l.b16 %v2337
      %v2370 = vunpack.c.l.b16 %v2338
      %v2371 = vunpack.c.l.b16 %v2339
      %v2372 = vunpack.c.l.b16 %v2340
      %v2373 = vunpack.c.l.b16 %v2341
      %v2374 = vunpack.c.l.b16 %v2342
      %v2375 = vunpack.c.l.b16 %v2343
      %v2376 = vunpack.c.l.b16 %v2344
      %v2377 = vunpack.c.l.b16 %v2345
      %v2378 = vunpack.c.l.b16 %v2346
      %v2379 = vpack.c.b16 %v2364, %v2363
      %v2380 = vpack.c.b16 %v2366, %v2365
      %v2381 = vpack.c.b16 %v2368, %v2367
      %v2382 = vpack.c.b16 %v2370, %v2369
      %v2383 = vpack.c.b16 %v2372, %v2371
      %v2384 = vpack.c.b16 %v2374, %v2373
      %v2385 = vpack.c.b16 %v2376, %v2375
      %v2386 = vpack.c.b16 %v2378, %v2377
      %2395 = vmatprep.subr.bf16.mxu0 0
      %2396 = vmatpush1.bf16.msra.mxu0 %v2386
      %2397 = vmatprep.subr.bf16.mxu0 0
      %2398 = vmatpush1.bf16.msra.mxu0 %v2385
      %2399 = vmatprep.subr.bf16.mxu0 0
      %2400 = vmatpush1.bf16.msra.mxu0 %v2384
      %2401 = vmatprep.subr.bf16.mxu0 0
      %2402 = vmatpush1.bf16.msra.mxu0 %v2383
      %2403 = vmatprep.subr.bf16.mxu0 0
      %2404 = vmatpush1.bf16.msra.mxu0 %v2382
      %2405 = vmatprep.subr.bf16.mxu0 0
      %2406 = vmatpush1.bf16.msra.mxu0 %v2381
      %2407 = vmatprep.subr.bf16.mxu0 0
      %2408 = vmatpush1.bf16.msra.mxu0 %v2380
      %2409 = vmatprep.subr.bf16.mxu0 0
      %2410 = vmatpush1.bf16.msra.mxu0 %v2379
      %2411 = vmatprep.subr.bf16.mxu0 0
      %2412 = vmatpush2.bf16.msra.mxu0 0
      %2413 = vmatprep.subr.bf16.mxu0 0
      %2414 = vmatpush2.bf16.msra.mxu0 0
      %2415 = vmatprep.subr.bf16.mxu0 0
      %2416 = vmatpush2.bf16.msra.mxu0 0
      %2417 = vmatprep.subr.bf16.mxu0 0
      %2418 = vmatpush2.bf16.msra.mxu0 0
      %2419 = vmatprep.subr.bf16.mxu0 0
      %2420 = vmatpush2.bf16.msra.mxu0 0
      %2421 = vmatprep.subr.bf16.mxu0 0
      %2422 = vmatpush2.bf16.msra.mxu0 0
      %2423 = vmatprep.subr.bf16.mxu0 0
      %2424 = vmatpush2.bf16.msra.mxu0 0
      %2425 = vmatprep.subr.bf16.mxu0 0
      %2426 = vmatpush2.bf16.msra.mxu0 0
      %2427 = vmatprep.mubr.bf16.mxu0 0
      %2428 = vmatmul.mubr.bf16.gmra.mxu0 %v1577
      %v2429 = vpop.f32.mrf.mxu0
      %v2430 = vadd.f32 0.0, %v2429
      %v2431 = vpop.f32.mrf.mxu0
      %v2432 = vpop.f32.mrf.mxu0
      %v2433 = vadd.f32 0.0, %v2432
      %v2434 = vpop.f32.mrf.mxu0
      %2435 = vdwg.mxu0
      %v2436 = vadd.f32 %v2328, %v2430
      %v2437 = vadd.f32 %v2329, %v2433
      %s2438 = scalar_lea.vmem %s4, 512
      %v2439 = vld [vmem:[%s2438] sm:$0xf]
      %v2440 = vld [vmem:[%s2438 + $0x4] sm:$0xf]
      %v2441 = vld [vmem:[%s2438 + $0x8] sm:$0xf]
      %v2442 = vld [vmem:[%s2438 + $0xc] sm:$0xf]
      %v2443 = vld [vmem:[%s2438 + $0x10] sm:$0xf]
      %v2444 = vld [vmem:[%s2438 + $0x14] sm:$0xf]
      %v2445 = vld [vmem:[%s2438 + $0x18] sm:$0xf]
      %v2446 = vld [vmem:[%s2438 + $0x1c] sm:$0xf]
      %v2447 = vld [vmem:[%s2438 + $0x20] sm:$0xf]
      %v2448 = vld [vmem:[%s2438 + $0x24] sm:$0xf]
      %v2449 = vld [vmem:[%s2438 + $0x28] sm:$0xf]
      %v2450 = vld [vmem:[%s2438 + $0x2c] sm:$0xf]
      %v2451 = vld [vmem:[%s2438 + $0x30] sm:$0xf]
      %v2452 = vld [vmem:[%s2438 + $0x34] sm:$0xf]
      %v2453 = vld [vmem:[%s2438 + $0x38] sm:$0xf]
      %v2454 = vld [vmem:[%s2438 + $0x3c] sm:$0xf]
      %v2471 = vunpack.c.l.b16 %v2439
      %v2472 = vunpack.c.l.b16 %v2440
      %v2473 = vunpack.c.l.b16 %v2441
      %v2474 = vunpack.c.l.b16 %v2442
      %v2475 = vunpack.c.l.b16 %v2443
      %v2476 = vunpack.c.l.b16 %v2444
      %v2477 = vunpack.c.l.b16 %v2445
      %v2478 = vunpack.c.l.b16 %v2446
      %v2479 = vunpack.c.l.b16 %v2447
      %v2480 = vunpack.c.l.b16 %v2448
      %v2481 = vunpack.c.l.b16 %v2449
      %v2482 = vunpack.c.l.b16 %v2450
      %v2483 = vunpack.c.l.b16 %v2451
      %v2484 = vunpack.c.l.b16 %v2452
      %v2485 = vunpack.c.l.b16 %v2453
      %v2486 = vunpack.c.l.b16 %v2454
      %v2487 = vpack.c.b16 %v2472, %v2471
      %v2488 = vpack.c.b16 %v2474, %v2473
      %v2489 = vpack.c.b16 %v2476, %v2475
      %v2490 = vpack.c.b16 %v2478, %v2477
      %v2491 = vpack.c.b16 %v2480, %v2479
      %v2492 = vpack.c.b16 %v2482, %v2481
      %v2493 = vpack.c.b16 %v2484, %v2483
      %v2494 = vpack.c.b16 %v2486, %v2485
      %2503 = vmatprep.subr.bf16.mxu0 0
      %2504 = vmatpush1.bf16.msra.mxu0 %v2494
      %2505 = vmatprep.subr.bf16.mxu0 0
      %2506 = vmatpush1.bf16.msra.mxu0 %v2493
      %2507 = vmatprep.subr.bf16.mxu0 0
      %2508 = vmatpush1.bf16.msra.mxu0 %v2492
      %2509 = vmatprep.subr.bf16.mxu0 0
      %2510 = vmatpush1.bf16.msra.mxu0 %v2491
      %2511 = vmatprep.subr.bf16.mxu0 0
      %2512 = vmatpush1.bf16.msra.mxu0 %v2490
      %2513 = vmatprep.subr.bf16.mxu0 0
      %2514 = vmatpush1.bf16.msra.mxu0 %v2489
      %2515 = vmatprep.subr.bf16.mxu0 0
      %2516 = vmatpush1.bf16.msra.mxu0 %v2488
      %2517 = vmatprep.subr.bf16.mxu0 0
      %2518 = vmatpush1.bf16.msra.mxu0 %v2487
      %2519 = vmatprep.subr.bf16.mxu0 0
      %2520 = vmatpush2.bf16.msra.mxu0 0
      %2521 = vmatprep.subr.bf16.mxu0 0
      %2522 = vmatpush2.bf16.msra.mxu0 0
      %2523 = vmatprep.subr.bf16.mxu0 0
      %2524 = vmatpush2.bf16.msra.mxu0 0
      %2525 = vmatprep.subr.bf16.mxu0 0
      %2526 = vmatpush2.bf16.msra.mxu0 0
      %2527 = vmatprep.subr.bf16.mxu0 0
      %2528 = vmatpush2.bf16.msra.mxu0 0
      %2529 = vmatprep.subr.bf16.mxu0 0
      %2530 = vmatpush2.bf16.msra.mxu0 0
      %2531 = vmatprep.subr.bf16.mxu0 0
      %2532 = vmatpush2.bf16.msra.mxu0 0
      %2533 = vmatprep.subr.bf16.mxu0 0
      %2534 = vmatpush2.bf16.msra.mxu0 0
      %2535 = vmatprep.mubr.bf16.mxu0 0
      %2536 = vmatmul.mubr.bf16.gmra.mxu0 %v1578
      %v2537 = vpop.f32.mrf.mxu0
      %v2538 = vadd.f32 0.0, %v2537
      %v2539 = vpop.f32.mrf.mxu0
      %v2540 = vpop.f32.mrf.mxu0
      %v2541 = vadd.f32 0.0, %v2540
      %v2542 = vpop.f32.mrf.mxu0
      %2543 = vdwg.mxu0
      %v2544 = vadd.f32 %v2436, %v2538
      %v2545 = vadd.f32 %v2437, %v2541
      %v2546 = vld [vmem:[%s5] sm:$0x1]
      %v2548 = vlaneseq
      %v2549 = vshrl.u32 %v2548, 7
      %v2550 = vsub.s32 0, %v2549
      %v2551 = vrot.slane %v2546, %v2550
      %v2553 = vadd.f32 %v2544, %v2551
      %v2554 = vadd.f32 %v2545, %v2551
      %v2555 = vadd.f32 %v2553, %v2554
      %v2556 = vrot.slane %v2555, 4
      %v2557 = vadd.f32 %v2555, %v2556
      %v2558 = vrot.slane %v2557, 2
      %v2559 = vadd.f32 %v2557, %v2558
      %v2560 = vrot.slane %v2559, 1
      %v2561 = vadd.f32 %v2559, %v2560
      %v2562 = vmul.f32 %v2561, %v1444
      %v2563 = vsub.f32 %v2553, %v2562
      %v2564 = vsub.f32 %v2554, %v2562
      %v2565 = vmul.f32 %v2563, %v2563
      %v2566 = vmul.f32 %v2564, %v2564
      %v2567 = vadd.f32 %v2565, %v2566
      %v2568 = vrot.slane %v2567, 4
      %v2569 = vadd.f32 %v2567, %v2568
      %v2570 = vrot.slane %v2569, 2
      %v2571 = vadd.f32 %v2569, %v2570
      %v2572 = vrot.slane %v2571, 1
      %v2573 = vadd.f32 %v2571, %v2572
      %v2574 = vmul.f32 %v2573, %v1444
      %v2575 = vadd.f32 %v2574, 1e-05
      %v2576 = vrsqrt.pop %v2575
      %v2577 = vmul.f32 %v2563, %v2576
      %v2578 = vmul.f32 %v2564, %v2576
      %v2579 = vadd.f32 %v253, %v2577
      %v2580 = vadd.f32 %v254, %v2578
      %2581 = vst [vmem:[%s251] sm:$0xff] %v2579
      %2582 = vst [vmem:[%s251 + $0x8] sm:$0xff] %v2580
      %p2583 = scmp.lt.s32.totalorder %s17, 1
      %s2584 = scalar_select %p2583, %s17, 1
      %s2585 = smul.addr %s2584, 2
      %s2586 = smul.addr %s2585, 8
      %s2587 = scalar_lea.vmem %s6, %s2586
      // Predicated region
      $region45: #{resnet_forward.15} parent=43 // pred_check
        %p2588 = pneg %p166
      $region46: #{resnet_forward.15} parent=43 // pred_check_branch
        %2590 = sbr.rel (%p2588) target = $region48
      $region47: #{resnet_forward.15} parent=43 // pred_region
        _
      $region48: #{resnet_forward.15} parent=43 // pred_fallthru
        _
    $region44: #{resnet_forward.15} parent=5 // pred_fallthru
      _
    %p2591 = scmp.le.s32.totalorder 2, %s12
    // Predicated region
    $region49: #{resnet_forward.15} parent=5 // pred_check
      %p2592 = pneg %p2591
    $region50: #{resnet_forward.15} parent=5 // pred_check_branch
      %2594 = sbr.rel (%p2592) target = $region52
    $region51: #{resnet_forward.15} parent=5 // pred_region
      %s2595 = ssub.s32 %s12, 2
      // Predicated region
      $region53: #{resnet_forward.15} parent=51 // pred_check
        %p2596 = pneg %p172
      $region54: #{resnet_forward.15} parent=51 // pred_check_branch
        %2598 = sbr.rel (%p2596) target = $region56
      $region55: #{resnet_forward.15} parent=51 // pred_region
        %p2599 = scmp.lt.s32.totalorder %s18, 1
        %s2600 = scalar_select %p2599, %s18, 1
        %s2601 = smul.addr %s2600, 2
        %s2602 = smul.addr %s2601, 8
        %s2603 = scalar_lea.vmem %s6, %s2602
      $region56: #{resnet_forward.15} parent=51 // pred_fallthru
        _
    $region52: #{resnet_forward.15} parent=5 // pred_fallthru
      _
  $region6: #{resnet_forward.15} parent=0 // loop_footer
    %s16 = sadd.s32 1, %s12
  $region7: #{resnet_forward.15} parent=0 // loop_footer_branch
    %11 = sbr.rel target = $region3
  $region8: #{resnet_forward.15} parent=0 // loop_exit
    _

// kernel: resnet_forward.21
$region0: #{resnet_forward.21}
  #allocation0 [shape = 'u32[]', space=smem, size = 0x4, offset = 0x4, fixed_abs, tag = 'smem constant byte address 0x4 - core index']
  #allocation1 [shape = 'u32[144,128]{1,0:T(1,128)}', space=vmem, size = 0x12000, scoped, tag = 'internal scratch']
  %s0 = inlined_call_operand.vmem [shape: bf16[2,64,1188], index: 0, kind: input, shape index: {}]
  %s1 = inlined_call_operand.vmem [shape: bf16[1188,64], index: 1, kind: input, shape index: {}]
  %s2 = inlined_call_operand.vmem [shape: f32[1,64], index: 2, kind: input, shape index: {}]
  %s3 = inlined_call_operand.vmem [shape: f32[2,64,64], index: 3, kind: output, shape index: {}]
  %s4 = sld [smem:[#allocation0]]
  $region45: #{resnet_forward.21} parent=0
    _
  %s6 = ssub.s32 1, %s4
  %s7 = scalar_select 0, %s6, %s4
  loop: start=0, step=1, limit=4
  $region2: #{resnet_forward.21} parent=0 // loop_pre_header
    _
  $region3: #{resnet_forward.21} parent=0 // loop_header
    %s9 = sphi 0, %s13
    %p10 = scmp.ge.s32.totalorder %s9, 4
    %s19 = sphi 0, %s21
    %s22 = sphi 0, %s19
    %s23 = sphi 0, %s22
    %s39 = sphi 0, %s23
    %s43 = sphi 0, %s43
    %s45 = sphi 0, %s43
    %s46 = sphi 0, %s45
    %s60 = sphi 0, %s46
    %s64 = sphi 0, %s64
    %s66 = sphi 0, %s64
    %s67 = sphi 0, %s66
    %s81 = sphi 0, %s67
    %s87 = sphi 0, %s89
    %s90 = sphi 0, %s87
    %s91 = sphi 0, %s90
    %s107 = sphi 0, %s91
  $region4: #{resnet_forward.21} parent=0 // loop_header_branch
    %12 = sbr.rel (%p10) target = $region8
  $region5: #{resnet_forward.21} parent=0 // loop_body
    %s14 = ssub.s32 %s9, 1
    %s15 = ssub.s32 %s9, 2
    %s16 = sadd.s32 %s9, 1
    %s17 = ssub.s32 %s9, %s16
    %p18 = scmp.eq.s32.totalorder %s17, 0
    %s20 = sadd.s32 %s19, 1
    %s21 = scalar_select %p18, %s19, %s20
    %p24 = pneg %p18
    %p25 = scmp.eq.s32.totalorder %s9, 1
    %p26 = por %p24, %p25
    %p27 = scmp.ne.s32.totalorder %s19, %s22
    %p28 = scmp.eq.s32.totalorder %s9, 0
    %p29 = por %p27, %p28
    %p30 = scmp.ne.s32.totalorder %s19, %s22
    %p31 = scmp.eq.s32.totalorder %s14, 1
    %p32 = por %p30, %p31
    %p33 = scmp.ne.s32.totalorder %s22, %s23
    %p34 = scmp.eq.s32.totalorder %s14, 0
    %p35 = por %p33, %p34
    %p36 = scmp.ne.s32.totalorder %s22, %s23
    %p37 = scmp.eq.s32.totalorder %s15, 1
    %p38 = por %p36, %p37
    %p40 = scmp.ne.s32.totalorder %s23, %s39
    %p41 = scmp.eq.s32.totalorder %s15, 0
    %p42 = por %p40, %p41
    %s44 = sadd.s32 %s43, 1
    %p47 = scmp.eq.s32.totalorder %s9, 1
    %p48 = scmp.ne.s32.totalorder %s43, %s45
    %p49 = scmp.eq.s32.totalorder %s9, 0
    %p50 = por %p48, %p49
    %p51 = scmp.ne.s32.totalorder %s43, %s45
    %p52 = scmp.eq.s32.totalorder %s14, 1
    %p53 = por %p51, %p52
    %p54 = scmp.ne.s32.totalorder %s45, %s46
    %p55 = scmp.eq.s32.totalorder %s14, 0
    %p56 = por %p54, %p55
    %p57 = scmp.ne.s32.totalorder %s45, %s46
    %p58 = scmp.eq.s32.totalorder %s15, 1
    %p59 = por %p57, %p58
    %p61 = scmp.ne.s32.totalorder %s46, %s60
    %p62 = scmp.eq.s32.totalorder %s15, 0
    %p63 = por %p61, %p62
    %s65 = sadd.s32 %s64, 1
    %p68 = scmp.eq.s32.totalorder %s9, 1
    %p69 = scmp.ne.s32.totalorder %s64, %s66
    %p70 = scmp.eq.s32.totalorder %s9, 0
    %p71 = por %p69, %p70
    %p72 = scmp.ne.s32.totalorder %s64, %s66
    %p73 = scmp.eq.s32.totalorder %s14, 1
    %p74 = por %p72, %p73
    %p75 = scmp.ne.s32.totalorder %s66, %s67
    %p76 = scmp.eq.s32.totalorder %s14, 0
    %p77 = por %p75, %p76
    %p78 = scmp.ne.s32.totalorder %s66, %s67
    %p79 = scmp.eq.s32.totalorder %s15, 1
    %p80 = por %p78, %p79
    %p82 = scmp.ne.s32.totalorder %s67, %s81
    %p83 = scmp.eq.s32.totalorder %s15, 0
    %p84 = por %p82, %p83
    %s85 = ssub.s32 %s9, %s16
    %p86 = scmp.eq.s32.totalorder %s85, 0
    %s88 = sadd.s32 %s87, 1
    %s89 = scalar_select %p86, %s87, %s88
    %p92 = pneg %p86
    %p93 = scmp.eq.s32.totalorder %s9, 1
    %p94 = por %p92, %p93
    %p95 = scmp.ne.s32.totalorder %s87, %s90
    %p96 = scmp.eq.s32.totalorder %s9, 0
    %p97 = por %p95, %p96
    %p98 = scmp.ne.s32.totalorder %s87, %s90
    %p99 = scmp.eq.s32.totalorder %s14, 1
    %p100 = por %p98, %p99
    %p101 = scmp.ne.s32.totalorder %s90, %s91
    %p102 = scmp.eq.s32.totalorder %s14, 0
    %p103 = por %p101, %p102
    %p104 = scmp.ne.s32.totalorder %s90, %s91
    %p105 = scmp.eq.s32.totalorder %s15, 1
    %p106 = por %p104, %p105
    %p108 = scmp.ne.s32.totalorder %s91, %s107
    %p109 = scmp.eq.s32.totalorder %s15, 0
    %p110 = por %p108, %p109
    %p111 = scmp.le.s32.totalorder 1, %s9
    %p112 = scmp.lt.s32.totalorder %s9, 3
    %p113 = pnand %p111, %p112
    %p114 = pneg %p113
    // Predicated region
    $region9: #{resnet_forward.21} parent=5 // pred_check
      _
    $region10: #{resnet_forward.21} parent=5 // pred_check_branch
      %116 = sbr.rel (%p113) target = $region12
    $region11: #{resnet_forward.21} parent=5 // pred_region
      %s117 = ssub.s32 %s9, 1
      // Predicated region
      $region13: #{resnet_forward.21} parent=11 // pred_check
        %p118 = pneg %p56
      $region14: #{resnet_forward.21} parent=11 // pred_check_branch
        %120 = sbr.rel (%p118) target = $region16
      $region15: #{resnet_forward.21} parent=11 // pred_region
        _
      $region16: #{resnet_forward.21} parent=11 // pred_fallthru
        _
      // Predicated region
      $region17: #{resnet_forward.21} parent=11 // pred_check
        %p121 = pneg %p77
      $region18: #{resnet_forward.21} parent=11 // pred_check_branch
        %123 = sbr.rel (%p121) target = $region20
      $region19: #{resnet_forward.21} parent=11 // pred_region
        _
      $region20: #{resnet_forward.21} parent=11 // pred_fallthru
        _
    $region12: #{resnet_forward.21} parent=5 // pred_fallthru
      _
    %p124 = scmp.lt.s32.totalorder %s9, 2
    // Predicated region
    $region21: #{resnet_forward.21} parent=5 // pred_check
      %p125 = pneg %p124
    $region22: #{resnet_forward.21} parent=5 // pred_check_branch
      %127 = sbr.rel (%p125) target = $region24
    $region23: #{resnet_forward.21} parent=5 // pred_region
      // Predicated region
      $region25: #{resnet_forward.21} parent=23 // pred_check
        %p128 = pneg %p29
      $region26: #{resnet_forward.21} parent=23 // pred_check_branch
        %130 = sbr.rel (%p128) target = $region28
      $region27: #{resnet_forward.21} parent=23 // pred_region
        %p131 = scmp.lt.s32.totalorder %s9, 1
        %s132 = scalar_select %p131, %s9, 1
        %s133 = smul.addr %s132, 80
        %s134 = smul.addr %s133, 4
        %s135 = scalar_lea.vmem %s0, %s134
      $region28: #{resnet_forward.21} parent=23 // pred_fallthru
        _
    $region24: #{resnet_forward.21} parent=5 // pred_fallthru
      _
    %p136 = scmp.le.s32.totalorder 1, %s9
    %p137 = scmp.lt.s32.totalorder %s9, 3
    %p138 = pnand %p136, %p137
    %p139 = pneg %p138
    // Predicated region
    $region29: #{resnet_forward.21} parent=5 // pred_check
      _
    $region30: #{resnet_forward.21} parent=5 // pred_check_branch
      %141 = sbr.rel (%p138) target = $region32
    $region31: #{resnet_forward.21} parent=5 // pred_region
      %s142 = ssub.s32 %s9, 1
      %p143 = scmp.lt.s32.totalorder %s14, 1
      %s144 = scalar_select %p143, %s14, 1
      %s145 = smul.addr %s144, 80
      %s146 = smul.addr %s145, 4
      %s147 = scalar_lea.vmem %s0, %s146
      %p148 = pneg %p35
      %p149 = pneg %p32
      %p150 = pneg %p56
      %p151 = pneg %p53
      %p152 = pneg %p77
      %p153 = pneg %p74
      %p154 = pneg %p103
      %p155 = pneg %p100
      %p156 = scmp.lt.s32.totalorder %s14, 1
      %s157 = scalar_select %p156, %s14, 1
      %s158 = smul.addr %s157, 8
      %s159 = smul.addr %s158, 8
      %s160 = scalar_lea.vmem %s3, %s159
      %p161 = scmp.lt.s32.totalorder %s14, 1
      %s162 = scalar_select %p161, %s14, 1
      %s163 = smul.addr %s162, 80
      %s164 = smul.addr %s163, 4
      %s165 = scalar_lea.vmem %s0, %s164
      %p166 = scmp.lt.s32.totalorder %s14, 1
      %s167 = scalar_select %p166, %s14, 1
      %s168 = smul.addr %s167, 8
      %s169 = smul.addr %s168, 8
      %s170 = scalar_lea.vmem %s3, %s169
      %v172 = vld [vmem:[%s165] sm:$0xff]
      %v173 = vld [vmem:[%s165 + $0x8] sm:$0xff]
      %v174 = vld [vmem:[%s165 + $0x10] sm:$0xff]
      %v175 = vld [vmem:[%s165 + $0x18] sm:$0xff]
      %v176 = vld [vmem:[%s165 + $0x20] sm:$0xff]
      %v177 = vld [vmem:[%s165 + $0x28] sm:$0xff]
      %v178 = vld [vmem:[%s165 + $0x30] sm:$0xff]
      %v179 = vld [vmem:[%s165 + $0x38] sm:$0xff]
      %v180 = vld [vmem:[%s165 + $0x40] sm:$0xff]
      %v181 = vld [vmem:[%s165 + $0x48] sm:$0xff]
      %v182 = vld [vmem:[%s165 + $0x50] sm:$0xff]
      %v183 = vld [vmem:[%s165 + $0x58] sm:$0xff]
      %v184 = vld [vmem:[%s165 + $0x60] sm:$0xff]
      %v185 = vld [vmem:[%s165 + $0x68] sm:$0xff]
      %v186 = vld [vmem:[%s165 + $0x70] sm:$0xff]
      %v187 = vld [vmem:[%s165 + $0x78] sm:$0xff]
      %v188 = vld [vmem:[%s165 + $0x80] sm:$0xff]
      %v189 = vld [vmem:[%s165 + $0x88] sm:$0xff]
      %v190 = vld [vmem:[%s165 + $0x90] sm:$0xff]
      %v191 = vld [vmem:[%s165 + $0x98] sm:$0xff]
      %v192 = vld [vmem:[%s165 + $0xa0] sm:$0xff]
      %v193 = vld [vmem:[%s165 + $0xa8] sm:$0xff]
      %v194 = vld [vmem:[%s165 + $0xb0] sm:$0xff]
      %v195 = vld [vmem:[%s165 + $0xb8] sm:$0xff]
      %v196 = vld [vmem:[%s165 + $0xc0] sm:$0xff]
      %v197 = vld [vmem:[%s165 + $0xc8] sm:$0xff]
      %v198 = vld [vmem:[%s165 + $0xd0] sm:$0xff]
      %v199 = vld [vmem:[%s165 + $0xd8] sm:$0xff]
      %v200 = vld [vmem:[%s165 + $0xe0] sm:$0xff]
      %v201 = vld [vmem:[%s165 + $0xe8] sm:$0xff]
      %v202 = vld [vmem:[%s165 + $0xf0] sm:$0xff]
      %v203 = vld [vmem:[%s165 + $0xf8] sm:$0xff]
      %v204 = vld [vmem:[%s165 + $0x100] sm:$0xff]
      %v205 = vld [vmem:[%s165 + $0x108] sm:$0xff]
      %v206 = vld [vmem:[%s165 + $0x110] sm:$0xff]
      %v207 = vld [vmem:[%s165 + $0x118] sm:$0xff]
      %v208 = vld [vmem:[%s165 + $0x120] sm:$0xff]
      %v209 = vld [vmem:[%s165 + $0x128] sm:$0xff]
      %v210 = vld [vmem:[%s165 + $0x130] sm:$0xff]
      %v211 = vld [vmem:[%s165 + $0x138] sm:$0xff]
      %v212 = vld [vmem:[%s1] sm:$0xf]
      %v213 = vld [vmem:[%s1 + $0x4] sm:$0xf]
      %v214 = vld [vmem:[%s1 + $0x8] sm:$0xf]
      %v215 = vld [vmem:[%s1 + $0xc] sm:$0xf]
      %v216 = vld [vmem:[%s1 + $0x10] sm:$0xf]
      %v217 = vld [vmem:[%s1 + $0x14] sm:$0xf]
      %v218 = vld [vmem:[%s1 + $0x18] sm:$0xf]
      %v219 = vld [vmem:[%s1 + $0x1c] sm:$0xf]
      %v220 = vld [vmem:[%s1 + $0x20] sm:$0xf]
      %v221 = vld [vmem:[%s1 + $0x24] sm:$0xf]
      %v222 = vld [vmem:[%s1 + $0x28] sm:$0xf]
      %v223 = vld [vmem:[%s1 + $0x2c] sm:$0xf]
      %v224 = vld [vmem:[%s1 + $0x30] sm:$0xf]
      %v225 = vld [vmem:[%s1 + $0x34] sm:$0xf]
      %v226 = vld [vmem:[%s1 + $0x38] sm:$0xf]
      %v227 = vld [vmem:[%s1 + $0x3c] sm:$0xf]
      %v228 = vld [vmem:[%s1 + $0x40] sm:$0xf]
      %v229 = vld [vmem:[%s1 + $0x44] sm:$0xf]
      %v230 = vld [vmem:[%s1 + $0x48] sm:$0xf]
      %v231 = vld [vmem:[%s1 + $0x4c] sm:$0xf]
      %v232 = vld [vmem:[%s1 + $0x50] sm:$0xf]
      %v233 = vld [vmem:[%s1 + $0x54] sm:$0xf]
      %v234 = vld [vmem:[%s1 + $0x58] sm:$0xf]
      %v235 = vld [vmem:[%s1 + $0x5c] sm:$0xf]
      %v236 = vld [vmem:[%s1 + $0x60] sm:$0xf]
      %v237 = vld [vmem:[%s1 + $0x64] sm:$0xf]
      %v238 = vld [vmem:[%s1 + $0x68] sm:$0xf]
      %v239 = vld [vmem:[%s1 + $0x6c] sm:$0xf]
      %v240 = vld [vmem:[%s1 + $0x70] sm:$0xf]
      %v241 = vld [vmem:[%s1 + $0x74] sm:$0xf]
      %v242 = vld [vmem:[%s1 + $0x78] sm:$0xf]
      %v243 = vld [vmem:[%s1 + $0x7c] sm:$0xf]
      %v244 = vld [vmem:[%s1 + $0x80] sm:$0xf]
      %v245 = vld [vmem:[%s1 + $0x84] sm:$0xf]
      %v246 = vld [vmem:[%s1 + $0x88] sm:$0xf]
      %v247 = vld [vmem:[%s1 + $0x8c] sm:$0xf]
      %v248 = vld [vmem:[%s1 + $0x90] sm:$0xf]
      %v249 = vld [vmem:[%s1 + $0x94] sm:$0xf]
      %v250 = vld [vmem:[%s1 + $0x98] sm:$0xf]
      %v251 = vld [vmem:[%s1 + $0x9c] sm:$0xf]
      %v252 = vld [vmem:[%s1 + $0xa0] sm:$0xf]
      %v253 = vld [vmem:[%s1 + $0xa4] sm:$0xf]
      %v254 = vld [vmem:[%s1 + $0xa8] sm:$0xf]
      %v255 = vld [vmem:[%s1 + $0xac] sm:$0xf]
      %v256 = vld [vmem:[%s1 + $0xb0] sm:$0xf]
      %v257 = vld [vmem:[%s1 + $0xb4] sm:$0xf]
      %v258 = vld [vmem:[%s1 + $0xb8] sm:$0xf]
      %v259 = vld [vmem:[%s1 + $0xbc] sm:$0xf]
      %v260 = vld [vmem:[%s1 + $0xc0] sm:$0xf]
      %v261 = vld [vmem:[%s1 + $0xc4] sm:$0xf]
      %v262 = vld [vmem:[%s1 + $0xc8] sm:$0xf]
      %v263 = vld [vmem:[%s1 + $0xcc] sm:$0xf]
      %v264 = vld [vmem:[%s1 + $0xd0] sm:$0xf]
      %v265 = vld [vmem:[%s1 + $0xd4] sm:$0xf]
      %v266 = vld [vmem:[%s1 + $0xd8] sm:$0xf]
      %v267 = vld [vmem:[%s1 + $0xdc] sm:$0xf]
      %v268 = vld [vmem:[%s1 + $0xe0] sm:$0xf]
      %v269 = vld [vmem:[%s1 + $0xe4] sm:$0xf]
      %v270 = vld [vmem:[%s1 + $0xe8] sm:$0xf]
      %v271 = vld [vmem:[%s1 + $0xec] sm:$0xf]
      %v272 = vld [vmem:[%s1 + $0xf0] sm:$0xf]
      %v273 = vld [vmem:[%s1 + $0xf4] sm:$0xf]
      %v274 = vld [vmem:[%s1 + $0xf8] sm:$0xf]
      %v275 = vld [vmem:[%s1 + $0xfc] sm:$0xf]
      %v276 = vld [vmem:[%s1 + $0x100] sm:$0xf]
      %v277 = vld [vmem:[%s1 + $0x104] sm:$0xf]
      %v278 = vld [vmem:[%s1 + $0x108] sm:$0xf]
      %v279 = vld [vmem:[%s1 + $0x10c] sm:$0xf]
      %v280 = vld [vmem:[%s1 + $0x110] sm:$0xf]
      %v281 = vld [vmem:[%s1 + $0x114] sm:$0xf]
      %v282 = vld [vmem:[%s1 + $0x118] sm:$0xf]
      %v283 = vld [vmem:[%s1 + $0x11c] sm:$0xf]
      %v284 = vld [vmem:[%s1 + $0x120] sm:$0xf]
      %v285 = vld [vmem:[%s1 + $0x124] sm:$0xf]
      %v286 = vld [vmem:[%s1 + $0x128] sm:$0xf]
      %v287 = vld [vmem:[%s1 + $0x12c] sm:$0xf]
      %v288 = vld [vmem:[%s1 + $0x130] sm:$0xf]
      %v289 = vld [vmem:[%s1 + $0x134] sm:$0xf]
      %v290 = vld [vmem:[%s1 + $0x138] sm:$0xf]
      %v291 = vld [vmem:[%s1 + $0x13c] sm:$0xf]
      %v292 = vld [vmem:[%s1 + $0x140] sm:$0xf]
      %v293 = vld [vmem:[%s1 + $0x144] sm:$0xf]
      %v294 = vld [vmem:[%s1 + $0x148] sm:$0xf]
      %v295 = vld [vmem:[%s1 + $0x14c] sm:$0xf]
      %v296 = vld [vmem:[%s1 + $0x150] sm:$0xf]
      %v297 = vld [vmem:[%s1 + $0x154] sm:$0xf]
      %v298 = vld [vmem:[%s1 + $0x158] sm:$0xf]
      %v299 = vld [vmem:[%s1 + $0x15c] sm:$0xf]
      %v300 = vld [vmem:[%s1 + $0x160] sm:$0xf]
      %v301 = vld [vmem:[%s1 + $0x164] sm:$0xf]
      %v302 = vld [vmem:[%s1 + $0x168] sm:$0xf]
      %v303 = vld [vmem:[%s1 + $0x16c] sm:$0xf]
      %v304 = vld [vmem:[%s1 + $0x170] sm:$0xf]
      %v305 = vld [vmem:[%s1 + $0x174] sm:$0xf]
      %v306 = vld [vmem:[%s1 + $0x178] sm:$0xf]
      %v307 = vld [vmem:[%s1 + $0x17c] sm:$0xf]
      %v308 = vld [vmem:[%s1 + $0x180] sm:$0xf]
      %v309 = vld [vmem:[%s1 + $0x184] sm:$0xf]
      %v310 = vld [vmem:[%s1 + $0x188] sm:$0xf]
      %v311 = vld [vmem:[%s1 + $0x18c] sm:$0xf]
      %v312 = vld [vmem:[%s1 + $0x190] sm:$0xf]
      %v313 = vld [vmem:[%s1 + $0x194] sm:$0xf]
      %v314 = vld [vmem:[%s1 + $0x198] sm:$0xf]
      %v315 = vld [vmem:[%s1 + $0x19c] sm:$0xf]
      %v316 = vld [vmem:[%s1 + $0x1a0] sm:$0xf]
      %v317 = vld [vmem:[%s1 + $0x1a4] sm:$0xf]
      %v318 = vld [vmem:[%s1 + $0x1a8] sm:$0xf]
      %v319 = vld [vmem:[%s1 + $0x1ac] sm:$0xf]
      %v320 = vld [vmem:[%s1 + $0x1b0] sm:$0xf]
      %v321 = vld [vmem:[%s1 + $0x1b4] sm:$0xf]
      %v322 = vld [vmem:[%s1 + $0x1b8] sm:$0xf]
      %v323 = vld [vmem:[%s1 + $0x1bc] sm:$0xf]
      %v324 = vld [vmem:[%s1 + $0x1c0] sm:$0xf]
      %v325 = vld [vmem:[%s1 + $0x1c4] sm:$0xf]
      %v326 = vld [vmem:[%s1 + $0x1c8] sm:$0xf]
      %v327 = vld [vmem:[%s1 + $0x1cc] sm:$0xf]
      %v328 = vld [vmem:[%s1 + $0x1d0] sm:$0xf]
      %v329 = vld [vmem:[%s1 + $0x1d4] sm:$0xf]
      %v330 = vld [vmem:[%s1 + $0x1d8] sm:$0xf]
      %v331 = vld [vmem:[%s1 + $0x1dc] sm:$0xf]
      %v332 = vld [vmem:[%s1 + $0x1e0] sm:$0xf]
      %v333 = vld [vmem:[%s1 + $0x1e4] sm:$0xf]
      %v334 = vld [vmem:[%s1 + $0x1e8] sm:$0xf]
      %v335 = vld [vmem:[%s1 + $0x1ec] sm:$0xf]
      %v336 = vld [vmem:[%s1 + $0x1f0] sm:$0xf]
      %v337 = vld [vmem:[%s1 + $0x1f4] sm:$0xf]
      %v338 = vld [vmem:[%s1 + $0x1f8] sm:$0xf]
      %v339 = vld [vmem:[%s1 + $0x1fc] sm:$0xf]
      %v340 = vld [vmem:[%s1 + $0x200] sm:$0xf]
      %v341 = vld [vmem:[%s1 + $0x204] sm:$0xf]
      %v342 = vld [vmem:[%s1 + $0x208] sm:$0xf]
      %v343 = vld [vmem:[%s1 + $0x20c] sm:$0xf]
      %v344 = vld [vmem:[%s1 + $0x210] sm:$0xf]
      %v345 = vld [vmem:[%s1 + $0x214] sm:$0xf]
      %v346 = vld [vmem:[%s1 + $0x218] sm:$0xf]
      %v347 = vld [vmem:[%s1 + $0x21c] sm:$0xf]
      %v348 = vld [vmem:[%s1 + $0x220] sm:$0xf]
      %v349 = vld [vmem:[%s1 + $0x224] sm:$0xf]
      %v350 = vld [vmem:[%s1 + $0x228] sm:$0xf]
      %v351 = vld [vmem:[%s1 + $0x22c] sm:$0xf]
      %v352 = vld [vmem:[%s1 + $0x230] sm:$0xf]
      %v353 = vld [vmem:[%s1 + $0x234] sm:$0xf]
      %v354 = vld [vmem:[%s1 + $0x238] sm:$0xf]
      %v355 = vld [vmem:[%s1 + $0x23c] sm:$0xf]
      %v356 = vld [vmem:[%s1 + $0x240] sm:$0xf]
      %v357 = vld [vmem:[%s1 + $0x244] sm:$0xf]
      %v358 = vld [vmem:[%s1 + $0x248] sm:$0xf]
      %v359 = vld [vmem:[%s1 + $0x24c] sm:$0xf]
      %v360 = vld [vmem:[%s1 + $0x250] sm:$0x3]
      %v361 = vld [vmem:[%s2] sm:$0x1]
      %v363 = vlaneseq
      %v364 = vshrl.u32 %v363, 7
      %v365 = vsub.s32 0, %v364
      %v366 = vrot.slane %v361, %v365
      %v408 = vunpack.c.l.b16 %v172
      %v409 = vunpack.c.h.b16 %v172
      %v410 = vunpack.c.l.b16 %v173
      %v411 = vunpack.c.h.b16 %v173
      %v412 = vunpack.c.l.b16 %v174
      %v413 = vunpack.c.h.b16 %v174
      %v414 = vunpack.c.l.b16 %v175
      %v415 = vunpack.c.h.b16 %v175
      %v416 = vunpack.c.l.b16 %v176
      %v417 = vunpack.c.h.b16 %v176
      %v418 = vunpack.c.l.b16 %v177
      %v419 = vunpack.c.h.b16 %v177
      %v420 = vunpack.c.l.b16 %v178
      %v421 = vunpack.c.h.b16 %v178
      %v422 = vunpack.c.l.b16 %v179
      %v423 = vunpack.c.h.b16 %v179
      %v424 = vunpack.c.l.b16 %v180
      %v425 = vunpack.c.h.b16 %v180
      %v426 = vunpack.c.l.b16 %v181
      %v427 = vunpack.c.h.b16 %v181
      %v428 = vunpack.c.l.b16 %v182
      %v429 = vunpack.c.h.b16 %v182
      %v430 = vunpack.c.l.b16 %v183
      %v431 = vunpack.c.h.b16 %v183
      %v432 = vunpack.c.l.b16 %v184
      %v433 = vunpack.c.h.b16 %v184
      %v434 = vunpack.c.l.b16 %v185
      %v435 = vunpack.c.h.b16 %v185
      %v436 = vunpack.c.l.b16 %v186
      %v437 = vunpack.c.h.b16 %v186
      %v438 = vunpack.c.l.b16 %v187
      %v439 = vunpack.c.h.b16 %v187
      %v440 = vunpack.c.l.b16 %v188
      %v441 = vunpack.c.h.b16 %v188
      %v442 = vunpack.c.l.b16 %v189
      %v443 = vunpack.c.h.b16 %v189
      %v444 = vunpack.c.l.b16 %v190
      %v445 = vunpack.c.h.b16 %v190
      %v446 = vunpack.c.l.b16 %v191
      %v447 = vunpack.c.h.b16 %v191
      %v448 = vunpack.c.l.b16 %v192
      %v449 = vunpack.c.h.b16 %v192
      %v450 = vunpack.c.l.b16 %v193
      %v451 = vunpack.c.h.b16 %v193
      %v452 = vunpack.c.l.b16 %v194
      %v453 = vunpack.c.h.b16 %v194
      %v454 = vunpack.c.l.b16 %v195
      %v455 = vunpack.c.h.b16 %v195
      %v456 = vunpack.c.l.b16 %v196
      %v457 = vunpack.c.h.b16 %v196
      %v458 = vunpack.c.l.b16 %v197
      %v459 = vunpack.c.h.b16 %v197
      %v460 = vunpack.c.l.b16 %v198
      %v461 = vunpack.c.h.b16 %v198
      %v462 = vunpack.c.l.b16 %v199
      %v463 = vunpack.c.h.b16 %v199
      %v464 = vunpack.c.l.b16 %v200
      %v465 = vunpack.c.h.b16 %v200
      %v466 = vunpack.c.l.b16 %v201
      %v467 = vunpack.c.h.b16 %v201
      %v468 = vunpack.c.l.b16 %v202
      %v469 = vunpack.c.h.b16 %v202
      %v470 = vunpack.c.l.b16 %v203
      %v471 = vunpack.c.h.b16 %v203
      %v472 = vunpack.c.l.b16 %v204
      %v473 = vunpack.c.h.b16 %v204
      %v474 = vunpack.c.l.b16 %v205
      %v475 = vunpack.c.h.b16 %v205
      %v476 = vunpack.c.l.b16 %v206
      %v477 = vunpack.c.h.b16 %v206
      %v478 = vunpack.c.l.b16 %v207
      %v479 = vunpack.c.h.b16 %v207
      %v480 = vunpack.c.l.b16 %v208
      %v481 = vunpack.c.h.b16 %v208
      %v482 = vunpack.c.l.b16 %v209
      %v483 = vunpack.c.h.b16 %v209
      %v484 = vunpack.c.l.b16 %v210
      %v485 = vunpack.c.h.b16 %v210
      %v486 = vunpack.c.l.b16 %v211
      %v487 = vunpack.c.h.b16 %v211
      %v488 = vpack.c.b16 %v418, %v408
      %v489 = vpack.c.b16 %v419, %v409
      %v490 = vpack.c.b16 %v420, %v410
      %v491 = vpack.c.b16 %v421, %v411
      %v492 = vpack.c.b16 %v422, %v412
      %v493 = vpack.c.b16 %v423, %v413
      %v494 = vpack.c.b16 %v424, %v414
      %v495 = vpack.c.b16 %v425, %v415
      %v496 = vpack.c.b16 %v426, %v416
      %v497 = vpack.c.b16 %v427, %v417
      %v498 = vpack.c.b16 %v438, %v428
      %v499 = vpack.c.b16 %v439, %v429
      %v500 = vpack.c.b16 %v440, %v430
      %v501 = vpack.c.b16 %v441, %v431
      %v502 = vpack.c.b16 %v442, %v432
      %v503 = vpack.c.b16 %v443, %v433
      %v504 = vpack.c.b16 %v444, %v434
      %v505 = vpack.c.b16 %v445, %v435
      %v506 = vpack.c.b16 %v446, %v436
      %v507 = vpack.c.b16 %v447, %v437
      %v508 = vpack.c.b16 %v458, %v448
      %v509 = vpack.c.b16 %v459, %v449
      %v510 = vpack.c.b16 %v460, %v450
      %v511 = vpack.c.b16 %v461, %v451
      %v512 = vpack.c.b16 %v462, %v452
      %v513 = vpack.c.b16 %v463, %v453
      %v514 = vpack.c.b16 %v464, %v454
      %v515 = vpack.c.b16 %v465, %v455
      %v516 = vpack.c.b16 %v466, %v456
      %v517 = vpack.c.b16 %v467, %v457
      %v518 = vpack.c.b16 %v478, %v468
      %v519 = vpack.c.b16 %v479, %v469
      %v520 = vpack.c.b16 %v480, %v470
      %v521 = vpack.c.b16 %v481, %v471
      %v522 = vpack.c.b16 %v482, %v472
      %v523 = vpack.c.b16 %v483, %v473
      %v524 = vpack.c.b16 %v484, %v474
      %v525 = vpack.c.b16 %v485, %v475
      %v526 = vpack.c.b16 %v486, %v476
      %v527 = vpack.c.b16 %v487, %v477
      %v713 = vunpack.c.l.b16 %v212
      %v714 = vunpack.c.l.b16 %v213
      %v715 = vunpack.c.l.b16 %v214
      %v716 = vunpack.c.l.b16 %v215
      %v717 = vunpack.c.l.b16 %v216
      %v718 = vunpack.c.l.b16 %v217
      %v719 = vunpack.c.l.b16 %v218
      %v720 = vunpack.c.l.b16 %v219
      %v721 = vunpack.c.l.b16 %v220
      %v722 = vunpack.c.l.b16 %v221
      %v723 = vunpack.c.l.b16 %v222
      %v724 = vunpack.c.l.b16 %v223
      %v725 = vunpack.c.l.b16 %v224
      %v726 = vunpack.c.l.b16 %v225
      %v727 = vunpack.c.l.b16 %v226
      %v728 = vunpack.c.l.b16 %v227
      %v729 = vunpack.c.l.b16 %v228
      %v730 = vunpack.c.l.b16 %v229
      %v731 = vunpack.c.l.b16 %v230
      %v732 = vunpack.c.l.b16 %v231
      %v733 = vunpack.c.l.b16 %v232
      %v734 = vunpack.c.l.b16 %v233
      %v735 = vunpack.c.l.b16 %v234
      %v736 = vunpack.c.l.b16 %v235
      %v737 = vunpack.c.l.b16 %v236
      %v738 = vunpack.c.l.b16 %v237
      %v739 = vunpack.c.l.b16 %v238
      %v740 = vunpack.c.l.b16 %v239
      %v741 = vunpack.c.l.b16 %v240
      %v742 = vunpack.c.l.b16 %v241
      %v743 = vunpack.c.l.b16 %v242
      %v744 = vunpack.c.l.b16 %v243
      %v745 = vunpack.c.l.b16 %v244
      %v746 = vunpack.c.l.b16 %v245
      %v747 = vunpack.c.l.b16 %v246
      %v748 = vunpack.c.l.b16 %v247
      %v749 = vunpack.c.l.b16 %v248
      %v750 = vunpack.c.l.b16 %v249
      %v751 = vunpack.c.l.b16 %v250
      %v752 = vunpack.c.l.b16 %v251
      %v753 = vunpack.c.l.b16 %v252
      %v754 = vunpack.c.l.b16 %v253
      %v755 = vunpack.c.l.b16 %v254
      %v756 = vunpack.c.l.b16 %v255
      %v757 = vunpack.c.l.b16 %v256
      %v758 = vunpack.c.l.b16 %v257
      %v759 = vunpack.c.l.b16 %v258
      %v760 = vunpack.c.l.b16 %v259
      %v761 = vunpack.c.l.b16 %v260
      %v762 = vunpack.c.l.b16 %v261
      %v763 = vunpack.c.l.b16 %v262
      %v764 = vunpack.c.l.b16 %v263
      %v765 = vunpack.c.l.b16 %v264
      %v766 = vunpack.c.l.b16 %v265
      %v767 = vunpack.c.l.b16 %v266
      %v768 = vunpack.c.l.b16 %v267
      %v769 = vunpack.c.l.b16 %v268
      %v770 = vunpack.c.l.b16 %v269
      %v771 = vunpack.c.l.b16 %v270
      %v772 = vunpack.c.l.b16 %v271
      %v773 = vunpack.c.l.b16 %v272
      %v774 = vunpack.c.l.b16 %v273
      %v775 = vunpack.c.l.b16 %v274
      %v776 = vunpack.c.l.b16 %v275
      %v777 = vunpack.c.l.b16 %v276
      %v778 = vunpack.c.l.b16 %v277
      %v779 = vunpack.c.l.b16 %v278
      %v780 = vunpack.c.l.b16 %v279
      %v781 = vunpack.c.l.b16 %v280
      %v782 = vunpack.c.l.b16 %v281
      %v783 = vunpack.c.l.b16 %v282
      %v784 = vunpack.c.l.b16 %v283
      %v785 = vunpack.c.l.b16 %v284
      %v786 = vunpack.c.l.b16 %v285
      %v787 = vunpack.c.l.b16 %v286
      %v788 = vunpack.c.l.b16 %v287
      %v789 = vunpack.c.l.b16 %v288
      %v790 = vunpack.c.l.b16 %v289
      %v791 = vunpack.c.l.b16 %v290
      %v792 = vunpack.c.l.b16 %v291
      %v793 = vunpack.c.l.b16 %v292
      %v794 = vunpack.c.l.b16 %v293
      %v795 = vunpack.c.l.b16 %v294
      %v796 = vunpack.c.l.b16 %v295
      %v797 = vunpack.c.l.b16 %v296
      %v798 = vunpack.c.l.b16 %v297
      %v799 = vunpack.c.l.b16 %v298
      %v800 = vunpack.c.l.b16 %v299
      %v801 = vunpack.c.l.b16 %v300
      %v802 = vunpack.c.l.b16 %v301
      %v803 = vunpack.c.l.b16 %v302
      %v804 = vunpack.c.l.b16 %v303
      %v805 = vunpack.c.l.b16 %v304
      %v806 = vunpack.c.l.b16 %v305
      %v807 = vunpack.c.l.b16 %v306
      %v808 = vunpack.c.l.b16 %v307
      %v809 = vunpack.c.l.b16 %v308
      %v810 = vunpack.c.l.b16 %v309
      %v811 = vunpack.c.l.b16 %v310
      %v812 = vunpack.c.l.b16 %v311
      %v813 = vunpack.c.l.b16 %v312
      %v814 = vunpack.c.l.b16 %v313
      %v815 = vunpack.c.l.b16 %v314
      %v816 = vunpack.c.l.b16 %v315
      %v817 = vunpack.c.l.b16 %v316
      %v818 = vunpack.c.l.b16 %v317
      %v819 = vunpack.c.l.b16 %v318
      %v820 = vunpack.c.l.b16 %v319
      %v821 = vunpack.c.l.b16 %v320
      %v822 = vunpack.c.l.b16 %v321
      %v823 = vunpack.c.l.b16 %v322
      %v824 = vunpack.c.l.b16 %v323
      %v825 = vunpack.c.l.b16 %v324
      %v826 = vunpack.c.l.b16 %v325
      %v827 = vunpack.c.l.b16 %v326
      %v828 = vunpack.c.l.b16 %v327
      %v829 = vunpack.c.l.b16 %v328
      %v830 = vunpack.c.l.b16 %v329
      %v831 = vunpack.c.l.b16 %v330
      %v832 = vunpack.c.l.b16 %v331
      %v833 = vunpack.c.l.b16 %v332
      %v834 = vunpack.c.l.b16 %v333
      %v835 = vunpack.c.l.b16 %v334
      %v836 = vunpack.c.l.b16 %v335
      %v837 = vunpack.c.l.b16 %v336
      %v838 = vunpack.c.l.b16 %v337
      %v839 = vunpack.c.l.b16 %v338
      %v840 = vunpack.c.l.b16 %v339
      %v841 = vunpack.c.l.b16 %v340
      %v842 = vunpack.c.l.b16 %v341
      %v843 = vunpack.c.l.b16 %v342
      %v844 = vunpack.c.l.b16 %v343
      %v845 = vunpack.c.l.b16 %v344
      %v846 = vunpack.c.l.b16 %v345
      %v847 = vunpack.c.l.b16 %v346
      %v848 = vunpack.c.l.b16 %v347
      %v849 = vunpack.c.l.b16 %v348
      %v850 = vunpack.c.l.b16 %v349
      %v851 = vunpack.c.l.b16 %v350
      %v852 = vunpack.c.l.b16 %v351
      %v853 = vunpack.c.l.b16 %v352
      %v854 = vunpack.c.l.b16 %v353
      %v855 = vunpack.c.l.b16 %v354
      %v856 = vunpack.c.l.b16 %v355
      %v857 = vunpack.c.l.b16 %v356
      %v858 = vunpack.c.l.b16 %v357
      %v859 = vunpack.c.l.b16 %v358
      %v860 = vunpack.c.l.b16 %v359
      %v861 = vunpack.c.l.b16 %v360
      %v862 = vpack.c.b16 %v714, %v713
      %v863 = vpack.c.b16 %v716, %v715
      %v864 = vpack.c.b16 %v718, %v717
      %v865 = vpack.c.b16 %v720, %v719
      %v866 = vpack.c.b16 %v722, %v721
      %v867 = vpack.c.b16 %v724, %v723
      %v868 = vpack.c.b16 %v726, %v725
      %v869 = vpack.c.b16 %v728, %v727
      %v870 = vpack.c.b16 %v730, %v729
      %v871 = vpack.c.b16 %v732, %v731
      %v872 = vpack.c.b16 %v734, %v733
      %v873 = vpack.c.b16 %v736, %v735
      %v874 = vpack.c.b16 %v738, %v737
      %v875 = vpack.c.b16 %v740, %v739
      %v876 = vpack.c.b16 %v742, %v741
      %v877 = vpack.c.b16 %v744, %v743
      %v878 = vpack.c.b16 %v746, %v745
      %v879 = vpack.c.b16 %v748, %v747
      %v880 = vpack.c.b16 %v750, %v749
      %v881 = vpack.c.b16 %v752, %v751
      %v882 = vpack.c.b16 %v754, %v753
      %v883 = vpack.c.b16 %v756, %v755
      %v884 = vpack.c.b16 %v758, %v757
      %v885 = vpack.c.b16 %v760, %v759
      %v886 = vpack.c.b16 %v762, %v761
      %v887 = vpack.c.b16 %v764, %v763
      %v888 = vpack.c.b16 %v766, %v765
      %v889 = vpack.c.b16 %v768, %v767
      %v890 = vpack.c.b16 %v770, %v769
      %v891 = vpack.c.b16 %v772, %v771
      %v892 = vpack.c.b16 %v774, %v773
      %v893 = vpack.c.b16 %v776, %v775
      %v894 = vpack.c.b16 %v778, %v777
      %v895 = vpack.c.b16 %v780, %v779
      %v896 = vpack.c.b16 %v782, %v781
      %v897 = vpack.c.b16 %v784, %v783
      %v898 = vpack.c.b16 %v786, %v785
      %v899 = vpack.c.b16 %v788, %v787
      %v900 = vpack.c.b16 %v790, %v789
      %v901 = vpack.c.b16 %v792, %v791
      %v902 = vpack.c.b16 %v794, %v793
      %v903 = vpack.c.b16 %v796, %v795
      %v904 = vpack.c.b16 %v798, %v797
      %v905 = vpack.c.b16 %v800, %v799
      %v906 = vpack.c.b16 %v802, %v801
      %v907 = vpack.c.b16 %v804, %v803
      %v908 = vpack.c.b16 %v806, %v805
      %v909 = vpack.c.b16 %v808, %v807
      %v910 = vpack.c.b16 %v810, %v809
      %v911 = vpack.c.b16 %v812, %v811
      %v912 = vpack.c.b16 %v814, %v813
      %v913 = vpack.c.b16 %v816, %v815
      %v914 = vpack.c.b16 %v818, %v817
      %v915 = vpack.c.b16 %v820, %v819
      %v916 = vpack.c.b16 %v822, %v821
      %v917 = vpack.c.b16 %v824, %v823
      %v918 = vpack.c.b16 %v826, %v825
      %v919 = vpack.c.b16 %v828, %v827
      %v920 = vpack.c.b16 %v830, %v829
      %v921 = vpack.c.b16 %v832, %v831
      %v922 = vpack.c.b16 %v834, %v833
      %v923 = vpack.c.b16 %v836, %v835
      %v924 = vpack.c.b16 %v838, %v837
      %v925 = vpack.c.b16 %v840, %v839
      %v926 = vpack.c.b16 %v842, %v841
      %v927 = vpack.c.b16 %v844, %v843
      %v928 = vpack.c.b16 %v846, %v845
      %v929 = vpack.c.b16 %v848, %v847
      %v930 = vpack.c.b16 %v850, %v849
      %v931 = vpack.c.b16 %v852, %v851
      %v932 = vpack.c.b16 %v854, %v853
      %v933 = vpack.c.b16 %v856, %v855
      %v934 = vpack.c.b16 %v858, %v857
      %v935 = vpack.c.b16 %v860, %v859
      %v936 = vpack.c.b16 %v861, %v861
      %vm1011 = vcmask 293888
      %v1013 = vsel %vm1011, %v497, 0
      %v1016 = vsel %vm1011, %v507, 0
      %v1019 = vsel %vm1011, %v517, 0
      %v1022 = vsel %vm1011, %v527, 0
      %vm1024 = vcmask 1041408
      %v1026 = vsel %vm1024, %v936, 0
      %1028 = vmatprep.subr.bf16.mxu0 0
      %1029 = vmatpush1.bf16.msra.mxu0 %v869
      %1030 = vmatprep.subr.bf16.mxu0 0
      %1031 = vmatpush1.bf16.msra.mxu0 %v868
      %1032 = vmatprep.subr.bf16.mxu0 0
      %1033 = vmatpush1.bf16.msra.mxu0 %v867
      %1034 = vmatprep.subr.bf16.mxu0 0
      %1035 = vmatpush1.bf16.msra.mxu0 %v866
      %1036 = vmatprep.subr.bf16.mxu0 0
      %1037 = vmatpush1.bf16.msra.mxu0 %v865
      %1038 = vmatprep.subr.bf16.mxu0 0
      %1039 = vmatpush1.bf16.msra.mxu0 %v864
      %1040 = vmatprep.subr.bf16.mxu0 0
      %1041 = vmatpush1.bf16.msra.mxu0 %v863
      %1042 = vmatprep.subr.bf16.mxu0 0
      %1043 = vmatpush1.bf16.msra.mxu0 %v862
      %1044 = vmatprep.subr.bf16.mxu0 0
      %1045 = vmatpush2.bf16.msra.mxu0 %v877
      %1046 = vmatprep.subr.bf16.mxu0 0
      %1047 = vmatpush2.bf16.msra.mxu0 %v876
      %1048 = vmatprep.subr.bf16.mxu0 0
      %1049 = vmatpush2.bf16.msra.mxu0 %v875
      %1050 = vmatprep.subr.bf16.mxu0 0
      %1051 = vmatpush2.bf16.msra.mxu0 %v874
      %1052 = vmatprep.subr.bf16.mxu0 0
      %1053 = vmatpush2.bf16.msra.mxu0 %v873
      %1054 = vmatprep.subr.bf16.mxu0 0
      %1055 = vmatpush2.bf16.msra.mxu0 %v872
      %1056 = vmatprep.subr.bf16.mxu0 0
      %1057 = vmatpush2.bf16.msra.mxu0 %v871
      %1058 = vmatprep.subr.bf16.mxu0 0
      %1059 = vmatpush2.bf16.msra.mxu0 %v870
      %1060 = vmatprep.mubr.bf16.mxu0 %v489
      %1061 = vmatmul.mubr.bf16.gmra.mxu0 %v488
      %v1062 = vpop.f32.mrf.mxu0
      %v1063 = vadd.f32 %v366, %v1062
      %v1064 = vpop.f32.mrf.mxu0
      %v1065 = vpop.f32.mrf.mxu0
      %v1066 = vadd.f32 %v366, %v1065
      %v1067 = vpop.f32.mrf.mxu0
      %1068 = vmatprep.mubr.bf16.mxu0 %v499
      %1069 = vmatmul.mubr.bf16.gmra.mxu0 %v498
      %v1070 = vpop.f32.mrf.mxu0
      %v1071 = vadd.f32 %v366, %v1070
      %v1072 = vpop.f32.mrf.mxu0
      %v1073 = vpop.f32.mrf.mxu0
      %v1074 = vadd.f32 %v366, %v1073
      %v1075 = vpop.f32.mrf.mxu0
      %1076 = vmatprep.mubr.bf16.mxu0 %v509
      %1077 = vmatmul.mubr.bf16.gmra.mxu0 %v508
      %v1078 = vpop.f32.mrf.mxu0
      %v1079 = vadd.f32 %v366, %v1078
      %v1080 = vpop.f32.mrf.mxu0
      %v1081 = vpop.f32.mrf.mxu0
      %v1082 = vadd.f32 %v366, %v1081
      %v1083 = vpop.f32.mrf.mxu0
      %1084 = vmatprep.mubr.bf16.mxu0 %v519
      %1085 = vmatmul.mubr.bf16.gmra.mxu0 %v518
      %v1086 = vpop.f32.mrf.mxu0
      %v1087 = vadd.f32 %v366, %v1086
      %v1088 = vpop.f32.mrf.mxu0
      %v1089 = vpop.f32.mrf.mxu0
      %v1090 = vadd.f32 %v366, %v1089
      %v1091 = vpop.f32.mrf.mxu0
      %1092 = vdwg.mxu0
      %1093 = vmatprep.subr.bf16.mxu0 0
      %1094 = vmatpush1.bf16.msra.mxu0 %v885
      %1095 = vmatprep.subr.bf16.mxu0 0
      %1096 = vmatpush1.bf16.msra.mxu0 %v884
      %1097 = vmatprep.subr.bf16.mxu0 0
      %1098 = vmatpush1.bf16.msra.mxu0 %v883
      %1099 = vmatprep.subr.bf16.mxu0 0
      %1100 = vmatpush1.bf16.msra.mxu0 %v882
      %1101 = vmatprep.subr.bf16.mxu0 0
      %1102 = vmatpush1.bf16.msra.mxu0 %v881
      %1103 = vmatprep.subr.bf16.mxu0 0
      %1104 = vmatpush1.bf16.msra.mxu0 %v880
      %1105 = vmatprep.subr.bf16.mxu0 0
      %1106 = vmatpush1.bf16.msra.mxu0 %v879
      %1107 = vmatprep.subr.bf16.mxu0 0
      %1108 = vmatpush1.bf16.msra.mxu0 %v878
      %1109 = vmatprep.subr.bf16.mxu0 0
      %1110 = vmatpush2.bf16.msra.mxu0 %v893
      %1111 = vmatprep.subr.bf16.mxu0 0
      %1112 = vmatpush2.bf16.msra.mxu0 %v892
      %1113 = vmatprep.subr.bf16.mxu0 0
      %1114 = vmatpush2.bf16.msra.mxu0 %v891
      %1115 = vmatprep.subr.bf16.mxu0 0
      %1116 = vmatpush2.bf16.msra.mxu0 %v890
      %1117 = vmatprep.subr.bf16.mxu0 0
      %1118 = vmatpush2.bf16.msra.mxu0 %v889
      %1119 = vmatprep.subr.bf16.mxu0 0
      %1120 = vmatpush2.bf16.msra.mxu0 %v888
      %1121 = vmatprep.subr.bf16.mxu0 0
      %1122 = vmatpush2.bf16.msra.mxu0 %v887
      %1123 = vmatprep.subr.bf16.mxu0 0
      %1124 = vmatpush2.bf16.msra.mxu0 %v886
      %1125 = vmatprep.mubr.bf16.mxu0 %v491
      %1126 = vmatmul.mubr.bf16.gmra.mxu0 %v490
      %v1127 = vpop.f32.mrf.mxu0
      %v1128 = vadd.f32 %v1063, %v1127
      %v1129 = vpop.f32.mrf.mxu0
      %v1130 = vpop.f32.mrf.mxu0
      %v1131 = vadd.f32 %v1066, %v1130
      %v1132 = vpop.f32.mrf.mxu0
      %1133 = vmatprep.mubr.bf16.mxu0 %v501
      %1134 = vmatmul.mubr.bf16.gmra.mxu0 %v500
      %v1135 = vpop.f32.mrf.mxu0
      %v1136 = vadd.f32 %v1071, %v1135
      %v1137 = vpop.f32.mrf.mxu0
      %v1138 = vpop.f32.mrf.mxu0
      %v1139 = vadd.f32 %v1074, %v1138
      %v1140 = vpop.f32.mrf.mxu0
      %1141 = vmatprep.mubr.bf16.mxu0 %v511
      %1142 = vmatmul.mubr.bf16.gmra.mxu0 %v510
      %v1143 = vpop.f32.mrf.mxu0
      %v1144 = vadd.f32 %v1079, %v1143
      %v1145 = vpop.f32.mrf.mxu0
      %v1146 = vpop.f32.mrf.mxu0
      %v1147 = vadd.f32 %v1082, %v1146
      %v1148 = vpop.f32.mrf.mxu0
      %1149 = vmatprep.mubr.bf16.mxu0 %v521
      %1150 = vmatmul.mubr.bf16.gmra.mxu0 %v520
      %v1151 = vpop.f32.mrf.mxu0
      %v1152 = vadd.f32 %v1087, %v1151
      %v1153 = vpop.f32.mrf.mxu0
      %v1154 = vpop.f32.mrf.mxu0
      %v1155 = vadd.f32 %v1090, %v1154
      %v1156 = vpop.f32.mrf.mxu0
      %1157 = vdwg.mxu0
      %1158 = vmatprep.subr.bf16.mxu0 0
      %1159 = vmatpush1.bf16.msra.mxu0 %v901
      %1160 = vmatprep.subr.bf16.mxu0 0
      %1161 = vmatpush1.bf16.msra.mxu0 %v900
      %1162 = vmatprep.subr.bf16.mxu0 0
      %1163 = vmatpush1.bf16.msra.mxu0 %v899
      %1164 = vmatprep.subr.bf16.mxu0 0
      %1165 = vmatpush1.bf16.msra.mxu0 %v898
      %1166 = vmatprep.subr.bf16.mxu0 0
      %1167 = vmatpush1.bf16.msra.mxu0 %v897
      %1168 = vmatprep.subr.bf16.mxu0 0
      %1169 = vmatpush1.bf16.msra.mxu0 %v896
      %1170 = vmatprep.subr.bf16.mxu0 0
      %1171 = vmatpush1.bf16.msra.mxu0 %v895
      %1172 = vmatprep.subr.bf16.mxu0 0
      %1173 = vmatpush1.bf16.msra.mxu0 %v894
      %1174 = vmatprep.subr.bf16.mxu0 0
      %1175 = vmatpush2.bf16.msra.mxu0 %v909
      %1176 = vmatprep.subr.bf16.mxu0 0
      %1177 = vmatpush2.bf16.msra.mxu0 %v908
      %1178 = vmatprep.subr.bf16.mxu0 0
      %1179 = vmatpush2.bf16.msra.mxu0 %v907
      %1180 = vmatprep.subr.bf16.mxu0 0
      %1181 = vmatpush2.bf16.msra.mxu0 %v906
      %1182 = vmatprep.subr.bf16.mxu0 0
      %1183 = vmatpush2.bf16.msra.mxu0 %v905
      %1184 = vmatprep.subr.bf16.mxu0 0
      %1185 = vmatpush2.bf16.msra.mxu0 %v904
      %1186 = vmatprep.subr.bf16.mxu0 0
      %1187 = vmatpush2.bf16.msra.mxu0 %v903
      %1188 = vmatprep.subr.bf16.mxu0 0
      %1189 = vmatpush2.bf16.msra.mxu0 %v902
      %1190 = vmatprep.mubr.bf16.mxu0 %v493
      %1191 = vmatmul.mubr.bf16.gmra.mxu0 %v492
      %v1192 = vpop.f32.mrf.mxu0
      %v1193 = vadd.f32 %v1128, %v1192
      %v1194 = vpop.f32.mrf.mxu0
      %v1195 = vpop.f32.mrf.mxu0
      %v1196 = vadd.f32 %v1131, %v1195
      %v1197 = vpop.f32.mrf.mxu0
      %1198 = vmatprep.mubr.bf16.mxu0 %v503
      %1199 = vmatmul.mubr.bf16.gmra.mxu0 %v502
      %v1200 = vpop.f32.mrf.mxu0
      %v1201 = vadd.f32 %v1136, %v1200
      %v1202 = vpop.f32.mrf.mxu0
      %v1203 = vpop.f32.mrf.mxu0
      %v1204 = vadd.f32 %v1139, %v1203
      %v1205 = vpop.f32.mrf.mxu0
      %1206 = vmatprep.mubr.bf16.mxu0 %v513
      %1207 = vmatmul.mubr.bf16.gmra.mxu0 %v512
      %v1208 = vpop.f32.mrf.mxu0
      %v1209 = vadd.f32 %v1144, %v1208
      %v1210 = vpop.f32.mrf.mxu0
      %v1211 = vpop.f32.mrf.mxu0
      %v1212 = vadd.f32 %v1147, %v1211
      %v1213 = vpop.f32.mrf.mxu0
      %1214 = vmatprep.mubr.bf16.mxu0 %v523
      %1215 = vmatmul.mubr.bf16.gmra.mxu0 %v522
      %v1216 = vpop.f32.mrf.mxu0
      %v1217 = vadd.f32 %v1152, %v1216
      %v1218 = vpop.f32.mrf.mxu0
      %v1219 = vpop.f32.mrf.mxu0
      %v1220 = vadd.f32 %v1155, %v1219
      %v1221 = vpop.f32.mrf.mxu0
      %1222 = vdwg.mxu0
      %1223 = vmatprep.subr.bf16.mxu0 0
      %1224 = vmatpush1.bf16.msra.mxu0 %v917
      %1225 = vmatprep.subr.bf16.mxu0 0
      %1226 = vmatpush1.bf16.msra.mxu0 %v916
      %1227 = vmatprep.subr.bf16.mxu0 0
      %1228 = vmatpush1.bf16.msra.mxu0 %v915
      %1229 = vmatprep.subr.bf16.mxu0 0
      %1230 = vmatpush1.bf16.msra.mxu0 %v914
      %1231 = vmatprep.subr.bf16.mxu0 0
      %1232 = vmatpush1.bf16.msra.mxu0 %v913
      %1233 = vmatprep.subr.bf16.mxu0 0
      %1234 = vmatpush1.bf16.msra.mxu0 %v912
      %1235 = vmatprep.subr.bf16.mxu0 0
      %1236 = vmatpush1.bf16.msra.mxu0 %v911
      %1237 = vmatprep.subr.bf16.mxu0 0
      %1238 = vmatpush1.bf16.msra.mxu0 %v910
      %1239 = vmatprep.subr.bf16.mxu0 0
      %1240 = vmatpush2.bf16.msra.mxu0 %v925
      %1241 = vmatprep.subr.bf16.mxu0 0
      %1242 = vmatpush2.bf16.msra.mxu0 %v924
      %1243 = vmatprep.subr.bf16.mxu0 0
      %1244 = vmatpush2.bf16.msra.mxu0 %v923
      %1245 = vmatprep.subr.bf16.mxu0 0
      %1246 = vmatpush2.bf16.msra.mxu0 %v922
      %1247 = vmatprep.subr.bf16.mxu0 0
      %1248 = vmatpush2.bf16.msra.mxu0 %v921
      %1249 = vmatprep.subr.bf16.mxu0 0
      %1250 = vmatpush2.bf16.msra.mxu0 %v920
      %1251 = vmatprep.subr.bf16.mxu0 0
      %1252 = vmatpush2.bf16.msra.mxu0 %v919
      %1253 = vmatprep.subr.bf16.mxu0 0
      %1254 = vmatpush2.bf16.msra.mxu0 %v918
      %1255 = vmatprep.mubr.bf16.mxu0 %v495
      %1256 = vmatmul.mubr.bf16.gmra.mxu0 %v494
      %v1257 = vpop.f32.mrf.mxu0
      %v1258 = vadd.f32 %v1193, %v1257
      %v1259 = vpop.f32.mrf.mxu0
      %v1260 = vpop.f32.mrf.mxu0
      %v1261 = vadd.f32 %v1196, %v1260
      %v1262 = vpop.f32.mrf.mxu0
      %1263 = vmatprep.mubr.bf16.mxu0 %v505
      %1264 = vmatmul.mubr.bf16.gmra.mxu0 %v504
      %v1265 = vpop.f32.mrf.mxu0
      %v1266 = vadd.f32 %v1201, %v1265
      %v1267 = vpop.f32.mrf.mxu0
      %v1268 = vpop.f32.mrf.mxu0
      %v1269 = vadd.f32 %v1204, %v1268
      %v1270 = vpop.f32.mrf.mxu0
      %1271 = vmatprep.mubr.bf16.mxu0 %v515
      %1272 = vmatmul.mubr.bf16.gmra.mxu0 %v514
      %v1273 = vpop.f32.mrf.mxu0
      %v1274 = vadd.f32 %v1209, %v1273
      %v1275 = vpop.f32.mrf.mxu0
      %v1276 = vpop.f32.mrf.mxu0
      %v1277 = vadd.f32 %v1212, %v1276
      %v1278 = vpop.f32.mrf.mxu0
      %1279 = vmatprep.mubr.bf16.mxu0 %v525
      %1280 = vmatmul.mubr.bf16.gmra.mxu0 %v524
      %v1281 = vpop.f32.mrf.mxu0
      %v1282 = vadd.f32 %v1217, %v1281
      %v1283 = vpop.f32.mrf.mxu0
      %v1284 = vpop.f32.mrf.mxu0
      %v1285 = vadd.f32 %v1220, %v1284
      %v1286 = vpop.f32.mrf.mxu0
      %1287 = vdwg.mxu0
      %1288 = vmatprep.subr.bf16.mxu0 0
      %1289 = vmatpush1.bf16.msra.mxu0 %v933
      %1290 = vmatprep.subr.bf16.mxu0 0
      %1291 = vmatpush1.bf16.msra.mxu0 %v932
      %1292 = vmatprep.subr.bf16.mxu0 0
      %1293 = vmatpush1.bf16.msra.mxu0 %v931
      %1294 = vmatprep.subr.bf16.mxu0 0
      %1295 = vmatpush1.bf16.msra.mxu0 %v930
      %1296 = vmatprep.subr.bf16.mxu0 0
      %1297 = vmatpush1.bf16.msra.mxu0 %v929
      %1298 = vmatprep.subr.bf16.mxu0 0
      %1299 = vmatpush1.bf16.msra.mxu0 %v928
      %1300 = vmatprep.subr.bf16.mxu0 0
      %1301 = vmatpush1.bf16.msra.mxu0 %v927
      %1302 = vmatprep.subr.bf16.mxu0 0
      %1303 = vmatpush1.bf16.msra.mxu0 %v926
      %1304 = vmatprep.subr.bf16.mxu0 0
      %1305 = vmatpush2.bf16.msra.mxu0 0
      %1306 = vmatprep.subr.bf16.mxu0 0
      %1307 = vmatpush2.bf16.msra.mxu0 0
      %1308 = vmatprep.subr.bf16.mxu0 0
      %1309 = vmatpush2.bf16.msra.mxu0 0
      %1310 = vmatprep.subr.bf16.mxu0 0
      %1311 = vmatpush2.bf16.msra.mxu0 0
      %1312 = vmatprep.subr.bf16.mxu0 0
      %1313 = vmatpush2.bf16.msra.mxu0 0
      %1314 = vmatprep.subr.bf16.mxu0 0
      %1315 = vmatpush2.bf16.msra.mxu0 %v1026
      %1316 = vmatprep.subr.bf16.mxu0 0
      %1317 = vmatpush2.bf16.msra.mxu0 %v935
      %1318 = vmatprep.subr.bf16.mxu0 0
      %1319 = vmatpush2.bf16.msra.mxu0 %v934
      %1320 = vmatprep.mubr.bf16.mxu0 %v1013
      %1321 = vmatmul.mubr.bf16.gmra.mxu0 %v496
      %v1322 = vpop.f32.mrf.mxu0
      %v1323 = vadd.f32 %v1258, %v1322
      %v1324 = vpop.f32.mrf.mxu0
      %v1325 = vpop.f32.mrf.mxu0
      %v1326 = vadd.f32 %v1261, %v1325
      %v1327 = vpop.f32.mrf.mxu0
      %1328 = vmatprep.mubr.bf16.mxu0 %v1016
      %1329 = vmatmul.mubr.bf16.gmra.mxu0 %v506
      %v1330 = vpop.f32.mrf.mxu0
      %v1331 = vadd.f32 %v1266, %v1330
      %v1332 = vpop.f32.mrf.mxu0
      %v1333 = vpop.f32.mrf.mxu0
      %v1334 = vadd.f32 %v1269, %v1333
      %v1335 = vpop.f32.mrf.mxu0
      %1336 = vmatprep.mubr.bf16.mxu0 %v1019
      %1337 = vmatmul.mubr.bf16.gmra.mxu0 %v516
      %v1338 = vpop.f32.mrf.mxu0
      %v1339 = vadd.f32 %v1274, %v1338
      %v1340 = vpop.f32.mrf.mxu0
      %v1341 = vpop.f32.mrf.mxu0
      %v1342 = vadd.f32 %v1277, %v1341
      %v1343 = vpop.f32.mrf.mxu0
      %1344 = vmatprep.mubr.bf16.mxu0 %v1022
      %1345 = vmatmul.mubr.bf16.gmra.mxu0 %v526
      %v1346 = vpop.f32.mrf.mxu0
      %v1347 = vadd.f32 %v1282, %v1346
      %v1348 = vpop.f32.mrf.mxu0
      %v1349 = vpop.f32.mrf.mxu0
      %v1350 = vadd.f32 %v1285, %v1349
      %v1351 = vpop.f32.mrf.mxu0
      %1352 = vdwg.mxu0
      %vm1353 = vcmask 523264
      %v1354 = vsel %vm1353, %v1323, 0.0
      %v1355 = vsel %vm1353, %v1326, 0.0
      %v1356 = vadd.f32 %v1354, %v1355
      %v1357 = vsel %vm1353, %v1331, 0.0
      %v1358 = vadd.f32 %v1356, %v1357
      %v1359 = vsel %vm1353, %v1334, 0.0
      %v1360 = vadd.f32 %v1358, %v1359
      %v1361 = vsel %vm1353, %v1339, 0.0
      %v1362 = vadd.f32 %v1360, %v1361
      %v1363 = vsel %vm1353, %v1342, 0.0
      %v1364 = vadd.f32 %v1362, %v1363
      %v1365 = vsel %vm1353, %v1347, 0.0
      %v1366 = vadd.f32 %v1364, %v1365
      %v1367 = vsel %vm1353, %v1350, 0.0
      %v1368 = vadd.f32 %v1366, %v1367
      %v1369 = vrot.slane %v1368, 4
      %v1370 = vadd.f32 %v1368, %v1369
      %v1371 = vrot.slane %v1370, 2
      %v1372 = vadd.f32 %v1370, %v1371
      %v1373 = vrot.slane %v1372, 1
      %v1374 = vadd.f32 %v1372, %v1373
      %v1375 = vrcp.pop 64.0
      %v1376 = vmul.f32 %v1374, %v1375
      %v1377 = vsub.f32 %v1323, %v1376
      %v1378 = vsub.f32 %v1326, %v1376
      %v1379 = vsub.f32 %v1331, %v1376
      %v1380 = vsub.f32 %v1334, %v1376
      %v1381 = vsub.f32 %v1339, %v1376
      %v1382 = vsub.f32 %v1342, %v1376
      %v1383 = vsub.f32 %v1347, %v1376
      %v1384 = vsub.f32 %v1350, %v1376
      %v1385 = vmul.f32 %v1377, %v1377
      %v1386 = vmul.f32 %v1378, %v1378
      %v1387 = vmul.f32 %v1379, %v1379
      %v1388 = vmul.f32 %v1380, %v1380
      %v1389 = vmul.f32 %v1381, %v1381
      %v1390 = vmul.f32 %v1382, %v1382
      %v1391 = vmul.f32 %v1383, %v1383
      %v1392 = vmul.f32 %v1384, %v1384
      %v1393 = vsel %vm1353, %v1385, 0.0
      %v1394 = vsel %vm1353, %v1386, 0.0
      %v1395 = vadd.f32 %v1393, %v1394
      %v1396 = vsel %vm1353, %v1387, 0.0
      %v1397 = vadd.f32 %v1395, %v1396
      %v1398 = vsel %vm1353, %v1388, 0.0
      %v1399 = vadd.f32 %v1397, %v1398
      %v1400 = vsel %vm1353, %v1389, 0.0
      %v1401 = vadd.f32 %v1399, %v1400
      %v1402 = vsel %vm1353, %v1390, 0.0
      %v1403 = vadd.f32 %v1401, %v1402
      %v1404 = vsel %vm1353, %v1391, 0.0
      %v1405 = vadd.f32 %v1403, %v1404
      %v1406 = vsel %vm1353, %v1392, 0.0
      %v1407 = vadd.f32 %v1405, %v1406
      %v1408 = vrot.slane %v1407, 4
      %v1409 = vadd.f32 %v1407, %v1408
      %v1410 = vrot.slane %v1409, 2
      %v1411 = vadd.f32 %v1409, %v1410
      %v1412 = vrot.slane %v1411, 1
      %v1413 = vadd.f32 %v1411, %v1412
      %v1414 = vmul.f32 %v1413, %v1375
      %v1415 = vadd.f32 %v1414, 1e-05
      %v1416 = vrsqrt.pop %v1415
      %v1417 = vmul.f32 %v1377, %v1416
      %v1418 = vmul.f32 %v1378, %v1416
      %v1419 = vmul.f32 %v1379, %v1416
      %v1420 = vmul.f32 %v1380, %v1416
      %v1421 = vmul.f32 %v1381, %v1416
      %v1422 = vmul.f32 %v1382, %v1416
      %v1423 = vmul.f32 %v1383, %v1416
      %v1424 = vmul.f32 %v1384, %v1416
      %v1425 = vmax.f32 %v1417, 0.0
      %v1426 = vmax.f32 %v1418, 0.0
      %v1427 = vmax.f32 %v1419, 0.0
      %v1428 = vmax.f32 %v1420, 0.0
      %v1429 = vmax.f32 %v1421, 0.0
      %v1430 = vmax.f32 %v1422, 0.0
      %v1431 = vmax.f32 %v1423, 0.0
      %v1432 = vmax.f32 %v1424, 0.0
      %1433 = vst.msk [vmem:[%s170] sm:$0xff] %vm1353, %v1425
      %1434 = vst.msk [vmem:[%s170 + $0x8] sm:$0xff] %vm1353, %v1426
      %1435 = vst.msk [vmem:[%s170 + $0x10] sm:$0xff] %vm1353, %v1427
      %1436 = vst.msk [vmem:[%s170 + $0x18] sm:$0xff] %vm1353, %v1428
      %1437 = vst.msk [vmem:[%s170 + $0x20] sm:$0xff] %vm1353, %v1429
      %1438 = vst.msk [vmem:[%s170 + $0x28] sm:$0xff] %vm1353, %v1430
      %1439 = vst.msk [vmem:[%s170 + $0x30] sm:$0xff] %vm1353, %v1431
      %1440 = vst.msk [vmem:[%s170 + $0x38] sm:$0xff] %vm1353, %v1432
      %p1441 = scmp.lt.s32.totalorder %s14, 1
      %s1442 = scalar_select %p1441, %s14, 1
      %s1443 = smul.addr %s1442, 8
      %s1444 = smul.addr %s1443, 8
      %s1445 = scalar_lea.vmem %s3, %s1444
      // Predicated region
      $region33: #{resnet_forward.21} parent=31 // pred_check
        %p1446 = pneg %p100
      $region34: #{resnet_forward.21} parent=31 // pred_check_branch
        %1448 = sbr.rel (%p1446) target = $region36
      $region35: #{resnet_forward.21} parent=31 // pred_region
        _
      $region36: #{resnet_forward.21} parent=31 // pred_fallthru
        _
    $region32: #{resnet_forward.21} parent=5 // pred_fallthru
      _
    %p1449 = scmp.le.s32.totalorder 2, %s9
    // Predicated region
    $region37: #{resnet_forward.21} parent=5 // pred_check
      %p1450 = pneg %p1449
    $region38: #{resnet_forward.21} parent=5 // pred_check_branch
      %1452 = sbr.rel (%p1450) target = $region40
    $region39: #{resnet_forward.21} parent=5 // pred_region
      %s1453 = ssub.s32 %s9, 2
      // Predicated region
      $region41: #{resnet_forward.21} parent=39 // pred_check
        %p1454 = pneg %p106
      $region42: #{resnet_forward.21} parent=39 // pred_check_branch
        %1456 = sbr.rel (%p1454) target = $region44
      $region43: #{resnet_forward.21} parent=39 // pred_region
        %p1457 = scmp.lt.s32.totalorder %s15, 1
        %s1458 = scalar_select %p1457, %s15, 1
        %s1459 = smul.addr %s1458, 8
        %s1460 = smul.addr %s1459, 8
        %s1461 = scalar_lea.vmem %s3, %s1460
      $region44: #{resnet_forward.21} parent=39 // pred_fallthru
        _
    $region40: #{resnet_forward.21} parent=5 // pred_fallthru
      _
  $region6: #{resnet_forward.21} parent=0 // loop_footer
    %s13 = sadd.s32 1, %s9
  $region7: #{resnet_forward.21} parent=0 // loop_footer_branch
    %8 = sbr.rel target = $region3
  $region8: #{resnet_forward.21} parent=0 // loop_exit
    _

// kernel: resnet_forward.22
$region0: #{resnet_forward.22}
  #allocation0 [shape = 'u32[]', space=smem, size = 0x4, offset = 0x4, fixed_abs, tag = 'smem constant byte address 0x4 - core index']
  #allocation1 [shape = 'u32[144,128]{1,0:T(1,128)}', space=vmem, size = 0x12000, scoped, tag = 'internal scratch']
  %s0 = inlined_call_operand.vmem [shape: bf16[2,256,612], index: 0, kind: input, shape index: {}]
  %s1 = inlined_call_operand.vmem [shape: bf16[612,32], index: 1, kind: input, shape index: {}]
  %s2 = inlined_call_operand.vmem [shape: f32[1,32], index: 2, kind: input, shape index: {}]
  %s3 = inlined_call_operand.vmem [shape: f32[2,256,32], index: 3, kind: output, shape index: {}]
  %s4 = sld [smem:[#allocation0]]
  $region45: #{resnet_forward.22} parent=0
    _
  %s6 = ssub.s32 1, %s4
  %s7 = scalar_select 0, %s6, %s4
  loop: start=0, step=1, limit=4
  $region2: #{resnet_forward.22} parent=0 // loop_pre_header
    _
  $region3: #{resnet_forward.22} parent=0 // loop_header
    %s9 = sphi 0, %s13
    %p10 = scmp.ge.s32.totalorder %s9, 4
    %s19 = sphi 0, %s21
    %s22 = sphi 0, %s19
    %s23 = sphi 0, %s22
    %s39 = sphi 0, %s23
    %s43 = sphi 0, %s43
    %s45 = sphi 0, %s43
    %s46 = sphi 0, %s45
    %s60 = sphi 0, %s46
    %s64 = sphi 0, %s64
    %s66 = sphi 0, %s64
    %s67 = sphi 0, %s66
    %s81 = sphi 0, %s67
    %s87 = sphi 0, %s89
    %s90 = sphi 0, %s87
    %s91 = sphi 0, %s90
    %s107 = sphi 0, %s91
  $region4: #{resnet_forward.22} parent=0 // loop_header_branch
    %12 = sbr.rel (%p10) target = $region8
  $region5: #{resnet_forward.22} parent=0 // loop_body
    %s14 = ssub.s32 %s9, 1
    %s15 = ssub.s32 %s9, 2
    %s16 = sadd.s32 %s9, 1
    %s17 = ssub.s32 %s9, %s16
    %p18 = scmp.eq.s32.totalorder %s17, 0
    %s20 = sadd.s32 %s19, 1
    %s21 = scalar_select %p18, %s19, %s20
    %p24 = pneg %p18
    %p25 = scmp.eq.s32.totalorder %s9, 1
    %p26 = por %p24, %p25
    %p27 = scmp.ne.s32.totalorder %s19, %s22
    %p28 = scmp.eq.s32.totalorder %s9, 0
    %p29 = por %p27, %p28
    %p30 = scmp.ne.s32.totalorder %s19, %s22
    %p31 = scmp.eq.s32.totalorder %s14, 1
    %p32 = por %p30, %p31
    %p33 = scmp.ne.s32.totalorder %s22, %s23
    %p34 = scmp.eq.s32.totalorder %s14, 0
    %p35 = por %p33, %p34
    %p36 = scmp.ne.s32.totalorder %s22, %s23
    %p37 = scmp.eq.s32.totalorder %s15, 1
    %p38 = por %p36, %p37
    %p40 = scmp.ne.s32.totalorder %s23, %s39
    %p41 = scmp.eq.s32.totalorder %s15, 0
    %p42 = por %p40, %p41
    %s44 = sadd.s32 %s43, 1
    %p47 = scmp.eq.s32.totalorder %s9, 1
    %p48 = scmp.ne.s32.totalorder %s43, %s45
    %p49 = scmp.eq.s32.totalorder %s9, 0
    %p50 = por %p48, %p49
    %p51 = scmp.ne.s32.totalorder %s43, %s45
    %p52 = scmp.eq.s32.totalorder %s14, 1
    %p53 = por %p51, %p52
    %p54 = scmp.ne.s32.totalorder %s45, %s46
    %p55 = scmp.eq.s32.totalorder %s14, 0
    %p56 = por %p54, %p55
    %p57 = scmp.ne.s32.totalorder %s45, %s46
    %p58 = scmp.eq.s32.totalorder %s15, 1
    %p59 = por %p57, %p58
    %p61 = scmp.ne.s32.totalorder %s46, %s60
    %p62 = scmp.eq.s32.totalorder %s15, 0
    %p63 = por %p61, %p62
    %s65 = sadd.s32 %s64, 1
    %p68 = scmp.eq.s32.totalorder %s9, 1
    %p69 = scmp.ne.s32.totalorder %s64, %s66
    %p70 = scmp.eq.s32.totalorder %s9, 0
    %p71 = por %p69, %p70
    %p72 = scmp.ne.s32.totalorder %s64, %s66
    %p73 = scmp.eq.s32.totalorder %s14, 1
    %p74 = por %p72, %p73
    %p75 = scmp.ne.s32.totalorder %s66, %s67
    %p76 = scmp.eq.s32.totalorder %s14, 0
    %p77 = por %p75, %p76
    %p78 = scmp.ne.s32.totalorder %s66, %s67
    %p79 = scmp.eq.s32.totalorder %s15, 1
    %p80 = por %p78, %p79
    %p82 = scmp.ne.s32.totalorder %s67, %s81
    %p83 = scmp.eq.s32.totalorder %s15, 0
    %p84 = por %p82, %p83
    %s85 = ssub.s32 %s9, %s16
    %p86 = scmp.eq.s32.totalorder %s85, 0
    %s88 = sadd.s32 %s87, 1
    %s89 = scalar_select %p86, %s87, %s88
    %p92 = pneg %p86
    %p93 = scmp.eq.s32.totalorder %s9, 1
    %p94 = por %p92, %p93
    %p95 = scmp.ne.s32.totalorder %s87, %s90
    %p96 = scmp.eq.s32.totalorder %s9, 0
    %p97 = por %p95, %p96
    %p98 = scmp.ne.s32.totalorder %s87, %s90
    %p99 = scmp.eq.s32.totalorder %s14, 1
    %p100 = por %p98, %p99
    %p101 = scmp.ne.s32.totalorder %s90, %s91
    %p102 = scmp.eq.s32.totalorder %s14, 0
    %p103 = por %p101, %p102
    %p104 = scmp.ne.s32.totalorder %s90, %s91
    %p105 = scmp.eq.s32.totalorder %s15, 1
    %p106 = por %p104, %p105
    %p108 = scmp.ne.s32.totalorder %s91, %s107
    %p109 = scmp.eq.s32.totalorder %s15, 0
    %p110 = por %p108, %p109
    %p111 = scmp.le.s32.totalorder 1, %s9
    %p112 = scmp.lt.s32.totalorder %s9, 3
    %p113 = pnand %p111, %p112
    %p114 = pneg %p113
    // Predicated region
    $region9: #{resnet_forward.22} parent=5 // pred_check
      _
    $region10: #{resnet_forward.22} parent=5 // pred_check_branch
      %116 = sbr.rel (%p113) target = $region12
    $region11: #{resnet_forward.22} parent=5 // pred_region
      %s117 = ssub.s32 %s9, 1
      // Predicated region
      $region13: #{resnet_forward.22} parent=11 // pred_check
        %p118 = pneg %p56
      $region14: #{resnet_forward.22} parent=11 // pred_check_branch
        %120 = sbr.rel (%p118) target = $region16
      $region15: #{resnet_forward.22} parent=11 // pred_region
        _
      $region16: #{resnet_forward.22} parent=11 // pred_fallthru
        _
      // Predicated region
      $region17: #{resnet_forward.22} parent=11 // pred_check
        %p121 = pneg %p77
      $region18: #{resnet_forward.22} parent=11 // pred_check_branch
        %123 = sbr.rel (%p121) target = $region20
      $region19: #{resnet_forward.22} parent=11 // pred_region
        _
      $region20: #{resnet_forward.22} parent=11 // pred_fallthru
        _
    $region12: #{resnet_forward.22} parent=5 // pred_fallthru
      _
    %p124 = scmp.lt.s32.totalorder %s9, 2
    // Predicated region
    $region21: #{resnet_forward.22} parent=5 // pred_check
      %p125 = pneg %p124
    $region22: #{resnet_forward.22} parent=5 // pred_check_branch
      %127 = sbr.rel (%p125) target = $region24
    $region23: #{resnet_forward.22} parent=5 // pred_region
      // Predicated region
      $region25: #{resnet_forward.22} parent=23 // pred_check
        %p128 = pneg %p29
      $region26: #{resnet_forward.22} parent=23 // pred_check_branch
        %130 = sbr.rel (%p128) target = $region28
      $region27: #{resnet_forward.22} parent=23 // pred_region
        %p131 = scmp.lt.s32.totalorder %s9, 1
        %s132 = scalar_select %p131, %s9, 1
        %s133 = smul.addr %s132, 160
        %s134 = smul.addr %s133, 4
        %s135 = scalar_lea.vmem %s0, %s134
      $region28: #{resnet_forward.22} parent=23 // pred_fallthru
        _
    $region24: #{resnet_forward.22} parent=5 // pred_fallthru
      _
    %p136 = scmp.le.s32.totalorder 1, %s9
    %p137 = scmp.lt.s32.totalorder %s9, 3
    %p138 = pnand %p136, %p137
    %p139 = pneg %p138
    // Predicated region
    $region29: #{resnet_forward.22} parent=5 // pred_check
      _
    $region30: #{resnet_forward.22} parent=5 // pred_check_branch
      %141 = sbr.rel (%p138) target = $region32
    $region31: #{resnet_forward.22} parent=5 // pred_region
      %s142 = ssub.s32 %s9, 1
      %p143 = scmp.lt.s32.totalorder %s14, 1
      %s144 = scalar_select %p143, %s14, 1
      %s145 = smul.addr %s144, 160
      %s146 = smul.addr %s145, 4
      %s147 = scalar_lea.vmem %s0, %s146
      %p148 = pneg %p35
      %p149 = pneg %p32
      %p150 = pneg %p56
      %p151 = pneg %p53
      %p152 = pneg %p77
      %p153 = pneg %p74
      %p154 = pneg %p103
      %p155 = pneg %p100
      %p156 = scmp.lt.s32.totalorder %s14, 1
      %s157 = scalar_select %p156, %s14, 1
      %s158 = smul.addr %s157, 32
      %s159 = smul.addr %s158, 8
      %s160 = scalar_lea.vmem %s3, %s159
      %p161 = scmp.lt.s32.totalorder %s14, 1
      %s162 = scalar_select %p161, %s14, 1
      %s163 = smul.addr %s162, 160
      %s164 = smul.addr %s163, 4
      %s165 = scalar_lea.vmem %s0, %s164
      %p166 = scmp.lt.s32.totalorder %s14, 1
      %s167 = scalar_select %p166, %s14, 1
      %s168 = smul.addr %s167, 32
      %s169 = smul.addr %s168, 8
      %s170 = scalar_lea.vmem %s3, %s169
      %v172 = vld [vmem:[%s165] sm:$0xff]
      %v173 = vld [vmem:[%s165 + $0x8] sm:$0xff]
      %v174 = vld [vmem:[%s165 + $0x10] sm:$0xf]
      %v175 = vld [vmem:[%s165 + $0x14] sm:$0xff]
      %v176 = vld [vmem:[%s165 + $0x1c] sm:$0xff]
      %v177 = vld [vmem:[%s165 + $0x24] sm:$0xf]
      %v178 = vld [vmem:[%s165 + $0x28] sm:$0xff]
      %v179 = vld [vmem:[%s165 + $0x30] sm:$0xff]
      %v180 = vld [vmem:[%s165 + $0x38] sm:$0xf]
      %v181 = vld [vmem:[%s165 + $0x3c] sm:$0xff]
      %v182 = vld [vmem:[%s165 + $0x44] sm:$0xff]
      %v183 = vld [vmem:[%s165 + $0x4c] sm:$0xf]
      %v184 = vld [vmem:[%s165 + $0x50] sm:$0xff]
      %v185 = vld [vmem:[%s165 + $0x58] sm:$0xff]
      %v186 = vld [vmem:[%s165 + $0x60] sm:$0xf]
      %v187 = vld [vmem:[%s165 + $0x64] sm:$0xff]
      %v188 = vld [vmem:[%s165 + $0x6c] sm:$0xff]
      %v189 = vld [vmem:[%s165 + $0x74] sm:$0xf]
      %v190 = vld [vmem:[%s165 + $0x78] sm:$0xff]
      %v191 = vld [vmem:[%s165 + $0x80] sm:$0xff]
      %v192 = vld [vmem:[%s165 + $0x88] sm:$0xf]
      %v193 = vld [vmem:[%s165 + $0x8c] sm:$0xff]
      %v194 = vld [vmem:[%s165 + $0x94] sm:$0xff]
      %v195 = vld [vmem:[%s165 + $0x9c] sm:$0xf]
      %v196 = vld [vmem:[%s165 + $0xa0] sm:$0xff]
      %v197 = vld [vmem:[%s165 + $0xa8] sm:$0xff]
      %v198 = vld [vmem:[%s165 + $0xb0] sm:$0xf]
      %v199 = vld [vmem:[%s165 + $0xb4] sm:$0xff]
      %v200 = vld [vmem:[%s165 + $0xbc] sm:$0xff]
      %v201 = vld [vmem:[%s165 + $0xc4] sm:$0xf]
      %v202 = vld [vmem:[%s165 + $0xc8] sm:$0xff]
      %v203 = vld [vmem:[%s165 + $0xd0] sm:$0xff]
      %v204 = vld [vmem:[%s165 + $0xd8] sm:$0xf]
      %v205 = vld [vmem:[%s165 + $0xdc] sm:$0xff]
      %v206 = vld [vmem:[%s165 + $0xe4] sm:$0xff]
      %v207 = vld [vmem:[%s165 + $0xec] sm:$0xf]
      %v208 = vld [vmem:[%s165 + $0xf0] sm:$0xff]
      %v209 = vld [vmem:[%s165 + $0xf8] sm:$0xff]
      %v210 = vld [vmem:[%s165 + $0x100] sm:$0xf]
      %v211 = vld [vmem:[%s165 + $0x104] sm:$0xff]
      %v212 = vld [vmem:[%s165 + $0x10c] sm:$0xff]
      %v213 = vld [vmem:[%s165 + $0x114] sm:$0xf]
      %v214 = vld [vmem:[%s165 + $0x118] sm:$0xff]
      %v215 = vld [vmem:[%s165 + $0x120] sm:$0xff]
      %v216 = vld [vmem:[%s165 + $0x128] sm:$0xf]
      %v217 = vld [vmem:[%s165 + $0x12c] sm:$0xff]
      %v218 = vld [vmem:[%s165 + $0x134] sm:$0xff]
      %v219 = vld [vmem:[%s165 + $0x13c] sm:$0xf]
      %v220 = vld [vmem:[%s165 + $0x140] sm:$0xff]
      %v221 = vld [vmem:[%s165 + $0x148] sm:$0xff]
      %v222 = vld [vmem:[%s165 + $0x150] sm:$0xf]
      %v223 = vld [vmem:[%s165 + $0x154] sm:$0xff]
      %v224 = vld [vmem:[%s165 + $0x15c] sm:$0xff]
      %v225 = vld [vmem:[%s165 + $0x164] sm:$0xf]
      %v226 = vld [vmem:[%s165 + $0x168] sm:$0xff]
      %v227 = vld [vmem:[%s165 + $0x170] sm:$0xff]
      %v228 = vld [vmem:[%s165 + $0x178] sm:$0xf]
      %v229 = vld [vmem:[%s165 + $0x17c] sm:$0xff]
      %v230 = vld [vmem:[%s165 + $0x184] sm:$0xff]
      %v231 = vld [vmem:[%s165 + $0x18c] sm:$0xf]
      %v232 = vld [vmem:[%s165 + $0x190] sm:$0xff]
      %v233 = vld [vmem:[%s165 + $0x198] sm:$0xff]
      %v234 = vld [vmem:[%s165 + $0x1a0] sm:$0xf]
      %v235 = vld [vmem:[%s165 + $0x1a4] sm:$0xff]
      %v236 = vld [vmem:[%s165 + $0x1ac] sm:$0xff]
      %v237 = vld [vmem:[%s165 + $0x1b4] sm:$0xf]
      %v238 = vld [vmem:[%s165 + $0x1b8] sm:$0xff]
      %v239 = vld [vmem:[%s165 + $0x1c0] sm:$0xff]
      %v240 = vld [vmem:[%s165 + $0x1c8] sm:$0xf]
      %v241 = vld [vmem:[%s165 + $0x1cc] sm:$0xff]
      %v242 = vld [vmem:[%s165 + $0x1d4] sm:$0xff]
      %v243 = vld [vmem:[%s165 + $0x1dc] sm:$0xf]
      %v244 = vld [vmem:[%s165 + $0x1e0] sm:$0xff]
      %v245 = vld [vmem:[%s165 + $0x1e8] sm:$0xff]
      %v246 = vld [vmem:[%s165 + $0x1f0] sm:$0xf]
      %v247 = vld [vmem:[%s165 + $0x1f4] sm:$0xff]
      %v248 = vld [vmem:[%s165 + $0x1fc] sm:$0xff]
      %v249 = vld [vmem:[%s165 + $0x204] sm:$0xf]
      %v250 = vld [vmem:[%s165 + $0x208] sm:$0xff]
      %v251 = vld [vmem:[%s165 + $0x210] sm:$0xff]
      %v252 = vld [vmem:[%s165 + $0x218] sm:$0xf]
      %v253 = vld [vmem:[%s165 + $0x21c] sm:$0xff]
      %v254 = vld [vmem:[%s165 + $0x224] sm:$0xff]
      %v255 = vld [vmem:[%s165 + $0x22c] sm:$0xf]
      %v256 = vld [vmem:[%s165 + $0x230] sm:$0xff]
      %v257 = vld [vmem:[%s165 + $0x238] sm:$0xff]
      %v258 = vld [vmem:[%s165 + $0x240] sm:$0xf]
      %v259 = vld [vmem:[%s165 + $0x244] sm:$0xff]
      %v260 = vld [vmem:[%s165 + $0x24c] sm:$0xff]
      %v261 = vld [vmem:[%s165 + $0x254] sm:$0xf]
      %v262 = vld [vmem:[%s165 + $0x258] sm:$0xff]
      %v263 = vld [vmem:[%s165 + $0x260] sm:$0xff]
      %v264 = vld [vmem:[%s165 + $0x268] sm:$0xf]
      %v265 = vld [vmem:[%s165 + $0x26c] sm:$0xff]
      %v266 = vld [vmem:[%s165 + $0x274] sm:$0xff]
      %v267 = vld [vmem:[%s165 + $0x27c] sm:$0xf]
      %v268 = vld [vmem:[%s1] sm:$0xf]
      %v269 = vld [vmem:[%s1 + $0x4] sm:$0xf]
      %v270 = vld [vmem:[%s1 + $0x8] sm:$0xf]
      %v271 = vld [vmem:[%s1 + $0xc] sm:$0xf]
      %v272 = vld [vmem:[%s1 + $0x10] sm:$0xf]
      %v273 = vld [vmem:[%s1 + $0x14] sm:$0xf]
      %v274 = vld [vmem:[%s1 + $0x18] sm:$0xf]
      %v275 = vld [vmem:[%s1 + $0x1c] sm:$0xf]
      %v276 = vld [vmem:[%s1 + $0x20] sm:$0xf]
      %v277 = vld [vmem:[%s1 + $0x24] sm:$0xf]
      %v278 = vld [vmem:[%s1 + $0x28] sm:$0xf]
      %v279 = vld [vmem:[%s1 + $0x2c] sm:$0xf]
      %v280 = vld [vmem:[%s1 + $0x30] sm:$0xf]
      %v281 = vld [vmem:[%s1 + $0x34] sm:$0xf]
      %v282 = vld [vmem:[%s1 + $0x38] sm:$0xf]
      %v283 = vld [vmem:[%s1 + $0x3c] sm:$0xf]
      %v284 = vld [vmem:[%s1 + $0x40] sm:$0xf]
      %v285 = vld [vmem:[%s1 + $0x44] sm:$0xf]
      %v286 = vld [vmem:[%s1 + $0x48] sm:$0xf]
      %v287 = vld [vmem:[%s1 + $0x4c] sm:$0xf]
      %v288 = vld [vmem:[%s1 + $0x50] sm:$0xf]
      %v289 = vld [vmem:[%s1 + $0x54] sm:$0xf]
      %v290 = vld [vmem:[%s1 + $0x58] sm:$0xf]
      %v291 = vld [vmem:[%s1 + $0x5c] sm:$0xf]
      %v292 = vld [vmem:[%s1 + $0x60] sm:$0xf]
      %v293 = vld [vmem:[%s1 + $0x64] sm:$0xf]
      %v294 = vld [vmem:[%s1 + $0x68] sm:$0xf]
      %v295 = vld [vmem:[%s1 + $0x6c] sm:$0xf]
      %v296 = vld [vmem:[%s1 + $0x70] sm:$0xf]
      %v297 = vld [vmem:[%s1 + $0x74] sm:$0xf]
      %v298 = vld [vmem:[%s1 + $0x78] sm:$0xf]
      %v299 = vld [vmem:[%s1 + $0x7c] sm:$0xf]
      %v300 = vld [vmem:[%s1 + $0x80] sm:$0xf]
      %v301 = vld [vmem:[%s1 + $0x84] sm:$0xf]
      %v302 = vld [vmem:[%s1 + $0x88] sm:$0xf]
      %v303 = vld [vmem:[%s1 + $0x8c] sm:$0xf]
      %v304 = vld [vmem:[%s1 + $0x90] sm:$0xf]
      %v305 = vld [vmem:[%s1 + $0x94] sm:$0xf]
      %v306 = vld [vmem:[%s1 + $0x98] sm:$0xf]
      %v307 = vld [vmem:[%s1 + $0x9c] sm:$0xf]
      %v308 = vld [vmem:[%s1 + $0xa0] sm:$0xf]
      %v309 = vld [vmem:[%s1 + $0xa4] sm:$0xf]
      %v310 = vld [vmem:[%s1 + $0xa8] sm:$0xf]
      %v311 = vld [vmem:[%s1 + $0xac] sm:$0xf]
      %v312 = vld [vmem:[%s1 + $0xb0] sm:$0xf]
      %v313 = vld [vmem:[%s1 + $0xb4] sm:$0xf]
      %v314 = vld [vmem:[%s1 + $0xb8] sm:$0xf]
      %v315 = vld [vmem:[%s1 + $0xbc] sm:$0xf]
      %v316 = vld [vmem:[%s1 + $0xc0] sm:$0xf]
      %v317 = vld [vmem:[%s1 + $0xc4] sm:$0xf]
      %v318 = vld [vmem:[%s1 + $0xc8] sm:$0xf]
      %v319 = vld [vmem:[%s1 + $0xcc] sm:$0xf]
      %v320 = vld [vmem:[%s1 + $0xd0] sm:$0xf]
      %v321 = vld [vmem:[%s1 + $0xd4] sm:$0xf]
      %v322 = vld [vmem:[%s1 + $0xd8] sm:$0xf]
      %v323 = vld [vmem:[%s1 + $0xdc] sm:$0xf]
      %v324 = vld [vmem:[%s1 + $0xe0] sm:$0xf]
      %v325 = vld [vmem:[%s1 + $0xe4] sm:$0xf]
      %v326 = vld [vmem:[%s1 + $0xe8] sm:$0xf]
      %v327 = vld [vmem:[%s1 + $0xec] sm:$0xf]
      %v328 = vld [vmem:[%s1 + $0xf0] sm:$0xf]
      %v329 = vld [vmem:[%s1 + $0xf4] sm:$0xf]
      %v330 = vld [vmem:[%s1 + $0xf8] sm:$0xf]
      %v331 = vld [vmem:[%s1 + $0xfc] sm:$0xf]
      %v332 = vld [vmem:[%s1 + $0x100] sm:$0xf]
      %v333 = vld [vmem:[%s1 + $0x104] sm:$0xf]
      %v334 = vld [vmem:[%s1 + $0x108] sm:$0xf]
      %v335 = vld [vmem:[%s1 + $0x10c] sm:$0xf]
      %v336 = vld [vmem:[%s1 + $0x110] sm:$0xf]
      %v337 = vld [vmem:[%s1 + $0x114] sm:$0xf]
      %v338 = vld [vmem:[%s1 + $0x118] sm:$0xf]
      %v339 = vld [vmem:[%s1 + $0x11c] sm:$0xf]
      %v340 = vld [vmem:[%s1 + $0x120] sm:$0xf]
      %v341 = vld [vmem:[%s1 + $0x124] sm:$0xf]
      %v342 = vld [vmem:[%s1 + $0x128] sm:$0xf]
      %v343 = vld [vmem:[%s1 + $0x12c] sm:$0xf]
      %v344 = vld [vmem:[%s1 + $0x130] sm:$0x3]
      %v345 = vld [vmem:[%s2] sm:$0x1]
      %v347 = vlaneseq
      %v348 = vshrl.u32 %v347, 7
      %v349 = vsub.s32 0, %v348
      %v350 = vrot.slane %v345, %v349
      %v448 = vunpack.c.l.b16 %v172
      %v449 = vunpack.c.h.b16 %v172
      %v450 = vunpack.c.l.b16 %v173
      %v451 = vunpack.c.h.b16 %v173
      %v452 = vunpack.c.l.b16 %v174
      %v453 = vunpack.c.l.b16 %v175
      %v454 = vunpack.c.h.b16 %v175
      %v455 = vunpack.c.l.b16 %v176
      %v456 = vunpack.c.h.b16 %v176
      %v457 = vunpack.c.l.b16 %v177
      %v458 = vunpack.c.l.b16 %v178
      %v459 = vunpack.c.h.b16 %v178
      %v460 = vunpack.c.l.b16 %v179
      %v461 = vunpack.c.h.b16 %v179
      %v462 = vunpack.c.l.b16 %v180
      %v463 = vunpack.c.l.b16 %v181
      %v464 = vunpack.c.h.b16 %v181
      %v465 = vunpack.c.l.b16 %v182
      %v466 = vunpack.c.h.b16 %v182
      %v467 = vunpack.c.l.b16 %v183
      %v468 = vunpack.c.l.b16 %v184
      %v469 = vunpack.c.h.b16 %v184
      %v470 = vunpack.c.l.b16 %v185
      %v471 = vunpack.c.h.b16 %v185
      %v472 = vunpack.c.l.b16 %v186
      %v473 = vunpack.c.l.b16 %v187
      %v474 = vunpack.c.h.b16 %v187
      %v475 = vunpack.c.l.b16 %v188
      %v476 = vunpack.c.h.b16 %v188
      %v477 = vunpack.c.l.b16 %v189
      %v478 = vunpack.c.l.b16 %v190
      %v479 = vunpack.c.h.b16 %v190
      %v480 = vunpack.c.l.b16 %v191
      %v481 = vunpack.c.h.b16 %v191
      %v482 = vunpack.c.l.b16 %v192
      %v483 = vunpack.c.l.b16 %v193
      %v484 = vunpack.c.h.b16 %v193
      %v485 = vunpack.c.l.b16 %v194
      %v486 = vunpack.c.h.b16 %v194
      %v487 = vunpack.c.l.b16 %v195
      %v488 = vunpack.c.l.b16 %v196
      %v489 = vunpack.c.h.b16 %v196
      %v490 = vunpack.c.l.b16 %v197
      %v491 = vunpack.c.h.b16 %v197
      %v492 = vunpack.c.l.b16 %v198
      %v493 = vunpack.c.l.b16 %v199
      %v494 = vunpack.c.h.b16 %v199
      %v495 = vunpack.c.l.b16 %v200
      %v496 = vunpack.c.h.b16 %v200
      %v497 = vunpack.c.l.b16 %v201
      %v498 = vunpack.c.l.b16 %v202
      %v499 = vunpack.c.h.b16 %v202
      %v500 = vunpack.c.l.b16 %v203
      %v501 = vunpack.c.h.b16 %v203
      %v502 = vunpack.c.l.b16 %v204
      %v503 = vunpack.c.l.b16 %v205
      %v504 = vunpack.c.h.b16 %v205
      %v505 = vunpack.c.l.b16 %v206
      %v506 = vunpack.c.h.b16 %v206
      %v507 = vunpack.c.l.b16 %v207
      %v508 = vunpack.c.l.b16 %v208
      %v509 = vunpack.c.h.b16 %v208
      %v510 = vunpack.c.l.b16 %v209
      %v511 = vunpack.c.h.b16 %v209
      %v512 = vunpack.c.l.b16 %v210
      %v513 = vunpack.c.l.b16 %v211
      %v514 = vunpack.c.h.b16 %v211
      %v515 = vunpack.c.l.b16 %v212
      %v516 = vunpack.c.h.b16 %v212
      %v517 = vunpack.c.l.b16 %v213
      %v518 = vunpack.c.l.b16 %v214
      %v519 = vunpack.c.h.b16 %v214
      %v520 = vunpack.c.l.b16 %v215
      %v521 = vunpack.c.h.b16 %v215
      %v522 = vunpack.c.l.b16 %v216
      %v523 = vunpack.c.l.b16 %v217
      %v524 = vunpack.c.h.b16 %v217
      %v525 = vunpack.c.l.b16 %v218
      %v526 = vunpack.c.h.b16 %v218
      %v527 = vunpack.c.l.b16 %v219
      %v528 = vunpack.c.l.b16 %v220
      %v529 = vunpack.c.h.b16 %v220
      %v530 = vunpack.c.l.b16 %v221
      %v531 = vunpack.c.h.b16 %v221
      %v532 = vunpack.c.l.b16 %v222
      %v533 = vunpack.c.l.b16 %v223
      %v534 = vunpack.c.h.b16 %v223
      %v535 = vunpack.c.l.b16 %v224
      %v536 = vunpack.c.h.b16 %v224
      %v537 = vunpack.c.l.b16 %v225
      %v538 = vunpack.c.l.b16 %v226
      %v539 = vunpack.c.h.b16 %v226
      %v540 = vunpack.c.l.b16 %v227
      %v541 = vunpack.c.h.b16 %v227
      %v542 = vunpack.c.l.b16 %v228
      %v543 = vunpack.c.l.b16 %v229
      %v544 = vunpack.c.h.b16 %v229
      %v545 = vunpack.c.l.b16 %v230
      %v546 = vunpack.c.h.b16 %v230
      %v547 = vunpack.c.l.b16 %v231
      %v548 = vunpack.c.l.b16 %v232
      %v549 = vunpack.c.h.b16 %v232
      %v550 = vunpack.c.l.b16 %v233
      %v551 = vunpack.c.h.b16 %v233
      %v552 = vunpack.c.l.b16 %v234
      %v553 = vunpack.c.l.b16 %v235
      %v554 = vunpack.c.h.b16 %v235
      %v555 = vunpack.c.l.b16 %v236
      %v556 = vunpack.c.h.b16 %v236
      %v557 = vunpack.c.l.b16 %v237
      %v558 = vunpack.c.l.b16 %v238
      %v559 = vunpack.c.h.b16 %v238
      %v560 = vunpack.c.l.b16 %v239
      %v561 = vunpack.c.h.b16 %v239
      %v562 = vunpack.c.l.b16 %v240
      %v563 = vunpack.c.l.b16 %v241
      %v564 = vunpack.c.h.b16 %v241
      %v565 = vunpack.c.l.b16 %v242
      %v566 = vunpack.c.h.b16 %v242
      %v567 = vunpack.c.l.b16 %v243
      %v568 = vunpack.c.l.b16 %v244
      %v569 = vunpack.c.h.b16 %v244
      %v570 = vunpack.c.l.b16 %v245
      %v571 = vunpack.c.h.b16 %v245
      %v572 = vunpack.c.l.b16 %v246
      %v573 = vunpack.c.l.b16 %v247
      %v574 = vunpack.c.h.b16 %v247
      %v575 = vunpack.c.l.b16 %v248
      %v576 = vunpack.c.h.b16 %v248
      %v577 = vunpack.c.l.b16 %v249
      %v578 = vunpack.c.l.b16 %v250
      %v579 = vunpack.c.h.b16 %v250
      %v580 = vunpack.c.l.b16 %v251
      %v581 = vunpack.c.h.b16 %v251
      %v582 = vunpack.c.l.b16 %v252
      %v583 = vunpack.c.l.b16 %v253
      %v584 = vunpack.c.h.b16 %v253
      %v585 = vunpack.c.l.b16 %v254
      %v586 = vunpack.c.h.b16 %v254
      %v587 = vunpack.c.l.b16 %v255
      %v588 = vunpack.c.l.b16 %v256
      %v589 = vunpack.c.h.b16 %v256
      %v590 = vunpack.c.l.b16 %v257
      %v591 = vunpack.c.h.b16 %v257
      %v592 = vunpack.c.l.b16 %v258
      %v593 = vunpack.c.l.b16 %v259
      %v594 = vunpack.c.h.b16 %v259
      %v595 = vunpack.c.l.b16 %v260
      %v596 = vunpack.c.h.b16 %v260
      %v597 = vunpack.c.l.b16 %v261
      %v598 = vunpack.c.l.b16 %v262
      %v599 = vunpack.c.h.b16 %v262
      %v600 = vunpack.c.l.b16 %v263
      %v601 = vunpack.c.h.b16 %v263
      %v602 = vunpack.c.l.b16 %v264
      %v603 = vunpack.c.l.b16 %v265
      %v604 = vunpack.c.h.b16 %v265
      %v605 = vunpack.c.l.b16 %v266
      %v606 = vunpack.c.h.b16 %v266
      %v607 = vunpack.c.l.b16 %v267
      %v608 = vpack.c.b16 %v453, %v448
      %v609 = vpack.c.b16 %v454, %v449
      %v610 = vpack.c.b16 %v455, %v450
      %v611 = vpack.c.b16 %v456, %v451
      %v612 = vpack.c.b16 %v457, %v452
      %v613 = vpack.c.b16 %v463, %v458
      %v614 = vpack.c.b16 %v464, %v459
      %v615 = vpack.c.b16 %v465, %v460
      %v616 = vpack.c.b16 %v466, %v461
      %v617 = vpack.c.b16 %v467, %v462
      %v618 = vpack.c.b16 %v473, %v468
      %v619 = vpack.c.b16 %v474, %v469
      %v620 = vpack.c.b16 %v475, %v470
      %v621 = vpack.c.b16 %v476, %v471
      %v622 = vpack.c.b16 %v477, %v472
      %v623 = vpack.c.b16 %v483, %v478
      %v624 = vpack.c.b16 %v484, %v479
      %v625 = vpack.c.b16 %v485, %v480
      %v626 = vpack.c.b16 %v486, %v481
      %v627 = vpack.c.b16 %v487, %v482
      %v628 = vpack.c.b16 %v493, %v488
      %v629 = vpack.c.b16 %v494, %v489
      %v630 = vpack.c.b16 %v495, %v490
      %v631 = vpack.c.b16 %v496, %v491
      %v632 = vpack.c.b16 %v497, %v492
      %v633 = vpack.c.b16 %v503, %v498
      %v634 = vpack.c.b16 %v504, %v499
      %v635 = vpack.c.b16 %v505, %v500
      %v636 = vpack.c.b16 %v506, %v501
      %v637 = vpack.c.b16 %v507, %v502
      %v638 = vpack.c.b16 %v513, %v508
      %v639 = vpack.c.b16 %v514, %v509
      %v640 = vpack.c.b16 %v515, %v510
      %v641 = vpack.c.b16 %v516, %v511
      %v642 = vpack.c.b16 %v517, %v512
      %v643 = vpack.c.b16 %v523, %v518
      %v644 = vpack.c.b16 %v524, %v519
      %v645 = vpack.c.b16 %v525, %v520
      %v646 = vpack.c.b16 %v526, %v521
      %v647 = vpack.c.b16 %v527, %v522
      %v648 = vpack.c.b16 %v533, %v528
      %v649 = vpack.c.b16 %v534, %v529
      %v650 = vpack.c.b16 %v535, %v530
      %v651 = vpack.c.b16 %v536, %v531
      %v652 = vpack.c.b16 %v537, %v532
      %v653 = vpack.c.b16 %v543, %v538
      %v654 = vpack.c.b16 %v544, %v539
      %v655 = vpack.c.b16 %v545, %v540
      %v656 = vpack.c.b16 %v546, %v541
      %v657 = vpack.c.b16 %v547, %v542
      %v658 = vpack.c.b16 %v553, %v548
      %v659 = vpack.c.b16 %v554, %v549
      %v660 = vpack.c.b16 %v555, %v550
      %v661 = vpack.c.b16 %v556, %v551
      %v662 = vpack.c.b16 %v557, %v552
      %v663 = vpack.c.b16 %v563, %v558
      %v664 = vpack.c.b16 %v564, %v559
      %v665 = vpack.c.b16 %v565, %v560
      %v666 = vpack.c.b16 %v566, %v561
      %v667 = vpack.c.b16 %v567, %v562
      %v668 = vpack.c.b16 %v573, %v568
      %v669 = vpack.c.b16 %v574, %v569
      %v670 = vpack.c.b16 %v575, %v570
      %v671 = vpack.c.b16 %v576, %v571
      %v672 = vpack.c.b16 %v577, %v572
      %v673 = vpack.c.b16 %v583, %v578
      %v674 = vpack.c.b16 %v584, %v579
      %v675 = vpack.c.b16 %v585, %v580
      %v676 = vpack.c.b16 %v586, %v581
      %v677 = vpack.c.b16 %v587, %v582
      %v678 = vpack.c.b16 %v593, %v588
      %v679 = vpack.c.b16 %v594, %v589
      %v680 = vpack.c.b16 %v595, %v590
      %v681 = vpack.c.b16 %v596, %v591
      %v682 = vpack.c.b16 %v597, %v592
      %v683 = vpack.c.b16 %v603, %v598
      %v684 = vpack.c.b16 %v604, %v599
      %v685 = vpack.c.b16 %v605, %v600
      %v686 = vpack.c.b16 %v606, %v601
      %v687 = vpack.c.b16 %v607, %v602
      %v829 = vunpack.c.l.b16 %v268
      %v830 = vunpack.c.l.b16 %v269
      %v831 = vunpack.c.l.b16 %v270
      %v832 = vunpack.c.l.b16 %v271
      %v833 = vunpack.c.l.b16 %v272
      %v834 = vunpack.c.l.b16 %v273
      %v835 = vunpack.c.l.b16 %v274
      %v836 = vunpack.c.l.b16 %v275
      %v837 = vunpack.c.l.b16 %v276
      %v838 = vunpack.c.l.b16 %v277
      %v839 = vunpack.c.l.b16 %v278
      %v840 = vunpack.c.l.b16 %v279
      %v841 = vunpack.c.l.b16 %v280
      %v842 = vunpack.c.l.b16 %v281
      %v843 = vunpack.c.l.b16 %v282
      %v844 = vunpack.c.l.b16 %v283
      %v845 = vunpack.c.l.b16 %v284
      %v846 = vunpack.c.l.b16 %v285
      %v847 = vunpack.c.l.b16 %v286
      %v848 = vunpack.c.l.b16 %v287
      %v849 = vunpack.c.l.b16 %v288
      %v850 = vunpack.c.l.b16 %v289
      %v851 = vunpack.c.l.b16 %v290
      %v852 = vunpack.c.l.b16 %v291
      %v853 = vunpack.c.l.b16 %v292
      %v854 = vunpack.c.l.b16 %v293
      %v855 = vunpack.c.l.b16 %v294
      %v856 = vunpack.c.l.b16 %v295
      %v857 = vunpack.c.l.b16 %v296
      %v858 = vunpack.c.l.b16 %v297
      %v859 = vunpack.c.l.b16 %v298
      %v860 = vunpack.c.l.b16 %v299
      %v861 = vunpack.c.l.b16 %v300
      %v862 = vunpack.c.l.b16 %v301
      %v863 = vunpack.c.l.b16 %v302
      %v864 = vunpack.c.l.b16 %v303
      %v865 = vunpack.c.l.b16 %v304
      %v866 = vunpack.c.l.b16 %v305
      %v867 = vunpack.c.l.b16 %v306
      %v868 = vunpack.c.l.b16 %v307
      %v869 = vunpack.c.l.b16 %v308
      %v870 = vunpack.c.l.b16 %v309
      %v871 = vunpack.c.l.b16 %v310
      %v872 = vunpack.c.l.b16 %v311
      %v873 = vunpack.c.l.b16 %v312
      %v874 = vunpack.c.l.b16 %v313
      %v875 = vunpack.c.l.b16 %v314
      %v876 = vunpack.c.l.b16 %v315
      %v877 = vunpack.c.l.b16 %v316
      %v878 = vunpack.c.l.b16 %v317
      %v879 = vunpack.c.l.b16 %v318
      %v880 = vunpack.c.l.b16 %v319
      %v881 = vunpack.c.l.b16 %v320
      %v882 = vunpack.c.l.b16 %v321
      %v883 = vunpack.c.l.b16 %v322
      %v884 = vunpack.c.l.b16 %v323
      %v885 = vunpack.c.l.b16 %v324
      %v886 = vunpack.c.l.b16 %v325
      %v887 = vunpack.c.l.b16 %v326
      %v888 = vunpack.c.l.b16 %v327
      %v889 = vunpack.c.l.b16 %v328
      %v890 = vunpack.c.l.b16 %v329
      %v891 = vunpack.c.l.b16 %v330
      %v892 = vunpack.c.l.b16 %v331
      %v893 = vunpack.c.l.b16 %v332
      %v894 = vunpack.c.l.b16 %v333
      %v895 = vunpack.c.l.b16 %v334
      %v896 = vunpack.c.l.b16 %v335
      %v897 = vunpack.c.l.b16 %v336
      %v898 = vunpack.c.l.b16 %v337
      %v899 = vunpack.c.l.b16 %v338
      %v900 = vunpack.c.l.b16 %v339
      %v901 = vunpack.c.l.b16 %v340
      %v902 = vunpack.c.l.b16 %v341
      %v903 = vunpack.c.l.b16 %v342
      %v904 = vunpack.c.l.b16 %v343
      %v905 = vunpack.c.l.b16 %v344
      %v906 = vpack.c.b16 %v830, %v829
      %v907 = vpack.c.b16 %v832, %v831
      %v908 = vpack.c.b16 %v834, %v833
      %v909 = vpack.c.b16 %v836, %v835
      %v910 = vpack.c.b16 %v838, %v837
      %v911 = vpack.c.b16 %v840, %v839
      %v912 = vpack.c.b16 %v842, %v841
      %v913 = vpack.c.b16 %v844, %v843
      %v914 = vpack.c.b16 %v846, %v845
      %v915 = vpack.c.b16 %v848, %v847
      %v916 = vpack.c.b16 %v850, %v849
      %v917 = vpack.c.b16 %v852, %v851
      %v918 = vpack.c.b16 %v854, %v853
      %v919 = vpack.c.b16 %v856, %v855
      %v920 = vpack.c.b16 %v858, %v857
      %v921 = vpack.c.b16 %v860, %v859
      %v922 = vpack.c.b16 %v862, %v861
      %v923 = vpack.c.b16 %v864, %v863
      %v924 = vpack.c.b16 %v866, %v865
      %v925 = vpack.c.b16 %v868, %v867
      %v926 = vpack.c.b16 %v870, %v869
      %v927 = vpack.c.b16 %v872, %v871
      %v928 = vpack.c.b16 %v874, %v873
      %v929 = vpack.c.b16 %v876, %v875
      %v930 = vpack.c.b16 %v878, %v877
      %v931 = vpack.c.b16 %v880, %v879
      %v932 = vpack.c.b16 %v882, %v881
      %v933 = vpack.c.b16 %v884, %v883
      %v934 = vpack.c.b16 %v886, %v885
      %v935 = vpack.c.b16 %v888, %v887
      %v936 = vpack.c.b16 %v890, %v889
      %v937 = vpack.c.b16 %v892, %v891
      %v938 = vpack.c.b16 %v894, %v893
      %v939 = vpack.c.b16 %v896, %v895
      %v940 = vpack.c.b16 %v898, %v897
      %v941 = vpack.c.b16 %v900, %v899
      %v942 = vpack.c.b16 %v902, %v901
      %v943 = vpack.c.b16 %v904, %v903
      %v944 = vpack.c.b16 %v905, %v905
      %vm983 = vcmask 818176
      %v985 = vsel %vm983, %v612, 0
      %v988 = vsel %vm983, %v617, 0
      %v991 = vsel %vm983, %v622, 0
      %v994 = vsel %vm983, %v627, 0
      %v997 = vsel %vm983, %v632, 0
      %v1000 = vsel %vm983, %v637, 0
      %v1003 = vsel %vm983, %v642, 0
      %v1006 = vsel %vm983, %v647, 0
      %v1009 = vsel %vm983, %v652, 0
      %v1012 = vsel %vm983, %v657, 0
      %v1015 = vsel %vm983, %v662, 0
      %v1018 = vsel %vm983, %v667, 0
      %v1021 = vsel %vm983, %v672, 0
      %v1024 = vsel %vm983, %v677, 0
      %v1027 = vsel %vm983, %v682, 0
      %v1030 = vsel %vm983, %v687, 0
      %vm1032 = vcmask 1041408
      %v1034 = vsel %vm1032, %v944, 0
      %1036 = vmatprep.subr.bf16.mxu0 0
      %1037 = vmatpush1.bf16.msra.mxu0 %v913
      %1038 = vmatprep.subr.bf16.mxu0 0
      %1039 = vmatpush1.bf16.msra.mxu0 %v912
      %1040 = vmatprep.subr.bf16.mxu0 0
      %1041 = vmatpush1.bf16.msra.mxu0 %v911
      %1042 = vmatprep.subr.bf16.mxu0 0
      %1043 = vmatpush1.bf16.msra.mxu0 %v910
      %1044 = vmatprep.subr.bf16.mxu0 0
      %1045 = vmatpush1.bf16.msra.mxu0 %v909
      %1046 = vmatprep.subr.bf16.mxu0 0
      %1047 = vmatpush1.bf16.msra.mxu0 %v908
      %1048 = vmatprep.subr.bf16.mxu0 0
      %1049 = vmatpush1.bf16.msra.mxu0 %v907
      %1050 = vmatprep.subr.bf16.mxu0 0
      %1051 = vmatpush1.bf16.msra.mxu0 %v906
      %1052 = vmatprep.subr.bf16.mxu0 0
      %1053 = vmatpush2.bf16.msra.mxu0 %v921
      %1054 = vmatprep.subr.bf16.mxu0 0
      %1055 = vmatpush2.bf16.msra.mxu0 %v920
      %1056 = vmatprep.subr.bf16.mxu0 0
      %1057 = vmatpush2.bf16.msra.mxu0 %v919
      %1058 = vmatprep.subr.bf16.mxu0 0
      %1059 = vmatpush2.bf16.msra.mxu0 %v918
      %1060 = vmatprep.subr.bf16.mxu0 0
      %1061 = vmatpush2.bf16.msra.mxu0 %v917
      %1062 = vmatprep.subr.bf16.mxu0 0
      %1063 = vmatpush2.bf16.msra.mxu0 %v916
      %1064 = vmatprep.subr.bf16.mxu0 0
      %1065 = vmatpush2.bf16.msra.mxu0 %v915
      %1066 = vmatprep.subr.bf16.mxu0 0
      %1067 = vmatpush2.bf16.msra.mxu0 %v914
      %1068 = vmatprep.mubr.bf16.mxu0 %v609
      %1069 = vmatmul.mubr.bf16.gmra.mxu0 %v608
      %v1070 = vpop.f32.mrf.mxu0
      %v1071 = vadd.f32 %v350, %v1070
      %v1072 = vpop.f32.mrf.mxu0
      %v1073 = vpop.f32.mrf.mxu0
      %v1074 = vadd.f32 %v350, %v1073
      %v1075 = vpop.f32.mrf.mxu0
      %1076 = vmatprep.mubr.bf16.mxu0 %v614
      %1077 = vmatmul.mubr.bf16.gmra.mxu0 %v613
      %v1078 = vpop.f32.mrf.mxu0
      %v1079 = vadd.f32 %v350, %v1078
      %v1080 = vpop.f32.mrf.mxu0
      %v1081 = vpop.f32.mrf.mxu0
      %v1082 = vadd.f32 %v350, %v1081
      %v1083 = vpop.f32.mrf.mxu0
      %1084 = vmatprep.mubr.bf16.mxu0 %v619
      %1085 = vmatmul.mubr.bf16.gmra.mxu0 %v618
      %v1086 = vpop.f32.mrf.mxu0
      %v1087 = vadd.f32 %v350, %v1086
      %v1088 = vpop.f32.mrf.mxu0
      %v1089 = vpop.f32.mrf.mxu0
      %v1090 = vadd.f32 %v350, %v1089
      %v1091 = vpop.f32.mrf.mxu0
      %1092 = vmatprep.mubr.bf16.mxu0 %v624
      %1093 = vmatmul.mubr.bf16.gmra.mxu0 %v623
      %v1094 = vpop.f32.mrf.mxu0
      %v1095 = vadd.f32 %v350, %v1094
      %v1096 = vpop.f32.mrf.mxu0
      %v1097 = vpop.f32.mrf.mxu0
      %v1098 = vadd.f32 %v350, %v1097
      %v1099 = vpop.f32.mrf.mxu0
      %1100 = vmatprep.mubr.bf16.mxu0 %v629
      %1101 = vmatmul.mubr.bf16.gmra.mxu0 %v628
      %v1102 = vpop.f32.mrf.mxu0
      %v1103 = vadd.f32 %v350, %v1102
      %v1104 = vpop.f32.mrf.mxu0
      %v1105 = vpop.f32.mrf.mxu0
      %v1106 = vadd.f32 %v350, %v1105
      %v1107 = vpop.f32.mrf.mxu0
      %1108 = vmatprep.mubr.bf16.mxu0 %v634
      %1109 = vmatmul.mubr.bf16.gmra.mxu0 %v633
      %v1110 = vpop.f32.mrf.mxu0
      %v1111 = vadd.f32 %v350, %v1110
      %v1112 = vpop.f32.mrf.mxu0
      %v1113 = vpop.f32.mrf.mxu0
      %v1114 = vadd.f32 %v350, %v1113
      %v1115 = vpop.f32.mrf.mxu0
      %1116 = vmatprep.mubr.bf16.mxu0 %v639
      %1117 = vmatmul.mubr.bf16.gmra.mxu0 %v638
      %v1118 = vpop.f32.mrf.mxu0
      %v1119 = vadd.f32 %v350, %v1118
      %v1120 = vpop.f32.mrf.mxu0
      %v1121 = vpop.f32.mrf.mxu0
      %v1122 = vadd.f32 %v350, %v1121
      %v1123 = vpop.f32.mrf.mxu0
      %1124 = vmatprep.mubr.bf16.mxu0 %v644
      %1125 = vmatmul.mubr.bf16.gmra.mxu0 %v643
      %v1126 = vpop.f32.mrf.mxu0
      %v1127 = vadd.f32 %v350, %v1126
      %v1128 = vpop.f32.mrf.mxu0
      %v1129 = vpop.f32.mrf.mxu0
      %v1130 = vadd.f32 %v350, %v1129
      %v1131 = vpop.f32.mrf.mxu0
      %1132 = vmatprep.mubr.bf16.mxu0 %v649
      %1133 = vmatmul.mubr.bf16.gmra.mxu0 %v648
      %v1134 = vpop.f32.mrf.mxu0
      %v1135 = vadd.f32 %v350, %v1134
      %v1136 = vpop.f32.mrf.mxu0
      %v1137 = vpop.f32.mrf.mxu0
      %v1138 = vadd.f32 %v350, %v1137
      %v1139 = vpop.f32.mrf.mxu0
      %1140 = vmatprep.mubr.bf16.mxu0 %v654
      %1141 = vmatmul.mubr.bf16.gmra.mxu0 %v653
      %v1142 = vpop.f32.mrf.mxu0
      %v1143 = vadd.f32 %v350, %v1142
      %v1144 = vpop.f32.mrf.mxu0
      %v1145 = vpop.f32.mrf.mxu0
      %v1146 = vadd.f32 %v350, %v1145
      %v1147 = vpop.f32.mrf.mxu0
      %1148 = vmatprep.mubr.bf16.mxu0 %v659
      %1149 = vmatmul.mubr.bf16.gmra.mxu0 %v658
      %v1150 = vpop.f32.mrf.mxu0
      %v1151 = vadd.f32 %v350, %v1150
      %v1152 = vpop.f32.mrf.mxu0
      %v1153 = vpop.f32.mrf.mxu0
      %v1154 = vadd.f32 %v350, %v1153
      %v1155 = vpop.f32.mrf.mxu0
      %1156 = vmatprep.mubr.bf16.mxu0 %v664
      %1157 = vmatmul.mubr.bf16.gmra.mxu0 %v663
      %v1158 = vpop.f32.mrf.mxu0
      %v1159 = vadd.f32 %v350, %v1158
      %v1160 = vpop.f32.mrf.mxu0
      %v1161 = vpop.f32.mrf.mxu0
      %v1162 = vadd.f32 %v350, %v1161
      %v1163 = vpop.f32.mrf.mxu0
      %1164 = vmatprep.mubr.bf16.mxu0 %v669
      %1165 = vmatmul.mubr.bf16.gmra.mxu0 %v668
      %v1166 = vpop.f32.mrf.mxu0
      %v1167 = vadd.f32 %v350, %v1166
      %v1168 = vpop.f32.mrf.mxu0
      %v1169 = vpop.f32.mrf.mxu0
      %v1170 = vadd.f32 %v350, %v1169
      %v1171 = vpop.f32.mrf.mxu0
      %1172 = vmatprep.mubr.bf16.mxu0 %v674
      %1173 = vmatmul.mubr.bf16.gmra.mxu0 %v673
      %v1174 = vpop.f32.mrf.mxu0
      %v1175 = vadd.f32 %v350, %v1174
      %v1176 = vpop.f32.mrf.mxu0
      %v1177 = vpop.f32.mrf.mxu0
      %v1178 = vadd.f32 %v350, %v1177
      %v1179 = vpop.f32.mrf.mxu0
      %1180 = vmatprep.mubr.bf16.mxu0 %v679
      %1181 = vmatmul.mubr.bf16.gmra.mxu0 %v678
      %v1182 = vpop.f32.mrf.mxu0
      %v1183 = vadd.f32 %v350, %v1182
      %v1184 = vpop.f32.mrf.mxu0
      %v1185 = vpop.f32.mrf.mxu0
      %v1186 = vadd.f32 %v350, %v1185
      %v1187 = vpop.f32.mrf.mxu0
      %1188 = vmatprep.mubr.bf16.mxu0 %v684
      %1189 = vmatmul.mubr.bf16.gmra.mxu0 %v683
      %v1190 = vpop.f32.mrf.mxu0
      %v1191 = vadd.f32 %v350, %v1190
      %v1192 = vpop.f32.mrf.mxu0
      %v1193 = vpop.f32.mrf.mxu0
      %v1194 = vadd.f32 %v350, %v1193
      %v1195 = vpop.f32.mrf.mxu0
      %1196 = vdwg.mxu0
      %1197 = vmatprep.subr.bf16.mxu0 0
      %1198 = vmatpush1.bf16.msra.mxu0 %v929
      %1199 = vmatprep.subr.bf16.mxu0 0
      %1200 = vmatpush1.bf16.msra.mxu0 %v928
      %1201 = vmatprep.subr.bf16.mxu0 0
      %1202 = vmatpush1.bf16.msra.mxu0 %v927
      %1203 = vmatprep.subr.bf16.mxu0 0
      %1204 = vmatpush1.bf16.msra.mxu0 %v926
      %1205 = vmatprep.subr.bf16.mxu0 0
      %1206 = vmatpush1.bf16.msra.mxu0 %v925
      %1207 = vmatprep.subr.bf16.mxu0 0
      %1208 = vmatpush1.bf16.msra.mxu0 %v924
      %1209 = vmatprep.subr.bf16.mxu0 0
      %1210 = vmatpush1.bf16.msra.mxu0 %v923
      %1211 = vmatprep.subr.bf16.mxu0 0
      %1212 = vmatpush1.bf16.msra.mxu0 %v922
      %1213 = vmatprep.subr.bf16.mxu0 0
      %1214 = vmatpush2.bf16.msra.mxu0 %v937
      %1215 = vmatprep.subr.bf16.mxu0 0
      %1216 = vmatpush2.bf16.msra.mxu0 %v936
      %1217 = vmatprep.subr.bf16.mxu0 0
      %1218 = vmatpush2.bf16.msra.mxu0 %v935
      %1219 = vmatprep.subr.bf16.mxu0 0
      %1220 = vmatpush2.bf16.msra.mxu0 %v934
      %1221 = vmatprep.subr.bf16.mxu0 0
      %1222 = vmatpush2.bf16.msra.mxu0 %v933
      %1223 = vmatprep.subr.bf16.mxu0 0
      %1224 = vmatpush2.bf16.msra.mxu0 %v932
      %1225 = vmatprep.subr.bf16.mxu0 0
      %1226 = vmatpush2.bf16.msra.mxu0 %v931
      %1227 = vmatprep.subr.bf16.mxu0 0
      %1228 = vmatpush2.bf16.msra.mxu0 %v930
      %1229 = vmatprep.mubr.bf16.mxu0 %v611
      %1230 = vmatmul.mubr.bf16.gmra.mxu0 %v610
      %v1231 = vpop.f32.mrf.mxu0
      %v1232 = vadd.f32 %v1071, %v1231
      %v1233 = vpop.f32.mrf.mxu0
      %v1234 = vpop.f32.mrf.mxu0
      %v1235 = vadd.f32 %v1074, %v1234
      %v1236 = vpop.f32.mrf.mxu0
      %1237 = vmatprep.mubr.bf16.mxu0 %v616
      %1238 = vmatmul.mubr.bf16.gmra.mxu0 %v615
      %v1239 = vpop.f32.mrf.mxu0
      %v1240 = vadd.f32 %v1079, %v1239
      %v1241 = vpop.f32.mrf.mxu0
      %v1242 = vpop.f32.mrf.mxu0
      %v1243 = vadd.f32 %v1082, %v1242
      %v1244 = vpop.f32.mrf.mxu0
      %1245 = vmatprep.mubr.bf16.mxu0 %v621
      %1246 = vmatmul.mubr.bf16.gmra.mxu0 %v620
      %v1247 = vpop.f32.mrf.mxu0
      %v1248 = vadd.f32 %v1087, %v1247
      %v1249 = vpop.f32.mrf.mxu0
      %v1250 = vpop.f32.mrf.mxu0
      %v1251 = vadd.f32 %v1090, %v1250
      %v1252 = vpop.f32.mrf.mxu0
      %1253 = vmatprep.mubr.bf16.mxu0 %v626
      %1254 = vmatmul.mubr.bf16.gmra.mxu0 %v625
      %v1255 = vpop.f32.mrf.mxu0
      %v1256 = vadd.f32 %v1095, %v1255
      %v1257 = vpop.f32.mrf.mxu0
      %v1258 = vpop.f32.mrf.mxu0
      %v1259 = vadd.f32 %v1098, %v1258
      %v1260 = vpop.f32.mrf.mxu0
      %1261 = vmatprep.mubr.bf16.mxu0 %v631
      %1262 = vmatmul.mubr.bf16.gmra.mxu0 %v630
      %v1263 = vpop.f32.mrf.mxu0
      %v1264 = vadd.f32 %v1103, %v1263
      %v1265 = vpop.f32.mrf.mxu0
      %v1266 = vpop.f32.mrf.mxu0
      %v1267 = vadd.f32 %v1106, %v1266
      %v1268 = vpop.f32.mrf.mxu0
      %1269 = vmatprep.mubr.bf16.mxu0 %v636
      %1270 = vmatmul.mubr.bf16.gmra.mxu0 %v635
      %v1271 = vpop.f32.mrf.mxu0
      %v1272 = vadd.f32 %v1111, %v1271
      %v1273 = vpop.f32.mrf.mxu0
      %v1274 = vpop.f32.mrf.mxu0
      %v1275 = vadd.f32 %v1114, %v1274
      %v1276 = vpop.f32.mrf.mxu0
      %1277 = vmatprep.mubr.bf16.mxu0 %v641
      %1278 = vmatmul.mubr.bf16.gmra.mxu0 %v640
      %v1279 = vpop.f32.mrf.mxu0
      %v1280 = vadd.f32 %v1119, %v1279
      %v1281 = vpop.f32.mrf.mxu0
      %v1282 = vpop.f32.mrf.mxu0
      %v1283 = vadd.f32 %v1122, %v1282
      %v1284 = vpop.f32.mrf.mxu0
      %1285 = vmatprep.mubr.bf16.mxu0 %v646
      %1286 = vmatmul.mubr.bf16.gmra.mxu0 %v645
      %v1287 = vpop.f32.mrf.mxu0
      %v1288 = vadd.f32 %v1127, %v1287
      %v1289 = vpop.f32.mrf.mxu0
      %v1290 = vpop.f32.mrf.mxu0
      %v1291 = vadd.f32 %v1130, %v1290
      %v1292 = vpop.f32.mrf.mxu0
      %1293 = vmatprep.mubr.bf16.mxu0 %v651
      %1294 = vmatmul.mubr.bf16.gmra.mxu0 %v650
      %v1295 = vpop.f32.mrf.mxu0
      %v1296 = vadd.f32 %v1135, %v1295
      %v1297 = vpop.f32.mrf.mxu0
      %v1298 = vpop.f32.mrf.mxu0
      %v1299 = vadd.f32 %v1138, %v1298
      %v1300 = vpop.f32.mrf.mxu0
      %1301 = vmatprep.mubr.bf16.mxu0 %v656
      %1302 = vmatmul.mubr.bf16.gmra.mxu0 %v655
      %v1303 = vpop.f32.mrf.mxu0
      %v1304 = vadd.f32 %v1143, %v1303
      %v1305 = vpop.f32.mrf.mxu0
      %v1306 = vpop.f32.mrf.mxu0
      %v1307 = vadd.f32 %v1146, %v1306
      %v1308 = vpop.f32.mrf.mxu0
      %1309 = vmatprep.mubr.bf16.mxu0 %v661
      %1310 = vmatmul.mubr.bf16.gmra.mxu0 %v660
      %v1311 = vpop.f32.mrf.mxu0
      %v1312 = vadd.f32 %v1151, %v1311
      %v1313 = vpop.f32.mrf.mxu0
      %v1314 = vpop.f32.mrf.mxu0
      %v1315 = vadd.f32 %v1154, %v1314
      %v1316 = vpop.f32.mrf.mxu0
      %1317 = vmatprep.mubr.bf16.mxu0 %v666
      %1318 = vmatmul.mubr.bf16.gmra.mxu0 %v665
      %v1319 = vpop.f32.mrf.mxu0
      %v1320 = vadd.f32 %v1159, %v1319
      %v1321 = vpop.f32.mrf.mxu0
      %v1322 = vpop.f32.mrf.mxu0
      %v1323 = vadd.f32 %v1162, %v1322
      %v1324 = vpop.f32.mrf.mxu0
      %1325 = vmatprep.mubr.bf16.mxu0 %v671
      %1326 = vmatmul.mubr.bf16.gmra.mxu0 %v670
      %v1327 = vpop.f32.mrf.mxu0
      %v1328 = vadd.f32 %v1167, %v1327
      %v1329 = vpop.f32.mrf.mxu0
      %v1330 = vpop.f32.mrf.mxu0
      %v1331 = vadd.f32 %v1170, %v1330
      %v1332 = vpop.f32.mrf.mxu0
      %1333 = vmatprep.mubr.bf16.mxu0 %v676
      %1334 = vmatmul.mubr.bf16.gmra.mxu0 %v675
      %v1335 = vpop.f32.mrf.mxu0
      %v1336 = vadd.f32 %v1175, %v1335
      %v1337 = vpop.f32.mrf.mxu0
      %v1338 = vpop.f32.mrf.mxu0
      %v1339 = vadd.f32 %v1178, %v1338
      %v1340 = vpop.f32.mrf.mxu0
      %1341 = vmatprep.mubr.bf16.mxu0 %v681
      %1342 = vmatmul.mubr.bf16.gmra.mxu0 %v680
      %v1343 = vpop.f32.mrf.mxu0
      %v1344 = vadd.f32 %v1183, %v1343
      %v1345 = vpop.f32.mrf.mxu0
      %v1346 = vpop.f32.mrf.mxu0
      %v1347 = vadd.f32 %v1186, %v1346
      %v1348 = vpop.f32.mrf.mxu0
      %1349 = vmatprep.mubr.bf16.mxu0 %v686
      %1350 = vmatmul.mubr.bf16.gmra.mxu0 %v685
      %v1351 = vpop.f32.mrf.mxu0
      %v1352 = vadd.f32 %v1191, %v1351
      %v1353 = vpop.f32.mrf.mxu0
      %v1354 = vpop.f32.mrf.mxu0
      %v1355 = vadd.f32 %v1194, %v1354
      %v1356 = vpop.f32.mrf.mxu0
      %1357 = vdwg.mxu0
      %1358 = vmatprep.subr.bf16.mxu0 0
      %1359 = vmatpush1.bf16.msra.mxu0 0
      %1360 = vmatprep.subr.bf16.mxu0 0
      %1361 = vmatpush1.bf16.msra.mxu0 %v1034
      %1362 = vmatprep.subr.bf16.mxu0 0
      %1363 = vmatpush1.bf16.msra.mxu0 %v943
      %1364 = vmatprep.subr.bf16.mxu0 0
      %1365 = vmatpush1.bf16.msra.mxu0 %v942
      %1366 = vmatprep.subr.bf16.mxu0 0
      %1367 = vmatpush1.bf16.msra.mxu0 %v941
      %1368 = vmatprep.subr.bf16.mxu0 0
      %1369 = vmatpush1.bf16.msra.mxu0 %v940
      %1370 = vmatprep.subr.bf16.mxu0 0
      %1371 = vmatpush1.bf16.msra.mxu0 %v939
      %1372 = vmatprep.subr.bf16.mxu0 0
      %1373 = vmatpush1.bf16.msra.mxu0 %v938
      %1374 = vmatprep.subr.bf16.mxu0 0
      %1375 = vmatpush2.bf16.msra.mxu0 0
      %1376 = vmatprep.subr.bf16.mxu0 0
      %1377 = vmatpush2.bf16.msra.mxu0 0
      %1378 = vmatprep.subr.bf16.mxu0 0
      %1379 = vmatpush2.bf16.msra.mxu0 0
      %1380 = vmatprep.subr.bf16.mxu0 0
      %1381 = vmatpush2.bf16.msra.mxu0 0
      %1382 = vmatprep.subr.bf16.mxu0 0
      %1383 = vmatpush2.bf16.msra.mxu0 0
      %1384 = vmatprep.subr.bf16.mxu0 0
      %1385 = vmatpush2.bf16.msra.mxu0 0
      %1386 = vmatprep.subr.bf16.mxu0 0
      %1387 = vmatpush2.bf16.msra.mxu0 0
      %1388 = vmatprep.subr.bf16.mxu0 0
      %1389 = vmatpush2.bf16.msra.mxu0 0
      %1390 = vmatprep.mubr.bf16.mxu0 0
      %1391 = vmatmul.mubr.bf16.gmra.mxu0 %v985
      %v1392 = vpop.f32.mrf.mxu0
      %v1393 = vadd.f32 %v1232, %v1392
      %v1394 = vpop.f32.mrf.mxu0
      %v1395 = vpop.f32.mrf.mxu0
      %v1396 = vadd.f32 %v1235, %v1395
      %v1397 = vpop.f32.mrf.mxu0
      %1398 = vmatprep.mubr.bf16.mxu0 0
      %1399 = vmatmul.mubr.bf16.gmra.mxu0 %v988
      %v1400 = vpop.f32.mrf.mxu0
      %v1401 = vadd.f32 %v1240, %v1400
      %v1402 = vpop.f32.mrf.mxu0
      %v1403 = vpop.f32.mrf.mxu0
      %v1404 = vadd.f32 %v1243, %v1403
      %v1405 = vpop.f32.mrf.mxu0
      %1406 = vmatprep.mubr.bf16.mxu0 0
      %1407 = vmatmul.mubr.bf16.gmra.mxu0 %v991
      %v1408 = vpop.f32.mrf.mxu0
      %v1409 = vadd.f32 %v1248, %v1408
      %v1410 = vpop.f32.mrf.mxu0
      %v1411 = vpop.f32.mrf.mxu0
      %v1412 = vadd.f32 %v1251, %v1411
      %v1413 = vpop.f32.mrf.mxu0
      %1414 = vmatprep.mubr.bf16.mxu0 0
      %1415 = vmatmul.mubr.bf16.gmra.mxu0 %v994
      %v1416 = vpop.f32.mrf.mxu0
      %v1417 = vadd.f32 %v1256, %v1416
      %v1418 = vpop.f32.mrf.mxu0
      %v1419 = vpop.f32.mrf.mxu0
      %v1420 = vadd.f32 %v1259, %v1419
      %v1421 = vpop.f32.mrf.mxu0
      %1422 = vmatprep.mubr.bf16.mxu0 0
      %1423 = vmatmul.mubr.bf16.gmra.mxu0 %v997
      %v1424 = vpop.f32.mrf.mxu0
      %v1425 = vadd.f32 %v1264, %v1424
      %v1426 = vpop.f32.mrf.mxu0
      %v1427 = vpop.f32.mrf.mxu0
      %v1428 = vadd.f32 %v1267, %v1427
      %v1429 = vpop.f32.mrf.mxu0
      %1430 = vmatprep.mubr.bf16.mxu0 0
      %1431 = vmatmul.mubr.bf16.gmra.mxu0 %v1000
      %v1432 = vpop.f32.mrf.mxu0
      %v1433 = vadd.f32 %v1272, %v1432
      %v1434 = vpop.f32.mrf.mxu0
      %v1435 = vpop.f32.mrf.mxu0
      %v1436 = vadd.f32 %v1275, %v1435
      %v1437 = vpop.f32.mrf.mxu0
      %1438 = vmatprep.mubr.bf16.mxu0 0
      %1439 = vmatmul.mubr.bf16.gmra.mxu0 %v1003
      %v1440 = vpop.f32.mrf.mxu0
      %v1441 = vadd.f32 %v1280, %v1440
      %v1442 = vpop.f32.mrf.mxu0
      %v1443 = vpop.f32.mrf.mxu0
      %v1444 = vadd.f32 %v1283, %v1443
      %v1445 = vpop.f32.mrf.mxu0
      %1446 = vmatprep.mubr.bf16.mxu0 0
      %1447 = vmatmul.mubr.bf16.gmra.mxu0 %v1006
      %v1448 = vpop.f32.mrf.mxu0
      %v1449 = vadd.f32 %v1288, %v1448
      %v1450 = vpop.f32.mrf.mxu0
      %v1451 = vpop.f32.mrf.mxu0
      %v1452 = vadd.f32 %v1291, %v1451
      %v1453 = vpop.f32.mrf.mxu0
      %1454 = vmatprep.mubr.bf16.mxu0 0
      %1455 = vmatmul.mubr.bf16.gmra.mxu0 %v1009
      %v1456 = vpop.f32.mrf.mxu0
      %v1457 = vadd.f32 %v1296, %v1456
      %v1458 = vpop.f32.mrf.mxu0
      %v1459 = vpop.f32.mrf.mxu0
      %v1460 = vadd.f32 %v1299, %v1459
      %v1461 = vpop.f32.mrf.mxu0
      %1462 = vmatprep.mubr.bf16.mxu0 0
      %1463 = vmatmul.mubr.bf16.gmra.mxu0 %v1012
      %v1464 = vpop.f32.mrf.mxu0
      %v1465 = vadd.f32 %v1304, %v1464
      %v1466 = vpop.f32.mrf.mxu0
      %v1467 = vpop.f32.mrf.mxu0
      %v1468 = vadd.f32 %v1307, %v1467
      %v1469 = vpop.f32.mrf.mxu0
      %1470 = vmatprep.mubr.bf16.mxu0 0
      %1471 = vmatmul.mubr.bf16.gmra.mxu0 %v1015
      %v1472 = vpop.f32.mrf.mxu0
      %v1473 = vadd.f32 %v1312, %v1472
      %v1474 = vpop.f32.mrf.mxu0
      %v1475 = vpop.f32.mrf.mxu0
      %v1476 = vadd.f32 %v1315, %v1475
      %v1477 = vpop.f32.mrf.mxu0
      %1478 = vmatprep.mubr.bf16.mxu0 0
      %1479 = vmatmul.mubr.bf16.gmra.mxu0 %v1018
      %v1480 = vpop.f32.mrf.mxu0
      %v1481 = vadd.f32 %v1320, %v1480
      %v1482 = vpop.f32.mrf.mxu0
      %v1483 = vpop.f32.mrf.mxu0
      %v1484 = vadd.f32 %v1323, %v1483
      %v1485 = vpop.f32.mrf.mxu0
      %1486 = vmatprep.mubr.bf16.mxu0 0
      %1487 = vmatmul.mubr.bf16.gmra.mxu0 %v1021
      %v1488 = vpop.f32.mrf.mxu0
      %v1489 = vadd.f32 %v1328, %v1488
      %v1490 = vpop.f32.mrf.mxu0
      %v1491 = vpop.f32.mrf.mxu0
      %v1492 = vadd.f32 %v1331, %v1491
      %v1493 = vpop.f32.mrf.mxu0
      %1494 = vmatprep.mubr.bf16.mxu0 0
      %1495 = vmatmul.mubr.bf16.gmra.mxu0 %v1024
      %v1496 = vpop.f32.mrf.mxu0
      %v1497 = vadd.f32 %v1336, %v1496
      %v1498 = vpop.f32.mrf.mxu0
      %v1499 = vpop.f32.mrf.mxu0
      %v1500 = vadd.f32 %v1339, %v1499
      %v1501 = vpop.f32.mrf.mxu0
      %1502 = vmatprep.mubr.bf16.mxu0 0
      %1503 = vmatmul.mubr.bf16.gmra.mxu0 %v1027
      %v1504 = vpop.f32.mrf.mxu0
      %v1505 = vadd.f32 %v1344, %v1504
      %v1506 = vpop.f32.mrf.mxu0
      %v1507 = vpop.f32.mrf.mxu0
      %v1508 = vadd.f32 %v1347, %v1507
      %v1509 = vpop.f32.mrf.mxu0
      %1510 = vmatprep.mubr.bf16.mxu0 0
      %1511 = vmatmul.mubr.bf16.gmra.mxu0 %v1030
      %v1512 = vpop.f32.mrf.mxu0
      %v1513 = vadd.f32 %v1352, %v1512
      %v1514 = vpop.f32.mrf.mxu0
      %v1515 = vpop.f32.mrf.mxu0
      %v1516 = vadd.f32 %v1355, %v1515
      %v1517 = vpop.f32.mrf.mxu0
      %1518 = vdwg.mxu0
      %vm1519 = vcmask 261120
      %v1520 = vsel %vm1519, %v1393, 0.0
      %v1521 = vsel %vm1519, %v1396, 0.0
      %v1522 = vadd.f32 %v1520, %v1521
      %v1523 = vsel %vm1519, %v1401, 0.0
      %v1524 = vadd.f32 %v1522, %v1523
      %v1525 = vsel %vm1519, %v1404, 0.0
      %v1526 = vadd.f32 %v1524, %v1525
      %v1527 = vsel %vm1519, %v1409, 0.0
      %v1528 = vadd.f32 %v1526, %v1527
      %v1529 = vsel %vm1519, %v1412, 0.0
      %v1530 = vadd.f32 %v1528, %v1529
      %v1531 = vsel %vm1519, %v1417, 0.0
      %v1532 = vadd.f32 %v1530, %v1531
      %v1533 = vsel %vm1519, %v1420, 0.0
      %v1534 = vadd.f32 %v1532, %v1533
      %v1535 = vsel %vm1519, %v1425, 0.0
      %v1536 = vadd.f32 %v1534, %v1535
      %v1537 = vsel %vm1519, %v1428, 0.0
      %v1538 = vadd.f32 %v1536, %v1537
      %v1539 = vsel %vm1519, %v1433, 0.0
      %v1540 = vadd.f32 %v1538, %v1539
      %v1541 = vsel %vm1519, %v1436, 0.0
      %v1542 = vadd.f32 %v1540, %v1541
      %v1543 = vsel %vm1519, %v1441, 0.0
      %v1544 = vadd.f32 %v1542, %v1543
      %v1545 = vsel %vm1519, %v1444, 0.0
      %v1546 = vadd.f32 %v1544, %v1545
      %v1547 = vsel %vm1519, %v1449, 0.0
      %v1548 = vadd.f32 %v1546, %v1547
      %v1549 = vsel %vm1519, %v1452, 0.0
      %v1550 = vadd.f32 %v1548, %v1549
      %v1551 = vsel %vm1519, %v1457, 0.0
      %v1552 = vadd.f32 %v1550, %v1551
      %v1553 = vsel %vm1519, %v1460, 0.0
      %v1554 = vadd.f32 %v1552, %v1553
      %v1555 = vsel %vm1519, %v1465, 0.0
      %v1556 = vadd.f32 %v1554, %v1555
      %v1557 = vsel %vm1519, %v1468, 0.0
      %v1558 = vadd.f32 %v1556, %v1557
      %v1559 = vsel %vm1519, %v1473, 0.0
      %v1560 = vadd.f32 %v1558, %v1559
      %v1561 = vsel %vm1519, %v1476, 0.0
      %v1562 = vadd.f32 %v1560, %v1561
      %v1563 = vsel %vm1519, %v1481, 0.0
      %v1564 = vadd.f32 %v1562, %v1563
      %v1565 = vsel %vm1519, %v1484, 0.0
      %v1566 = vadd.f32 %v1564, %v1565
      %v1567 = vsel %vm1519, %v1489, 0.0
      %v1568 = vadd.f32 %v1566, %v1567
      %v1569 = vsel %vm1519, %v1492, 0.0
      %v1570 = vadd.f32 %v1568, %v1569
      %v1571 = vsel %vm1519, %v1497, 0.0
      %v1572 = vadd.f32 %v1570, %v1571
      %v1573 = vsel %vm1519, %v1500, 0.0
      %v1574 = vadd.f32 %v1572, %v1573
      %v1575 = vsel %vm1519, %v1505, 0.0
      %v1576 = vadd.f32 %v1574, %v1575
      %v1577 = vsel %vm1519, %v1508, 0.0
      %v1578 = vadd.f32 %v1576, %v1577
      %v1579 = vsel %vm1519, %v1513, 0.0
      %v1580 = vadd.f32 %v1578, %v1579
      %v1581 = vsel %vm1519, %v1516, 0.0
      %v1582 = vadd.f32 %v1580, %v1581
      %v1583 = vrot.slane %v1582, 4
      %v1584 = vadd.f32 %v1582, %v1583
      %v1585 = vrot.slane %v1584, 2
      %v1586 = vadd.f32 %v1584, %v1585
      %v1587 = vrot.slane %v1586, 1
      %v1588 = vadd.f32 %v1586, %v1587
      %v1589 = vrcp.pop 256.0
      %v1590 = vmul.f32 %v1588, %v1589
      %v1591 = vsub.f32 %v1393, %v1590
      %v1592 = vsub.f32 %v1396, %v1590
      %v1593 = vsub.f32 %v1401, %v1590
      %v1594 = vsub.f32 %v1404, %v1590
      %v1595 = vsub.f32 %v1409, %v1590
      %v1596 = vsub.f32 %v1412, %v1590
      %v1597 = vsub.f32 %v1417, %v1590
      %v1598 = vsub.f32 %v1420, %v1590
      %v1599 = vsub.f32 %v1425, %v1590
      %v1600 = vsub.f32 %v1428, %v1590
      %v1601 = vsub.f32 %v1433, %v1590
      %v1602 = vsub.f32 %v1436, %v1590
      %v1603 = vsub.f32 %v1441, %v1590
      %v1604 = vsub.f32 %v1444, %v1590
      %v1605 = vsub.f32 %v1449, %v1590
      %v1606 = vsub.f32 %v1452, %v1590
      %v1607 = vsub.f32 %v1457, %v1590
      %v1608 = vsub.f32 %v1460, %v1590
      %v1609 = vsub.f32 %v1465, %v1590
      %v1610 = vsub.f32 %v1468, %v1590
      %v1611 = vsub.f32 %v1473, %v1590
      %v1612 = vsub.f32 %v1476, %v1590
      %v1613 = vsub.f32 %v1481, %v1590
      %v1614 = vsub.f32 %v1484, %v1590
      %v1615 = vsub.f32 %v1489, %v1590
      %v1616 = vsub.f32 %v1492, %v1590
      %v1617 = vsub.f32 %v1497, %v1590
      %v1618 = vsub.f32 %v1500, %v1590
      %v1619 = vsub.f32 %v1505, %v1590
      %v1620 = vsub.f32 %v1508, %v1590
      %v1621 = vsub.f32 %v1513, %v1590
      %v1622 = vsub.f32 %v1516, %v1590
      %v1623 = vmul.f32 %v1591, %v1591
      %v1624 = vmul.f32 %v1592, %v1592
      %v1625 = vmul.f32 %v1593, %v1593
      %v1626 = vmul.f32 %v1594, %v1594
      %v1627 = vmul.f32 %v1595, %v1595
      %v1628 = vmul.f32 %v1596, %v1596
      %v1629 = vmul.f32 %v1597, %v1597
      %v1630 = vmul.f32 %v1598, %v1598
      %v1631 = vmul.f32 %v1599, %v1599
      %v1632 = vmul.f32 %v1600, %v1600
      %v1633 = vmul.f32 %v1601, %v1601
      %v1634 = vmul.f32 %v1602, %v1602
      %v1635 = vmul.f32 %v1603, %v1603
      %v1636 = vmul.f32 %v1604, %v1604
      %v1637 = vmul.f32 %v1605, %v1605
      %v1638 = vmul.f32 %v1606, %v1606
      %v1639 = vmul.f32 %v1607, %v1607
      %v1640 = vmul.f32 %v1608, %v1608
      %v1641 = vmul.f32 %v1609, %v1609
      %v1642 = vmul.f32 %v1610, %v1610
      %v1643 = vmul.f32 %v1611, %v1611
      %v1644 = vmul.f32 %v1612, %v1612
      %v1645 = vmul.f32 %v1613, %v1613
      %v1646 = vmul.f32 %v1614, %v1614
      %v1647 = vmul.f32 %v1615, %v1615
      %v1648 = vmul.f32 %v1616, %v1616
      %v1649 = vmul.f32 %v1617, %v1617
      %v1650 = vmul.f32 %v1618, %v1618
      %v1651 = vmul.f32 %v1619, %v1619
      %v1652 = vmul.f32 %v1620, %v1620
      %v1653 = vmul.f32 %v1621, %v1621
      %v1654 = vmul.f32 %v1622, %v1622
      %v1655 = vsel %vm1519, %v1623, 0.0
      %v1656 = vsel %vm1519, %v1624, 0.0
      %v1657 = vadd.f32 %v1655, %v1656
      %v1658 = vsel %vm1519, %v1625, 0.0
      %v1659 = vadd.f32 %v1657, %v1658
      %v1660 = vsel %vm1519, %v1626, 0.0
      %v1661 = vadd.f32 %v1659, %v1660
      %v1662 = vsel %vm1519, %v1627, 0.0
      %v1663 = vadd.f32 %v1661, %v1662
      %v1664 = vsel %vm1519, %v1628, 0.0
      %v1665 = vadd.f32 %v1663, %v1664
      %v1666 = vsel %vm1519, %v1629, 0.0
      %v1667 = vadd.f32 %v1665, %v1666
      %v1668 = vsel %vm1519, %v1630, 0.0
      %v1669 = vadd.f32 %v1667, %v1668
      %v1670 = vsel %vm1519, %v1631, 0.0
      %v1671 = vadd.f32 %v1669, %v1670
      %v1672 = vsel %vm1519, %v1632, 0.0
      %v1673 = vadd.f32 %v1671, %v1672
      %v1674 = vsel %vm1519, %v1633, 0.0
      %v1675 = vadd.f32 %v1673, %v1674
      %v1676 = vsel %vm1519, %v1634, 0.0
      %v1677 = vadd.f32 %v1675, %v1676
      %v1678 = vsel %vm1519, %v1635, 0.0
      %v1679 = vadd.f32 %v1677, %v1678
      %v1680 = vsel %vm1519, %v1636, 0.0
      %v1681 = vadd.f32 %v1679, %v1680
      %v1682 = vsel %vm1519, %v1637, 0.0
      %v1683 = vadd.f32 %v1681, %v1682
      %v1684 = vsel %vm1519, %v1638, 0.0
      %v1685 = vadd.f32 %v1683, %v1684
      %v1686 = vsel %vm1519, %v1639, 0.0
      %v1687 = vadd.f32 %v1685, %v1686
      %v1688 = vsel %vm1519, %v1640, 0.0
      %v1689 = vadd.f32 %v1687, %v1688
      %v1690 = vsel %vm1519, %v1641, 0.0
      %v1691 = vadd.f32 %v1689, %v1690
      %v1692 = vsel %vm1519, %v1642, 0.0
      %v1693 = vadd.f32 %v1691, %v1692
      %v1694 = vsel %vm1519, %v1643, 0.0
      %v1695 = vadd.f32 %v1693, %v1694
      %v1696 = vsel %vm1519, %v1644, 0.0
      %v1697 = vadd.f32 %v1695, %v1696
      %v1698 = vsel %vm1519, %v1645, 0.0
      %v1699 = vadd.f32 %v1697, %v1698
      %v1700 = vsel %vm1519, %v1646, 0.0
      %v1701 = vadd.f32 %v1699, %v1700
      %v1702 = vsel %vm1519, %v1647, 0.0
      %v1703 = vadd.f32 %v1701, %v1702
      %v1704 = vsel %vm1519, %v1648, 0.0
      %v1705 = vadd.f32 %v1703, %v1704
      %v1706 = vsel %vm1519, %v1649, 0.0
      %v1707 = vadd.f32 %v1705, %v1706
      %v1708 = vsel %vm1519, %v1650, 0.0
      %v1709 = vadd.f32 %v1707, %v1708
      %v1710 = vsel %vm1519, %v1651, 0.0
      %v1711 = vadd.f32 %v1709, %v1710
      %v1712 = vsel %vm1519, %v1652, 0.0
      %v1713 = vadd.f32 %v1711, %v1712
      %v1714 = vsel %vm1519, %v1653, 0.0
      %v1715 = vadd.f32 %v1713, %v1714
      %v1716 = vsel %vm1519, %v1654, 0.0
      %v1717 = vadd.f32 %v1715, %v1716
      %v1718 = vrot.slane %v1717, 4
      %v1719 = vadd.f32 %v1717, %v1718
      %v1720 = vrot.slane %v1719, 2
      %v1721 = vadd.f32 %v1719, %v1720
      %v1722 = vrot.slane %v1721, 1
      %v1723 = vadd.f32 %v1721, %v1722
      %v1724 = vmul.f32 %v1723, %v1589
      %v1725 = vadd.f32 %v1724, 1e-05
      %v1726 = vrsqrt.pop %v1725
      %v1727 = vmul.f32 %v1591, %v1726
      %v1728 = vmul.f32 %v1592, %v1726
      %v1729 = vmul.f32 %v1593, %v1726
      %v1730 = vmul.f32 %v1594, %v1726
      %v1731 = vmul.f32 %v1595, %v1726
      %v1732 = vmul.f32 %v1596, %v1726
      %v1733 = vmul.f32 %v1597, %v1726
      %v1734 = vmul.f32 %v1598, %v1726
      %v1735 = vmul.f32 %v1599, %v1726
      %v1736 = vmul.f32 %v1600, %v1726
      %v1737 = vmul.f32 %v1601, %v1726
      %v1738 = vmul.f32 %v1602, %v1726
      %v1739 = vmul.f32 %v1603, %v1726
      %v1740 = vmul.f32 %v1604, %v1726
      %v1741 = vmul.f32 %v1605, %v1726
      %v1742 = vmul.f32 %v1606, %v1726
      %v1743 = vmul.f32 %v1607, %v1726
      %v1744 = vmul.f32 %v1608, %v1726
      %v1745 = vmul.f32 %v1609, %v1726
      %v1746 = vmul.f32 %v1610, %v1726
      %v1747 = vmul.f32 %v1611, %v1726
      %v1748 = vmul.f32 %v1612, %v1726
      %v1749 = vmul.f32 %v1613, %v1726
      %v1750 = vmul.f32 %v1614, %v1726
      %v1751 = vmul.f32 %v1615, %v1726
      %v1752 = vmul.f32 %v1616, %v1726
      %v1753 = vmul.f32 %v1617, %v1726
      %v1754 = vmul.f32 %v1618, %v1726
      %v1755 = vmul.f32 %v1619, %v1726
      %v1756 = vmul.f32 %v1620, %v1726
      %v1757 = vmul.f32 %v1621, %v1726
      %v1758 = vmul.f32 %v1622, %v1726
      %v1759 = vmax.f32 %v1727, 0.0
      %v1760 = vmax.f32 %v1728, 0.0
      %v1761 = vmax.f32 %v1729, 0.0
      %v1762 = vmax.f32 %v1730, 0.0
      %v1763 = vmax.f32 %v1731, 0.0
      %v1764 = vmax.f32 %v1732, 0.0
      %v1765 = vmax.f32 %v1733, 0.0
      %v1766 = vmax.f32 %v1734, 0.0
      %v1767 = vmax.f32 %v1735, 0.0
      %v1768 = vmax.f32 %v1736, 0.0
      %v1769 = vmax.f32 %v1737, 0.0
      %v1770 = vmax.f32 %v1738, 0.0
      %v1771 = vmax.f32 %v1739, 0.0
      %v1772 = vmax.f32 %v1740, 0.0
      %v1773 = vmax.f32 %v1741, 0.0
      %v1774 = vmax.f32 %v1742, 0.0
      %v1775 = vmax.f32 %v1743, 0.0
      %v1776 = vmax.f32 %v1744, 0.0
      %v1777 = vmax.f32 %v1745, 0.0
      %v1778 = vmax.f32 %v1746, 0.0
      %v1779 = vmax.f32 %v1747, 0.0
      %v1780 = vmax.f32 %v1748, 0.0
      %v1781 = vmax.f32 %v1749, 0.0
      %v1782 = vmax.f32 %v1750, 0.0
      %v1783 = vmax.f32 %v1751, 0.0
      %v1784 = vmax.f32 %v1752, 0.0
      %v1785 = vmax.f32 %v1753, 0.0
      %v1786 = vmax.f32 %v1754, 0.0
      %v1787 = vmax.f32 %v1755, 0.0
      %v1788 = vmax.f32 %v1756, 0.0
      %v1789 = vmax.f32 %v1757, 0.0
      %v1790 = vmax.f32 %v1758, 0.0
      %1791 = vst.msk [vmem:[%s170] sm:$0xff] %vm1519, %v1759
      %1792 = vst.msk [vmem:[%s170 + $0x8] sm:$0xff] %vm1519, %v1760
      %1793 = vst.msk [vmem:[%s170 + $0x10] sm:$0xff] %vm1519, %v1761
      %1794 = vst.msk [vmem:[%s170 + $0x18] sm:$0xff] %vm1519, %v1762
      %1795 = vst.msk [vmem:[%s170 + $0x20] sm:$0xff] %vm1519, %v1763
      %1796 = vst.msk [vmem:[%s170 + $0x28] sm:$0xff] %vm1519, %v1764
      %1797 = vst.msk [vmem:[%s170 + $0x30] sm:$0xff] %vm1519, %v1765
      %1798 = vst.msk [vmem:[%s170 + $0x38] sm:$0xff] %vm1519, %v1766
      %1799 = vst.msk [vmem:[%s170 + $0x40] sm:$0xff] %vm1519, %v1767
      %1800 = vst.msk [vmem:[%s170 + $0x48] sm:$0xff] %vm1519, %v1768
      %1801 = vst.msk [vmem:[%s170 + $0x50] sm:$0xff] %vm1519, %v1769
      %1802 = vst.msk [vmem:[%s170 + $0x58] sm:$0xff] %vm1519, %v1770
      %1803 = vst.msk [vmem:[%s170 + $0x60] sm:$0xff] %vm1519, %v1771
      %1804 = vst.msk [vmem:[%s170 + $0x68] sm:$0xff] %vm1519, %v1772
      %1805 = vst.msk [vmem:[%s170 + $0x70] sm:$0xff] %vm1519, %v1773
      %1806 = vst.msk [vmem:[%s170 + $0x78] sm:$0xff] %vm1519, %v1774
      %1807 = vst.msk [vmem:[%s170 + $0x80] sm:$0xff] %vm1519, %v1775
      %1808 = vst.msk [vmem:[%s170 + $0x88] sm:$0xff] %vm1519, %v1776
      %1809 = vst.msk [vmem:[%s170 + $0x90] sm:$0xff] %vm1519, %v1777
      %1810 = vst.msk [vmem:[%s170 + $0x98] sm:$0xff] %vm1519, %v1778
      %1811 = vst.msk [vmem:[%s170 + $0xa0] sm:$0xff] %vm1519, %v1779
      %1812 = vst.msk [vmem:[%s170 + $0xa8] sm:$0xff] %vm1519, %v1780
      %1813 = vst.msk [vmem:[%s170 + $0xb0] sm:$0xff] %vm1519, %v1781
      %1814 = vst.msk [vmem:[%s170 + $0xb8] sm:$0xff] %vm1519, %v1782
      %1815 = vst.msk [vmem:[%s170 + $0xc0] sm:$0xff] %vm1519, %v1783
      %1816 = vst.msk [vmem:[%s170 + $0xc8] sm:$0xff] %vm1519, %v1784
      %1817 = vst.msk [vmem:[%s170 + $0xd0] sm:$0xff] %vm1519, %v1785
      %1818 = vst.msk [vmem:[%s170 + $0xd8] sm:$0xff] %vm1519, %v1786
      %1819 = vst.msk [vmem:[%s170 + $0xe0] sm:$0xff] %vm1519, %v1787
      %1820 = vst.msk [vmem:[%s170 + $0xe8] sm:$0xff] %vm1519, %v1788
      %1821 = vst.msk [vmem:[%s170 + $0xf0] sm:$0xff] %vm1519, %v1789
      %1822 = vst.msk [vmem:[%s170 + $0xf8] sm:$0xff] %vm1519, %v1790
      %p1823 = scmp.lt.s32.totalorder %s14, 1
      %s1824 = scalar_select %p1823, %s14, 1
      %s1825 = smul.addr %s1824, 32
      %s1826 = smul.addr %s1825, 8
      %s1827 = scalar_lea.vmem %s3, %s1826
      // Predicated region
      $region33: #{resnet_forward.22} parent=31 // pred_check
        %p1828 = pneg %p100
      $region34: #{resnet_forward.22} parent=31 // pred_check_branch
        %1830 = sbr.rel (%p1828) target = $region36
      $region35: #{resnet_forward.22} parent=31 // pred_region
        _
      $region36: #{resnet_forward.22} parent=31 // pred_fallthru
        _
    $region32: #{resnet_forward.22} parent=5 // pred_fallthru
      _
    %p1831 = scmp.le.s32.totalorder 2, %s9
    // Predicated region
    $region37: #{resnet_forward.22} parent=5 // pred_check
      %p1832 = pneg %p1831
    $region38: #{resnet_forward.22} parent=5 // pred_check_branch
      %1834 = sbr.rel (%p1832) target = $region40
    $region39: #{resnet_forward.22} parent=5 // pred_region
      %s1835 = ssub.s32 %s9, 2
      // Predicated region
      $region41: #{resnet_forward.22} parent=39 // pred_check
        %p1836 = pneg %p106
      $region42: #{resnet_forward.22} parent=39 // pred_check_branch
        %1838 = sbr.rel (%p1836) target = $region44
      $region43: #{resnet_forward.22} parent=39 // pred_region
        %p1839 = scmp.lt.s32.totalorder %s15, 1
        %s1840 = scalar_select %p1839, %s15, 1
        %s1841 = smul.addr %s1840, 32
        %s1842 = smul.addr %s1841, 8
        %s1843 = scalar_lea.vmem %s3, %s1842
      $region44: #{resnet_forward.22} parent=39 // pred_fallthru
        _
    $region40: #{resnet_forward.22} parent=5 // pred_fallthru
      _
  $region6: #{resnet_forward.22} parent=0 // loop_footer
    %s13 = sadd.s32 1, %s9
  $region7: #{resnet_forward.22} parent=0 // loop_footer_branch
    %8 = sbr.rel target = $region3
  $region8: #{resnet_forward.22} parent=0 // loop_exit
    _

// kernel: resnet_forward.23
$region0: #{resnet_forward.23}
  #allocation0 [shape = 'u32[]', space=smem, size = 0x4, offset = 0x4, fixed_abs, tag = 'smem constant byte address 0x4 - core index']
  #allocation1 [shape = 'u32[144,128]{1,0:T(1,128)}', space=vmem, size = 0x12000, scoped, tag = 'internal scratch']
  %s0 = inlined_call_operand.vmem [shape: bf16[2,256,1568], index: 0, kind: input, shape index: {}]
  %s1 = inlined_call_operand.vmem [shape: bf16[1568,3], index: 1, kind: input, shape index: {}]
  %s2 = inlined_call_operand.vmem [shape: f32[1,3], index: 2, kind: input, shape index: {}]
  %s3 = inlined_call_operand.vmem [shape: f32[2,256,3], index: 3, kind: output, shape index: {}]
  %s4 = sld [smem:[#allocation0]]
  $region45: #{resnet_forward.23} parent=0
    _
  %s6 = ssub.s32 1, %s4
  %s7 = scalar_select 0, %s6, %s4
  loop: start=0, step=1, limit=4
  $region2: #{resnet_forward.23} parent=0 // loop_pre_header
    _
  $region3: #{resnet_forward.23} parent=0 // loop_header
    %s9 = sphi 0, %s13
    %p10 = scmp.ge.s32.totalorder %s9, 4
    %s19 = sphi 0, %s21
    %s22 = sphi 0, %s19
    %s23 = sphi 0, %s22
    %s39 = sphi 0, %s23
    %s43 = sphi 0, %s43
    %s45 = sphi 0, %s43
    %s46 = sphi 0, %s45
    %s60 = sphi 0, %s46
    %s64 = sphi 0, %s64
    %s66 = sphi 0, %s64
    %s67 = sphi 0, %s66
    %s81 = sphi 0, %s67
    %s87 = sphi 0, %s89
    %s90 = sphi 0, %s87
    %s91 = sphi 0, %s90
    %s107 = sphi 0, %s91
  $region4: #{resnet_forward.23} parent=0 // loop_header_branch
    %12 = sbr.rel (%p10) target = $region8
  $region5: #{resnet_forward.23} parent=0 // loop_body
    %s14 = ssub.s32 %s9, 1
    %s15 = ssub.s32 %s9, 2
    %s16 = sadd.s32 %s9, 1
    %s17 = ssub.s32 %s9, %s16
    %p18 = scmp.eq.s32.totalorder %s17, 0
    %s20 = sadd.s32 %s19, 1
    %s21 = scalar_select %p18, %s19, %s20
    %p24 = pneg %p18
    %p25 = scmp.eq.s32.totalorder %s9, 1
    %p26 = por %p24, %p25
    %p27 = scmp.ne.s32.totalorder %s19, %s22
    %p28 = scmp.eq.s32.totalorder %s9, 0
    %p29 = por %p27, %p28
    %p30 = scmp.ne.s32.totalorder %s19, %s22
    %p31 = scmp.eq.s32.totalorder %s14, 1
    %p32 = por %p30, %p31
    %p33 = scmp.ne.s32.totalorder %s22, %s23
    %p34 = scmp.eq.s32.totalorder %s14, 0
    %p35 = por %p33, %p34
    %p36 = scmp.ne.s32.totalorder %s22, %s23
    %p37 = scmp.eq.s32.totalorder %s15, 1
    %p38 = por %p36, %p37
    %p40 = scmp.ne.s32.totalorder %s23, %s39
    %p41 = scmp.eq.s32.totalorder %s15, 0
    %p42 = por %p40, %p41
    %s44 = sadd.s32 %s43, 1
    %p47 = scmp.eq.s32.totalorder %s9, 1
    %p48 = scmp.ne.s32.totalorder %s43, %s45
    %p49 = scmp.eq.s32.totalorder %s9, 0
    %p50 = por %p48, %p49
    %p51 = scmp.ne.s32.totalorder %s43, %s45
    %p52 = scmp.eq.s32.totalorder %s14, 1
    %p53 = por %p51, %p52
    %p54 = scmp.ne.s32.totalorder %s45, %s46
    %p55 = scmp.eq.s32.totalorder %s14, 0
    %p56 = por %p54, %p55
    %p57 = scmp.ne.s32.totalorder %s45, %s46
    %p58 = scmp.eq.s32.totalorder %s15, 1
    %p59 = por %p57, %p58
    %p61 = scmp.ne.s32.totalorder %s46, %s60
    %p62 = scmp.eq.s32.totalorder %s15, 0
    %p63 = por %p61, %p62
    %s65 = sadd.s32 %s64, 1
    %p68 = scmp.eq.s32.totalorder %s9, 1
    %p69 = scmp.ne.s32.totalorder %s64, %s66
    %p70 = scmp.eq.s32.totalorder %s9, 0
    %p71 = por %p69, %p70
    %p72 = scmp.ne.s32.totalorder %s64, %s66
    %p73 = scmp.eq.s32.totalorder %s14, 1
    %p74 = por %p72, %p73
    %p75 = scmp.ne.s32.totalorder %s66, %s67
    %p76 = scmp.eq.s32.totalorder %s14, 0
    %p77 = por %p75, %p76
    %p78 = scmp.ne.s32.totalorder %s66, %s67
    %p79 = scmp.eq.s32.totalorder %s15, 1
    %p80 = por %p78, %p79
    %p82 = scmp.ne.s32.totalorder %s67, %s81
    %p83 = scmp.eq.s32.totalorder %s15, 0
    %p84 = por %p82, %p83
    %s85 = ssub.s32 %s9, %s16
    %p86 = scmp.eq.s32.totalorder %s85, 0
    %s88 = sadd.s32 %s87, 1
    %s89 = scalar_select %p86, %s87, %s88
    %p92 = pneg %p86
    %p93 = scmp.eq.s32.totalorder %s9, 1
    %p94 = por %p92, %p93
    %p95 = scmp.ne.s32.totalorder %s87, %s90
    %p96 = scmp.eq.s32.totalorder %s9, 0
    %p97 = por %p95, %p96
    %p98 = scmp.ne.s32.totalorder %s87, %s90
    %p99 = scmp.eq.s32.totalorder %s14, 1
    %p100 = por %p98, %p99
    %p101 = scmp.ne.s32.totalorder %s90, %s91
    %p102 = scmp.eq.s32.totalorder %s14, 0
    %p103 = por %p101, %p102
    %p104 = scmp.ne.s32.totalorder %s90, %s91
    %p105 = scmp.eq.s32.totalorder %s15, 1
    %p106 = por %p104, %p105
    %p108 = scmp.ne.s32.totalorder %s91, %s107
    %p109 = scmp.eq.s32.totalorder %s15, 0
    %p110 = por %p108, %p109
    %p111 = scmp.le.s32.totalorder 1, %s9
    %p112 = scmp.lt.s32.totalorder %s9, 3
    %p113 = pnand %p111, %p112
    %p114 = pneg %p113
    // Predicated region
    $region9: #{resnet_forward.23} parent=5 // pred_check
      _
    $region10: #{resnet_forward.23} parent=5 // pred_check_branch
      %116 = sbr.rel (%p113) target = $region12
    $region11: #{resnet_forward.23} parent=5 // pred_region
      %s117 = ssub.s32 %s9, 1
      // Predicated region
      $region13: #{resnet_forward.23} parent=11 // pred_check
        %p118 = pneg %p56
      $region14: #{resnet_forward.23} parent=11 // pred_check_branch
        %120 = sbr.rel (%p118) target = $region16
      $region15: #{resnet_forward.23} parent=11 // pred_region
        _
      $region16: #{resnet_forward.23} parent=11 // pred_fallthru
        _
      // Predicated region
      $region17: #{resnet_forward.23} parent=11 // pred_check
        %p121 = pneg %p77
      $region18: #{resnet_forward.23} parent=11 // pred_check_branch
        %123 = sbr.rel (%p121) target = $region20
      $region19: #{resnet_forward.23} parent=11 // pred_region
        _
      $region20: #{resnet_forward.23} parent=11 // pred_fallthru
        _
    $region12: #{resnet_forward.23} parent=5 // pred_fallthru
      _
    %p124 = scmp.lt.s32.totalorder %s9, 2
    // Predicated region
    $region21: #{resnet_forward.23} parent=5 // pred_check
      %p125 = pneg %p124
    $region22: #{resnet_forward.23} parent=5 // pred_check_branch
      %127 = sbr.rel (%p125) target = $region24
    $region23: #{resnet_forward.23} parent=5 // pred_region
      // Predicated region
      $region25: #{resnet_forward.23} parent=23 // pred_check
        %p128 = pneg %p29
      $region26: #{resnet_forward.23} parent=23 // pred_check_branch
        %130 = sbr.rel (%p128) target = $region28
      $region27: #{resnet_forward.23} parent=23 // pred_region
        %p131 = scmp.lt.s32.totalorder %s9, 1
        %s132 = scalar_select %p131, %s9, 1
        %s133 = smul.addr %s132, 416
        %s134 = smul.addr %s133, 4
        %s135 = scalar_lea.vmem %s0, %s134
      $region28: #{resnet_forward.23} parent=23 // pred_fallthru
        _
    $region24: #{resnet_forward.23} parent=5 // pred_fallthru
      _
    %p136 = scmp.le.s32.totalorder 1, %s9
    %p137 = scmp.lt.s32.totalorder %s9, 3
    %p138 = pnand %p136, %p137
    %p139 = pneg %p138
    // Predicated region
    $region29: #{resnet_forward.23} parent=5 // pred_check
      _
    $region30: #{resnet_forward.23} parent=5 // pred_check_branch
      %141 = sbr.rel (%p138) target = $region32
    $region31: #{resnet_forward.23} parent=5 // pred_region
      %s142 = ssub.s32 %s9, 1
      %p143 = scmp.lt.s32.totalorder %s14, 1
      %s144 = scalar_select %p143, %s14, 1
      %s145 = smul.addr %s144, 416
      %s146 = smul.addr %s145, 4
      %s147 = scalar_lea.vmem %s0, %s146
      %p148 = pneg %p35
      %p149 = pneg %p32
      %p150 = pneg %p56
      %p151 = pneg %p53
      %p152 = pneg %p77
      %p153 = pneg %p74
      %p154 = pneg %p103
      %p155 = pneg %p100
      %p156 = scmp.lt.s32.totalorder %s14, 1
      %s157 = scalar_select %p156, %s14, 1
      %s158 = smul.addr %s157, 32
      %s159 = smul.addr %s158, 8
      %s160 = scalar_lea.vmem %s3, %s159
      %p161 = scmp.lt.s32.totalorder %s14, 1
      %s162 = scalar_select %p161, %s14, 1
      %s163 = smul.addr %s162, 416
      %s164 = smul.addr %s163, 4
      %s165 = scalar_lea.vmem %s0, %s164
      %p166 = scmp.lt.s32.totalorder %s14, 1
      %s167 = scalar_select %p166, %s14, 1
      %s168 = smul.addr %s167, 32
      %s169 = smul.addr %s168, 8
      %s170 = scalar_lea.vmem %s3, %s169
      %v172 = vld [vmem:[%s165] sm:$0xff]
      %v173 = vld [vmem:[%s165 + $0x8] sm:$0xff]
      %v174 = vld [vmem:[%s165 + $0x10] sm:$0xff]
      %v175 = vld [vmem:[%s165 + $0x18] sm:$0xff]
      %v176 = vld [vmem:[%s165 + $0x20] sm:$0xff]
      %v177 = vld [vmem:[%s165 + $0x28] sm:$0xff]
      %v178 = vld [vmem:[%s165 + $0x30] sm:$0xf]
      %v179 = vld [vmem:[%s165 + $0x34] sm:$0xff]
      %v180 = vld [vmem:[%s165 + $0x3c] sm:$0xff]
      %v181 = vld [vmem:[%s165 + $0x44] sm:$0xff]
      %v182 = vld [vmem:[%s165 + $0x4c] sm:$0xff]
      %v183 = vld [vmem:[%s165 + $0x54] sm:$0xff]
      %v184 = vld [vmem:[%s165 + $0x5c] sm:$0xff]
      %v185 = vld [vmem:[%s165 + $0x64] sm:$0xf]
      %v186 = vld [vmem:[%s165 + $0x68] sm:$0xff]
      %v187 = vld [vmem:[%s165 + $0x70] sm:$0xff]
      %v188 = vld [vmem:[%s165 + $0x78] sm:$0xff]
      %v189 = vld [vmem:[%s165 + $0x80] sm:$0xff]
      %v190 = vld [vmem:[%s165 + $0x88] sm:$0xff]
      %v191 = vld [vmem:[%s165 + $0x90] sm:$0xff]
      %v192 = vld [vmem:[%s165 + $0x98] sm:$0xf]
      %v193 = vld [vmem:[%s165 + $0x9c] sm:$0xff]
      %v194 = vld [vmem:[%s165 + $0xa4] sm:$0xff]
      %v195 = vld [vmem:[%s165 + $0xac] sm:$0xff]
      %v196 = vld [vmem:[%s165 + $0xb4] sm:$0xff]
      %v197 = vld [vmem:[%s165 + $0xbc] sm:$0xff]
      %v198 = vld [vmem:[%s165 + $0xc4] sm:$0xff]
      %v199 = vld [vmem:[%s165 + $0xcc] sm:$0xf]
      %v200 = vld [vmem:[%s165 + $0xd0] sm:$0xff]
      %v201 = vld [vmem:[%s165 + $0xd8] sm:$0xff]
      %v202 = vld [vmem:[%s165 + $0xe0] sm:$0xff]
      %v203 = vld [vmem:[%s165 + $0xe8] sm:$0xff]
      %v204 = vld [vmem:[%s165 + $0xf0] sm:$0xff]
      %v205 = vld [vmem:[%s165 + $0xf8] sm:$0xff]
      %v206 = vld [vmem:[%s165 + $0x100] sm:$0xf]
      %v207 = vld [vmem:[%s165 + $0x104] sm:$0xff]
      %v208 = vld [vmem:[%s165 + $0x10c] sm:$0xff]
      %v209 = vld [vmem:[%s165 + $0x114] sm:$0xff]
      %v210 = vld [vmem:[%s165 + $0x11c] sm:$0xff]
      %v211 = vld [vmem:[%s165 + $0x124] sm:$0xff]
      %v212 = vld [vmem:[%s165 + $0x12c] sm:$0xff]
      %v213 = vld [vmem:[%s165 + $0x134] sm:$0xf]
      %v214 = vld [vmem:[%s165 + $0x138] sm:$0xff]
      %v215 = vld [vmem:[%s165 + $0x140] sm:$0xff]
      %v216 = vld [vmem:[%s165 + $0x148] sm:$0xff]
      %v217 = vld [vmem:[%s165 + $0x150] sm:$0xff]
      %v218 = vld [vmem:[%s165 + $0x158] sm:$0xff]
      %v219 = vld [vmem:[%s165 + $0x160] sm:$0xff]
      %v220 = vld [vmem:[%s165 + $0x168] sm:$0xf]
      %v221 = vld [vmem:[%s165 + $0x16c] sm:$0xff]
      %v222 = vld [vmem:[%s165 + $0x174] sm:$0xff]
      %v223 = vld [vmem:[%s165 + $0x17c] sm:$0xff]
      %v224 = vld [vmem:[%s165 + $0x184] sm:$0xff]
      %v225 = vld [vmem:[%s165 + $0x18c] sm:$0xff]
      %v226 = vld [vmem:[%s165 + $0x194] sm:$0xff]
      %v227 = vld [vmem:[%s165 + $0x19c] sm:$0xf]
      %v228 = vld [vmem:[%s165 + $0x1a0] sm:$0xff]
      %v229 = vld [vmem:[%s165 + $0x1a8] sm:$0xff]
      %v230 = vld [vmem:[%s165 + $0x1b0] sm:$0xff]
      %v231 = vld [vmem:[%s165 + $0x1b8] sm:$0xff]
      %v232 = vld [vmem:[%s165 + $0x1c0] sm:$0xff]
      %v233 = vld [vmem:[%s165 + $0x1c8] sm:$0xff]
      %v234 = vld [vmem:[%s165 + $0x1d0] sm:$0xf]
      %v235 = vld [vmem:[%s165 + $0x1d4] sm:$0xff]
      %v236 = vld [vmem:[%s165 + $0x1dc] sm:$0xff]
      %v237 = vld [vmem:[%s165 + $0x1e4] sm:$0xff]
      %v238 = vld [vmem:[%s165 + $0x1ec] sm:$0xff]
      %v239 = vld [vmem:[%s165 + $0x1f4] sm:$0xff]
      %v240 = vld [vmem:[%s165 + $0x1fc] sm:$0xff]
      %v241 = vld [vmem:[%s165 + $0x204] sm:$0xf]
      %v242 = vld [vmem:[%s165 + $0x208] sm:$0xff]
      %v243 = vld [vmem:[%s165 + $0x210] sm:$0xff]
      %v244 = vld [vmem:[%s165 + $0x218] sm:$0xff]
      %v245 = vld [vmem:[%s165 + $0x220] sm:$0xff]
      %v246 = vld [vmem:[%s165 + $0x228] sm:$0xff]
      %v247 = vld [vmem:[%s165 + $0x230] sm:$0xff]
      %v248 = vld [vmem:[%s165 + $0x238] sm:$0xf]
      %v249 = vld [vmem:[%s165 + $0x23c] sm:$0xff]
      %v250 = vld [vmem:[%s165 + $0x244] sm:$0xff]
      %v251 = vld [vmem:[%s165 + $0x24c] sm:$0xff]
      %v252 = vld [vmem:[%s165 + $0x254] sm:$0xff]
      %v253 = vld [vmem:[%s165 + $0x25c] sm:$0xff]
      %v254 = vld [vmem:[%s165 + $0x264] sm:$0xff]
      %v255 = vld [vmem:[%s165 + $0x26c] sm:$0xf]
      %v256 = vld [vmem:[%s165 + $0x270] sm:$0xff]
      %v257 = vld [vmem:[%s165 + $0x278] sm:$0xff]
      %v258 = vld [vmem:[%s165 + $0x280] sm:$0xff]
      %v259 = vld [vmem:[%s165 + $0x288] sm:$0xff]
      %v260 = vld [vmem:[%s165 + $0x290] sm:$0xff]
      %v261 = vld [vmem:[%s165 + $0x298] sm:$0xff]
      %v262 = vld [vmem:[%s165 + $0x2a0] sm:$0xf]
      %v263 = vld [vmem:[%s165 + $0x2a4] sm:$0xff]
      %v264 = vld [vmem:[%s165 + $0x2ac] sm:$0xff]
      %v265 = vld [vmem:[%s165 + $0x2b4] sm:$0xff]
      %v266 = vld [vmem:[%s165 + $0x2bc] sm:$0xff]
      %v267 = vld [vmem:[%s165 + $0x2c4] sm:$0xff]
      %v268 = vld [vmem:[%s165 + $0x2cc] sm:$0xff]
      %v269 = vld [vmem:[%s165 + $0x2d4] sm:$0xf]
      %v270 = vld [vmem:[%s165 + $0x2d8] sm:$0xff]
      %v271 = vld [vmem:[%s165 + $0x2e0] sm:$0xff]
      %v272 = vld [vmem:[%s165 + $0x2e8] sm:$0xff]
      %v273 = vld [vmem:[%s165 + $0x2f0] sm:$0xff]
      %v274 = vld [vmem:[%s165 + $0x2f8] sm:$0xff]
      %v275 = vld [vmem:[%s165 + $0x300] sm:$0xff]
      %v276 = vld [vmem:[%s165 + $0x308] sm:$0xf]
      %v277 = vld [vmem:[%s165 + $0x30c] sm:$0xff]
      %v278 = vld [vmem:[%s165 + $0x314] sm:$0xff]
      %v279 = vld [vmem:[%s165 + $0x31c] sm:$0xff]
      %v280 = vld [vmem:[%s165 + $0x324] sm:$0xff]
      %v281 = vld [vmem:[%s165 + $0x32c] sm:$0xff]
      %v282 = vld [vmem:[%s165 + $0x334] sm:$0xff]
      %v283 = vld [vmem:[%s165 + $0x33c] sm:$0xf]
      %v284 = vld [vmem:[%s165 + $0x340] sm:$0xff]
      %v285 = vld [vmem:[%s165 + $0x348] sm:$0xff]
      %v286 = vld [vmem:[%s165 + $0x350] sm:$0xff]
      %v287 = vld [vmem:[%s165 + $0x358] sm:$0xff]
      %v288 = vld [vmem:[%s165 + $0x360] sm:$0xff]
      %v289 = vld [vmem:[%s165 + $0x368] sm:$0xff]
      %v290 = vld [vmem:[%s165 + $0x370] sm:$0xf]
      %v291 = vld [vmem:[%s165 + $0x374] sm:$0xff]
      %v292 = vld [vmem:[%s165 + $0x37c] sm:$0xff]
      %v293 = vld [vmem:[%s165 + $0x384] sm:$0xff]
      %v294 = vld [vmem:[%s165 + $0x38c] sm:$0xff]
      %v295 = vld [vmem:[%s165 + $0x394] sm:$0xff]
      %v296 = vld [vmem:[%s165 + $0x39c] sm:$0xff]
      %v297 = vld [vmem:[%s165 + $0x3a4] sm:$0xf]
      %v298 = vld [vmem:[%s165 + $0x3a8] sm:$0xff]
      %v299 = vld [vmem:[%s165 + $0x3b0] sm:$0xff]
      %v300 = vld [vmem:[%s165 + $0x3b8] sm:$0xff]
      %v301 = vld [vmem:[%s165 + $0x3c0] sm:$0xff]
      %v302 = vld [vmem:[%s165 + $0x3c8] sm:$0xff]
      %v303 = vld [vmem:[%s165 + $0x3d0] sm:$0xff]
      %v304 = vld [vmem:[%s165 + $0x3d8] sm:$0xf]
      %v305 = vld [vmem:[%s165 + $0x3dc] sm:$0xff]
      %v306 = vld [vmem:[%s165 + $0x3e4] sm:$0xff]
      %v307 = vld [vmem:[%s165 + $0x3ec] sm:$0xff]
      %v308 = vld [vmem:[%s165 + $0x3f4] sm:$0xff]
      %v309 = vld [vmem:[%s165 + $0x3fc] sm:$0xff]
      %v310 = vld [vmem:[%s165 + $0x404] sm:$0xff]
      %v311 = vld [vmem:[%s165 + $0x40c] sm:$0xf]
      %v312 = vld [vmem:[%s165 + $0x410] sm:$0xff]
      %v313 = vld [vmem:[%s165 + $0x418] sm:$0xff]
      %v314 = vld [vmem:[%s165 + $0x420] sm:$0xff]
      %v315 = vld [vmem:[%s165 + $0x428] sm:$0xff]
      %v316 = vld [vmem:[%s165 + $0x430] sm:$0xff]
      %v317 = vld [vmem:[%s165 + $0x438] sm:$0xff]
      %v318 = vld [vmem:[%s165 + $0x440] sm:$0xf]
      %v319 = vld [vmem:[%s165 + $0x444] sm:$0xff]
      %v320 = vld [vmem:[%s165 + $0x44c] sm:$0xff]
      %v321 = vld [vmem:[%s165 + $0x454] sm:$0xff]
      %v322 = vld [vmem:[%s165 + $0x45c] sm:$0xff]
      %v323 = vld [vmem:[%s165 + $0x464] sm:$0xff]
      %v324 = vld [vmem:[%s165 + $0x46c] sm:$0xff]
      %v325 = vld [vmem:[%s165 + $0x474] sm:$0xf]
      %v326 = vld [vmem:[%s165 + $0x478] sm:$0xff]
      %v327 = vld [vmem:[%s165 + $0x480] sm:$0xff]
      %v328 = vld [vmem:[%s165 + $0x488] sm:$0xff]
      %v329 = vld [vmem:[%s165 + $0x490] sm:$0xff]
      %v330 = vld [vmem:[%s165 + $0x498] sm:$0xff]
      %v331 = vld [vmem:[%s165 + $0x4a0] sm:$0xff]
      %v332 = vld [vmem:[%s165 + $0x4a8] sm:$0xf]
      %v333 = vld [vmem:[%s165 + $0x4ac] sm:$0xff]
      %v334 = vld [vmem:[%s165 + $0x4b4] sm:$0xff]
      %v335 = vld [vmem:[%s165 + $0x4bc] sm:$0xff]
      %v336 = vld [vmem:[%s165 + $0x4c4] sm:$0xff]
      %v337 = vld [vmem:[%s165 + $0x4cc] sm:$0xff]
      %v338 = vld [vmem:[%s165 + $0x4d4] sm:$0xff]
      %v339 = vld [vmem:[%s165 + $0x4dc] sm:$0xf]
      %v340 = vld [vmem:[%s165 + $0x4e0] sm:$0xff]
      %v341 = vld [vmem:[%s165 + $0x4e8] sm:$0xff]
      %v342 = vld [vmem:[%s165 + $0x4f0] sm:$0xff]
      %v343 = vld [vmem:[%s165 + $0x4f8] sm:$0xff]
      %v344 = vld [vmem:[%s165 + $0x500] sm:$0xff]
      %v345 = vld [vmem:[%s165 + $0x508] sm:$0xff]
      %v346 = vld [vmem:[%s165 + $0x510] sm:$0xf]
      %v347 = vld [vmem:[%s165 + $0x514] sm:$0xff]
      %v348 = vld [vmem:[%s165 + $0x51c] sm:$0xff]
      %v349 = vld [vmem:[%s165 + $0x524] sm:$0xff]
      %v350 = vld [vmem:[%s165 + $0x52c] sm:$0xff]
      %v351 = vld [vmem:[%s165 + $0x534] sm:$0xff]
      %v352 = vld [vmem:[%s165 + $0x53c] sm:$0xff]
      %v353 = vld [vmem:[%s165 + $0x544] sm:$0xf]
      %v354 = vld [vmem:[%s165 + $0x548] sm:$0xff]
      %v355 = vld [vmem:[%s165 + $0x550] sm:$0xff]
      %v356 = vld [vmem:[%s165 + $0x558] sm:$0xff]
      %v357 = vld [vmem:[%s165 + $0x560] sm:$0xff]
      %v358 = vld [vmem:[%s165 + $0x568] sm:$0xff]
      %v359 = vld [vmem:[%s165 + $0x570] sm:$0xff]
      %v360 = vld [vmem:[%s165 + $0x578] sm:$0xf]
      %v361 = vld [vmem:[%s165 + $0x57c] sm:$0xff]
      %v362 = vld [vmem:[%s165 + $0x584] sm:$0xff]
      %v363 = vld [vmem:[%s165 + $0x58c] sm:$0xff]
      %v364 = vld [vmem:[%s165 + $0x594] sm:$0xff]
      %v365 = vld [vmem:[%s165 + $0x59c] sm:$0xff]
      %v366 = vld [vmem:[%s165 + $0x5a4] sm:$0xff]
      %v367 = vld [vmem:[%s165 + $0x5ac] sm:$0xf]
      %v368 = vld [vmem:[%s165 + $0x5b0] sm:$0xff]
      %v369 = vld [vmem:[%s165 + $0x5b8] sm:$0xff]
      %v370 = vld [vmem:[%s165 + $0x5c0] sm:$0xff]
      %v371 = vld [vmem:[%s165 + $0x5c8] sm:$0xff]
      %v372 = vld [vmem:[%s165 + $0x5d0] sm:$0xff]
      %v373 = vld [vmem:[%s165 + $0x5d8] sm:$0xff]
      %v374 = vld [vmem:[%s165 + $0x5e0] sm:$0xf]
      %v375 = vld [vmem:[%s165 + $0x5e4] sm:$0xff]
      %v376 = vld [vmem:[%s165 + $0x5ec] sm:$0xff]
      %v377 = vld [vmem:[%s165 + $0x5f4] sm:$0xff]
      %v378 = vld [vmem:[%s165 + $0x5fc] sm:$0xff]
      %v379 = vld [vmem:[%s165 + $0x604] sm:$0xff]
      %v380 = vld [vmem:[%s165 + $0x60c] sm:$0xff]
      %v381 = vld [vmem:[%s165 + $0x614] sm:$0xf]
      %v382 = vld [vmem:[%s165 + $0x618] sm:$0xff]
      %v383 = vld [vmem:[%s165 + $0x620] sm:$0xff]
      %v384 = vld [vmem:[%s165 + $0x628] sm:$0xff]
      %v385 = vld [vmem:[%s165 + $0x630] sm:$0xff]
      %v386 = vld [vmem:[%s165 + $0x638] sm:$0xff]
      %v387 = vld [vmem:[%s165 + $0x640] sm:$0xff]
      %v388 = vld [vmem:[%s165 + $0x648] sm:$0xf]
      %v389 = vld [vmem:[%s165 + $0x64c] sm:$0xff]
      %v390 = vld [vmem:[%s165 + $0x654] sm:$0xff]
      %v391 = vld [vmem:[%s165 + $0x65c] sm:$0xff]
      %v392 = vld [vmem:[%s165 + $0x664] sm:$0xff]
      %v393 = vld [vmem:[%s165 + $0x66c] sm:$0xff]
      %v394 = vld [vmem:[%s165 + $0x674] sm:$0xff]
      %v395 = vld [vmem:[%s165 + $0x67c] sm:$0xf]
      %v396 = vld [vmem:[%s1] sm:$0xf]
      %v397 = vld [vmem:[%s1 + $0x4] sm:$0xf]
      %v398 = vld [vmem:[%s1 + $0x8] sm:$0xf]
      %v399 = vld [vmem:[%s1 + $0xc] sm:$0xf]
      %v400 = vld [vmem:[%s1 + $0x10] sm:$0xf]
      %v401 = vld [vmem:[%s1 + $0x14] sm:$0xf]
      %v402 = vld [vmem:[%s1 + $0x18] sm:$0xf]
      %v403 = vld [vmem:[%s1 + $0x1c] sm:$0xf]
      %v404 = vld [vmem:[%s1 + $0x20] sm:$0xf]
      %v405 = vld [vmem:[%s1 + $0x24] sm:$0xf]
      %v406 = vld [vmem:[%s1 + $0x28] sm:$0xf]
      %v407 = vld [vmem:[%s1 + $0x2c] sm:$0xf]
      %v408 = vld [vmem:[%s1 + $0x30] sm:$0xf]
      %v409 = vld [vmem:[%s1 + $0x34] sm:$0xf]
      %v410 = vld [vmem:[%s1 + $0x38] sm:$0xf]
      %v411 = vld [vmem:[%s1 + $0x3c] sm:$0xf]
      %v412 = vld [vmem:[%s1 + $0x40] sm:$0xf]
      %v413 = vld [vmem:[%s1 + $0x44] sm:$0xf]
      %v414 = vld [vmem:[%s1 + $0x48] sm:$0xf]
      %v415 = vld [vmem:[%s1 + $0x4c] sm:$0xf]
      %v416 = vld [vmem:[%s1 + $0x50] sm:$0xf]
      %v417 = vld [vmem:[%s1 + $0x54] sm:$0xf]
      %v418 = vld [vmem:[%s1 + $0x58] sm:$0xf]
      %v419 = vld [vmem:[%s1 + $0x5c] sm:$0xf]
      %v420 = vld [vmem:[%s1 + $0x60] sm:$0xf]
      %v421 = vld [vmem:[%s1 + $0x64] sm:$0xf]
      %v422 = vld [vmem:[%s1 + $0x68] sm:$0xf]
      %v423 = vld [vmem:[%s1 + $0x6c] sm:$0xf]
      %v424 = vld [vmem:[%s1 + $0x70] sm:$0xf]
      %v425 = vld [vmem:[%s1 + $0x74] sm:$0xf]
      %v426 = vld [vmem:[%s1 + $0x78] sm:$0xf]
      %v427 = vld [vmem:[%s1 + $0x7c] sm:$0xf]
      %v428 = vld [vmem:[%s1 + $0x80] sm:$0xf]
      %v429 = vld [vmem:[%s1 + $0x84] sm:$0xf]
      %v430 = vld [vmem:[%s1 + $0x88] sm:$0xf]
      %v431 = vld [vmem:[%s1 + $0x8c] sm:$0xf]
      %v432 = vld [vmem:[%s1 + $0x90] sm:$0xf]
      %v433 = vld [vmem:[%s1 + $0x94] sm:$0xf]
      %v434 = vld [vmem:[%s1 + $0x98] sm:$0xf]
      %v435 = vld [vmem:[%s1 + $0x9c] sm:$0xf]
      %v436 = vld [vmem:[%s1 + $0xa0] sm:$0xf]
      %v437 = vld [vmem:[%s1 + $0xa4] sm:$0xf]
      %v438 = vld [vmem:[%s1 + $0xa8] sm:$0xf]
      %v439 = vld [vmem:[%s1 + $0xac] sm:$0xf]
      %v440 = vld [vmem:[%s1 + $0xb0] sm:$0xf]
      %v441 = vld [vmem:[%s1 + $0xb4] sm:$0xf]
      %v442 = vld [vmem:[%s1 + $0xb8] sm:$0xf]
      %v443 = vld [vmem:[%s1 + $0xbc] sm:$0xf]
      %v444 = vld [vmem:[%s1 + $0xc0] sm:$0xf]
      %v445 = vld [vmem:[%s1 + $0xc4] sm:$0xf]
      %v446 = vld [vmem:[%s1 + $0xc8] sm:$0xf]
      %v447 = vld [vmem:[%s1 + $0xcc] sm:$0xf]
      %v448 = vld [vmem:[%s1 + $0xd0] sm:$0xf]
      %v449 = vld [vmem:[%s1 + $0xd4] sm:$0xf]
      %v450 = vld [vmem:[%s1 + $0xd8] sm:$0xf]
      %v451 = vld [vmem:[%s1 + $0xdc] sm:$0xf]
      %v452 = vld [vmem:[%s1 + $0xe0] sm:$0xf]
      %v453 = vld [vmem:[%s1 + $0xe4] sm:$0xf]
      %v454 = vld [vmem:[%s1 + $0xe8] sm:$0xf]
      %v455 = vld [vmem:[%s1 + $0xec] sm:$0xf]
      %v456 = vld [vmem:[%s1 + $0xf0] sm:$0xf]
      %v457 = vld [vmem:[%s1 + $0xf4] sm:$0xf]
      %v458 = vld [vmem:[%s1 + $0xf8] sm:$0xf]
      %v459 = vld [vmem:[%s1 + $0xfc] sm:$0xf]
      %v460 = vld [vmem:[%s1 + $0x100] sm:$0xf]
      %v461 = vld [vmem:[%s1 + $0x104] sm:$0xf]
      %v462 = vld [vmem:[%s1 + $0x108] sm:$0xf]
      %v463 = vld [vmem:[%s1 + $0x10c] sm:$0xf]
      %v464 = vld [vmem:[%s1 + $0x110] sm:$0xf]
      %v465 = vld [vmem:[%s1 + $0x114] sm:$0xf]
      %v466 = vld [vmem:[%s1 + $0x118] sm:$0xf]
      %v467 = vld [vmem:[%s1 + $0x11c] sm:$0xf]
      %v468 = vld [vmem:[%s1 + $0x120] sm:$0xf]
      %v469 = vld [vmem:[%s1 + $0x124] sm:$0xf]
      %v470 = vld [vmem:[%s1 + $0x128] sm:$0xf]
      %v471 = vld [vmem:[%s1 + $0x12c] sm:$0xf]
      %v472 = vld [vmem:[%s1 + $0x130] sm:$0xf]
      %v473 = vld [vmem:[%s1 + $0x134] sm:$0xf]
      %v474 = vld [vmem:[%s1 + $0x138] sm:$0xf]
      %v475 = vld [vmem:[%s1 + $0x13c] sm:$0xf]
      %v476 = vld [vmem:[%s1 + $0x140] sm:$0xf]
      %v477 = vld [vmem:[%s1 + $0x144] sm:$0xf]
      %v478 = vld [vmem:[%s1 + $0x148] sm:$0xf]
      %v479 = vld [vmem:[%s1 + $0x14c] sm:$0xf]
      %v480 = vld [vmem:[%s1 + $0x150] sm:$0xf]
      %v481 = vld [vmem:[%s1 + $0x154] sm:$0xf]
      %v482 = vld [vmem:[%s1 + $0x158] sm:$0xf]
      %v483 = vld [vmem:[%s1 + $0x15c] sm:$0xf]
      %v484 = vld [vmem:[%s1 + $0x160] sm:$0xf]
      %v485 = vld [vmem:[%s1 + $0x164] sm:$0xf]
      %v486 = vld [vmem:[%s1 + $0x168] sm:$0xf]
      %v487 = vld [vmem:[%s1 + $0x16c] sm:$0xf]
      %v488 = vld [vmem:[%s1 + $0x170] sm:$0xf]
      %v489 = vld [vmem:[%s1 + $0x174] sm:$0xf]
      %v490 = vld [vmem:[%s1 + $0x178] sm:$0xf]
      %v491 = vld [vmem:[%s1 + $0x17c] sm:$0xf]
      %v492 = vld [vmem:[%s1 + $0x180] sm:$0xf]
      %v493 = vld [vmem:[%s1 + $0x184] sm:$0xf]
      %v494 = vld [vmem:[%s1 + $0x188] sm:$0xf]
      %v495 = vld [vmem:[%s1 + $0x18c] sm:$0xf]
      %v496 = vld [vmem:[%s1 + $0x190] sm:$0xf]
      %v497 = vld [vmem:[%s1 + $0x194] sm:$0xf]
      %v498 = vld [vmem:[%s1 + $0x198] sm:$0xf]
      %v499 = vld [vmem:[%s1 + $0x19c] sm:$0xf]
      %v500 = vld [vmem:[%s1 + $0x1a0] sm:$0xf]
      %v501 = vld [vmem:[%s1 + $0x1a4] sm:$0xf]
      %v502 = vld [vmem:[%s1 + $0x1a8] sm:$0xf]
      %v503 = vld [vmem:[%s1 + $0x1ac] sm:$0xf]
      %v504 = vld [vmem:[%s1 + $0x1b0] sm:$0xf]
      %v505 = vld [vmem:[%s1 + $0x1b4] sm:$0xf]
      %v506 = vld [vmem:[%s1 + $0x1b8] sm:$0xf]
      %v507 = vld [vmem:[%s1 + $0x1bc] sm:$0xf]
      %v508 = vld [vmem:[%s1 + $0x1c0] sm:$0xf]
      %v509 = vld [vmem:[%s1 + $0x1c4] sm:$0xf]
      %v510 = vld [vmem:[%s1 + $0x1c8] sm:$0xf]
      %v511 = vld [vmem:[%s1 + $0x1cc] sm:$0xf]
      %v512 = vld [vmem:[%s1 + $0x1d0] sm:$0xf]
      %v513 = vld [vmem:[%s1 + $0x1d4] sm:$0xf]
      %v514 = vld [vmem:[%s1 + $0x1d8] sm:$0xf]
      %v515 = vld [vmem:[%s1 + $0x1dc] sm:$0xf]
      %v516 = vld [vmem:[%s1 + $0x1e0] sm:$0xf]
      %v517 = vld [vmem:[%s1 + $0x1e4] sm:$0xf]
      %v518 = vld [vmem:[%s1 + $0x1e8] sm:$0xf]
      %v519 = vld [vmem:[%s1 + $0x1ec] sm:$0xf]
      %v520 = vld [vmem:[%s1 + $0x1f0] sm:$0xf]
      %v521 = vld [vmem:[%s1 + $0x1f4] sm:$0xf]
      %v522 = vld [vmem:[%s1 + $0x1f8] sm:$0xf]
      %v523 = vld [vmem:[%s1 + $0x1fc] sm:$0xf]
      %v524 = vld [vmem:[%s1 + $0x200] sm:$0xf]
      %v525 = vld [vmem:[%s1 + $0x204] sm:$0xf]
      %v526 = vld [vmem:[%s1 + $0x208] sm:$0xf]
      %v527 = vld [vmem:[%s1 + $0x20c] sm:$0xf]
      %v528 = vld [vmem:[%s1 + $0x210] sm:$0xf]
      %v529 = vld [vmem:[%s1 + $0x214] sm:$0xf]
      %v530 = vld [vmem:[%s1 + $0x218] sm:$0xf]
      %v531 = vld [vmem:[%s1 + $0x21c] sm:$0xf]
      %v532 = vld [vmem:[%s1 + $0x220] sm:$0xf]
      %v533 = vld [vmem:[%s1 + $0x224] sm:$0xf]
      %v534 = vld [vmem:[%s1 + $0x228] sm:$0xf]
      %v535 = vld [vmem:[%s1 + $0x22c] sm:$0xf]
      %v536 = vld [vmem:[%s1 + $0x230] sm:$0xf]
      %v537 = vld [vmem:[%s1 + $0x234] sm:$0xf]
      %v538 = vld [vmem:[%s1 + $0x238] sm:$0xf]
      %v539 = vld [vmem:[%s1 + $0x23c] sm:$0xf]
      %v540 = vld [vmem:[%s1 + $0x240] sm:$0xf]
      %v541 = vld [vmem:[%s1 + $0x244] sm:$0xf]
      %v542 = vld [vmem:[%s1 + $0x248] sm:$0xf]
      %v543 = vld [vmem:[%s1 + $0x24c] sm:$0xf]
      %v544 = vld [vmem:[%s1 + $0x250] sm:$0xf]
      %v545 = vld [vmem:[%s1 + $0x254] sm:$0xf]
      %v546 = vld [vmem:[%s1 + $0x258] sm:$0xf]
      %v547 = vld [vmem:[%s1 + $0x25c] sm:$0xf]
      %v548 = vld [vmem:[%s1 + $0x260] sm:$0xf]
      %v549 = vld [vmem:[%s1 + $0x264] sm:$0xf]
      %v550 = vld [vmem:[%s1 + $0x268] sm:$0xf]
      %v551 = vld [vmem:[%s1 + $0x26c] sm:$0xf]
      %v552 = vld [vmem:[%s1 + $0x270] sm:$0xf]
      %v553 = vld [vmem:[%s1 + $0x274] sm:$0xf]
      %v554 = vld [vmem:[%s1 + $0x278] sm:$0xf]
      %v555 = vld [vmem:[%s1 + $0x27c] sm:$0xf]
      %v556 = vld [vmem:[%s1 + $0x280] sm:$0xf]
      %v557 = vld [vmem:[%s1 + $0x284] sm:$0xf]
      %v558 = vld [vmem:[%s1 + $0x288] sm:$0xf]
      %v559 = vld [vmem:[%s1 + $0x28c] sm:$0xf]
      %v560 = vld [vmem:[%s1 + $0x290] sm:$0xf]
      %v561 = vld [vmem:[%s1 + $0x294] sm:$0xf]
      %v562 = vld [vmem:[%s1 + $0x298] sm:$0xf]
      %v563 = vld [vmem:[%s1 + $0x29c] sm:$0xf]
      %v564 = vld [vmem:[%s1 + $0x2a0] sm:$0xf]
      %v565 = vld [vmem:[%s1 + $0x2a4] sm:$0xf]
      %v566 = vld [vmem:[%s1 + $0x2a8] sm:$0xf]
      %v567 = vld [vmem:[%s1 + $0x2ac] sm:$0xf]
      %v568 = vld [vmem:[%s1 + $0x2b0] sm:$0xf]
      %v569 = vld [vmem:[%s1 + $0x2b4] sm:$0xf]
      %v570 = vld [vmem:[%s1 + $0x2b8] sm:$0xf]
      %v571 = vld [vmem:[%s1 + $0x2bc] sm:$0xf]
      %v572 = vld [vmem:[%s1 + $0x2c0] sm:$0xf]
      %v573 = vld [vmem:[%s1 + $0x2c4] sm:$0xf]
      %v574 = vld [vmem:[%s1 + $0x2c8] sm:$0xf]
      %v575 = vld [vmem:[%s1 + $0x2cc] sm:$0xf]
      %v576 = vld [vmem:[%s1 + $0x2d0] sm:$0xf]
      %v577 = vld [vmem:[%s1 + $0x2d4] sm:$0xf]
      %v578 = vld [vmem:[%s1 + $0x2d8] sm:$0xf]
      %v579 = vld [vmem:[%s1 + $0x2dc] sm:$0xf]
      %v580 = vld [vmem:[%s1 + $0x2e0] sm:$0xf]
      %v581 = vld [vmem:[%s1 + $0x2e4] sm:$0xf]
      %v582 = vld [vmem:[%s1 + $0x2e8] sm:$0xf]
      %v583 = vld [vmem:[%s1 + $0x2ec] sm:$0xf]
      %v584 = vld [vmem:[%s1 + $0x2f0] sm:$0xf]
      %v585 = vld [vmem:[%s1 + $0x2f4] sm:$0xf]
      %v586 = vld [vmem:[%s1 + $0x2f8] sm:$0xf]
      %v587 = vld [vmem:[%s1 + $0x2fc] sm:$0xf]
      %v588 = vld [vmem:[%s1 + $0x300] sm:$0xf]
      %v589 = vld [vmem:[%s1 + $0x304] sm:$0xf]
      %v590 = vld [vmem:[%s1 + $0x308] sm:$0xf]
      %v591 = vld [vmem:[%s1 + $0x30c] sm:$0xf]
      %v592 = vld [vmem:[%s2] sm:$0x1]
      %v594 = vlaneseq
      %v595 = vshrl.u32 %v594, 7
      %v596 = vsub.s32 0, %v595
      %v597 = vrot.slane %v592, %v596
      %v823 = vunpack.c.l.b16 %v172
      %v824 = vunpack.c.h.b16 %v172
      %v825 = vunpack.c.l.b16 %v173
      %v826 = vunpack.c.h.b16 %v173
      %v827 = vunpack.c.l.b16 %v174
      %v828 = vunpack.c.h.b16 %v174
      %v829 = vunpack.c.l.b16 %v175
      %v830 = vunpack.c.h.b16 %v175
      %v831 = vunpack.c.l.b16 %v176
      %v832 = vunpack.c.h.b16 %v176
      %v833 = vunpack.c.l.b16 %v177
      %v834 = vunpack.c.h.b16 %v177
      %v835 = vunpack.c.l.b16 %v178
      %v836 = vunpack.c.l.b16 %v179
      %v837 = vunpack.c.h.b16 %v179
      %v838 = vunpack.c.l.b16 %v180
      %v839 = vunpack.c.h.b16 %v180
      %v840 = vunpack.c.l.b16 %v181
      %v841 = vunpack.c.h.b16 %v181
      %v842 = vunpack.c.l.b16 %v182
      %v843 = vunpack.c.h.b16 %v182
      %v844 = vunpack.c.l.b16 %v183
      %v845 = vunpack.c.h.b16 %v183
      %v846 = vunpack.c.l.b16 %v184
      %v847 = vunpack.c.h.b16 %v184
      %v848 = vunpack.c.l.b16 %v185
      %v849 = vunpack.c.l.b16 %v186
      %v850 = vunpack.c.h.b16 %v186
      %v851 = vunpack.c.l.b16 %v187
      %v852 = vunpack.c.h.b16 %v187
      %v853 = vunpack.c.l.b16 %v188
      %v854 = vunpack.c.h.b16 %v188
      %v855 = vunpack.c.l.b16 %v189
      %v856 = vunpack.c.h.b16 %v189
      %v857 = vunpack.c.l.b16 %v190
      %v858 = vunpack.c.h.b16 %v190
      %v859 = vunpack.c.l.b16 %v191
      %v860 = vunpack.c.h.b16 %v191
      %v861 = vunpack.c.l.b16 %v192
      %v862 = vunpack.c.l.b16 %v193
      %v863 = vunpack.c.h.b16 %v193
      %v864 = vunpack.c.l.b16 %v194
      %v865 = vunpack.c.h.b16 %v194
      %v866 = vunpack.c.l.b16 %v195
      %v867 = vunpack.c.h.b16 %v195
      %v868 = vunpack.c.l.b16 %v196
      %v869 = vunpack.c.h.b16 %v196
      %v870 = vunpack.c.l.b16 %v197
      %v871 = vunpack.c.h.b16 %v197
      %v872 = vunpack.c.l.b16 %v198
      %v873 = vunpack.c.h.b16 %v198
      %v874 = vunpack.c.l.b16 %v199
      %v875 = vunpack.c.l.b16 %v200
      %v876 = vunpack.c.h.b16 %v200
      %v877 = vunpack.c.l.b16 %v201
      %v878 = vunpack.c.h.b16 %v201
      %v879 = vunpack.c.l.b16 %v202
      %v880 = vunpack.c.h.b16 %v202
      %v881 = vunpack.c.l.b16 %v203
      %v882 = vunpack.c.h.b16 %v203
      %v883 = vunpack.c.l.b16 %v204
      %v884 = vunpack.c.h.b16 %v204
      %v885 = vunpack.c.l.b16 %v205
      %v886 = vunpack.c.h.b16 %v205
      %v887 = vunpack.c.l.b16 %v206
      %v888 = vunpack.c.l.b16 %v207
      %v889 = vunpack.c.h.b16 %v207
      %v890 = vunpack.c.l.b16 %v208
      %v891 = vunpack.c.h.b16 %v208
      %v892 = vunpack.c.l.b16 %v209
      %v893 = vunpack.c.h.b16 %v209
      %v894 = vunpack.c.l.b16 %v210
      %v895 = vunpack.c.h.b16 %v210
      %v896 = vunpack.c.l.b16 %v211
      %v897 = vunpack.c.h.b16 %v211
      %v898 = vunpack.c.l.b16 %v212
      %v899 = vunpack.c.h.b16 %v212
      %v900 = vunpack.c.l.b16 %v213
      %v901 = vunpack.c.l.b16 %v214
      %v902 = vunpack.c.h.b16 %v214
      %v903 = vunpack.c.l.b16 %v215
      %v904 = vunpack.c.h.b16 %v215
      %v905 = vunpack.c.l.b16 %v216
      %v906 = vunpack.c.h.b16 %v216
      %v907 = vunpack.c.l.b16 %v217
      %v908 = vunpack.c.h.b16 %v217
      %v909 = vunpack.c.l.b16 %v218
      %v910 = vunpack.c.h.b16 %v218
      %v911 = vunpack.c.l.b16 %v219
      %v912 = vunpack.c.h.b16 %v219
      %v913 = vunpack.c.l.b16 %v220
      %v914 = vunpack.c.l.b16 %v221
      %v915 = vunpack.c.h.b16 %v221
      %v916 = vunpack.c.l.b16 %v222
      %v917 = vunpack.c.h.b16 %v222
      %v918 = vunpack.c.l.b16 %v223
      %v919 = vunpack.c.h.b16 %v223
      %v920 = vunpack.c.l.b16 %v224
      %v921 = vunpack.c.h.b16 %v224
      %v922 = vunpack.c.l.b16 %v225
      %v923 = vunpack.c.h.b16 %v225
      %v924 = vunpack.c.l.b16 %v226
      %v925 = vunpack.c.h.b16 %v226
      %v926 = vunpack.c.l.b16 %v227
      %v927 = vunpack.c.l.b16 %v228
      %v928 = vunpack.c.h.b16 %v228
      %v929 = vunpack.c.l.b16 %v229
      %v930 = vunpack.c.h.b16 %v229
      %v931 = vunpack.c.l.b16 %v230
      %v932 = vunpack.c.h.b16 %v230
      %v933 = vunpack.c.l.b16 %v231
      %v934 = vunpack.c.h.b16 %v231
      %v935 = vunpack.c.l.b16 %v232
      %v936 = vunpack.c.h.b16 %v232
      %v937 = vunpack.c.l.b16 %v233
      %v938 = vunpack.c.h.b16 %v233
      %v939 = vunpack.c.l.b16 %v234
      %v940 = vunpack.c.l.b16 %v235
      %v941 = vunpack.c.h.b16 %v235
      %v942 = vunpack.c.l.b16 %v236
      %v943 = vunpack.c.h.b16 %v236
      %v944 = vunpack.c.l.b16 %v237
      %v945 = vunpack.c.h.b16 %v237
      %v946 = vunpack.c.l.b16 %v238
      %v947 = vunpack.c.h.b16 %v238
      %v948 = vunpack.c.l.b16 %v239
      %v949 = vunpack.c.h.b16 %v239
      %v950 = vunpack.c.l.b16 %v240
      %v951 = vunpack.c.h.b16 %v240
      %v952 = vunpack.c.l.b16 %v241
      %v953 = vunpack.c.l.b16 %v242
      %v954 = vunpack.c.h.b16 %v242
      %v955 = vunpack.c.l.b16 %v243
      %v956 = vunpack.c.h.b16 %v243
      %v957 = vunpack.c.l.b16 %v244
      %v958 = vunpack.c.h.b16 %v244
      %v959 = vunpack.c.l.b16 %v245
      %v960 = vunpack.c.h.b16 %v245
      %v961 = vunpack.c.l.b16 %v246
      %v962 = vunpack.c.h.b16 %v246
      %v963 = vunpack.c.l.b16 %v247
      %v964 = vunpack.c.h.b16 %v247
      %v965 = vunpack.c.l.b16 %v248
      %v966 = vunpack.c.l.b16 %v249
      %v967 = vunpack.c.h.b16 %v249
      %v968 = vunpack.c.l.b16 %v250
      %v969 = vunpack.c.h.b16 %v250
      %v970 = vunpack.c.l.b16 %v251
      %v971 = vunpack.c.h.b16 %v251
      %v972 = vunpack.c.l.b16 %v252
      %v973 = vunpack.c.h.b16 %v252
      %v974 = vunpack.c.l.b16 %v253
      %v975 = vunpack.c.h.b16 %v253
      %v976 = vunpack.c.l.b16 %v254
      %v977 = vunpack.c.h.b16 %v254
      %v978 = vunpack.c.l.b16 %v255
      %v979 = vunpack.c.l.b16 %v256
      %v980 = vunpack.c.h.b16 %v256
      %v981 = vunpack.c.l.b16 %v257
      %v982 = vunpack.c.h.b16 %v257
      %v983 = vunpack.c.l.b16 %v258
      %v984 = vunpack.c.h.b16 %v258
      %v985 = vunpack.c.l.b16 %v259
      %v986 = vunpack.c.h.b16 %v259
      %v987 = vunpack.c.l.b16 %v260
      %v988 = vunpack.c.h.b16 %v260
      %v989 = vunpack.c.l.b16 %v261
      %v990 = vunpack.c.h.b16 %v261
      %v991 = vunpack.c.l.b16 %v262
      %v992 = vunpack.c.l.b16 %v263
      %v993 = vunpack.c.h.b16 %v263
      %v994 = vunpack.c.l.b16 %v264
      %v995 = vunpack.c.h.b16 %v264
      %v996 = vunpack.c.l.b16 %v265
      %v997 = vunpack.c.h.b16 %v265
      %v998 = vunpack.c.l.b16 %v266
      %v999 = vunpack.c.h.b16 %v266
      %v1000 = vunpack.c.l.b16 %v267
      %v1001 = vunpack.c.h.b16 %v267
      %v1002 = vunpack.c.l.b16 %v268
      %v1003 = vunpack.c.h.b16 %v268
      %v1004 = vunpack.c.l.b16 %v269
      %v1005 = vunpack.c.l.b16 %v270
      %v1006 = vunpack.c.h.b16 %v270
      %v1007 = vunpack.c.l.b16 %v271
      %v1008 = vunpack.c.h.b16 %v271
      %v1009 = vunpack.c.l.b16 %v272
      %v1010 = vunpack.c.h.b16 %v272
      %v1011 = vunpack.c.l.b16 %v273
      %v1012 = vunpack.c.h.b16 %v273
      %v1013 = vunpack.c.l.b16 %v274
      %v1014 = vunpack.c.h.b16 %v274
      %v1015 = vunpack.c.l.b16 %v275
      %v1016 = vunpack.c.h.b16 %v275
      %v1017 = vunpack.c.l.b16 %v276
      %v1018 = vunpack.c.l.b16 %v277
      %v1019 = vunpack.c.h.b16 %v277
      %v1020 = vunpack.c.l.b16 %v278
      %v1021 = vunpack.c.h.b16 %v278
      %v1022 = vunpack.c.l.b16 %v279
      %v1023 = vunpack.c.h.b16 %v279
      %v1024 = vunpack.c.l.b16 %v280
      %v1025 = vunpack.c.h.b16 %v280
      %v1026 = vunpack.c.l.b16 %v281
      %v1027 = vunpack.c.h.b16 %v281
      %v1028 = vunpack.c.l.b16 %v282
      %v1029 = vunpack.c.h.b16 %v282
      %v1030 = vunpack.c.l.b16 %v283
      %v1031 = vunpack.c.l.b16 %v284
      %v1032 = vunpack.c.h.b16 %v284
      %v1033 = vunpack.c.l.b16 %v285
      %v1034 = vunpack.c.h.b16 %v285
      %v1035 = vunpack.c.l.b16 %v286
      %v1036 = vunpack.c.h.b16 %v286
      %v1037 = vunpack.c.l.b16 %v287
      %v1038 = vunpack.c.h.b16 %v287
      %v1039 = vunpack.c.l.b16 %v288
      %v1040 = vunpack.c.h.b16 %v288
      %v1041 = vunpack.c.l.b16 %v289
      %v1042 = vunpack.c.h.b16 %v289
      %v1043 = vunpack.c.l.b16 %v290
      %v1044 = vunpack.c.l.b16 %v291
      %v1045 = vunpack.c.h.b16 %v291
      %v1046 = vunpack.c.l.b16 %v292
      %v1047 = vunpack.c.h.b16 %v292
      %v1048 = vunpack.c.l.b16 %v293
      %v1049 = vunpack.c.h.b16 %v293
      %v1050 = vunpack.c.l.b16 %v294
      %v1051 = vunpack.c.h.b16 %v294
      %v1052 = vunpack.c.l.b16 %v295
      %v1053 = vunpack.c.h.b16 %v295
      %v1054 = vunpack.c.l.b16 %v296
      %v1055 = vunpack.c.h.b16 %v296
      %v1056 = vunpack.c.l.b16 %v297
      %v1057 = vunpack.c.l.b16 %v298
      %v1058 = vunpack.c.h.b16 %v298
      %v1059 = vunpack.c.l.b16 %v299
      %v1060 = vunpack.c.h.b16 %v299
      %v1061 = vunpack.c.l.b16 %v300
      %v1062 = vunpack.c.h.b16 %v300
      %v1063 = vunpack.c.l.b16 %v301
      %v1064 = vunpack.c.h.b16 %v301
      %v1065 = vunpack.c.l.b16 %v302
      %v1066 = vunpack.c.h.b16 %v302
      %v1067 = vunpack.c.l.b16 %v303
      %v1068 = vunpack.c.h.b16 %v303
      %v1069 = vunpack.c.l.b16 %v304
      %v1070 = vunpack.c.l.b16 %v305
      %v1071 = vunpack.c.h.b16 %v305
      %v1072 = vunpack.c.l.b16 %v306
      %v1073 = vunpack.c.h.b16 %v306
      %v1074 = vunpack.c.l.b16 %v307
      %v1075 = vunpack.c.h.b16 %v307
      %v1076 = vunpack.c.l.b16 %v308
      %v1077 = vunpack.c.h.b16 %v308
      %v1078 = vunpack.c.l.b16 %v309
      %v1079 = vunpack.c.h.b16 %v309
      %v1080 = vunpack.c.l.b16 %v310
      %v1081 = vunpack.c.h.b16 %v310
      %v1082 = vunpack.c.l.b16 %v311
      %v1083 = vunpack.c.l.b16 %v312
      %v1084 = vunpack.c.h.b16 %v312
      %v1085 = vunpack.c.l.b16 %v313
      %v1086 = vunpack.c.h.b16 %v313
      %v1087 = vunpack.c.l.b16 %v314
      %v1088 = vunpack.c.h.b16 %v314
      %v1089 = vunpack.c.l.b16 %v315
      %v1090 = vunpack.c.h.b16 %v315
      %v1091 = vunpack.c.l.b16 %v316
      %v1092 = vunpack.c.h.b16 %v316
      %v1093 = vunpack.c.l.b16 %v317
      %v1094 = vunpack.c.h.b16 %v317
      %v1095 = vunpack.c.l.b16 %v318
      %v1096 = vunpack.c.l.b16 %v319
      %v1097 = vunpack.c.h.b16 %v319
      %v1098 = vunpack.c.l.b16 %v320
      %v1099 = vunpack.c.h.b16 %v320
      %v1100 = vunpack.c.l.b16 %v321
      %v1101 = vunpack.c.h.b16 %v321
      %v1102 = vunpack.c.l.b16 %v322
      %v1103 = vunpack.c.h.b16 %v322
      %v1104 = vunpack.c.l.b16 %v323
      %v1105 = vunpack.c.h.b16 %v323
      %v1106 = vunpack.c.l.b16 %v324
      %v1107 = vunpack.c.h.b16 %v324
      %v1108 = vunpack.c.l.b16 %v325
      %v1109 = vunpack.c.l.b16 %v326
      %v1110 = vunpack.c.h.b16 %v326
      %v1111 = vunpack.c.l.b16 %v327
      %v1112 = vunpack.c.h.b16 %v327
      %v1113 = vunpack.c.l.b16 %v328
      %v1114 = vunpack.c.h.b16 %v328
      %v1115 = vunpack.c.l.b16 %v329
      %v1116 = vunpack.c.h.b16 %v329
      %v1117 = vunpack.c.l.b16 %v330
      %v1118 = vunpack.c.h.b16 %v330
      %v1119 = vunpack.c.l.b16 %v331
      %v1120 = vunpack.c.h.b16 %v331
      %v1121 = vunpack.c.l.b16 %v332
      %v1122 = vunpack.c.l.b16 %v333
      %v1123 = vunpack.c.h.b16 %v333
      %v1124 = vunpack.c.l.b16 %v334
      %v1125 = vunpack.c.h.b16 %v334
      %v1126 = vunpack.c.l.b16 %v335
      %v1127 = vunpack.c.h.b16 %v335
      %v1128 = vunpack.c.l.b16 %v336
      %v1129 = vunpack.c.h.b16 %v336
      %v1130 = vunpack.c.l.b16 %v337
      %v1131 = vunpack.c.h.b16 %v337
      %v1132 = vunpack.c.l.b16 %v338
      %v1133 = vunpack.c.h.b16 %v338
      %v1134 = vunpack.c.l.b16 %v339
      %v1135 = vunpack.c.l.b16 %v340
      %v1136 = vunpack.c.h.b16 %v340
      %v1137 = vunpack.c.l.b16 %v341
      %v1138 = vunpack.c.h.b16 %v341
      %v1139 = vunpack.c.l.b16 %v342
      %v1140 = vunpack.c.h.b16 %v342
      %v1141 = vunpack.c.l.b16 %v343
      %v1142 = vunpack.c.h.b16 %v343
      %v1143 = vunpack.c.l.b16 %v344
      %v1144 = vunpack.c.h.b16 %v344
      %v1145 = vunpack.c.l.b16 %v345
      %v1146 = vunpack.c.h.b16 %v345
      %v1147 = vunpack.c.l.b16 %v346
      %v1148 = vunpack.c.l.b16 %v347
      %v1149 = vunpack.c.h.b16 %v347
      %v1150 = vunpack.c.l.b16 %v348
      %v1151 = vunpack.c.h.b16 %v348
      %v1152 = vunpack.c.l.b16 %v349
      %v1153 = vunpack.c.h.b16 %v349
      %v1154 = vunpack.c.l.b16 %v350
      %v1155 = vunpack.c.h.b16 %v350
      %v1156 = vunpack.c.l.b16 %v351
      %v1157 = vunpack.c.h.b16 %v351
      %v1158 = vunpack.c.l.b16 %v352
      %v1159 = vunpack.c.h.b16 %v352
      %v1160 = vunpack.c.l.b16 %v353
      %v1161 = vunpack.c.l.b16 %v354
      %v1162 = vunpack.c.h.b16 %v354
      %v1163 = vunpack.c.l.b16 %v355
      %v1164 = vunpack.c.h.b16 %v355
      %v1165 = vunpack.c.l.b16 %v356
      %v1166 = vunpack.c.h.b16 %v356
      %v1167 = vunpack.c.l.b16 %v357
      %v1168 = vunpack.c.h.b16 %v357
      %v1169 = vunpack.c.l.b16 %v358
      %v1170 = vunpack.c.h.b16 %v358
      %v1171 = vunpack.c.l.b16 %v359
      %v1172 = vunpack.c.h.b16 %v359
      %v1173 = vunpack.c.l.b16 %v360
      %v1174 = vunpack.c.l.b16 %v361
      %v1175 = vunpack.c.h.b16 %v361
      %v1176 = vunpack.c.l.b16 %v362
      %v1177 = vunpack.c.h.b16 %v362
      %v1178 = vunpack.c.l.b16 %v363
      %v1179 = vunpack.c.h.b16 %v363
      %v1180 = vunpack.c.l.b16 %v364
      %v1181 = vunpack.c.h.b16 %v364
      %v1182 = vunpack.c.l.b16 %v365
      %v1183 = vunpack.c.h.b16 %v365
      %v1184 = vunpack.c.l.b16 %v366
      %v1185 = vunpack.c.h.b16 %v366
      %v1186 = vunpack.c.l.b16 %v367
      %v1187 = vunpack.c.l.b16 %v368
      %v1188 = vunpack.c.h.b16 %v368
      %v1189 = vunpack.c.l.b16 %v369
      %v1190 = vunpack.c.h.b16 %v369
      %v1191 = vunpack.c.l.b16 %v370
      %v1192 = vunpack.c.h.b16 %v370
      %v1193 = vunpack.c.l.b16 %v371
      %v1194 = vunpack.c.h.b16 %v371
      %v1195 = vunpack.c.l.b16 %v372
      %v1196 = vunpack.c.h.b16 %v372
      %v1197 = vunpack.c.l.b16 %v373
      %v1198 = vunpack.c.h.b16 %v373
      %v1199 = vunpack.c.l.b16 %v374
      %v1200 = vunpack.c.l.b16 %v375
      %v1201 = vunpack.c.h.b16 %v375
      %v1202 = vunpack.c.l.b16 %v376
      %v1203 = vunpack.c.h.b16 %v376
      %v1204 = vunpack.c.l.b16 %v377
      %v1205 = vunpack.c.h.b16 %v377
      %v1206 = vunpack.c.l.b16 %v378
      %v1207 = vunpack.c.h.b16 %v378
      %v1208 = vunpack.c.l.b16 %v379
      %v1209 = vunpack.c.h.b16 %v379
      %v1210 = vunpack.c.l.b16 %v380
      %v1211 = vunpack.c.h.b16 %v380
      %v1212 = vunpack.c.l.b16 %v381
      %v1213 = vunpack.c.l.b16 %v382
      %v1214 = vunpack.c.h.b16 %v382
      %v1215 = vunpack.c.l.b16 %v383
      %v1216 = vunpack.c.h.b16 %v383
      %v1217 = vunpack.c.l.b16 %v384
      %v1218 = vunpack.c.h.b16 %v384
      %v1219 = vunpack.c.l.b16 %v385
      %v1220 = vunpack.c.h.b16 %v385
      %v1221 = vunpack.c.l.b16 %v386
      %v1222 = vunpack.c.h.b16 %v386
      %v1223 = vunpack.c.l.b16 %v387
      %v1224 = vunpack.c.h.b16 %v387
      %v1225 = vunpack.c.l.b16 %v388
      %v1226 = vunpack.c.l.b16 %v389
      %v1227 = vunpack.c.h.b16 %v389
      %v1228 = vunpack.c.l.b16 %v390
      %v1229 = vunpack.c.h.b16 %v390
      %v1230 = vunpack.c.l.b16 %v391
      %v1231 = vunpack.c.h.b16 %v391
      %v1232 = vunpack.c.l.b16 %v392
      %v1233 = vunpack.c.h.b16 %v392
      %v1234 = vunpack.c.l.b16 %v393
      %v1235 = vunpack.c.h.b16 %v393
      %v1236 = vunpack.c.l.b16 %v394
      %v1237 = vunpack.c.h.b16 %v394
      %v1238 = vunpack.c.l.b16 %v395
      %v1239 = vpack.c.b16 %v836, %v823
      %v1240 = vpack.c.b16 %v837, %v824
      %v1241 = vpack.c.b16 %v838, %v825
      %v1242 = vpack.c.b16 %v839, %v826
      %v1243 = vpack.c.b16 %v840, %v827
      %v1244 = vpack.c.b16 %v841, %v828
      %v1245 = vpack.c.b16 %v842, %v829
      %v1246 = vpack.c.b16 %v843, %v830
      %v1247 = vpack.c.b16 %v844, %v831
      %v1248 = vpack.c.b16 %v845, %v832
      %v1249 = vpack.c.b16 %v846, %v833
      %v1250 = vpack.c.b16 %v847, %v834
      %v1251 = vpack.c.b16 %v848, %v835
      %v1252 = vpack.c.b16 %v862, %v849
      %v1253 = vpack.c.b16 %v863, %v850
      %v1254 = vpack.c.b16 %v864, %v851
      %v1255 = vpack.c.b16 %v865, %v852
      %v1256 = vpack.c.b16 %v866, %v853
      %v1257 = vpack.c.b16 %v867, %v854
      %v1258 = vpack.c.b16 %v868, %v855
      %v1259 = vpack.c.b16 %v869, %v856
      %v1260 = vpack.c.b16 %v870, %v857
      %v1261 = vpack.c.b16 %v871, %v858
      %v1262 = vpack.c.b16 %v872, %v859
      %v1263 = vpack.c.b16 %v873, %v860
      %v1264 = vpack.c.b16 %v874, %v861
      %v1265 = vpack.c.b16 %v888, %v875
      %v1266 = vpack.c.b16 %v889, %v876
      %v1267 = vpack.c.b16 %v890, %v877
      %v1268 = vpack.c.b16 %v891, %v878
      %v1269 = vpack.c.b16 %v892, %v879
      %v1270 = vpack.c.b16 %v893, %v880
      %v1271 = vpack.c.b16 %v894, %v881
      %v1272 = vpack.c.b16 %v895, %v882
      %v1273 = vpack.c.b16 %v896, %v883
      %v1274 = vpack.c.b16 %v897, %v884
      %v1275 = vpack.c.b16 %v898, %v885
      %v1276 = vpack.c.b16 %v899, %v886
      %v1277 = vpack.c.b16 %v900, %v887
      %v1278 = vpack.c.b16 %v914, %v901
      %v1279 = vpack.c.b16 %v915, %v902
      %v1280 = vpack.c.b16 %v916, %v903
      %v1281 = vpack.c.b16 %v917, %v904
      %v1282 = vpack.c.b16 %v918, %v905
      %v1283 = vpack.c.b16 %v919, %v906
      %v1284 = vpack.c.b16 %v920, %v907
      %v1285 = vpack.c.b16 %v921, %v908
      %v1286 = vpack.c.b16 %v922, %v909
      %v1287 = vpack.c.b16 %v923, %v910
      %v1288 = vpack.c.b16 %v924, %v911
      %v1289 = vpack.c.b16 %v925, %v912
      %v1290 = vpack.c.b16 %v926, %v913
      %v1291 = vpack.c.b16 %v940, %v927
      %v1292 = vpack.c.b16 %v941, %v928
      %v1293 = vpack.c.b16 %v942, %v929
      %v1294 = vpack.c.b16 %v943, %v930
      %v1295 = vpack.c.b16 %v944, %v931
      %v1296 = vpack.c.b16 %v945, %v932
      %v1297 = vpack.c.b16 %v946, %v933
      %v1298 = vpack.c.b16 %v947, %v934
      %v1299 = vpack.c.b16 %v948, %v935
      %v1300 = vpack.c.b16 %v949, %v936
      %v1301 = vpack.c.b16 %v950, %v937
      %v1302 = vpack.c.b16 %v951, %v938
      %v1303 = vpack.c.b16 %v952, %v939
      %v1304 = vpack.c.b16 %v966, %v953
      %v1305 = vpack.c.b16 %v967, %v954
      %v1306 = vpack.c.b16 %v968, %v955
      %v1307 = vpack.c.b16 %v969, %v956
      %v1308 = vpack.c.b16 %v970, %v957
      %v1309 = vpack.c.b16 %v971, %v958
      %v1310 = vpack.c.b16 %v972, %v959
      %v1311 = vpack.c.b16 %v973, %v960
      %v1312 = vpack.c.b16 %v974, %v961
      %v1313 = vpack.c.b16 %v975, %v962
      %v1314 = vpack.c.b16 %v976, %v963
      %v1315 = vpack.c.b16 %v977, %v964
      %v1316 = vpack.c.b16 %v978, %v965
      %v1317 = vpack.c.b16 %v992, %v979
      %v1318 = vpack.c.b16 %v993, %v980
      %v1319 = vpack.c.b16 %v994, %v981
      %v1320 = vpack.c.b16 %v995, %v982
      %v1321 = vpack.c.b16 %v996, %v983
      %v1322 = vpack.c.b16 %v997, %v984
      %v1323 = vpack.c.b16 %v998, %v985
      %v1324 = vpack.c.b16 %v999, %v986
      %v1325 = vpack.c.b16 %v1000, %v987
      %v1326 = vpack.c.b16 %v1001, %v988
      %v1327 = vpack.c.b16 %v1002, %v989
      %v1328 = vpack.c.b16 %v1003, %v990
      %v1329 = vpack.c.b16 %v1004, %v991
      %v1330 = vpack.c.b16 %v1018, %v1005
      %v1331 = vpack.c.b16 %v1019, %v1006
      %v1332 = vpack.c.b16 %v1020, %v1007
      %v1333 = vpack.c.b16 %v1021, %v1008
      %v1334 = vpack.c.b16 %v1022, %v1009
      %v1335 = vpack.c.b16 %v1023, %v1010
      %v1336 = vpack.c.b16 %v1024, %v1011
      %v1337 = vpack.c.b16 %v1025, %v1012
      %v1338 = vpack.c.b16 %v1026, %v1013
      %v1339 = vpack.c.b16 %v1027, %v1014
      %v1340 = vpack.c.b16 %v1028, %v1015
      %v1341 = vpack.c.b16 %v1029, %v1016
      %v1342 = vpack.c.b16 %v1030, %v1017
      %v1343 = vpack.c.b16 %v1044, %v1031
      %v1344 = vpack.c.b16 %v1045, %v1032
      %v1345 = vpack.c.b16 %v1046, %v1033
      %v1346 = vpack.c.b16 %v1047, %v1034
      %v1347 = vpack.c.b16 %v1048, %v1035
      %v1348 = vpack.c.b16 %v1049, %v1036
      %v1349 = vpack.c.b16 %v1050, %v1037
      %v1350 = vpack.c.b16 %v1051, %v1038
      %v1351 = vpack.c.b16 %v1052, %v1039
      %v1352 = vpack.c.b16 %v1053, %v1040
      %v1353 = vpack.c.b16 %v1054, %v1041
      %v1354 = vpack.c.b16 %v1055, %v1042
      %v1355 = vpack.c.b16 %v1056, %v1043
      %v1356 = vpack.c.b16 %v1070, %v1057
      %v1357 = vpack.c.b16 %v1071, %v1058
      %v1358 = vpack.c.b16 %v1072, %v1059
      %v1359 = vpack.c.b16 %v1073, %v1060
      %v1360 = vpack.c.b16 %v1074, %v1061
      %v1361 = vpack.c.b16 %v1075, %v1062
      %v1362 = vpack.c.b16 %v1076, %v1063
      %v1363 = vpack.c.b16 %v1077, %v1064
      %v1364 = vpack.c.b16 %v1078, %v1065
      %v1365 = vpack.c.b16 %v1079, %v1066
      %v1366 = vpack.c.b16 %v1080, %v1067
      %v1367 = vpack.c.b16 %v1081, %v1068
      %v1368 = vpack.c.b16 %v1082, %v1069
      %v1369 = vpack.c.b16 %v1096, %v1083
      %v1370 = vpack.c.b16 %v1097, %v1084
      %v1371 = vpack.c.b16 %v1098, %v1085
      %v1372 = vpack.c.b16 %v1099, %v1086
      %v1373 = vpack.c.b16 %v1100, %v1087
      %v1374 = vpack.c.b16 %v1101, %v1088
      %v1375 = vpack.c.b16 %v1102, %v1089
      %v1376 = vpack.c.b16 %v1103, %v1090
      %v1377 = vpack.c.b16 %v1104, %v1091
      %v1378 = vpack.c.b16 %v1105, %v1092
      %v1379 = vpack.c.b16 %v1106, %v1093
      %v1380 = vpack.c.b16 %v1107, %v1094
      %v1381 = vpack.c.b16 %v1108, %v1095
      %v1382 = vpack.c.b16 %v1122, %v1109
      %v1383 = vpack.c.b16 %v1123, %v1110
      %v1384 = vpack.c.b16 %v1124, %v1111
      %v1385 = vpack.c.b16 %v1125, %v1112
      %v1386 = vpack.c.b16 %v1126, %v1113
      %v1387 = vpack.c.b16 %v1127, %v1114
      %v1388 = vpack.c.b16 %v1128, %v1115
      %v1389 = vpack.c.b16 %v1129, %v1116
      %v1390 = vpack.c.b16 %v1130, %v1117
      %v1391 = vpack.c.b16 %v1131, %v1118
      %v1392 = vpack.c.b16 %v1132, %v1119
      %v1393 = vpack.c.b16 %v1133, %v1120
      %v1394 = vpack.c.b16 %v1134, %v1121
      %v1395 = vpack.c.b16 %v1148, %v1135
      %v1396 = vpack.c.b16 %v1149, %v1136
      %v1397 = vpack.c.b16 %v1150, %v1137
      %v1398 = vpack.c.b16 %v1151, %v1138
      %v1399 = vpack.c.b16 %v1152, %v1139
      %v1400 = vpack.c.b16 %v1153, %v1140
      %v1401 = vpack.c.b16 %v1154, %v1141
      %v1402 = vpack.c.b16 %v1155, %v1142
      %v1403 = vpack.c.b16 %v1156, %v1143
      %v1404 = vpack.c.b16 %v1157, %v1144
      %v1405 = vpack.c.b16 %v1158, %v1145
      %v1406 = vpack.c.b16 %v1159, %v1146
      %v1407 = vpack.c.b16 %v1160, %v1147
      %v1408 = vpack.c.b16 %v1174, %v1161
      %v1409 = vpack.c.b16 %v1175, %v1162
      %v1410 = vpack.c.b16 %v1176, %v1163
      %v1411 = vpack.c.b16 %v1177, %v1164
      %v1412 = vpack.c.b16 %v1178, %v1165
      %v1413 = vpack.c.b16 %v1179, %v1166
      %v1414 = vpack.c.b16 %v1180, %v1167
      %v1415 = vpack.c.b16 %v1181, %v1168
      %v1416 = vpack.c.b16 %v1182, %v1169
      %v1417 = vpack.c.b16 %v1183, %v1170
      %v1418 = vpack.c.b16 %v1184, %v1171
      %v1419 = vpack.c.b16 %v1185, %v1172
      %v1420 = vpack.c.b16 %v1186, %v1173
      %v1421 = vpack.c.b16 %v1200, %v1187
      %v1422 = vpack.c.b16 %v1201, %v1188
      %v1423 = vpack.c.b16 %v1202, %v1189
      %v1424 = vpack.c.b16 %v1203, %v1190
      %v1425 = vpack.c.b16 %v1204, %v1191
      %v1426 = vpack.c.b16 %v1205, %v1192
      %v1427 = vpack.c.b16 %v1206, %v1193
      %v1428 = vpack.c.b16 %v1207, %v1194
      %v1429 = vpack.c.b16 %v1208, %v1195
      %v1430 = vpack.c.b16 %v1209, %v1196
      %v1431 = vpack.c.b16 %v1210, %v1197
      %v1432 = vpack.c.b16 %v1211, %v1198
      %v1433 = vpack.c.b16 %v1212, %v1199
      %v1434 = vpack.c.b16 %v1226, %v1213
      %v1435 = vpack.c.b16 %v1227, %v1214
      %v1436 = vpack.c.b16 %v1228, %v1215
      %v1437 = vpack.c.b16 %v1229, %v1216
      %v1438 = vpack.c.b16 %v1230, %v1217
      %v1439 = vpack.c.b16 %v1231, %v1218
      %v1440 = vpack.c.b16 %v1232, %v1219
      %v1441 = vpack.c.b16 %v1233, %v1220
      %v1442 = vpack.c.b16 %v1234, %v1221
      %v1443 = vpack.c.b16 %v1235, %v1222
      %v1444 = vpack.c.b16 %v1236, %v1223
      %v1445 = vpack.c.b16 %v1237, %v1224
      %v1446 = vpack.c.b16 %v1238, %v1225
      %v1835 = vunpack.c.l.b16 %v396
      %v1836 = vunpack.c.l.b16 %v397
      %v1837 = vunpack.c.l.b16 %v398
      %v1838 = vunpack.c.l.b16 %v399
      %v1839 = vunpack.c.l.b16 %v400
      %v1840 = vunpack.c.l.b16 %v401
      %v1841 = vunpack.c.l.b16 %v402
      %v1842 = vunpack.c.l.b16 %v403
      %v1843 = vunpack.c.l.b16 %v404
      %v1844 = vunpack.c.l.b16 %v405
      %v1845 = vunpack.c.l.b16 %v406
      %v1846 = vunpack.c.l.b16 %v407
      %v1847 = vunpack.c.l.b16 %v408
      %v1848 = vunpack.c.l.b16 %v409
      %v1849 = vunpack.c.l.b16 %v410
      %v1850 = vunpack.c.l.b16 %v411
      %v1851 = vunpack.c.l.b16 %v412
      %v1852 = vunpack.c.l.b16 %v413
      %v1853 = vunpack.c.l.b16 %v414
      %v1854 = vunpack.c.l.b16 %v415
      %v1855 = vunpack.c.l.b16 %v416
      %v1856 = vunpack.c.l.b16 %v417
      %v1857 = vunpack.c.l.b16 %v418
      %v1858 = vunpack.c.l.b16 %v419
      %v1859 = vunpack.c.l.b16 %v420
      %v1860 = vunpack.c.l.b16 %v421
      %v1861 = vunpack.c.l.b16 %v422
      %v1862 = vunpack.c.l.b16 %v423
      %v1863 = vunpack.c.l.b16 %v424
      %v1864 = vunpack.c.l.b16 %v425
      %v1865 = vunpack.c.l.b16 %v426
      %v1866 = vunpack.c.l.b16 %v427
      %v1867 = vunpack.c.l.b16 %v428
      %v1868 = vunpack.c.l.b16 %v429
      %v1869 = vunpack.c.l.b16 %v430
      %v1870 = vunpack.c.l.b16 %v431
      %v1871 = vunpack.c.l.b16 %v432
      %v1872 = vunpack.c.l.b16 %v433
      %v1873 = vunpack.c.l.b16 %v434
      %v1874 = vunpack.c.l.b16 %v435
      %v1875 = vunpack.c.l.b16 %v436
      %v1876 = vunpack.c.l.b16 %v437
      %v1877 = vunpack.c.l.b16 %v438
      %v1878 = vunpack.c.l.b16 %v439
      %v1879 = vunpack.c.l.b16 %v440
      %v1880 = vunpack.c.l.b16 %v441
      %v1881 = vunpack.c.l.b16 %v442
      %v1882 = vunpack.c.l.b16 %v443
      %v1883 = vunpack.c.l.b16 %v444
      %v1884 = vunpack.c.l.b16 %v445
      %v1885 = vunpack.c.l.b16 %v446
      %v1886 = vunpack.c.l.b16 %v447
      %v1887 = vunpack.c.l.b16 %v448
      %v1888 = vunpack.c.l.b16 %v449
      %v1889 = vunpack.c.l.b16 %v450
      %v1890 = vunpack.c.l.b16 %v451
      %v1891 = vunpack.c.l.b16 %v452
      %v1892 = vunpack.c.l.b16 %v453
      %v1893 = vunpack.c.l.b16 %v454
      %v1894 = vunpack.c.l.b16 %v455
      %v1895 = vunpack.c.l.b16 %v456
      %v1896 = vunpack.c.l.b16 %v457
      %v1897 = vunpack.c.l.b16 %v458
      %v1898 = vunpack.c.l.b16 %v459
      %v1899 = vunpack.c.l.b16 %v460
      %v1900 = vunpack.c.l.b16 %v461
      %v1901 = vunpack.c.l.b16 %v462
      %v1902 = vunpack.c.l.b16 %v463
      %v1903 = vunpack.c.l.b16 %v464
      %v1904 = vunpack.c.l.b16 %v465
      %v1905 = vunpack.c.l.b16 %v466
      %v1906 = vunpack.c.l.b16 %v467
      %v1907 = vunpack.c.l.b16 %v468
      %v1908 = vunpack.c.l.b16 %v469
      %v1909 = vunpack.c.l.b16 %v470
      %v1910 = vunpack.c.l.b16 %v471
      %v1911 = vunpack.c.l.b16 %v472
      %v1912 = vunpack.c.l.b16 %v473
      %v1913 = vunpack.c.l.b16 %v474
      %v1914 = vunpack.c.l.b16 %v475
      %v1915 = vunpack.c.l.b16 %v476
      %v1916 = vunpack.c.l.b16 %v477
      %v1917 = vunpack.c.l.b16 %v478
      %v1918 = vunpack.c.l.b16 %v479
      %v1919 = vunpack.c.l.b16 %v480
      %v1920 = vunpack.c.l.b16 %v481
      %v1921 = vunpack.c.l.b16 %v482
      %v1922 = vunpack.c.l.b16 %v483
      %v1923 = vunpack.c.l.b16 %v484
      %v1924 = vunpack.c.l.b16 %v485
      %v1925 = vunpack.c.l.b16 %v486
      %v1926 = vunpack.c.l.b16 %v487
      %v1927 = vunpack.c.l.b16 %v488
      %v1928 = vunpack.c.l.b16 %v489
      %v1929 = vunpack.c.l.b16 %v490
      %v1930 = vunpack.c.l.b16 %v491
      %v1931 = vunpack.c.l.b16 %v492
      %v1932 = vunpack.c.l.b16 %v493
      %v1933 = vunpack.c.l.b16 %v494
      %v1934 = vunpack.c.l.b16 %v495
      %v1935 = vunpack.c.l.b16 %v496
      %v1936 = vunpack.c.l.b16 %v497
      %v1937 = vunpack.c.l.b16 %v498
      %v1938 = vunpack.c.l.b16 %v499
      %v1939 = vunpack.c.l.b16 %v500
      %v1940 = vunpack.c.l.b16 %v501
      %v1941 = vunpack.c.l.b16 %v502
      %v1942 = vunpack.c.l.b16 %v503
      %v1943 = vunpack.c.l.b16 %v504
      %v1944 = vunpack.c.l.b16 %v505
      %v1945 = vunpack.c.l.b16 %v506
      %v1946 = vunpack.c.l.b16 %v507
      %v1947 = vunpack.c.l.b16 %v508
      %v1948 = vunpack.c.l.b16 %v509
      %v1949 = vunpack.c.l.b16 %v510
      %v1950 = vunpack.c.l.b16 %v511
      %v1951 = vunpack.c.l.b16 %v512
      %v1952 = vunpack.c.l.b16 %v513
      %v1953 = vunpack.c.l.b16 %v514
      %v1954 = vunpack.c.l.b16 %v515
      %v1955 = vunpack.c.l.b16 %v516
      %v1956 = vunpack.c.l.b16 %v517
      %v1957 = vunpack.c.l.b16 %v518
      %v1958 = vunpack.c.l.b16 %v519
      %v1959 = vunpack.c.l.b16 %v520
      %v1960 = vunpack.c.l.b16 %v521
      %v1961 = vunpack.c.l.b16 %v522
      %v1962 = vunpack.c.l.b16 %v523
      %v1963 = vunpack.c.l.b16 %v524
      %v1964 = vunpack.c.l.b16 %v525
      %v1965 = vunpack.c.l.b16 %v526
      %v1966 = vunpack.c.l.b16 %v527
      %v1967 = vunpack.c.l.b16 %v528
      %v1968 = vunpack.c.l.b16 %v529
      %v1969 = vunpack.c.l.b16 %v530
      %v1970 = vunpack.c.l.b16 %v531
      %v1971 = vunpack.c.l.b16 %v532
      %v1972 = vunpack.c.l.b16 %v533
      %v1973 = vunpack.c.l.b16 %v534
      %v1974 = vunpack.c.l.b16 %v535
      %v1975 = vunpack.c.l.b16 %v536
      %v1976 = vunpack.c.l.b16 %v537
      %v1977 = vunpack.c.l.b16 %v538
      %v1978 = vunpack.c.l.b16 %v539
      %v1979 = vunpack.c.l.b16 %v540
      %v1980 = vunpack.c.l.b16 %v541
      %v1981 = vunpack.c.l.b16 %v542
      %v1982 = vunpack.c.l.b16 %v543
      %v1983 = vunpack.c.l.b16 %v544
      %v1984 = vunpack.c.l.b16 %v545
      %v1985 = vunpack.c.l.b16 %v546
      %v1986 = vunpack.c.l.b16 %v547
      %v1987 = vunpack.c.l.b16 %v548
      %v1988 = vunpack.c.l.b16 %v549
      %v1989 = vunpack.c.l.b16 %v550
      %v1990 = vunpack.c.l.b16 %v551
      %v1991 = vunpack.c.l.b16 %v552
      %v1992 = vunpack.c.l.b16 %v553
      %v1993 = vunpack.c.l.b16 %v554
      %v1994 = vunpack.c.l.b16 %v555
      %v1995 = vunpack.c.l.b16 %v556
      %v1996 = vunpack.c.l.b16 %v557
      %v1997 = vunpack.c.l.b16 %v558
      %v1998 = vunpack.c.l.b16 %v559
      %v1999 = vunpack.c.l.b16 %v560
      %v2000 = vunpack.c.l.b16 %v561
      %v2001 = vunpack.c.l.b16 %v562
      %v2002 = vunpack.c.l.b16 %v563
      %v2003 = vunpack.c.l.b16 %v564
      %v2004 = vunpack.c.l.b16 %v565
      %v2005 = vunpack.c.l.b16 %v566
      %v2006 = vunpack.c.l.b16 %v567
      %v2007 = vunpack.c.l.b16 %v568
      %v2008 = vunpack.c.l.b16 %v569
      %v2009 = vunpack.c.l.b16 %v570
      %v2010 = vunpack.c.l.b16 %v571
      %v2011 = vunpack.c.l.b16 %v572
      %v2012 = vunpack.c.l.b16 %v573
      %v2013 = vunpack.c.l.b16 %v574
      %v2014 = vunpack.c.l.b16 %v575
      %v2015 = vunpack.c.l.b16 %v576
      %v2016 = vunpack.c.l.b16 %v577
      %v2017 = vunpack.c.l.b16 %v578
      %v2018 = vunpack.c.l.b16 %v579
      %v2019 = vunpack.c.l.b16 %v580
      %v2020 = vunpack.c.l.b16 %v581
      %v2021 = vunpack.c.l.b16 %v582
      %v2022 = vunpack.c.l.b16 %v583
      %v2023 = vunpack.c.l.b16 %v584
      %v2024 = vunpack.c.l.b16 %v585
      %v2025 = vunpack.c.l.b16 %v586
      %v2026 = vunpack.c.l.b16 %v587
      %v2027 = vunpack.c.l.b16 %v588
      %v2028 = vunpack.c.l.b16 %v589
      %v2029 = vunpack.c.l.b16 %v590
      %v2030 = vunpack.c.l.b16 %v591
      %v2031 = vpack.c.b16 %v1836, %v1835
      %v2032 = vpack.c.b16 %v1838, %v1837
      %v2033 = vpack.c.b16 %v1840, %v1839
      %v2034 = vpack.c.b16 %v1842, %v1841
      %v2035 = vpack.c.b16 %v1844, %v1843
      %v2036 = vpack.c.b16 %v1846, %v1845
      %v2037 = vpack.c.b16 %v1848, %v1847
      %v2038 = vpack.c.b16 %v1850, %v1849
      %v2039 = vpack.c.b16 %v1852, %v1851
      %v2040 = vpack.c.b16 %v1854, %v1853
      %v2041 = vpack.c.b16 %v1856, %v1855
      %v2042 = vpack.c.b16 %v1858, %v1857
      %v2043 = vpack.c.b16 %v1860, %v1859
      %v2044 = vpack.c.b16 %v1862, %v1861
      %v2045 = vpack.c.b16 %v1864, %v1863
      %v2046 = vpack.c.b16 %v1866, %v1865
      %v2047 = vpack.c.b16 %v1868, %v1867
      %v2048 = vpack.c.b16 %v1870, %v1869
      %v2049 = vpack.c.b16 %v1872, %v1871
      %v2050 = vpack.c.b16 %v1874, %v1873
      %v2051 = vpack.c.b16 %v1876, %v1875
      %v2052 = vpack.c.b16 %v1878, %v1877
      %v2053 = vpack.c.b16 %v1880, %v1879
      %v2054 = vpack.c.b16 %v1882, %v1881
      %v2055 = vpack.c.b16 %v1884, %v1883
      %v2056 = vpack.c.b16 %v1886, %v1885
      %v2057 = vpack.c.b16 %v1888, %v1887
      %v2058 = vpack.c.b16 %v1890, %v1889
      %v2059 = vpack.c.b16 %v1892, %v1891
      %v2060 = vpack.c.b16 %v1894, %v1893
      %v2061 = vpack.c.b16 %v1896, %v1895
      %v2062 = vpack.c.b16 %v1898, %v1897
      %v2063 = vpack.c.b16 %v1900, %v1899
      %v2064 = vpack.c.b16 %v1902, %v1901
      %v2065 = vpack.c.b16 %v1904, %v1903
      %v2066 = vpack.c.b16 %v1906, %v1905
      %v2067 = vpack.c.b16 %v1908, %v1907
      %v2068 = vpack.c.b16 %v1910, %v1909
      %v2069 = vpack.c.b16 %v1912, %v1911
      %v2070 = vpack.c.b16 %v1914, %v1913
      %v2071 = vpack.c.b16 %v1916, %v1915
      %v2072 = vpack.c.b16 %v1918, %v1917
      %v2073 = vpack.c.b16 %v1920, %v1919
      %v2074 = vpack.c.b16 %v1922, %v1921
      %v2075 = vpack.c.b16 %v1924, %v1923
      %v2076 = vpack.c.b16 %v1926, %v1925
      %v2077 = vpack.c.b16 %v1928, %v1927
      %v2078 = vpack.c.b16 %v1930, %v1929
      %v2079 = vpack.c.b16 %v1932, %v1931
      %v2080 = vpack.c.b16 %v1934, %v1933
      %v2081 = vpack.c.b16 %v1936, %v1935
      %v2082 = vpack.c.b16 %v1938, %v1937
      %v2083 = vpack.c.b16 %v1940, %v1939
      %v2084 = vpack.c.b16 %v1942, %v1941
      %v2085 = vpack.c.b16 %v1944, %v1943
      %v2086 = vpack.c.b16 %v1946, %v1945
      %v2087 = vpack.c.b16 %v1948, %v1947
      %v2088 = vpack.c.b16 %v1950, %v1949
      %v2089 = vpack.c.b16 %v1952, %v1951
      %v2090 = vpack.c.b16 %v1954, %v1953
      %v2091 = vpack.c.b16 %v1956, %v1955
      %v2092 = vpack.c.b16 %v1958, %v1957
      %v2093 = vpack.c.b16 %v1960, %v1959
      %v2094 = vpack.c.b16 %v1962, %v1961
      %v2095 = vpack.c.b16 %v1964, %v1963
      %v2096 = vpack.c.b16 %v1966, %v1965
      %v2097 = vpack.c.b16 %v1968, %v1967
      %v2098 = vpack.c.b16 %v1970, %v1969
      %v2099 = vpack.c.b16 %v1972, %v1971
      %v2100 = vpack.c.b16 %v1974, %v1973
      %v2101 = vpack.c.b16 %v1976, %v1975
      %v2102 = vpack.c.b16 %v1978, %v1977
      %v2103 = vpack.c.b16 %v1980, %v1979
      %v2104 = vpack.c.b16 %v1982, %v1981
      %v2105 = vpack.c.b16 %v1984, %v1983
      %v2106 = vpack.c.b16 %v1986, %v1985
      %v2107 = vpack.c.b16 %v1988, %v1987
      %v2108 = vpack.c.b16 %v1990, %v1989
      %v2109 = vpack.c.b16 %v1992, %v1991
      %v2110 = vpack.c.b16 %v1994, %v1993
      %v2111 = vpack.c.b16 %v1996, %v1995
      %v2112 = vpack.c.b16 %v1998, %v1997
      %v2113 = vpack.c.b16 %v2000, %v1999
      %v2114 = vpack.c.b16 %v2002, %v2001
      %v2115 = vpack.c.b16 %v2004, %v2003
      %v2116 = vpack.c.b16 %v2006, %v2005
      %v2117 = vpack.c.b16 %v2008, %v2007
      %v2118 = vpack.c.b16 %v2010, %v2009
      %v2119 = vpack.c.b16 %v2012, %v2011
      %v2120 = vpack.c.b16 %v2014, %v2013
      %v2121 = vpack.c.b16 %v2016, %v2015
      %v2122 = vpack.c.b16 %v2018, %v2017
      %v2123 = vpack.c.b16 %v2020, %v2019
      %v2124 = vpack.c.b16 %v2022, %v2021
      %v2125 = vpack.c.b16 %v2024, %v2023
      %v2126 = vpack.c.b16 %v2026, %v2025
      %v2127 = vpack.c.b16 %v2028, %v2027
      %v2128 = vpack.c.b16 %v2030, %v2029
      %vm2227 = vcmask 261120
      %v2229 = vsel %vm2227, %v1251, 0
      %v2232 = vsel %vm2227, %v1264, 0
      %v2235 = vsel %vm2227, %v1277, 0
      %v2238 = vsel %vm2227, %v1290, 0
      %v2241 = vsel %vm2227, %v1303, 0
      %v2244 = vsel %vm2227, %v1316, 0
      %v2247 = vsel %vm2227, %v1329, 0
      %v2250 = vsel %vm2227, %v1342, 0
      %v2253 = vsel %vm2227, %v1355, 0
      %v2256 = vsel %vm2227, %v1368, 0
      %v2259 = vsel %vm2227, %v1381, 0
      %v2262 = vsel %vm2227, %v1394, 0
      %v2265 = vsel %vm2227, %v1407, 0
      %v2268 = vsel %vm2227, %v1420, 0
      %v2271 = vsel %vm2227, %v1433, 0
      %v2274 = vsel %vm2227, %v1446, 0
      %2276 = vmatprep.subr.bf16.mxu0 0
      %2277 = vmatpush1.bf16.msra.mxu0 %v2038
      %2278 = vmatprep.subr.bf16.mxu0 0
      %2279 = vmatpush1.bf16.msra.mxu0 %v2037
      %2280 = vmatprep.subr.bf16.mxu0 0
      %2281 = vmatpush1.bf16.msra.mxu0 %v2036
      %2282 = vmatprep.subr.bf16.mxu0 0
      %2283 = vmatpush1.bf16.msra.mxu0 %v2035
      %2284 = vmatprep.subr.bf16.mxu0 0
      %2285 = vmatpush1.bf16.msra.mxu0 %v2034
      %2286 = vmatprep.subr.bf16.mxu0 0
      %2287 = vmatpush1.bf16.msra.mxu0 %v2033
      %2288 = vmatprep.subr.bf16.mxu0 0
      %2289 = vmatpush1.bf16.msra.mxu0 %v2032
      %2290 = vmatprep.subr.bf16.mxu0 0
      %2291 = vmatpush1.bf16.msra.mxu0 %v2031
      %2292 = vmatprep.subr.bf16.mxu0 0
      %2293 = vmatpush2.bf16.msra.mxu0 %v2046
      %2294 = vmatprep.subr.bf16.mxu0 0
      %2295 = vmatpush2.bf16.msra.mxu0 %v2045
      %2296 = vmatprep.subr.bf16.mxu0 0
      %2297 = vmatpush2.bf16.msra.mxu0 %v2044
      %2298 = vmatprep.subr.bf16.mxu0 0
      %2299 = vmatpush2.bf16.msra.mxu0 %v2043
      %2300 = vmatprep.subr.bf16.mxu0 0
      %2301 = vmatpush2.bf16.msra.mxu0 %v2042
      %2302 = vmatprep.subr.bf16.mxu0 0
      %2303 = vmatpush2.bf16.msra.mxu0 %v2041
      %2304 = vmatprep.subr.bf16.mxu0 0
      %2305 = vmatpush2.bf16.msra.mxu0 %v2040
      %2306 = vmatprep.subr.bf16.mxu0 0
      %2307 = vmatpush2.bf16.msra.mxu0 %v2039
      %2308 = vmatprep.mubr.bf16.mxu0 %v1240
      %2309 = vmatmul.mubr.bf16.gmra.mxu0 %v1239
      %v2310 = vpop.f32.mrf.mxu0
      %v2311 = vadd.f32 %v597, %v2310
      %v2312 = vpop.f32.mrf.mxu0
      %v2313 = vpop.f32.mrf.mxu0
      %v2314 = vadd.f32 %v597, %v2313
      %v2315 = vpop.f32.mrf.mxu0
      %2316 = vmatprep.mubr.bf16.mxu0 %v1253
      %2317 = vmatmul.mubr.bf16.gmra.mxu0 %v1252
      %v2318 = vpop.f32.mrf.mxu0
      %v2319 = vadd.f32 %v597, %v2318
      %v2320 = vpop.f32.mrf.mxu0
      %v2321 = vpop.f32.mrf.mxu0
      %v2322 = vadd.f32 %v597, %v2321
      %v2323 = vpop.f32.mrf.mxu0
      %2324 = vmatprep.mubr.bf16.mxu0 %v1266
      %2325 = vmatmul.mubr.bf16.gmra.mxu0 %v1265
      %v2326 = vpop.f32.mrf.mxu0
      %v2327 = vadd.f32 %v597, %v2326
      %v2328 = vpop.f32.mrf.mxu0
      %v2329 = vpop.f32.mrf.mxu0
      %v2330 = vadd.f32 %v597, %v2329
      %v2331 = vpop.f32.mrf.mxu0
      %2332 = vmatprep.mubr.bf16.mxu0 %v1279
      %2333 = vmatmul.mubr.bf16.gmra.mxu0 %v1278
      %v2334 = vpop.f32.mrf.mxu0
      %v2335 = vadd.f32 %v597, %v2334
      %v2336 = vpop.f32.mrf.mxu0
      %v2337 = vpop.f32.mrf.mxu0
      %v2338 = vadd.f32 %v597, %v2337
      %v2339 = vpop.f32.mrf.mxu0
      %2340 = vmatprep.mubr.bf16.mxu0 %v1292
      %2341 = vmatmul.mubr.bf16.gmra.mxu0 %v1291
      %v2342 = vpop.f32.mrf.mxu0
      %v2343 = vadd.f32 %v597, %v2342
      %v2344 = vpop.f32.mrf.mxu0
      %v2345 = vpop.f32.mrf.mxu0
      %v2346 = vadd.f32 %v597, %v2345
      %v2347 = vpop.f32.mrf.mxu0
      %2348 = vmatprep.mubr.bf16.mxu0 %v1305
      %2349 = vmatmul.mubr.bf16.gmra.mxu0 %v1304
      %v2350 = vpop.f32.mrf.mxu0
      %v2351 = vadd.f32 %v597, %v2350
      %v2352 = vpop.f32.mrf.mxu0
      %v2353 = vpop.f32.mrf.mxu0
      %v2354 = vadd.f32 %v597, %v2353
      %v2355 = vpop.f32.mrf.mxu0
      %2356 = vmatprep.mubr.bf16.mxu0 %v1318
      %2357 = vmatmul.mubr.bf16.gmra.mxu0 %v1317
      %v2358 = vpop.f32.mrf.mxu0
      %v2359 = vadd.f32 %v597, %v2358
      %v2360 = vpop.f32.mrf.mxu0
      %v2361 = vpop.f32.mrf.mxu0
      %v2362 = vadd.f32 %v597, %v2361
      %v2363 = vpop.f32.mrf.mxu0
      %2364 = vmatprep.mubr.bf16.mxu0 %v1331
      %2365 = vmatmul.mubr.bf16.gmra.mxu0 %v1330
      %v2366 = vpop.f32.mrf.mxu0
      %v2367 = vadd.f32 %v597, %v2366
      %v2368 = vpop.f32.mrf.mxu0
      %v2369 = vpop.f32.mrf.mxu0
      %v2370 = vadd.f32 %v597, %v2369
      %v2371 = vpop.f32.mrf.mxu0
      %2372 = vmatprep.mubr.bf16.mxu0 %v1344
      %2373 = vmatmul.mubr.bf16.gmra.mxu0 %v1343
      %v2374 = vpop.f32.mrf.mxu0
      %v2375 = vadd.f32 %v597, %v2374
      %v2376 = vpop.f32.mrf.mxu0
      %v2377 = vpop.f32.mrf.mxu0
      %v2378 = vadd.f32 %v597, %v2377
      %v2379 = vpop.f32.mrf.mxu0
      %2380 = vmatprep.mubr.bf16.mxu0 %v1357
      %2381 = vmatmul.mubr.bf16.gmra.mxu0 %v1356
      %v2382 = vpop.f32.mrf.mxu0
      %v2383 = vadd.f32 %v597, %v2382
      %v2384 = vpop.f32.mrf.mxu0
      %v2385 = vpop.f32.mrf.mxu0
      %v2386 = vadd.f32 %v597, %v2385
      %v2387 = vpop.f32.mrf.mxu0
      %2388 = vmatprep.mubr.bf16.mxu0 %v1370
      %2389 = vmatmul.mubr.bf16.gmra.mxu0 %v1369
      %v2390 = vpop.f32.mrf.mxu0
      %v2391 = vadd.f32 %v597, %v2390
      %v2392 = vpop.f32.mrf.mxu0
      %v2393 = vpop.f32.mrf.mxu0
      %v2394 = vadd.f32 %v597, %v2393
      %v2395 = vpop.f32.mrf.mxu0
      %2396 = vmatprep.mubr.bf16.mxu0 %v1383
      %2397 = vmatmul.mubr.bf16.gmra.mxu0 %v1382
      %v2398 = vpop.f32.mrf.mxu0
      %v2399 = vadd.f32 %v597, %v2398
      %v2400 = vpop.f32.mrf.mxu0
      %v2401 = vpop.f32.mrf.mxu0
      %v2402 = vadd.f32 %v597, %v2401
      %v2403 = vpop.f32.mrf.mxu0
      %2404 = vmatprep.mubr.bf16.mxu0 %v1396
      %2405 = vmatmul.mubr.bf16.gmra.mxu0 %v1395
      %v2406 = vpop.f32.mrf.mxu0
      %v2407 = vadd.f32 %v597, %v2406
      %v2408 = vpop.f32.mrf.mxu0
      %v2409 = vpop.f32.mrf.mxu0
      %v2410 = vadd.f32 %v597, %v2409
      %v2411 = vpop.f32.mrf.mxu0
      %2412 = vmatprep.mubr.bf16.mxu0 %v1409
      %2413 = vmatmul.mubr.bf16.gmra.mxu0 %v1408
      %v2414 = vpop.f32.mrf.mxu0
      %v2415 = vadd.f32 %v597, %v2414
      %v2416 = vpop.f32.mrf.mxu0
      %v2417 = vpop.f32.mrf.mxu0
      %v2418 = vadd.f32 %v597, %v2417
      %v2419 = vpop.f32.mrf.mxu0
      %2420 = vmatprep.mubr.bf16.mxu0 %v1422
      %2421 = vmatmul.mubr.bf16.gmra.mxu0 %v1421
      %v2422 = vpop.f32.mrf.mxu0
      %v2423 = vadd.f32 %v597, %v2422
      %v2424 = vpop.f32.mrf.mxu0
      %v2425 = vpop.f32.mrf.mxu0
      %v2426 = vadd.f32 %v597, %v2425
      %v2427 = vpop.f32.mrf.mxu0
      %2428 = vmatprep.mubr.bf16.mxu0 %v1435
      %2429 = vmatmul.mubr.bf16.gmra.mxu0 %v1434
      %v2430 = vpop.f32.mrf.mxu0
      %v2431 = vadd.f32 %v597, %v2430
      %v2432 = vpop.f32.mrf.mxu0
      %v2433 = vpop.f32.mrf.mxu0
      %v2434 = vadd.f32 %v597, %v2433
      %v2435 = vpop.f32.mrf.mxu0
      %2436 = vdwg.mxu0
      %2437 = vmatprep.subr.bf16.mxu0 0
      %2438 = vmatpush1.bf16.msra.mxu0 %v2054
      %2439 = vmatprep.subr.bf16.mxu0 0
      %2440 = vmatpush1.bf16.msra.mxu0 %v2053
      %2441 = vmatprep.subr.bf16.mxu0 0
      %2442 = vmatpush1.bf16.msra.mxu0 %v2052
      %2443 = vmatprep.subr.bf16.mxu0 0
      %2444 = vmatpush1.bf16.msra.mxu0 %v2051
      %2445 = vmatprep.subr.bf16.mxu0 0
      %2446 = vmatpush1.bf16.msra.mxu0 %v2050
      %2447 = vmatprep.subr.bf16.mxu0 0
      %2448 = vmatpush1.bf16.msra.mxu0 %v2049
      %2449 = vmatprep.subr.bf16.mxu0 0
      %2450 = vmatpush1.bf16.msra.mxu0 %v2048
      %2451 = vmatprep.subr.bf16.mxu0 0
      %2452 = vmatpush1.bf16.msra.mxu0 %v2047
      %2453 = vmatprep.subr.bf16.mxu0 0
      %2454 = vmatpush2.bf16.msra.mxu0 %v2062
      %2455 = vmatprep.subr.bf16.mxu0 0
      %2456 = vmatpush2.bf16.msra.mxu0 %v2061
      %2457 = vmatprep.subr.bf16.mxu0 0
      %2458 = vmatpush2.bf16.msra.mxu0 %v2060
      %2459 = vmatprep.subr.bf16.mxu0 0
      %2460 = vmatpush2.bf16.msra.mxu0 %v2059
      %2461 = vmatprep.subr.bf16.mxu0 0
      %2462 = vmatpush2.bf16.msra.mxu0 %v2058
      %2463 = vmatprep.subr.bf16.mxu0 0
      %2464 = vmatpush2.bf16.msra.mxu0 %v2057
      %2465 = vmatprep.subr.bf16.mxu0 0
      %2466 = vmatpush2.bf16.msra.mxu0 %v2056
      %2467 = vmatprep.subr.bf16.mxu0 0
      %2468 = vmatpush2.bf16.msra.mxu0 %v2055
      %2469 = vmatprep.mubr.bf16.mxu0 %v1242
      %2470 = vmatmul.mubr.bf16.gmra.mxu0 %v1241
      %v2471 = vpop.f32.mrf.mxu0
      %v2472 = vadd.f32 %v2311, %v2471
      %v2473 = vpop.f32.mrf.mxu0
      %v2474 = vpop.f32.mrf.mxu0
      %v2475 = vadd.f32 %v2314, %v2474
      %v2476 = vpop.f32.mrf.mxu0
      %2477 = vmatprep.mubr.bf16.mxu0 %v1255
      %2478 = vmatmul.mubr.bf16.gmra.mxu0 %v1254
      %v2479 = vpop.f32.mrf.mxu0
      %v2480 = vadd.f32 %v2319, %v2479
      %v2481 = vpop.f32.mrf.mxu0
      %v2482 = vpop.f32.mrf.mxu0
      %v2483 = vadd.f32 %v2322, %v2482
      %v2484 = vpop.f32.mrf.mxu0
      %2485 = vmatprep.mubr.bf16.mxu0 %v1268
      %2486 = vmatmul.mubr.bf16.gmra.mxu0 %v1267
      %v2487 = vpop.f32.mrf.mxu0
      %v2488 = vadd.f32 %v2327, %v2487
      %v2489 = vpop.f32.mrf.mxu0
      %v2490 = vpop.f32.mrf.mxu0
      %v2491 = vadd.f32 %v2330, %v2490
      %v2492 = vpop.f32.mrf.mxu0
      %2493 = vmatprep.mubr.bf16.mxu0 %v1281
      %2494 = vmatmul.mubr.bf16.gmra.mxu0 %v1280
      %v2495 = vpop.f32.mrf.mxu0
      %v2496 = vadd.f32 %v2335, %v2495
      %v2497 = vpop.f32.mrf.mxu0
      %v2498 = vpop.f32.mrf.mxu0
      %v2499 = vadd.f32 %v2338, %v2498
      %v2500 = vpop.f32.mrf.mxu0
      %2501 = vmatprep.mubr.bf16.mxu0 %v1294
      %2502 = vmatmul.mubr.bf16.gmra.mxu0 %v1293
      %v2503 = vpop.f32.mrf.mxu0
      %v2504 = vadd.f32 %v2343, %v2503
      %v2505 = vpop.f32.mrf.mxu0
      %v2506 = vpop.f32.mrf.mxu0
      %v2507 = vadd.f32 %v2346, %v2506
      %v2508 = vpop.f32.mrf.mxu0
      %2509 = vmatprep.mubr.bf16.mxu0 %v1307
      %2510 = vmatmul.mubr.bf16.gmra.mxu0 %v1306
      %v2511 = vpop.f32.mrf.mxu0
      %v2512 = vadd.f32 %v2351, %v2511
      %v2513 = vpop.f32.mrf.mxu0
      %v2514 = vpop.f32.mrf.mxu0
      %v2515 = vadd.f32 %v2354, %v2514
      %v2516 = vpop.f32.mrf.mxu0
      %2517 = vmatprep.mubr.bf16.mxu0 %v1320
      %2518 = vmatmul.mubr.bf16.gmra.mxu0 %v1319
      %v2519 = vpop.f32.mrf.mxu0
      %v2520 = vadd.f32 %v2359, %v2519
      %v2521 = vpop.f32.mrf.mxu0
      %v2522 = vpop.f32.mrf.mxu0
      %v2523 = vadd.f32 %v2362, %v2522
      %v2524 = vpop.f32.mrf.mxu0
      %2525 = vmatprep.mubr.bf16.mxu0 %v1333
      %2526 = vmatmul.mubr.bf16.gmra.mxu0 %v1332
      %v2527 = vpop.f32.mrf.mxu0
      %v2528 = vadd.f32 %v2367, %v2527
      %v2529 = vpop.f32.mrf.mxu0
      %v2530 = vpop.f32.mrf.mxu0
      %v2531 = vadd.f32 %v2370, %v2530
      %v2532 = vpop.f32.mrf.mxu0
      %2533 = vmatprep.mubr.bf16.mxu0 %v1346
      %2534 = vmatmul.mubr.bf16.gmra.mxu0 %v1345
      %v2535 = vpop.f32.mrf.mxu0
      %v2536 = vadd.f32 %v2375, %v2535
      %v2537 = vpop.f32.mrf.mxu0
      %v2538 = vpop.f32.mrf.mxu0
      %v2539 = vadd.f32 %v2378, %v2538
      %v2540 = vpop.f32.mrf.mxu0
      %2541 = vmatprep.mubr.bf16.mxu0 %v1359
      %2542 = vmatmul.mubr.bf16.gmra.mxu0 %v1358
      %v2543 = vpop.f32.mrf.mxu0
      %v2544 = vadd.f32 %v2383, %v2543
      %v2545 = vpop.f32.mrf.mxu0
      %v2546 = vpop.f32.mrf.mxu0
      %v2547 = vadd.f32 %v2386, %v2546
      %v2548 = vpop.f32.mrf.mxu0
      %2549 = vmatprep.mubr.bf16.mxu0 %v1372
      %2550 = vmatmul.mubr.bf16.gmra.mxu0 %v1371
      %v2551 = vpop.f32.mrf.mxu0
      %v2552 = vadd.f32 %v2391, %v2551
      %v2553 = vpop.f32.mrf.mxu0
      %v2554 = vpop.f32.mrf.mxu0
      %v2555 = vadd.f32 %v2394, %v2554
      %v2556 = vpop.f32.mrf.mxu0
      %2557 = vmatprep.mubr.bf16.mxu0 %v1385
      %2558 = vmatmul.mubr.bf16.gmra.mxu0 %v1384
      %v2559 = vpop.f32.mrf.mxu0
      %v2560 = vadd.f32 %v2399, %v2559
      %v2561 = vpop.f32.mrf.mxu0
      %v2562 = vpop.f32.mrf.mxu0
      %v2563 = vadd.f32 %v2402, %v2562
      %v2564 = vpop.f32.mrf.mxu0
      %2565 = vmatprep.mubr.bf16.mxu0 %v1398
      %2566 = vmatmul.mubr.bf16.gmra.mxu0 %v1397
      %v2567 = vpop.f32.mrf.mxu0
      %v2568 = vadd.f32 %v2407, %v2567
      %v2569 = vpop.f32.mrf.mxu0
      %v2570 = vpop.f32.mrf.mxu0
      %v2571 = vadd.f32 %v2410, %v2570
      %v2572 = vpop.f32.mrf.mxu0
      %2573 = vmatprep.mubr.bf16.mxu0 %v1411
      %2574 = vmatmul.mubr.bf16.gmra.mxu0 %v1410
      %v2575 = vpop.f32.mrf.mxu0
      %v2576 = vadd.f32 %v2415, %v2575
      %v2577 = vpop.f32.mrf.mxu0
      %v2578 = vpop.f32.mrf.mxu0
      %v2579 = vadd.f32 %v2418, %v2578
      %v2580 = vpop.f32.mrf.mxu0
      %2581 = vmatprep.mubr.bf16.mxu0 %v1424
      %2582 = vmatmul.mubr.bf16.gmra.mxu0 %v1423
      %v2583 = vpop.f32.mrf.mxu0
      %v2584 = vadd.f32 %v2423, %v2583
      %v2585 = vpop.f32.mrf.mxu0
      %v2586 = vpop.f32.mrf.mxu0
      %v2587 = vadd.f32 %v2426, %v2586
      %v2588 = vpop.f32.mrf.mxu0
      %2589 = vmatprep.mubr.bf16.mxu0 %v1437
      %2590 = vmatmul.mubr.bf16.gmra.mxu0 %v1436
      %v2591 = vpop.f32.mrf.mxu0
      %v2592 = vadd.f32 %v2431, %v2591
      %v2593 = vpop.f32.mrf.mxu0
      %v2594 = vpop.f32.mrf.mxu0
      %v2595 = vadd.f32 %v2434, %v2594
      %v2596 = vpop.f32.mrf.mxu0
      %2597 = vdwg.mxu0
      %2598 = vmatprep.subr.bf16.mxu0 0
      %2599 = vmatpush1.bf16.msra.mxu0 %v2070
      %2600 = vmatprep.subr.bf16.mxu0 0
      %2601 = vmatpush1.bf16.msra.mxu0 %v2069
      %2602 = vmatprep.subr.bf16.mxu0 0
      %2603 = vmatpush1.bf16.msra.mxu0 %v2068
      %2604 = vmatprep.subr.bf16.mxu0 0
      %2605 = vmatpush1.bf16.msra.mxu0 %v2067
      %2606 = vmatprep.subr.bf16.mxu0 0
      %2607 = vmatpush1.bf16.msra.mxu0 %v2066
      %2608 = vmatprep.subr.bf16.mxu0 0
      %2609 = vmatpush1.bf16.msra.mxu0 %v2065
      %2610 = vmatprep.subr.bf16.mxu0 0
      %2611 = vmatpush1.bf16.msra.mxu0 %v2064
      %2612 = vmatprep.subr.bf16.mxu0 0
      %2613 = vmatpush1.bf16.msra.mxu0 %v2063
      %2614 = vmatprep.subr.bf16.mxu0 0
      %2615 = vmatpush2.bf16.msra.mxu0 %v2078
      %2616 = vmatprep.subr.bf16.mxu0 0
      %2617 = vmatpush2.bf16.msra.mxu0 %v2077
      %2618 = vmatprep.subr.bf16.mxu0 0
      %2619 = vmatpush2.bf16.msra.mxu0 %v2076
      %2620 = vmatprep.subr.bf16.mxu0 0
      %2621 = vmatpush2.bf16.msra.mxu0 %v2075
      %2622 = vmatprep.subr.bf16.mxu0 0
      %2623 = vmatpush2.bf16.msra.mxu0 %v2074
      %2624 = vmatprep.subr.bf16.mxu0 0
      %2625 = vmatpush2.bf16.msra.mxu0 %v2073
      %2626 = vmatprep.subr.bf16.mxu0 0
      %2627 = vmatpush2.bf16.msra.mxu0 %v2072
      %2628 = vmatprep.subr.bf16.mxu0 0
      %2629 = vmatpush2.bf16.msra.mxu0 %v2071
      %2630 = vmatprep.mubr.bf16.mxu0 %v1244
      %2631 = vmatmul.mubr.bf16.gmra.mxu0 %v1243
      %v2632 = vpop.f32.mrf.mxu0
      %v2633 = vadd.f32 %v2472, %v2632
      %v2634 = vpop.f32.mrf.mxu0
      %v2635 = vpop.f32.mrf.mxu0
      %v2636 = vadd.f32 %v2475, %v2635
      %v2637 = vpop.f32.mrf.mxu0
      %2638 = vmatprep.mubr.bf16.mxu0 %v1257
      %2639 = vmatmul.mubr.bf16.gmra.mxu0 %v1256
      %v2640 = vpop.f32.mrf.mxu0
      %v2641 = vadd.f32 %v2480, %v2640
      %v2642 = vpop.f32.mrf.mxu0
      %v2643 = vpop.f32.mrf.mxu0
      %v2644 = vadd.f32 %v2483, %v2643
      %v2645 = vpop.f32.mrf.mxu0
      %2646 = vmatprep.mubr.bf16.mxu0 %v1270
      %2647 = vmatmul.mubr.bf16.gmra.mxu0 %v1269
      %v2648 = vpop.f32.mrf.mxu0
      %v2649 = vadd.f32 %v2488, %v2648
      %v2650 = vpop.f32.mrf.mxu0
      %v2651 = vpop.f32.mrf.mxu0
      %v2652 = vadd.f32 %v2491, %v2651
      %v2653 = vpop.f32.mrf.mxu0
      %2654 = vmatprep.mubr.bf16.mxu0 %v1283
      %2655 = vmatmul.mubr.bf16.gmra.mxu0 %v1282
      %v2656 = vpop.f32.mrf.mxu0
      %v2657 = vadd.f32 %v2496, %v2656
      %v2658 = vpop.f32.mrf.mxu0
      %v2659 = vpop.f32.mrf.mxu0
      %v2660 = vadd.f32 %v2499, %v2659
      %v2661 = vpop.f32.mrf.mxu0
      %2662 = vmatprep.mubr.bf16.mxu0 %v1296
      %2663 = vmatmul.mubr.bf16.gmra.mxu0 %v1295
      %v2664 = vpop.f32.mrf.mxu0
      %v2665 = vadd.f32 %v2504, %v2664
      %v2666 = vpop.f32.mrf.mxu0
      %v2667 = vpop.f32.mrf.mxu0
      %v2668 = vadd.f32 %v2507, %v2667
      %v2669 = vpop.f32.mrf.mxu0
      %2670 = vmatprep.mubr.bf16.mxu0 %v1309
      %2671 = vmatmul.mubr.bf16.gmra.mxu0 %v1308
      %v2672 = vpop.f32.mrf.mxu0
      %v2673 = vadd.f32 %v2512, %v2672
      %v2674 = vpop.f32.mrf.mxu0
      %v2675 = vpop.f32.mrf.mxu0
      %v2676 = vadd.f32 %v2515, %v2675
      %v2677 = vpop.f32.mrf.mxu0
      %2678 = vmatprep.mubr.bf16.mxu0 %v1322
      %2679 = vmatmul.mubr.bf16.gmra.mxu0 %v1321
      %v2680 = vpop.f32.mrf.mxu0
      %v2681 = vadd.f32 %v2520, %v2680
      %v2682 = vpop.f32.mrf.mxu0
      %v2683 = vpop.f32.mrf.mxu0
      %v2684 = vadd.f32 %v2523, %v2683
      %v2685 = vpop.f32.mrf.mxu0
      %2686 = vmatprep.mubr.bf16.mxu0 %v1335
      %2687 = vmatmul.mubr.bf16.gmra.mxu0 %v1334
      %v2688 = vpop.f32.mrf.mxu0
      %v2689 = vadd.f32 %v2528, %v2688
      %v2690 = vpop.f32.mrf.mxu0
      %v2691 = vpop.f32.mrf.mxu0
      %v2692 = vadd.f32 %v2531, %v2691
      %v2693 = vpop.f32.mrf.mxu0
      %2694 = vmatprep.mubr.bf16.mxu0 %v1348
      %2695 = vmatmul.mubr.bf16.gmra.mxu0 %v1347
      %v2696 = vpop.f32.mrf.mxu0
      %v2697 = vadd.f32 %v2536, %v2696
      %v2698 = vpop.f32.mrf.mxu0
      %v2699 = vpop.f32.mrf.mxu0
      %v2700 = vadd.f32 %v2539, %v2699
      %v2701 = vpop.f32.mrf.mxu0
      %2702 = vmatprep.mubr.bf16.mxu0 %v1361
      %2703 = vmatmul.mubr.bf16.gmra.mxu0 %v1360
      %v2704 = vpop.f32.mrf.mxu0
      %v2705 = vadd.f32 %v2544, %v2704
      %v2706 = vpop.f32.mrf.mxu0
      %v2707 = vpop.f32.mrf.mxu0
      %v2708 = vadd.f32 %v2547, %v2707
      %v2709 = vpop.f32.mrf.mxu0
      %2710 = vmatprep.mubr.bf16.mxu0 %v1374
      %2711 = vmatmul.mubr.bf16.gmra.mxu0 %v1373
      %v2712 = vpop.f32.mrf.mxu0
      %v2713 = vadd.f32 %v2552, %v2712
      %v2714 = vpop.f32.mrf.mxu0
      %v2715 = vpop.f32.mrf.mxu0
      %v2716 = vadd.f32 %v2555, %v2715
      %v2717 = vpop.f32.mrf.mxu0
      %2718 = vmatprep.mubr.bf16.mxu0 %v1387
      %2719 = vmatmul.mubr.bf16.gmra.mxu0 %v1386
      %v2720 = vpop.f32.mrf.mxu0
      %v2721 = vadd.f32 %v2560, %v2720
      %v2722 = vpop.f32.mrf.mxu0
      %v2723 = vpop.f32.mrf.mxu0
      %v2724 = vadd.f32 %v2563, %v2723
      %v2725 = vpop.f32.mrf.mxu0
      %2726 = vmatprep.mubr.bf16.mxu0 %v1400
      %2727 = vmatmul.mubr.bf16.gmra.mxu0 %v1399
      %v2728 = vpop.f32.mrf.mxu0
      %v2729 = vadd.f32 %v2568, %v2728
      %v2730 = vpop.f32.mrf.mxu0
      %v2731 = vpop.f32.mrf.mxu0
      %v2732 = vadd.f32 %v2571, %v2731
      %v2733 = vpop.f32.mrf.mxu0
      %2734 = vmatprep.mubr.bf16.mxu0 %v1413
      %2735 = vmatmul.mubr.bf16.gmra.mxu0 %v1412
      %v2736 = vpop.f32.mrf.mxu0
      %v2737 = vadd.f32 %v2576, %v2736
      %v2738 = vpop.f32.mrf.mxu0
      %v2739 = vpop.f32.mrf.mxu0
      %v2740 = vadd.f32 %v2579, %v2739
      %v2741 = vpop.f32.mrf.mxu0
      %2742 = vmatprep.mubr.bf16.mxu0 %v1426
      %2743 = vmatmul.mubr.bf16.gmra.mxu0 %v1425
      %v2744 = vpop.f32.mrf.mxu0
      %v2745 = vadd.f32 %v2584, %v2744
      %v2746 = vpop.f32.mrf.mxu0
      %v2747 = vpop.f32.mrf.mxu0
      %v2748 = vadd.f32 %v2587, %v2747
      %v2749 = vpop.f32.mrf.mxu0
      %2750 = vmatprep.mubr.bf16.mxu0 %v1439
      %2751 = vmatmul.mubr.bf16.gmra.mxu0 %v1438
      %v2752 = vpop.f32.mrf.mxu0
      %v2753 = vadd.f32 %v2592, %v2752
      %v2754 = vpop.f32.mrf.mxu0
      %v2755 = vpop.f32.mrf.mxu0
      %v2756 = vadd.f32 %v2595, %v2755
      %v2757 = vpop.f32.mrf.mxu0
      %2758 = vdwg.mxu0
      %2759 = vmatprep.subr.bf16.mxu0 0
      %2760 = vmatpush1.bf16.msra.mxu0 %v2086
      %2761 = vmatprep.subr.bf16.mxu0 0
      %2762 = vmatpush1.bf16.msra.mxu0 %v2085
      %2763 = vmatprep.subr.bf16.mxu0 0
      %2764 = vmatpush1.bf16.msra.mxu0 %v2084
      %2765 = vmatprep.subr.bf16.mxu0 0
      %2766 = vmatpush1.bf16.msra.mxu0 %v2083
      %2767 = vmatprep.subr.bf16.mxu0 0
      %2768 = vmatpush1.bf16.msra.mxu0 %v2082
      %2769 = vmatprep.subr.bf16.mxu0 0
      %2770 = vmatpush1.bf16.msra.mxu0 %v2081
      %2771 = vmatprep.subr.bf16.mxu0 0
      %2772 = vmatpush1.bf16.msra.mxu0 %v2080
      %2773 = vmatprep.subr.bf16.mxu0 0
      %2774 = vmatpush1.bf16.msra.mxu0 %v2079
      %2775 = vmatprep.subr.bf16.mxu0 0
      %2776 = vmatpush2.bf16.msra.mxu0 %v2094
      %2777 = vmatprep.subr.bf16.mxu0 0
      %2778 = vmatpush2.bf16.msra.mxu0 %v2093
      %2779 = vmatprep.subr.bf16.mxu0 0
      %2780 = vmatpush2.bf16.msra.mxu0 %v2092
      %2781 = vmatprep.subr.bf16.mxu0 0
      %2782 = vmatpush2.bf16.msra.mxu0 %v2091
      %2783 = vmatprep.subr.bf16.mxu0 0
      %2784 = vmatpush2.bf16.msra.mxu0 %v2090
      %2785 = vmatprep.subr.bf16.mxu0 0
      %2786 = vmatpush2.bf16.msra.mxu0 %v2089
      %2787 = vmatprep.subr.bf16.mxu0 0
      %2788 = vmatpush2.bf16.msra.mxu0 %v2088
      %2789 = vmatprep.subr.bf16.mxu0 0
      %2790 = vmatpush2.bf16.msra.mxu0 %v2087
      %2791 = vmatprep.mubr.bf16.mxu0 %v1246
      %2792 = vmatmul.mubr.bf16.gmra.mxu0 %v1245
      %v2793 = vpop.f32.mrf.mxu0
      %v2794 = vadd.f32 %v2633, %v2793
      %v2795 = vpop.f32.mrf.mxu0
      %v2796 = vpop.f32.mrf.mxu0
      %v2797 = vadd.f32 %v2636, %v2796
      %v2798 = vpop.f32.mrf.mxu0
      %2799 = vmatprep.mubr.bf16.mxu0 %v1259
      %2800 = vmatmul.mubr.bf16.gmra.mxu0 %v1258
      %v2801 = vpop.f32.mrf.mxu0
      %v2802 = vadd.f32 %v2641, %v2801
      %v2803 = vpop.f32.mrf.mxu0
      %v2804 = vpop.f32.mrf.mxu0
      %v2805 = vadd.f32 %v2644, %v2804
      %v2806 = vpop.f32.mrf.mxu0
      %2807 = vmatprep.mubr.bf16.mxu0 %v1272
      %2808 = vmatmul.mubr.bf16.gmra.mxu0 %v1271
      %v2809 = vpop.f32.mrf.mxu0
      %v2810 = vadd.f32 %v2649, %v2809
      %v2811 = vpop.f32.mrf.mxu0
      %v2812 = vpop.f32.mrf.mxu0
      %v2813 = vadd.f32 %v2652, %v2812
      %v2814 = vpop.f32.mrf.mxu0
      %2815 = vmatprep.mubr.bf16.mxu0 %v1285
      %2816 = vmatmul.mubr.bf16.gmra.mxu0 %v1284
      %v2817 = vpop.f32.mrf.mxu0
      %v2818 = vadd.f32 %v2657, %v2817
      %v2819 = vpop.f32.mrf.mxu0
      %v2820 = vpop.f32.mrf.mxu0
      %v2821 = vadd.f32 %v2660, %v2820
      %v2822 = vpop.f32.mrf.mxu0
      %2823 = vmatprep.mubr.bf16.mxu0 %v1298
      %2824 = vmatmul.mubr.bf16.gmra.mxu0 %v1297
      %v2825 = vpop.f32.mrf.mxu0
      %v2826 = vadd.f32 %v2665, %v2825
      %v2827 = vpop.f32.mrf.mxu0
      %v2828 = vpop.f32.mrf.mxu0
      %v2829 = vadd.f32 %v2668, %v2828
      %v2830 = vpop.f32.mrf.mxu0
      %2831 = vmatprep.mubr.bf16.mxu0 %v1311
      %2832 = vmatmul.mubr.bf16.gmra.mxu0 %v1310
      %v2833 = vpop.f32.mrf.mxu0
      %v2834 = vadd.f32 %v2673, %v2833
      %v2835 = vpop.f32.mrf.mxu0
      %v2836 = vpop.f32.mrf.mxu0
      %v2837 = vadd.f32 %v2676, %v2836
      %v2838 = vpop.f32.mrf.mxu0
      %2839 = vmatprep.mubr.bf16.mxu0 %v1324
      %2840 = vmatmul.mubr.bf16.gmra.mxu0 %v1323
      %v2841 = vpop.f32.mrf.mxu0
      %v2842 = vadd.f32 %v2681, %v2841
      %v2843 = vpop.f32.mrf.mxu0
      %v2844 = vpop.f32.mrf.mxu0
      %v2845 = vadd.f32 %v2684, %v2844
      %v2846 = vpop.f32.mrf.mxu0
      %2847 = vmatprep.mubr.bf16.mxu0 %v1337
      %2848 = vmatmul.mubr.bf16.gmra.mxu0 %v1336
      %v2849 = vpop.f32.mrf.mxu0
      %v2850 = vadd.f32 %v2689, %v2849
      %v2851 = vpop.f32.mrf.mxu0
      %v2852 = vpop.f32.mrf.mxu0
      %v2853 = vadd.f32 %v2692, %v2852
      %v2854 = vpop.f32.mrf.mxu0
      %2855 = vmatprep.mubr.bf16.mxu0 %v1350
      %2856 = vmatmul.mubr.bf16.gmra.mxu0 %v1349
      %v2857 = vpop.f32.mrf.mxu0
      %v2858 = vadd.f32 %v2697, %v2857
      %v2859 = vpop.f32.mrf.mxu0
      %v2860 = vpop.f32.mrf.mxu0
      %v2861 = vadd.f32 %v2700, %v2860
      %v2862 = vpop.f32.mrf.mxu0
      %2863 = vmatprep.mubr.bf16.mxu0 %v1363
      %2864 = vmatmul.mubr.bf16.gmra.mxu0 %v1362
      %v2865 = vpop.f32.mrf.mxu0
      %v2866 = vadd.f32 %v2705, %v2865
      %v2867 = vpop.f32.mrf.mxu0
      %v2868 = vpop.f32.mrf.mxu0
      %v2869 = vadd.f32 %v2708, %v2868
      %v2870 = vpop.f32.mrf.mxu0
      %2871 = vmatprep.mubr.bf16.mxu0 %v1376
      %2872 = vmatmul.mubr.bf16.gmra.mxu0 %v1375
      %v2873 = vpop.f32.mrf.mxu0
      %v2874 = vadd.f32 %v2713, %v2873
      %v2875 = vpop.f32.mrf.mxu0
      %v2876 = vpop.f32.mrf.mxu0
      %v2877 = vadd.f32 %v2716, %v2876
      %v2878 = vpop.f32.mrf.mxu0
      %2879 = vmatprep.mubr.bf16.mxu0 %v1389
      %2880 = vmatmul.mubr.bf16.gmra.mxu0 %v1388
      %v2881 = vpop.f32.mrf.mxu0
      %v2882 = vadd.f32 %v2721, %v2881
      %v2883 = vpop.f32.mrf.mxu0
      %v2884 = vpop.f32.mrf.mxu0
      %v2885 = vadd.f32 %v2724, %v2884
      %v2886 = vpop.f32.mrf.mxu0
      %2887 = vmatprep.mubr.bf16.mxu0 %v1402
      %2888 = vmatmul.mubr.bf16.gmra.mxu0 %v1401
      %v2889 = vpop.f32.mrf.mxu0
      %v2890 = vadd.f32 %v2729, %v2889
      %v2891 = vpop.f32.mrf.mxu0
      %v2892 = vpop.f32.mrf.mxu0
      %v2893 = vadd.f32 %v2732, %v2892
      %v2894 = vpop.f32.mrf.mxu0
      %2895 = vmatprep.mubr.bf16.mxu0 %v1415
      %2896 = vmatmul.mubr.bf16.gmra.mxu0 %v1414
      %v2897 = vpop.f32.mrf.mxu0
      %v2898 = vadd.f32 %v2737, %v2897
      %v2899 = vpop.f32.mrf.mxu0
      %v2900 = vpop.f32.mrf.mxu0
      %v2901 = vadd.f32 %v2740, %v2900
      %v2902 = vpop.f32.mrf.mxu0
      %2903 = vmatprep.mubr.bf16.mxu0 %v1428
      %2904 = vmatmul.mubr.bf16.gmra.mxu0 %v1427
      %v2905 = vpop.f32.mrf.mxu0
      %v2906 = vadd.f32 %v2745, %v2905
      %v2907 = vpop.f32.mrf.mxu0
      %v2908 = vpop.f32.mrf.mxu0
      %v2909 = vadd.f32 %v2748, %v2908
      %v2910 = vpop.f32.mrf.mxu0
      %2911 = vmatprep.mubr.bf16.mxu0 %v1441
      %2912 = vmatmul.mubr.bf16.gmra.mxu0 %v1440
      %v2913 = vpop.f32.mrf.mxu0
      %v2914 = vadd.f32 %v2753, %v2913
      %v2915 = vpop.f32.mrf.mxu0
      %v2916 = vpop.f32.mrf.mxu0
      %v2917 = vadd.f32 %v2756, %v2916
      %v2918 = vpop.f32.mrf.mxu0
      %2919 = vdwg.mxu0
      %2920 = vmatprep.subr.bf16.mxu0 0
      %2921 = vmatpush1.bf16.msra.mxu0 %v2102
      %2922 = vmatprep.subr.bf16.mxu0 0
      %2923 = vmatpush1.bf16.msra.mxu0 %v2101
      %2924 = vmatprep.subr.bf16.mxu0 0
      %2925 = vmatpush1.bf16.msra.mxu0 %v2100
      %2926 = vmatprep.subr.bf16.mxu0 0
      %2927 = vmatpush1.bf16.msra.mxu0 %v2099
      %2928 = vmatprep.subr.bf16.mxu0 0
      %2929 = vmatpush1.bf16.msra.mxu0 %v2098
      %2930 = vmatprep.subr.bf16.mxu0 0
      %2931 = vmatpush1.bf16.msra.mxu0 %v2097
      %2932 = vmatprep.subr.bf16.mxu0 0
      %2933 = vmatpush1.bf16.msra.mxu0 %v2096
      %2934 = vmatprep.subr.bf16.mxu0 0
      %2935 = vmatpush1.bf16.msra.mxu0 %v2095
      %2936 = vmatprep.subr.bf16.mxu0 0
      %2937 = vmatpush2.bf16.msra.mxu0 %v2110
      %2938 = vmatprep.subr.bf16.mxu0 0
      %2939 = vmatpush2.bf16.msra.mxu0 %v2109
      %2940 = vmatprep.subr.bf16.mxu0 0
      %2941 = vmatpush2.bf16.msra.mxu0 %v2108
      %2942 = vmatprep.subr.bf16.mxu0 0
      %2943 = vmatpush2.bf16.msra.mxu0 %v2107
      %2944 = vmatprep.subr.bf16.mxu0 0
      %2945 = vmatpush2.bf16.msra.mxu0 %v2106
      %2946 = vmatprep.subr.bf16.mxu0 0
      %2947 = vmatpush2.bf16.msra.mxu0 %v2105
      %2948 = vmatprep.subr.bf16.mxu0 0
      %2949 = vmatpush2.bf16.msra.mxu0 %v2104
      %2950 = vmatprep.subr.bf16.mxu0 0
      %2951 = vmatpush2.bf16.msra.mxu0 %v2103
      %2952 = vmatprep.mubr.bf16.mxu0 %v1248
      %2953 = vmatmul.mubr.bf16.gmra.mxu0 %v1247
      %v2954 = vpop.f32.mrf.mxu0
      %v2955 = vadd.f32 %v2794, %v2954
      %v2956 = vpop.f32.mrf.mxu0
      %v2957 = vpop.f32.mrf.mxu0
      %v2958 = vadd.f32 %v2797, %v2957
      %v2959 = vpop.f32.mrf.mxu0
      %2960 = vmatprep.mubr.bf16.mxu0 %v1261
      %2961 = vmatmul.mubr.bf16.gmra.mxu0 %v1260
      %v2962 = vpop.f32.mrf.mxu0
      %v2963 = vadd.f32 %v2802, %v2962
      %v2964 = vpop.f32.mrf.mxu0
      %v2965 = vpop.f32.mrf.mxu0
      %v2966 = vadd.f32 %v2805, %v2965
      %v2967 = vpop.f32.mrf.mxu0
      %2968 = vmatprep.mubr.bf16.mxu0 %v1274
      %2969 = vmatmul.mubr.bf16.gmra.mxu0 %v1273
      %v2970 = vpop.f32.mrf.mxu0
      %v2971 = vadd.f32 %v2810, %v2970
      %v2972 = vpop.f32.mrf.mxu0
      %v2973 = vpop.f32.mrf.mxu0
      %v2974 = vadd.f32 %v2813, %v2973
      %v2975 = vpop.f32.mrf.mxu0
      %2976 = vmatprep.mubr.bf16.mxu0 %v1287
      %2977 = vmatmul.mubr.bf16.gmra.mxu0 %v1286
      %v2978 = vpop.f32.mrf.mxu0
      %v2979 = vadd.f32 %v2818, %v2978
      %v2980 = vpop.f32.mrf.mxu0
      %v2981 = vpop.f32.mrf.mxu0
      %v2982 = vadd.f32 %v2821, %v2981
      %v2983 = vpop.f32.mrf.mxu0
      %2984 = vmatprep.mubr.bf16.mxu0 %v1300
      %2985 = vmatmul.mubr.bf16.gmra.mxu0 %v1299
      %v2986 = vpop.f32.mrf.mxu0
      %v2987 = vadd.f32 %v2826, %v2986
      %v2988 = vpop.f32.mrf.mxu0
      %v2989 = vpop.f32.mrf.mxu0
      %v2990 = vadd.f32 %v2829, %v2989
      %v2991 = vpop.f32.mrf.mxu0
      %2992 = vmatprep.mubr.bf16.mxu0 %v1313
      %2993 = vmatmul.mubr.bf16.gmra.mxu0 %v1312
      %v2994 = vpop.f32.mrf.mxu0
      %v2995 = vadd.f32 %v2834, %v2994
      %v2996 = vpop.f32.mrf.mxu0
      %v2997 = vpop.f32.mrf.mxu0
      %v2998 = vadd.f32 %v2837, %v2997
      %v2999 = vpop.f32.mrf.mxu0
      %3000 = vmatprep.mubr.bf16.mxu0 %v1326
      %3001 = vmatmul.mubr.bf16.gmra.mxu0 %v1325
      %v3002 = vpop.f32.mrf.mxu0
      %v3003 = vadd.f32 %v2842, %v3002
      %v3004 = vpop.f32.mrf.mxu0
      %v3005 = vpop.f32.mrf.mxu0
      %v3006 = vadd.f32 %v2845, %v3005
      %v3007 = vpop.f32.mrf.mxu0
      %3008 = vmatprep.mubr.bf16.mxu0 %v1339
      %3009 = vmatmul.mubr.bf16.gmra.mxu0 %v1338
      %v3010 = vpop.f32.mrf.mxu0
      %v3011 = vadd.f32 %v2850, %v3010
      %v3012 = vpop.f32.mrf.mxu0
      %v3013 = vpop.f32.mrf.mxu0
      %v3014 = vadd.f32 %v2853, %v3013
      %v3015 = vpop.f32.mrf.mxu0
      %3016 = vmatprep.mubr.bf16.mxu0 %v1352
      %3017 = vmatmul.mubr.bf16.gmra.mxu0 %v1351
      %v3018 = vpop.f32.mrf.mxu0
      %v3019 = vadd.f32 %v2858, %v3018
      %v3020 = vpop.f32.mrf.mxu0
      %v3021 = vpop.f32.mrf.mxu0
      %v3022 = vadd.f32 %v2861, %v3021
      %v3023 = vpop.f32.mrf.mxu0
      %3024 = vmatprep.mubr.bf16.mxu0 %v1365
      %3025 = vmatmul.mubr.bf16.gmra.mxu0 %v1364
      %v3026 = vpop.f32.mrf.mxu0
      %v3027 = vadd.f32 %v2866, %v3026
      %v3028 = vpop.f32.mrf.mxu0
      %v3029 = vpop.f32.mrf.mxu0
      %v3030 = vadd.f32 %v2869, %v3029
      %v3031 = vpop.f32.mrf.mxu0
      %3032 = vmatprep.mubr.bf16.mxu0 %v1378
      %3033 = vmatmul.mubr.bf16.gmra.mxu0 %v1377
      %v3034 = vpop.f32.mrf.mxu0
      %v3035 = vadd.f32 %v2874, %v3034
      %v3036 = vpop.f32.mrf.mxu0
      %v3037 = vpop.f32.mrf.mxu0
      %v3038 = vadd.f32 %v2877, %v3037
      %v3039 = vpop.f32.mrf.mxu0
      %3040 = vmatprep.mubr.bf16.mxu0 %v1391
      %3041 = vmatmul.mubr.bf16.gmra.mxu0 %v1390
      %v3042 = vpop.f32.mrf.mxu0
      %v3043 = vadd.f32 %v2882, %v3042
      %v3044 = vpop.f32.mrf.mxu0
      %v3045 = vpop.f32.mrf.mxu0
      %v3046 = vadd.f32 %v2885, %v3045
      %v3047 = vpop.f32.mrf.mxu0
      %3048 = vmatprep.mubr.bf16.mxu0 %v1404
      %3049 = vmatmul.mubr.bf16.gmra.mxu0 %v1403
      %v3050 = vpop.f32.mrf.mxu0
      %v3051 = vadd.f32 %v2890, %v3050
      %v3052 = vpop.f32.mrf.mxu0
      %v3053 = vpop.f32.mrf.mxu0
      %v3054 = vadd.f32 %v2893, %v3053
      %v3055 = vpop.f32.mrf.mxu0
      %3056 = vmatprep.mubr.bf16.mxu0 %v1417
      %3057 = vmatmul.mubr.bf16.gmra.mxu0 %v1416
      %v3058 = vpop.f32.mrf.mxu0
      %v3059 = vadd.f32 %v2898, %v3058
      %v3060 = vpop.f32.mrf.mxu0
      %v3061 = vpop.f32.mrf.mxu0
      %v3062 = vadd.f32 %v2901, %v3061
      %v3063 = vpop.f32.mrf.mxu0
      %3064 = vmatprep.mubr.bf16.mxu0 %v1430
      %3065 = vmatmul.mubr.bf16.gmra.mxu0 %v1429
      %v3066 = vpop.f32.mrf.mxu0
      %v3067 = vadd.f32 %v2906, %v3066
      %v3068 = vpop.f32.mrf.mxu0
      %v3069 = vpop.f32.mrf.mxu0
      %v3070 = vadd.f32 %v2909, %v3069
      %v3071 = vpop.f32.mrf.mxu0
      %3072 = vmatprep.mubr.bf16.mxu0 %v1443
      %3073 = vmatmul.mubr.bf16.gmra.mxu0 %v1442
      %v3074 = vpop.f32.mrf.mxu0
      %v3075 = vadd.f32 %v2914, %v3074
      %v3076 = vpop.f32.mrf.mxu0
      %v3077 = vpop.f32.mrf.mxu0
      %v3078 = vadd.f32 %v2917, %v3077
      %v3079 = vpop.f32.mrf.mxu0
      %3080 = vdwg.mxu0
      %3081 = vmatprep.subr.bf16.mxu0 0
      %3082 = vmatpush1.bf16.msra.mxu0 %v2118
      %3083 = vmatprep.subr.bf16.mxu0 0
      %3084 = vmatpush1.bf16.msra.mxu0 %v2117
      %3085 = vmatprep.subr.bf16.mxu0 0
      %3086 = vmatpush1.bf16.msra.mxu0 %v2116
      %3087 = vmatprep.subr.bf16.mxu0 0
      %3088 = vmatpush1.bf16.msra.mxu0 %v2115
      %3089 = vmatprep.subr.bf16.mxu0 0
      %3090 = vmatpush1.bf16.msra.mxu0 %v2114
      %3091 = vmatprep.subr.bf16.mxu0 0
      %3092 = vmatpush1.bf16.msra.mxu0 %v2113
      %3093 = vmatprep.subr.bf16.mxu0 0
      %3094 = vmatpush1.bf16.msra.mxu0 %v2112
      %3095 = vmatprep.subr.bf16.mxu0 0
      %3096 = vmatpush1.bf16.msra.mxu0 %v2111
      %3097 = vmatprep.subr.bf16.mxu0 0
      %3098 = vmatpush2.bf16.msra.mxu0 %v2126
      %3099 = vmatprep.subr.bf16.mxu0 0
      %3100 = vmatpush2.bf16.msra.mxu0 %v2125
      %3101 = vmatprep.subr.bf16.mxu0 0
      %3102 = vmatpush2.bf16.msra.mxu0 %v2124
      %3103 = vmatprep.subr.bf16.mxu0 0
      %3104 = vmatpush2.bf16.msra.mxu0 %v2123
      %3105 = vmatprep.subr.bf16.mxu0 0
      %3106 = vmatpush2.bf16.msra.mxu0 %v2122
      %3107 = vmatprep.subr.bf16.mxu0 0
      %3108 = vmatpush2.bf16.msra.mxu0 %v2121
      %3109 = vmatprep.subr.bf16.mxu0 0
      %3110 = vmatpush2.bf16.msra.mxu0 %v2120
      %3111 = vmatprep.subr.bf16.mxu0 0
      %3112 = vmatpush2.bf16.msra.mxu0 %v2119
      %3113 = vmatprep.mubr.bf16.mxu0 %v1250
      %3114 = vmatmul.mubr.bf16.gmra.mxu0 %v1249
      %v3115 = vpop.f32.mrf.mxu0
      %v3116 = vadd.f32 %v2955, %v3115
      %v3117 = vpop.f32.mrf.mxu0
      %v3118 = vpop.f32.mrf.mxu0
      %v3119 = vadd.f32 %v2958, %v3118
      %v3120 = vpop.f32.mrf.mxu0
      %3121 = vmatprep.mubr.bf16.mxu0 %v1263
      %3122 = vmatmul.mubr.bf16.gmra.mxu0 %v1262
      %v3123 = vpop.f32.mrf.mxu0
      %v3124 = vadd.f32 %v2963, %v3123
      %v3125 = vpop.f32.mrf.mxu0
      %v3126 = vpop.f32.mrf.mxu0
      %v3127 = vadd.f32 %v2966, %v3126
      %v3128 = vpop.f32.mrf.mxu0
      %3129 = vmatprep.mubr.bf16.mxu0 %v1276
      %3130 = vmatmul.mubr.bf16.gmra.mxu0 %v1275
      %v3131 = vpop.f32.mrf.mxu0
      %v3132 = vadd.f32 %v2971, %v3131
      %v3133 = vpop.f32.mrf.mxu0
      %v3134 = vpop.f32.mrf.mxu0
      %v3135 = vadd.f32 %v2974, %v3134
      %v3136 = vpop.f32.mrf.mxu0
      %3137 = vmatprep.mubr.bf16.mxu0 %v1289
      %3138 = vmatmul.mubr.bf16.gmra.mxu0 %v1288
      %v3139 = vpop.f32.mrf.mxu0
      %v3140 = vadd.f32 %v2979, %v3139
      %v3141 = vpop.f32.mrf.mxu0
      %v3142 = vpop.f32.mrf.mxu0
      %v3143 = vadd.f32 %v2982, %v3142
      %v3144 = vpop.f32.mrf.mxu0
      %3145 = vmatprep.mubr.bf16.mxu0 %v1302
      %3146 = vmatmul.mubr.bf16.gmra.mxu0 %v1301
      %v3147 = vpop.f32.mrf.mxu0
      %v3148 = vadd.f32 %v2987, %v3147
      %v3149 = vpop.f32.mrf.mxu0
      %v3150 = vpop.f32.mrf.mxu0
      %v3151 = vadd.f32 %v2990, %v3150
      %v3152 = vpop.f32.mrf.mxu0
      %3153 = vmatprep.mubr.bf16.mxu0 %v1315
      %3154 = vmatmul.mubr.bf16.gmra.mxu0 %v1314
      %v3155 = vpop.f32.mrf.mxu0
      %v3156 = vadd.f32 %v2995, %v3155
      %v3157 = vpop.f32.mrf.mxu0
      %v3158 = vpop.f32.mrf.mxu0
      %v3159 = vadd.f32 %v2998, %v3158
      %v3160 = vpop.f32.mrf.mxu0
      %3161 = vmatprep.mubr.bf16.mxu0 %v1328
      %3162 = vmatmul.mubr.bf16.gmra.mxu0 %v1327
      %v3163 = vpop.f32.mrf.mxu0
      %v3164 = vadd.f32 %v3003, %v3163
      %v3165 = vpop.f32.mrf.mxu0
      %v3166 = vpop.f32.mrf.mxu0
      %v3167 = vadd.f32 %v3006, %v3166
      %v3168 = vpop.f32.mrf.mxu0
      %3169 = vmatprep.mubr.bf16.mxu0 %v1341
      %3170 = vmatmul.mubr.bf16.gmra.mxu0 %v1340
      %v3171 = vpop.f32.mrf.mxu0
      %v3172 = vadd.f32 %v3011, %v3171
      %v3173 = vpop.f32.mrf.mxu0
      %v3174 = vpop.f32.mrf.mxu0
      %v3175 = vadd.f32 %v3014, %v3174
      %v3176 = vpop.f32.mrf.mxu0
      %3177 = vmatprep.mubr.bf16.mxu0 %v1354
      %3178 = vmatmul.mubr.bf16.gmra.mxu0 %v1353
      %v3179 = vpop.f32.mrf.mxu0
      %v3180 = vadd.f32 %v3019, %v3179
      %v3181 = vpop.f32.mrf.mxu0
      %v3182 = vpop.f32.mrf.mxu0
      %v3183 = vadd.f32 %v3022, %v3182
      %v3184 = vpop.f32.mrf.mxu0
      %3185 = vmatprep.mubr.bf16.mxu0 %v1367
      %3186 = vmatmul.mubr.bf16.gmra.mxu0 %v1366
      %v3187 = vpop.f32.mrf.mxu0
      %v3188 = vadd.f32 %v3027, %v3187
      %v3189 = vpop.f32.mrf.mxu0
      %v3190 = vpop.f32.mrf.mxu0
      %v3191 = vadd.f32 %v3030, %v3190
      %v3192 = vpop.f32.mrf.mxu0
      %3193 = vmatprep.mubr.bf16.mxu0 %v1380
      %3194 = vmatmul.mubr.bf16.gmra.mxu0 %v1379
      %v3195 = vpop.f32.mrf.mxu0
      %v3196 = vadd.f32 %v3035, %v3195
      %v3197 = vpop.f32.mrf.mxu0
      %v3198 = vpop.f32.mrf.mxu0
      %v3199 = vadd.f32 %v3038, %v3198
      %v3200 = vpop.f32.mrf.mxu0
      %3201 = vmatprep.mubr.bf16.mxu0 %v1393
      %3202 = vmatmul.mubr.bf16.gmra.mxu0 %v1392
      %v3203 = vpop.f32.mrf.mxu0
      %v3204 = vadd.f32 %v3043, %v3203
      %v3205 = vpop.f32.mrf.mxu0
      %v3206 = vpop.f32.mrf.mxu0
      %v3207 = vadd.f32 %v3046, %v3206
      %v3208 = vpop.f32.mrf.mxu0
      %3209 = vmatprep.mubr.bf16.mxu0 %v1406
      %3210 = vmatmul.mubr.bf16.gmra.mxu0 %v1405
      %v3211 = vpop.f32.mrf.mxu0
      %v3212 = vadd.f32 %v3051, %v3211
      %v3213 = vpop.f32.mrf.mxu0
      %v3214 = vpop.f32.mrf.mxu0
      %v3215 = vadd.f32 %v3054, %v3214
      %v3216 = vpop.f32.mrf.mxu0
      %3217 = vmatprep.mubr.bf16.mxu0 %v1419
      %3218 = vmatmul.mubr.bf16.gmra.mxu0 %v1418
      %v3219 = vpop.f32.mrf.mxu0
      %v3220 = vadd.f32 %v3059, %v3219
      %v3221 = vpop.f32.mrf.mxu0
      %v3222 = vpop.f32.mrf.mxu0
      %v3223 = vadd.f32 %v3062, %v3222
      %v3224 = vpop.f32.mrf.mxu0
      %3225 = vmatprep.mubr.bf16.mxu0 %v1432
      %3226 = vmatmul.mubr.bf16.gmra.mxu0 %v1431
      %v3227 = vpop.f32.mrf.mxu0
      %v3228 = vadd.f32 %v3067, %v3227
      %v3229 = vpop.f32.mrf.mxu0
      %v3230 = vpop.f32.mrf.mxu0
      %v3231 = vadd.f32 %v3070, %v3230
      %v3232 = vpop.f32.mrf.mxu0
      %3233 = vmatprep.mubr.bf16.mxu0 %v1445
      %3234 = vmatmul.mubr.bf16.gmra.mxu0 %v1444
      %v3235 = vpop.f32.mrf.mxu0
      %v3236 = vadd.f32 %v3075, %v3235
      %v3237 = vpop.f32.mrf.mxu0
      %v3238 = vpop.f32.mrf.mxu0
      %v3239 = vadd.f32 %v3078, %v3238
      %v3240 = vpop.f32.mrf.mxu0
      %3241 = vdwg.mxu0
      %3242 = vmatprep.subr.bf16.mxu0 0
      %3243 = vmatpush1.bf16.msra.mxu0 0
      %3244 = vmatprep.subr.bf16.mxu0 0
      %3245 = vmatpush1.bf16.msra.mxu0 0
      %3246 = vmatprep.subr.bf16.mxu0 0
      %3247 = vmatpush1.bf16.msra.mxu0 0
      %3248 = vmatprep.subr.bf16.mxu0 0
      %3249 = vmatpush1.bf16.msra.mxu0 0
      %3250 = vmatprep.subr.bf16.mxu0 0
      %3251 = vmatpush1.bf16.msra.mxu0 0
      %3252 = vmatprep.subr.bf16.mxu0 0
      %3253 = vmatpush1.bf16.msra.mxu0 0
      %3254 = vmatprep.subr.bf16.mxu0 0
      %3255 = vmatpush1.bf16.msra.mxu0 %v2128
      %3256 = vmatprep.subr.bf16.mxu0 0
      %3257 = vmatpush1.bf16.msra.mxu0 %v2127
      %3258 = vmatprep.subr.bf16.mxu0 0
      %3259 = vmatpush2.bf16.msra.mxu0 0
      %3260 = vmatprep.subr.bf16.mxu0 0
      %3261 = vmatpush2.bf16.msra.mxu0 0
      %3262 = vmatprep.subr.bf16.mxu0 0
      %3263 = vmatpush2.bf16.msra.mxu0 0
      %3264 = vmatprep.subr.bf16.mxu0 0
      %3265 = vmatpush2.bf16.msra.mxu0 0
      %3266 = vmatprep.subr.bf16.mxu0 0
      %3267 = vmatpush2.bf16.msra.mxu0 0
      %3268 = vmatprep.subr.bf16.mxu0 0
      %3269 = vmatpush2.bf16.msra.mxu0 0
      %3270 = vmatprep.subr.bf16.mxu0 0
      %3271 = vmatpush2.bf16.msra.mxu0 0
      %3272 = vmatprep.subr.bf16.mxu0 0
      %3273 = vmatpush2.bf16.msra.mxu0 0
      %3274 = vmatprep.mubr.bf16.mxu0 0
      %3275 = vmatmul.mubr.bf16.gmra.mxu0 %v2229
      %v3276 = vpop.f32.mrf.mxu0
      %v3277 = vadd.f32 %v3116, %v3276
      %v3278 = vpop.f32.mrf.mxu0
      %v3279 = vpop.f32.mrf.mxu0
      %v3280 = vadd.f32 %v3119, %v3279
      %v3281 = vpop.f32.mrf.mxu0
      %3282 = vmatprep.mubr.bf16.mxu0 0
      %3283 = vmatmul.mubr.bf16.gmra.mxu0 %v2232
      %v3284 = vpop.f32.mrf.mxu0
      %v3285 = vadd.f32 %v3124, %v3284
      %v3286 = vpop.f32.mrf.mxu0
      %v3287 = vpop.f32.mrf.mxu0
      %v3288 = vadd.f32 %v3127, %v3287
      %v3289 = vpop.f32.mrf.mxu0
      %3290 = vmatprep.mubr.bf16.mxu0 0
      %3291 = vmatmul.mubr.bf16.gmra.mxu0 %v2235
      %v3292 = vpop.f32.mrf.mxu0
      %v3293 = vadd.f32 %v3132, %v3292
      %v3294 = vpop.f32.mrf.mxu0
      %v3295 = vpop.f32.mrf.mxu0
      %v3296 = vadd.f32 %v3135, %v3295
      %v3297 = vpop.f32.mrf.mxu0
      %3298 = vmatprep.mubr.bf16.mxu0 0
      %3299 = vmatmul.mubr.bf16.gmra.mxu0 %v2238
      %v3300 = vpop.f32.mrf.mxu0
      %v3301 = vadd.f32 %v3140, %v3300
      %v3302 = vpop.f32.mrf.mxu0
      %v3303 = vpop.f32.mrf.mxu0
      %v3304 = vadd.f32 %v3143, %v3303
      %v3305 = vpop.f32.mrf.mxu0
      %3306 = vmatprep.mubr.bf16.mxu0 0
      %3307 = vmatmul.mubr.bf16.gmra.mxu0 %v2241
      %v3308 = vpop.f32.mrf.mxu0
      %v3309 = vadd.f32 %v3148, %v3308
      %v3310 = vpop.f32.mrf.mxu0
      %v3311 = vpop.f32.mrf.mxu0
      %v3312 = vadd.f32 %v3151, %v3311
      %v3313 = vpop.f32.mrf.mxu0
      %3314 = vmatprep.mubr.bf16.mxu0 0
      %3315 = vmatmul.mubr.bf16.gmra.mxu0 %v2244
      %v3316 = vpop.f32.mrf.mxu0
      %v3317 = vadd.f32 %v3156, %v3316
      %v3318 = vpop.f32.mrf.mxu0
      %v3319 = vpop.f32.mrf.mxu0
      %v3320 = vadd.f32 %v3159, %v3319
      %v3321 = vpop.f32.mrf.mxu0
      %3322 = vmatprep.mubr.bf16.mxu0 0
      %3323 = vmatmul.mubr.bf16.gmra.mxu0 %v2247
      %v3324 = vpop.f32.mrf.mxu0
      %v3325 = vadd.f32 %v3164, %v3324
      %v3326 = vpop.f32.mrf.mxu0
      %v3327 = vpop.f32.mrf.mxu0
      %v3328 = vadd.f32 %v3167, %v3327
      %v3329 = vpop.f32.mrf.mxu0
      %3330 = vmatprep.mubr.bf16.mxu0 0
      %3331 = vmatmul.mubr.bf16.gmra.mxu0 %v2250
      %v3332 = vpop.f32.mrf.mxu0
      %v3333 = vadd.f32 %v3172, %v3332
      %v3334 = vpop.f32.mrf.mxu0
      %v3335 = vpop.f32.mrf.mxu0
      %v3336 = vadd.f32 %v3175, %v3335
      %v3337 = vpop.f32.mrf.mxu0
      %3338 = vmatprep.mubr.bf16.mxu0 0
      %3339 = vmatmul.mubr.bf16.gmra.mxu0 %v2253
      %v3340 = vpop.f32.mrf.mxu0
      %v3341 = vadd.f32 %v3180, %v3340
      %v3342 = vpop.f32.mrf.mxu0
      %v3343 = vpop.f32.mrf.mxu0
      %v3344 = vadd.f32 %v3183, %v3343
      %v3345 = vpop.f32.mrf.mxu0
      %3346 = vmatprep.mubr.bf16.mxu0 0
      %3347 = vmatmul.mubr.bf16.gmra.mxu0 %v2256
      %v3348 = vpop.f32.mrf.mxu0
      %v3349 = vadd.f32 %v3188, %v3348
      %v3350 = vpop.f32.mrf.mxu0
      %v3351 = vpop.f32.mrf.mxu0
      %v3352 = vadd.f32 %v3191, %v3351
      %v3353 = vpop.f32.mrf.mxu0
      %3354 = vmatprep.mubr.bf16.mxu0 0
      %3355 = vmatmul.mubr.bf16.gmra.mxu0 %v2259
      %v3356 = vpop.f32.mrf.mxu0
      %v3357 = vadd.f32 %v3196, %v3356
      %v3358 = vpop.f32.mrf.mxu0
      %v3359 = vpop.f32.mrf.mxu0
      %v3360 = vadd.f32 %v3199, %v3359
      %v3361 = vpop.f32.mrf.mxu0
      %3362 = vmatprep.mubr.bf16.mxu0 0
      %3363 = vmatmul.mubr.bf16.gmra.mxu0 %v2262
      %v3364 = vpop.f32.mrf.mxu0
      %v3365 = vadd.f32 %v3204, %v3364
      %v3366 = vpop.f32.mrf.mxu0
      %v3367 = vpop.f32.mrf.mxu0
      %v3368 = vadd.f32 %v3207, %v3367
      %v3369 = vpop.f32.mrf.mxu0
      %3370 = vmatprep.mubr.bf16.mxu0 0
      %3371 = vmatmul.mubr.bf16.gmra.mxu0 %v2265
      %v3372 = vpop.f32.mrf.mxu0
      %v3373 = vadd.f32 %v3212, %v3372
      %v3374 = vpop.f32.mrf.mxu0
      %v3375 = vpop.f32.mrf.mxu0
      %v3376 = vadd.f32 %v3215, %v3375
      %v3377 = vpop.f32.mrf.mxu0
      %3378 = vmatprep.mubr.bf16.mxu0 0
      %3379 = vmatmul.mubr.bf16.gmra.mxu0 %v2268
      %v3380 = vpop.f32.mrf.mxu0
      %v3381 = vadd.f32 %v3220, %v3380
      %v3382 = vpop.f32.mrf.mxu0
      %v3383 = vpop.f32.mrf.mxu0
      %v3384 = vadd.f32 %v3223, %v3383
      %v3385 = vpop.f32.mrf.mxu0
      %3386 = vmatprep.mubr.bf16.mxu0 0
      %3387 = vmatmul.mubr.bf16.gmra.mxu0 %v2271
      %v3388 = vpop.f32.mrf.mxu0
      %v3389 = vadd.f32 %v3228, %v3388
      %v3390 = vpop.f32.mrf.mxu0
      %v3391 = vpop.f32.mrf.mxu0
      %v3392 = vadd.f32 %v3231, %v3391
      %v3393 = vpop.f32.mrf.mxu0
      %3394 = vmatprep.mubr.bf16.mxu0 0
      %3395 = vmatmul.mubr.bf16.gmra.mxu0 %v2274
      %v3396 = vpop.f32.mrf.mxu0
      %v3397 = vadd.f32 %v3236, %v3396
      %v3398 = vpop.f32.mrf.mxu0
      %v3399 = vpop.f32.mrf.mxu0
      %v3400 = vadd.f32 %v3239, %v3399
      %v3401 = vpop.f32.mrf.mxu0
      %3402 = vdwg.mxu0
      %v3403 = vtanh.pop %v3277
      %v3404 = vtanh.pop %v3280
      %v3405 = vtanh.pop %v3285
      %v3406 = vtanh.pop %v3288
      %v3407 = vtanh.pop %v3293
      %v3408 = vtanh.pop %v3296
      %v3409 = vtanh.pop %v3301
      %v3410 = vtanh.pop %v3304
      %v3411 = vtanh.pop %v3309
      %v3412 = vtanh.pop %v3312
      %v3413 = vtanh.pop %v3317
      %v3414 = vtanh.pop %v3320
      %v3415 = vtanh.pop %v3325
      %v3416 = vtanh.pop %v3328
      %v3417 = vtanh.pop %v3333
      %v3418 = vtanh.pop %v3336
      %v3419 = vtanh.pop %v3341
      %v3420 = vtanh.pop %v3344
      %v3421 = vtanh.pop %v3349
      %v3422 = vtanh.pop %v3352
      %v3423 = vtanh.pop %v3357
      %v3424 = vtanh.pop %v3360
      %v3425 = vtanh.pop %v3365
      %v3426 = vtanh.pop %v3368
      %v3427 = vtanh.pop %v3373
      %v3428 = vtanh.pop %v3376
      %v3429 = vtanh.pop %v3381
      %v3430 = vtanh.pop %v3384
      %v3431 = vtanh.pop %v3389
      %v3432 = vtanh.pop %v3392
      %v3433 = vtanh.pop %v3397
      %v3434 = vtanh.pop %v3400
      %vm3435 = vcmask 23552
      %3436 = vst.msk [vmem:[%s170] sm:$0xff] %vm3435, %v3403
      %3437 = vst.msk [vmem:[%s170 + $0x8] sm:$0xff] %vm3435, %v3404
      %3438 = vst.msk [vmem:[%s170 + $0x10] sm:$0xff] %vm3435, %v3405
      %3439 = vst.msk [vmem:[%s170 + $0x18] sm:$0xff] %vm3435, %v3406
      %3440 = vst.msk [vmem:[%s170 + $0x20] sm:$0xff] %vm3435, %v3407
      %3441 = vst.msk [vmem:[%s170 + $0x28] sm:$0xff] %vm3435, %v3408
      %3442 = vst.msk [vmem:[%s170 + $0x30] sm:$0xff] %vm3435, %v3409
      %3443 = vst.msk [vmem:[%s170 + $0x38] sm:$0xff] %vm3435, %v3410
      %3444 = vst.msk [vmem:[%s170 + $0x40] sm:$0xff] %vm3435, %v3411
      %3445 = vst.msk [vmem:[%s170 + $0x48] sm:$0xff] %vm3435, %v3412
      %3446 = vst.msk [vmem:[%s170 + $0x50] sm:$0xff] %vm3435, %v3413
      %3447 = vst.msk [vmem:[%s170 + $0x58] sm:$0xff] %vm3435, %v3414
      %3448 = vst.msk [vmem:[%s170 + $0x60] sm:$0xff] %vm3435, %v3415
      %3449 = vst.msk [vmem:[%s170 + $0x68] sm:$0xff] %vm3435, %v3416
      %3450 = vst.msk [vmem:[%s170 + $0x70] sm:$0xff] %vm3435, %v3417
      %3451 = vst.msk [vmem:[%s170 + $0x78] sm:$0xff] %vm3435, %v3418
      %3452 = vst.msk [vmem:[%s170 + $0x80] sm:$0xff] %vm3435, %v3419
      %3453 = vst.msk [vmem:[%s170 + $0x88] sm:$0xff] %vm3435, %v3420
      %3454 = vst.msk [vmem:[%s170 + $0x90] sm:$0xff] %vm3435, %v3421
      %3455 = vst.msk [vmem:[%s170 + $0x98] sm:$0xff] %vm3435, %v3422
      %3456 = vst.msk [vmem:[%s170 + $0xa0] sm:$0xff] %vm3435, %v3423
      %3457 = vst.msk [vmem:[%s170 + $0xa8] sm:$0xff] %vm3435, %v3424
      %3458 = vst.msk [vmem:[%s170 + $0xb0] sm:$0xff] %vm3435, %v3425
      %3459 = vst.msk [vmem:[%s170 + $0xb8] sm:$0xff] %vm3435, %v3426
      %3460 = vst.msk [vmem:[%s170 + $0xc0] sm:$0xff] %vm3435, %v3427
      %3461 = vst.msk [vmem:[%s170 + $0xc8] sm:$0xff] %vm3435, %v3428
      %3462 = vst.msk [vmem:[%s170 + $0xd0] sm:$0xff] %vm3435, %v3429
      %3463 = vst.msk [vmem:[%s170 + $0xd8] sm:$0xff] %vm3435, %v3430
      %3464 = vst.msk [vmem:[%s170 + $0xe0] sm:$0xff] %vm3435, %v3431
      %3465 = vst.msk [vmem:[%s170 + $0xe8] sm:$0xff] %vm3435, %v3432
      %3466 = vst.msk [vmem:[%s170 + $0xf0] sm:$0xff] %vm3435, %v3433
      %3467 = vst.msk [vmem:[%s170 + $0xf8] sm:$0xff] %vm3435, %v3434
      %p3468 = scmp.lt.s32.totalorder %s14, 1
      %s3469 = scalar_select %p3468, %s14, 1
      %s3470 = smul.addr %s3469, 32
      %s3471 = smul.addr %s3470, 8
      %s3472 = scalar_lea.vmem %s3, %s3471
      // Predicated region
      $region33: #{resnet_forward.23} parent=31 // pred_check
        %p3473 = pneg %p100
      $region34: #{resnet_forward.23} parent=31 // pred_check_branch
        %3475 = sbr.rel (%p3473) target = $region36
      $region35: #{resnet_forward.23} parent=31 // pred_region
        _
      $region36: #{resnet_forward.23} parent=31 // pred_fallthru
        _
    $region32: #{resnet_forward.23} parent=5 // pred_fallthru
      _
    %p3476 = scmp.le.s32.totalorder 2, %s9
    // Predicated region
    $region37: #{resnet_forward.23} parent=5 // pred_check
      %p3477 = pneg %p3476
    $region38: #{resnet_forward.23} parent=5 // pred_check_branch
      %3479 = sbr.rel (%p3477) target = $region40
    $region39: #{resnet_forward.23} parent=5 // pred_region
      %s3480 = ssub.s32 %s9, 2
      // Predicated region
      $region41: #{resnet_forward.23} parent=39 // pred_check
        %p3481 = pneg %p106
      $region42: #{resnet_forward.23} parent=39 // pred_check_branch
        %3483 = sbr.rel (%p3481) target = $region44
      $region43: #{resnet_forward.23} parent=39 // pred_region
        %p3484 = scmp.lt.s32.totalorder %s15, 1
        %s3485 = scalar_select %p3484, %s15, 1
        %s3486 = smul.addr %s3485, 32
        %s3487 = smul.addr %s3486, 8
        %s3488 = scalar_lea.vmem %s3, %s3487
      $region44: #{resnet_forward.23} parent=39 // pred_fallthru
        _
    $region40: #{resnet_forward.23} parent=5 // pred_fallthru
      _
  $region6: #{resnet_forward.23} parent=0 // loop_footer
    %s13 = sadd.s32 1, %s9
  $region7: #{resnet_forward.23} parent=0 // loop_footer_branch
    %8 = sbr.rel target = $region3
  $region8: #{resnet_forward.23} parent=0 // loop_exit
    _

</llo_original>
